<compile_context>
chip_gen: v7x
topology: tpu7x:2x2x1
jax: 0.10.0
libtpu: 0.0.40
codegen_flags: <defaults>
</compile_context>

<pallas_src>
import functools
import math

import jax
import jax.numpy as jnp
from jax.experimental import pallas as pl
from jax.experimental.pallas import tpu as pltpu

BERT_HEADS = 4      # heads of the synthetic BERT stand-in
AEN_HEADS = 8       # n_head of every AEN Attention module (per the PyTorch spec)
NEG_INF = -1e30


# ----------------------------- in-kernel math helpers -----------------------------

def _softmax_last(s):
    m = jnp.max(s, axis=-1, keepdims=True)
    e = jnp.exp(s - m)
    return e / jnp.sum(e, axis=-1, keepdims=True)


def _gelu(x):  # tanh approximation (close to erf GELU; synthetic weights anyway)
    return 0.5 * x * (1.0 + jnp.tanh(0.7978845608028654 * (x + 0.044715 * x * x * x)))


def _layer_norm(x, g, b, eps=1e-12):
    mu = jnp.mean(x, axis=-1, keepdims=True)
    var = jnp.mean(jnp.square(x - mu), axis=-1, keepdims=True)
    return (x - mu) * jax.lax.rsqrt(var + eps) * g + b


def _bf16(x):
    return x.astype(jnp.bfloat16)


def _mlp_multihead_attention(k, q, kmask, wk, bk, wq, bq, wmlp, wp, bp, n_head):
    """ABSA-PyTorch Attention(score_function='mlp'), all heads fused, eval mode.

    k: (B, Lk, Dk) f32, q: (B, Lq, Dq) f32, kmask: (B, 1, Lk) additive f32.
    wk/wq: (D, n_head*hd) bf16, wmlp: (2, hd) f32 (row 0 multiplies kx, row 1 qx),
    wp: (n_head*hd, out_dim) bf16, biases f32 row vectors.
    Returns the projected attention output (B, Lq, out_dim) f32.
    The per-head output-projection accumulate replaces the torch head-major concat.
    """
    B, Lk, Dk = k.shape
    Lq, Dq = q.shape[1], q.shape[2]
    hd = wmlp.shape[1]
    out_dim = wp.shape[1]

    kx = (jnp.dot(_bf16(k.reshape(B * Lk, Dk)), wk,
                  preferred_element_type=jnp.float32) + bk).reshape(B, Lk, n_head * hd)
    qx = (jnp.dot(_bf16(q.reshape(B * Lq, Dq)), wq,
                  preferred_element_type=jnp.float32) + bq).reshape(B, Lq, n_head * hd)

    acc = jnp.zeros((B * Lq, out_dim), jnp.float32) + bp
    for hi in range(n_head):
        kxh = kx[:, :, hi * hd:(hi + 1) * hd]                       # (B, Lk, hd)
        qxh = qx[:, :, hi * hd:(hi + 1) * hd]                       # (B, Lq, hd)
        # score[q, k] = tanh(kx[k].w0 + qx[q].w1)  -- VPU reductions, no MXU matvecs
        sk = jnp.sum(kxh * wmlp[0:1, :], axis=-1)                   # (B, Lk)
        sq = jnp.sum(qxh * wmlp[1:2, :], axis=-1, keepdims=True)    # (B, Lq, 1)
        score = jnp.tanh(sq + sk[:, None, :]) + kmask               # (B, Lq, Lk)
        p = _softmax_last(score)
        outh = jnp.einsum('bqk,bkd->bqd', _bf16(p), _bf16(kxh),
                          preferred_element_type=jnp.float32)       # (B, Lq, hd)
        acc = acc + jnp.dot(_bf16(outh.reshape(B * Lq, hd)),
                            wp[hi * hd:(hi + 1) * hd, :],
                            preferred_element_type=jnp.float32)
    return acc.reshape(B, Lq, out_dim)


# ----------------------------- Pallas kernels -----------------------------

def _bert_kernel(x_ref, mask_ref,
                 lne_g_ref, lne_b_ref, wqkv_ref, bqkv_ref, wo_ref, bo_ref,
                 ln1_g_ref, ln1_b_ref, w1_ref, b1_ref, w2_ref, b2_ref,
                 ln2_g_ref, ln2_b_ref, o_ref, *, n_head):
    """One fused synthetic-BERT encoder layer on a block of sequences."""
    x = x_ref[...]                               # (Gb, L, d) f32 (embeddings)
    Gb, L, d = x.shape
    dh = d // n_head
    scale = 1.0 / math.sqrt(dh)
    mask = mask_ref[...]                         # (Gb, 1, L) additive key mask

    h = _layer_norm(x.reshape(Gb * L, d), lne_g_ref[...], lne_b_ref[...])

    # fused QKV projection: one (Gb*L, d) @ (d, 3d) matmul
    qkv = (jnp.dot(_bf16(h), wqkv_ref[...],
                   preferred_element_type=jnp.float32) + bqkv_ref[...]).reshape(Gb, L, 3 * d)

    wo = wo_ref[...]
    attn = jnp.zeros((Gb * L, d), jnp.float32) + bo_ref[...]
    for hi in range(n_head):                     # heads = lane slices, no transposes
        qh = qkv[:, :, hi * dh:(hi + 1) * dh]
        kh = qkv[:, :, d + hi * dh:d + (hi + 1) * dh]
        vh = qkv[:, :, 2 * d + hi * dh:2 * d + (hi + 1) * dh]
        s = jnp.einsum('bqd,bkd->bqk', _bf16(qh), _bf16(kh),
                       preferred_element_type=jnp.float32) * scale + mask
        p = _softmax_last(s)
        ctx = jnp.einsum('bqk,bkd->bqd', _bf16(p), _bf16(vh),
                         preferred_element_type=jnp.float32)
        # fold the head-concat + output projection into a per-head accumulate
        attn = attn + jnp.dot(_bf16(ctx.reshape(Gb * L, dh)),
                              wo[hi * dh:(hi + 1) * dh, :],
                              preferred_element_type=jnp.float32)

    h2 = _layer_norm(h + attn, ln1_g_ref[...], ln1_b_ref[...])
    ff = _gelu(jnp.dot(_bf16(h2), w1_ref[...],
                       preferred_element_type=jnp.float32) + b1_ref[...])
    ff = jnp.dot(_bf16(ff), w2_ref[...],
                 preferred_element_type=jnp.float32) + b2_ref[...]
    out = _layer_norm(h2 + ff, ln2_g_ref[...], ln2_b_ref[...])
    o_ref[...] = out.reshape(Gb, L, d)


def _aen_ffn_kernel(k_ref, q_ref, kmask_ref, qmask_ref, len_ref,
                    wk_ref, bk_ref, wq_ref, bq_ref, wmlp_ref, wp_ref, bp_ref,
                    fw1_ref, fb1_ref, fw2_ref, fb2_ref,
                    out_ref, mean_ref, *, n_head):
    """Fused AEN Attention('mlp') + PositionwiseFeedForward + masked mean-by-length."""
    att = _mlp_multihead_attention(k_ref[...], q_ref[...], kmask_ref[...],
                                   wk_ref[...], bk_ref[...], wq_ref[...], bq_ref[...],
                                   wmlp_ref[...], wp_ref[...], bp_ref[...], n_head)
    B, Lq, H = att.shape
    x = att.reshape(B * Lq, H)
    h = jnp.maximum(jnp.dot(_bf16(x), fw1_ref[...],
                            preferred_element_type=jnp.float32) + fb1_ref[...], 0.0)
    h = jnp.dot(_bf16(h), fw2_ref[...],
                preferred_element_type=jnp.float32) + fb2_ref[...]
    h = h.reshape(B, Lq, H)
    out_ref[...] = h
    # torch: sum over the (truncated) sequence axis / true length
    mean_ref[...] = jnp.sum(h * qmask_ref[...], axis=1) / len_ref[...]


def _s1_dense_kernel(hc_ref, ht_ref, kmask_ref, qmask_ref, clen_ref, hcm_ref, htm_ref,
                     wk_ref, bk_ref, wq_ref, bq_ref, wmlp_ref, wp_ref, bp_ref,
                     dw_ref, db_ref, o_ref, *, n_head):
    """Fused attn_s1 + masked mean + final dense (concat folded into row-sliced dots)."""
    s1 = _mlp_multihead_attention(hc_ref[...], ht_ref[...], kmask_ref[...],
                                  wk_ref[...], bk_ref[...], wq_ref[...], bq_ref[...],
                                  wmlp_ref[...], wp_ref[...], bp_ref[...], n_head)
    s1_mean = jnp.sum(s1 * qmask_ref[...], axis=1) / clen_ref[...]   # divided by context_len
    H = s1.shape[-1]
    dw = dw_ref[...]
    logits = (jnp.dot(_bf16(hcm_ref[...]), dw[0:H, :], preferred_element_type=jnp.float32)
              + jnp.dot(_bf16(s1_mean), dw[H:2 * H, :], preferred_element_type=jnp.float32)
              + jnp.dot(_bf16(htm_ref[...]), dw[2 * H:3 * H, :], preferred_element_type=jnp.float32)
              + db_ref[...])
    o_ref[...] = logits


# ----------------------------- pallas_call wrappers -----------------------------

def _rep(shape):
    """Full-array block, replicated across the (rank-1) grid."""
    nd = len(shape)
    return pl.BlockSpec(tuple(shape), lambda g, _nd=nd: (0,) * _nd)


def bert_encode(p, x_emb, key_mask, *, n_head, group_block):
    """x_emb: (G, L, d) embedded inputs; key_mask: (G, 1, L) additive. One launch."""
    G, L, d = x_emb.shape
    steps = G // group_block
    weights = (p["lnE_g"], p["lnE_b"], p["wqkv"], p["bqkv"], p["wo"], p["bo"],
               p["ln1_g"], p["ln1_b"], p["w1"], p["b1"], p["w2"], p["b2"],
               p["ln2_g"], p["ln2_b"])
    grp_x = pl.BlockSpec((group_block, L, d), lambda g: (g, 0, 0))
    grp_m = pl.BlockSpec((group_block, 1, L), lambda g: (g, 0, 0))
    return pl.pallas_call(
        functools.partial(_bert_kernel, n_head=n_head),
        grid=(steps,),
        in_specs=[grp_x, grp_m] + [_rep(w.shape) for w in weights],
        out_specs=grp_x,
        out_shape=jax.ShapeDtypeStruct((G, L, d), jnp.float32),
        compiler_params=pltpu.CompilerParams(dimension_semantics=("parallel",)),
    )(x_emb, key_mask, *weights)


def aen_attn_ffn(ap, fp, k, q, key_mask, q_mask, q_len, *, n_head):
    B, Lq = q.shape[0], q.shape[1]
    H = fp["w2"].shape[1]
    operands = (k, q, key_mask, q_mask, q_len,
                ap["w_k"], ap["b_k"], ap["w_q"], ap["b_q"], ap["wmlp"],
                ap["w_p"], ap["b_p"], fp["w1"], fp["b1"], fp["w2"], fp["b2"])
    return pl.pallas_call(
        functools.partial(_aen_ffn_kernel, n_head=n_head),
        grid=(1,),
        in_specs=[_rep(op.shape) for op in operands],
        out_specs=[_rep((B, Lq, H)), _rep((B, H))],
        out_shape=[jax.ShapeDtypeStruct((B, Lq, H), jnp.float32),
                   jax.ShapeDtypeStruct((B, H), jnp.float32)],
    )(*operands)


def aen_s1_dense(ap, dense_w, dense_b, hc, ht, kmask, qmask, clen, hc_mean, ht_mean, *, n_head):
    B = hc.shape[0]
    P = dense_w.shape[1]
    operands = (hc, ht, kmask, qmask, clen, hc_mean, ht_mean,
                ap["w_k"], ap["b_k"], ap["w_q"], ap["b_q"], ap["wmlp"],
                ap["w_p"], ap["b_p"], dense_w, dense_b)
    return pl.pallas_call(
        functools.partial(_s1_dense_kernel, n_head=n_head),
        grid=(1,),
        in_specs=[_rep(op.shape) for op in operands],
        out_specs=_rep((B, P)),
        out_shape=jax.ShapeDtypeStruct((B, P), jnp.float32),
    )(*operands)


# ----------------------------- full forward (single jit, 4 launches) -----------------------------

@jax.jit
def aen_bert_forward(params, context, target):
    B, L = context.shape
    context_len = jnp.sum(context != 0, axis=-1)        # (B,) int32, on device
    target_len = jnp.sum(target != 0, axis=-1)
    Lc = jnp.max(context_len)                           # batch-max true lengths
    Lt = jnp.max(target_len)
    pos = jnp.arange(L)

    bp = params["bert"]
    # batched BERT encode of (context | target) in one launch; token gather stays in XLA
    tok = jnp.concatenate([context, target], axis=0)    # (2B, L)
    emb = (bp["word_emb"][tok] + bp["pos_emb"][None, :L, :]
           + bp["type_emb"][0][None, None, :]).astype(jnp.float32)
    grp_len = jnp.concatenate([jnp.broadcast_to(Lc, (B,)), jnp.broadcast_to(Lt, (B,))])
    bert_kmask = jnp.where(pos[None, None, :] < grp_len[:, None, None],
                           0.0, NEG_INF).astype(jnp.float32)             # (2B, 1, L)
    enc = bert_encode(bp, emb, bert_kmask, n_head=BERT_HEADS, group_block=B)
    ctx_h, tgt_h = enc[:B], enc[B:]                     # (B, L, bert_dim) each

    # masks replacing SqueezeEmbedding truncation: keys beyond Lc/Lt are killed in the
    # softmax, query rows beyond Lc/Lt are excluded from the mean-by-length sums.
    kmask_c = jnp.broadcast_to(jnp.where(pos[None, None, :] < Lc, 0.0, NEG_INF),
                               (B, 1, L)).astype(jnp.float32)
    qmask_c = jnp.broadcast_to(jnp.where(pos[None, :, None] < Lc, 1.0, 0.0),
                               (B, L, 1)).astype(jnp.float32)
    qmask_t = jnp.broadcast_to(jnp.where(pos[None, :, None] < Lt, 1.0, 0.0),
                               (B, L, 1)).astype(jnp.float32)
    clen = context_len.astype(jnp.float32)[:, None]     # (B, 1)
    tlen = target_len.astype(jnp.float32)[:, None]

    hc, hc_mean = aen_attn_ffn(params["attn_k"], params["ffn_c"], ctx_h, ctx_h,
                               kmask_c, qmask_c, clen, n_head=AEN_HEADS)
    ht, ht_mean = aen_attn_ffn(params["attn_q"], params["ffn_t"], ctx_h, tgt_h,
                               kmask_c, qmask_t, tlen, n_head=AEN_HEADS)
    logits = aen_s1_dense(params["attn_s1"], params["dense_w"], params["dense_b"],
                          hc, ht, kmask_c, qmask_t, clen, hc_mean, ht_mean,
                          n_head=AEN_HEADS)
    return logits


# ----------------------------- deterministic parameter init -----------------------------

def _init_linear(key, fan_in, fan_out):
    kw, kb = jax.random.split(key)
    bound = 1.0 / math.sqrt(fan_in)
    w = jax.random.uniform(kw, (fan_in, fan_out), jnp.float32, -bound, bound)
    b = jax.random.uniform(kb, (1, fan_out), jnp.float32, -bound, bound)
    return w.astype(jnp.bfloat16), b                    # bf16 weights, f32 bias rows


def init_attention_params(key, embed_dim, n_head, out_dim=None):
    hidden = embed_dim // n_head
    if out_dim is None:
        out_dim = embed_dim
    k1, k2, k3, k4 = jax.random.split(key, 4)
    w_k, b_k = _init_linear(k1, embed_dim, n_head * hidden)
    w_q, b_q = _init_linear(k2, embed_dim, n_head * hidden)
    w_p, b_p = _init_linear(k3, n_head * hidden, out_dim)
    stdv = 1.0 / math.sqrt(hidden)
    wmlp = jax.random.uniform(k4, (2, hidden), jnp.float32, -stdv, stdv)
    return dict(w_k=w_k, b_k=b_k, w_q=w_q, b_q=b_q, w_p=w_p, b_p=b_p, wmlp=wmlp)


def init_ffn_params(key, d_hid):
    k1, k2 = jax.random.split(key)
    w1, b1 = _init_linear(k1, d_hid, d_hid)
    w2, b2 = _init_linear(k2, d_hid, d_hid)
    return dict(w1=w1, b1=b1, w2=w2, b2=b2)


def init_bert_params(key, vocab, max_pos, d, d_ff):
    ks = jax.random.split(key, 7)
    wqkv, bqkv = _init_linear(ks[3], d, 3 * d)
    wo, bo = _init_linear(ks[4], d, d)
    w1, b1 = _init_linear(ks[5], d, d_ff)
    w2, b2 = _init_linear(ks[6], d_ff, d)
    ones = jnp.ones((1, d), jnp.float32)
    zeros = jnp.zeros((1, d), jnp.float32)
    return dict(
        word_emb=0.02 * jax.random.normal(ks[0], (vocab, d), jnp.float32),
        pos_emb=0.02 * jax.random.normal(ks[1], (max_pos, d), jnp.float32),
        type_emb=0.02 * jax.random.normal(ks[2], (2, d), jnp.float32),
        lnE_g=ones, lnE_b=zeros,
        wqkv=wqkv, bqkv=bqkv, wo=wo, bo=bo,
        ln1_g=ones, ln1_b=zeros,
        w1=w1, b1=b1, w2=w2, b2=b2,
        ln2_g=ones, ln2_b=zeros)


def init_aen_bert_params(key, vocab, max_pos, bert_dim, hidden_dim, polarities):
    ks = jax.random.split(key, 7)
    dense_w, dense_b = _init_linear(ks[6], hidden_dim * 3, polarities)
    return dict(
        bert=init_bert_params(ks[0], vocab, max_pos, bert_dim, 2 * bert_dim),
        attn_k=init_attention_params(ks[1], bert_dim, AEN_HEADS, out_dim=hidden_dim),
        attn_q=init_attention_params(ks[2], bert_dim, AEN_HEADS, out_dim=hidden_dim),
        ffn_c=init_ffn_params(ks[3], hidden_dim),
        ffn_t=init_ffn_params(ks[4], hidden_dim),
        attn_s1=init_attention_params(ks[5], hidden_dim, AEN_HEADS),
        dense_w=dense_w, dense_b=dense_b)


# ----------------------------- main -----------------------------

if __name__ == "__main__":
    B, MAX_LEN, VOCAB = 2, 16, 30
    BERT_DIM, HIDDEN_DIM, POLARITIES = 32, 16, 3

    root = jax.random.PRNGKey(0)
    kp, kc, kt = jax.random.split(root, 3)
    params = init_aen_bert_params(kp, VOCAB, MAX_LEN, BERT_DIM, HIDDEN_DIM, POLARITIES)

    # padded int token ids, 0 == pad (drives context_len / target_len and the masks)
    pos = jnp.arange(MAX_LEN)[None, :]
    ctx_lens = jnp.array([10, 7])
    tgt_lens = jnp.array([4, 3])
    context = jnp.where(pos < ctx_lens[:, None],
                        jax.random.randint(kc, (B, MAX_LEN), 1, VOCAB), 0).astype(jnp.int32)
    target = jnp.where(pos < tgt_lens[:, None],
                       jax.random.randint(kt, (B, MAX_LEN), 1, VOCAB), 0).astype(jnp.int32)

    out = aen_bert_forward(params, context, target)
    jax.block_until_ready(out)
    assert out.shape == (B, POLARITIES)
    assert bool(jnp.all(jnp.isfinite(out)))
    print("KERNEL_OK")
</pallas_src>

<mosaic_0001>
module attributes {stable_mosaic.version = 11 : i64} {
  func.func @_s1_dense_kernel(%arg0: i32, %arg1: memref<2x16x16xf32, #tpu.memory_space<vmem>>, %arg2: memref<2x16x16xf32, #tpu.memory_space<vmem>>, %arg3: memref<2x1x16xf32, #tpu.memory_space<vmem>>, %arg4: memref<2x16x1xf32, #tpu.memory_space<vmem>>, %arg5: memref<2x1xf32, #tpu.memory_space<vmem>>, %arg6: memref<2x16xf32, #tpu.memory_space<vmem>>, %arg7: memref<2x16xf32, #tpu.memory_space<vmem>>, %arg8: memref<16x16xbf16, #tpu.memory_space<vmem>>, %arg9: memref<1x16xf32, #tpu.memory_space<vmem>>, %arg10: memref<16x16xbf16, #tpu.memory_space<vmem>>, %arg11: memref<1x16xf32, #tpu.memory_space<vmem>>, %arg12: memref<2x2xf32, #tpu.memory_space<vmem>>, %arg13: memref<16x16xbf16, #tpu.memory_space<vmem>>, %arg14: memref<1x16xf32, #tpu.memory_space<vmem>>, %arg15: memref<48x3xbf16, #tpu.memory_space<vmem>>, %arg16: memref<1x3xf32, #tpu.memory_space<vmem>>, %arg17: memref<2x3xf32, #tpu.memory_space<vmem>>) attributes {dimension_semantics = [#tpu.dimension_semantics<arbitrary>], iteration_bounds = array<i64: 1>, scalar_prefetch = 0 : i64, scratch_operands = 0 : i64, tpu.core_type = #tpu.core_type<tc>, window_params = [{pipeline_mode = #tpu.pipeline_mode<synchronous>, transform_indices = @transform_0, window_bounds = array<i64: 2, 16, 16>}, {pipeline_mode = #tpu.pipeline_mode<synchronous>, transform_indices = @transform_1, window_bounds = array<i64: 2, 16, 16>}, {pipeline_mode = #tpu.pipeline_mode<synchronous>, transform_indices = @transform_2, window_bounds = array<i64: 2, 1, 16>}, {pipeline_mode = #tpu.pipeline_mode<synchronous>, transform_indices = @transform_3, window_bounds = array<i64: 2, 16, 1>}, {pipeline_mode = #tpu.pipeline_mode<synchronous>, transform_indices = @transform_4, window_bounds = array<i64: 2, 1>}, {pipeline_mode = #tpu.pipeline_mode<synchronous>, transform_indices = @transform_5, window_bounds = array<i64: 2, 16>}, {pipeline_mode = #tpu.pipeline_mode<synchronous>, transform_indices = @transform_6, window_bounds = array<i64: 2, 16>}, {pipeline_mode = #tpu.pipeline_mode<synchronous>, transform_indices = @transform_7, window_bounds = array<i64: 16, 16>}, {pipeline_mode = #tpu.pipeline_mode<synchronous>, transform_indices = @transform_8, window_bounds = array<i64: 1, 16>}, {pipeline_mode = #tpu.pipeline_mode<synchronous>, transform_indices = @transform_9, window_bounds = array<i64: 16, 16>}, {pipeline_mode = #tpu.pipeline_mode<synchronous>, transform_indices = @transform_10, window_bounds = array<i64: 1, 16>}, {pipeline_mode = #tpu.pipeline_mode<synchronous>, transform_indices = @transform_11, window_bounds = array<i64: 2, 2>}, {pipeline_mode = #tpu.pipeline_mode<synchronous>, transform_indices = @transform_12, window_bounds = array<i64: 16, 16>}, {pipeline_mode = #tpu.pipeline_mode<synchronous>, transform_indices = @transform_13, window_bounds = array<i64: 1, 16>}, {pipeline_mode = #tpu.pipeline_mode<synchronous>, transform_indices = @transform_14, window_bounds = array<i64: 48, 3>}, {pipeline_mode = #tpu.pipeline_mode<synchronous>, transform_indices = @transform_15, window_bounds = array<i64: 1, 3>}, {pipeline_mode = #tpu.pipeline_mode<synchronous>, transform_indices = @transform_16, window_bounds = array<i64: 2, 3>}]} {
    %c0 = arith.constant 0 : index
    %c0_0 = arith.constant 0 : index
    %c0_1 = arith.constant 0 : index
    %0 = vector.load %arg1[%c0, %c0_0, %c0_1] : memref<2x16x16xf32, #tpu.memory_space<vmem>>, vector<2x16x16xf32>
    %c0_2 = arith.constant 0 : index
    %c0_3 = arith.constant 0 : index
    %c0_4 = arith.constant 0 : index
    %1 = vector.load %arg2[%c0_2, %c0_3, %c0_4] : memref<2x16x16xf32, #tpu.memory_space<vmem>>, vector<2x16x16xf32>
    %c0_5 = arith.constant 0 : index
    %c0_6 = arith.constant 0 : index
    %c0_7 = arith.constant 0 : index
    %2 = vector.load %arg3[%c0_5, %c0_6, %c0_7] : memref<2x1x16xf32, #tpu.memory_space<vmem>>, vector<2x1x16xf32>
    %c0_8 = arith.constant 0 : index
    %c0_9 = arith.constant 0 : index
    %3 = vector.load %arg8[%c0_8, %c0_9] : memref<16x16xbf16, #tpu.memory_space<vmem>>, vector<16x16xbf16>
    %c0_10 = arith.constant 0 : index
    %c0_11 = arith.constant 0 : index
    %4 = vector.load %arg9[%c0_10, %c0_11] : memref<1x16xf32, #tpu.memory_space<vmem>>, vector<1x16xf32>
    %c0_12 = arith.constant 0 : index
    %c0_13 = arith.constant 0 : index
    %5 = vector.load %arg10[%c0_12, %c0_13] : memref<16x16xbf16, #tpu.memory_space<vmem>>, vector<16x16xbf16>
    %c0_14 = arith.constant 0 : index
    %c0_15 = arith.constant 0 : index
    %6 = vector.load %arg11[%c0_14, %c0_15] : memref<1x16xf32, #tpu.memory_space<vmem>>, vector<1x16xf32>
    %c0_16 = arith.constant 0 : index
    %c0_17 = arith.constant 0 : index
    %7 = vector.load %arg12[%c0_16, %c0_17] : memref<2x2xf32, #tpu.memory_space<vmem>>, vector<2x2xf32>
    %c0_18 = arith.constant 0 : index
    %c0_19 = arith.constant 0 : index
    %8 = vector.load %arg13[%c0_18, %c0_19] : memref<16x16xbf16, #tpu.memory_space<vmem>>, vector<16x16xbf16>
    %c0_20 = arith.constant 0 : index
    %c0_21 = arith.constant 0 : index
    %9 = vector.load %arg14[%c0_20, %c0_21] : memref<1x16xf32, #tpu.memory_space<vmem>>, vector<1x16xf32>
    %10 = vector.shape_cast %0 : vector<2x16x16xf32> to vector<32x16xf32>
    %11 = arith.truncf %10 : vector<32x16xf32> to vector<32x16xbf16>
    %cst = arith.constant dense<0.000000e+00> : vector<32x16xf32>
    %12 = tpu.matmul %11, %3, %cst {dimension_numbers = #tpu.dot_dimension_numbers<[1], [0], [0], [1], [0, 0, 1, 1], [], []>} : vector<32x16xbf16>, vector<16x16xbf16>, vector<32x16xf32> -> vector<32x16xf32>
    %13 = vector.broadcast %4 : vector<1x16xf32> to vector<32x16xf32>
    %14 = arith.addf %12, %13 : vector<32x16xf32>
    %15 = vector.shape_cast %14 : vector<32x16xf32> to vector<2x16x16xf32>
    %16 = vector.shape_cast %1 : vector<2x16x16xf32> to vector<32x16xf32>
    %17 = arith.truncf %16 : vector<32x16xf32> to vector<32x16xbf16>
    %cst_22 = arith.constant dense<0.000000e+00> : vector<32x16xf32>
    %18 = tpu.matmul %17, %5, %cst_22 {dimension_numbers = #tpu.dot_dimension_numbers<[1], [0], [0], [1], [0, 0, 1, 1], [], []>} : vector<32x16xbf16>, vector<16x16xbf16>, vector<32x16xf32> -> vector<32x16xf32>
    %19 = vector.broadcast %6 : vector<1x16xf32> to vector<32x16xf32>
    %20 = arith.addf %18, %19 : vector<32x16xf32>
    %21 = vector.shape_cast %20 : vector<32x16xf32> to vector<2x16x16xf32>
    %cst_23 = arith.constant 0.000000e+00 : f32
    %22 = vector.broadcast %cst_23 : f32 to vector<32x16xf32>
    %23 = vector.broadcast %9 : vector<1x16xf32> to vector<32x16xf32>
    %24 = arith.addf %22, %23 : vector<32x16xf32>
    %25 = vector.extract_strided_slice %15 {offsets = [0, 0, 0], sizes = [2, 16, 2], strides = [1, 1, 1]} : vector<2x16x16xf32> to vector<2x16x2xf32>
    %26 = vector.extract_strided_slice %21 {offsets = [0, 0, 0], sizes = [2, 16, 2], strides = [1, 1, 1]} : vector<2x16x16xf32> to vector<2x16x2xf32>
    %27 = vector.extract_strided_slice %7 {offsets = [0, 0], sizes = [1, 2], strides = [1, 1]} : vector<2x2xf32> to vector<1x2xf32>
    %28 = vector.shape_cast %27 : vector<1x2xf32> to vector<1x1x2xf32>
    %29 = vector.broadcast %28 : vector<1x1x2xf32> to vector<2x16x2xf32>
    %30 = arith.mulf %25, %29 : vector<2x16x2xf32>
    %cst_24 = arith.constant dense<0.000000e+00> : vector<2x16xf32>
    %31 = vector.multi_reduction <add>, %30, %cst_24 [2] : vector<2x16x2xf32> to vector<2x16xf32>
    %32 = vector.extract_strided_slice %7 {offsets = [1, 0], sizes = [1, 2], strides = [1, 1]} : vector<2x2xf32> to vector<1x2xf32>
    %33 = vector.shape_cast %32 : vector<1x2xf32> to vector<1x1x2xf32>
    %34 = vector.broadcast %33 : vector<1x1x2xf32> to vector<2x16x2xf32>
    %35 = arith.mulf %26, %34 : vector<2x16x2xf32>
    %cst_25 = arith.constant dense<0.000000e+00> : vector<2x16xf32>
    %36 = vector.multi_reduction <add>, %35, %cst_25 [2] : vector<2x16x2xf32> to vector<2x16xf32>
    %37 = vector.shape_cast %36 : vector<2x16xf32> to vector<2x16x1xf32>
    %38 = vector.shape_cast %31 : vector<2x16xf32> to vector<2x1x16xf32>
    %39 = vector.broadcast %37 : vector<2x16x1xf32> to vector<2x16x16xf32>
    %40 = vector.broadcast %38 : vector<2x1x16xf32> to vector<2x16x16xf32>
    %41 = arith.addf %39, %40 : vector<2x16x16xf32>
    %42 = math.tanh %41 : vector<2x16x16xf32>
    %43 = vector.broadcast %2 : vector<2x1x16xf32> to vector<2x16x16xf32>
    %44 = arith.addf %42, %43 : vector<2x16x16xf32>
    %cst_26 = arith.constant dense<0xFF800000> : vector<2x16xf32>
    %45 = vector.multi_reduction <maximumf>, %44, %cst_26 [2] : vector<2x16x16xf32> to vector<2x16xf32>
    %46 = vector.shape_cast %45 : vector<2x16xf32> to vector<2x16x1xf32>
    %47 = vector.broadcast %46 : vector<2x16x1xf32> to vector<2x16x16xf32>
    %48 = arith.subf %44, %47 : vector<2x16x16xf32>
    %49 = math.exp %48 : vector<2x16x16xf32>
    %cst_27 = arith.constant dense<0.000000e+00> : vector<2x16xf32>
    %50 = vector.multi_reduction <add>, %49, %cst_27 [2] : vector<2x16x16xf32> to vector<2x16xf32>
    %51 = vector.shape_cast %50 : vector<2x16xf32> to vector<2x16x1xf32>
    %52 = vector.broadcast %51 : vector<2x16x1xf32> to vector<2x16x16xf32>
    %53 = arith.divf %49, %52 : vector<2x16x16xf32>
    %54 = arith.truncf %53 : vector<2x16x16xf32> to vector<2x16x16xbf16>
    %55 = arith.truncf %25 : vector<2x16x2xf32> to vector<2x16x2xbf16>
    "tpu.trace_start"() <{level = 10 : i32, message = "bqk,bkd->bqd"}> : () -> ()
    %cst_28 = arith.constant dense<0.000000e+00> : vector<2x16x2xf32>
    %56 = tpu.matmul %54, %55, %cst_28 {dimension_numbers = #tpu.dot_dimension_numbers<[2], [1], [1], [2], [0, 0, 0, 1, 1, 2], [0], [0]>} : vector<2x16x16xbf16>, vector<2x16x2xbf16>, vector<2x16x2xf32> -> vector<2x16x2xf32>
    "tpu.trace_stop"() : () -> ()
    %57 = vector.shape_cast %56 : vector<2x16x2xf32> to vector<32x2xf32>
    %58 = arith.truncf %57 : vector<32x2xf32> to vector<32x2xbf16>
    %59 = vector.extract_strided_slice %8 {offsets = [0, 0], sizes = [2, 16], strides = [1, 1]} : vector<16x16xbf16> to vector<2x16xbf16>
    %cst_29 = arith.constant dense<0.000000e+00> : vector<32x16xf32>
    %60 = tpu.matmul %58, %59, %cst_29 {dimension_numbers = #tpu.dot_dimension_numbers<[1], [0], [0], [1], [0, 0, 1, 1], [], []>} : vector<32x2xbf16>, vector<2x16xbf16>, vector<32x16xf32> -> vector<32x16xf32>
    %61 = arith.addf %24, %60 : vector<32x16xf32>
    %62 = vector.extract_strided_slice %15 {offsets = [0, 0, 2], sizes = [2, 16, 2], strides = [1, 1, 1]} : vector<2x16x16xf32> to vector<2x16x2xf32>
    %63 = vector.extract_strided_slice %21 {offsets = [0, 0, 2], sizes = [2, 16, 2], strides = [1, 1, 1]} : vector<2x16x16xf32> to vector<2x16x2xf32>
    %64 = vector.extract_strided_slice %7 {offsets = [0, 0], sizes = [1, 2], strides = [1, 1]} : vector<2x2xf32> to vector<1x2xf32>
    %65 = vector.shape_cast %64 : vector<1x2xf32> to vector<1x1x2xf32>
    %66 = vector.broadcast %65 : vector<1x1x2xf32> to vector<2x16x2xf32>
    %67 = arith.mulf %62, %66 : vector<2x16x2xf32>
    %cst_30 = arith.constant dense<0.000000e+00> : vector<2x16xf32>
    %68 = vector.multi_reduction <add>, %67, %cst_30 [2] : vector<2x16x2xf32> to vector<2x16xf32>
    %69 = vector.extract_strided_slice %7 {offsets = [1, 0], sizes = [1, 2], strides = [1, 1]} : vector<2x2xf32> to vector<1x2xf32>
    %70 = vector.shape_cast %69 : vector<1x2xf32> to vector<1x1x2xf32>
    %71 = vector.broadcast %70 : vector<1x1x2xf32> to vector<2x16x2xf32>
    %72 = arith.mulf %63, %71 : vector<2x16x2xf32>
    %cst_31 = arith.constant dense<0.000000e+00> : vector<2x16xf32>
    %73 = vector.multi_reduction <add>, %72, %cst_31 [2] : vector<2x16x2xf32> to vector<2x16xf32>
    %74 = vector.shape_cast %73 : vector<2x16xf32> to vector<2x16x1xf32>
    %75 = vector.shape_cast %68 : vector<2x16xf32> to vector<2x1x16xf32>
    %76 = vector.broadcast %74 : vector<2x16x1xf32> to vector<2x16x16xf32>
    %77 = vector.broadcast %75 : vector<2x1x16xf32> to vector<2x16x16xf32>
    %78 = arith.addf %76, %77 : vector<2x16x16xf32>
    %79 = math.tanh %78 : vector<2x16x16xf32>
    %80 = vector.broadcast %2 : vector<2x1x16xf32> to vector<2x16x16xf32>
    %81 = arith.addf %79, %80 : vector<2x16x16xf32>
    %cst_32 = arith.constant dense<0xFF800000> : vector<2x16xf32>
    %82 = vector.multi_reduction <maximumf>, %81, %cst_32 [2] : vector<2x16x16xf32> to vector<2x16xf32>
    %83 = vector.shape_cast %82 : vector<2x16xf32> to vector<2x16x1xf32>
    %84 = vector.broadcast %83 : vector<2x16x1xf32> to vector<2x16x16xf32>
    %85 = arith.subf %81, %84 : vector<2x16x16xf32>
    %86 = math.exp %85 : vector<2x16x16xf32>
    %cst_33 = arith.constant dense<0.000000e+00> : vector<2x16xf32>
    %87 = vector.multi_reduction <add>, %86, %cst_33 [2] : vector<2x16x16xf32> to vector<2x16xf32>
    %88 = vector.shape_cast %87 : vector<2x16xf32> to vector<2x16x1xf32>
    %89 = vector.broadcast %88 : vector<2x16x1xf32> to vector<2x16x16xf32>
    %90 = arith.divf %86, %89 : vector<2x16x16xf32>
    %91 = arith.truncf %90 : vector<2x16x16xf32> to vector<2x16x16xbf16>
    %92 = arith.truncf %62 : vector<2x16x2xf32> to vector<2x16x2xbf16>
    "tpu.trace_start"() <{level = 10 : i32, message = "bqk,bkd->bqd"}> : () -> ()
    %cst_34 = arith.constant dense<0.000000e+00> : vector<2x16x2xf32>
    %93 = tpu.matmul %91, %92, %cst_34 {dimension_numbers = #tpu.dot_dimension_numbers<[2], [1], [1], [2], [0, 0, 0, 1, 1, 2], [0], [0]>} : vector<2x16x16xbf16>, vector<2x16x2xbf16>, vector<2x16x2xf32> -> vector<2x16x2xf32>
    "tpu.trace_stop"() : () -> ()
    %94 = vector.shape_cast %93 : vector<2x16x2xf32> to vector<32x2xf32>
    %95 = arith.truncf %94 : vector<32x2xf32> to vector<32x2xbf16>
    %96 = vector.extract_strided_slice %8 {offsets = [2, 0], sizes = [2, 16], strides = [1, 1]} : vector<16x16xbf16> to vector<2x16xbf16>
    %cst_35 = arith.constant dense<0.000000e+00> : vector<32x16xf32>
    %97 = tpu.matmul %95, %96, %cst_35 {dimension_numbers = #tpu.dot_dimension_numbers<[1], [0], [0], [1], [0, 0, 1, 1], [], []>} : vector<32x2xbf16>, vector<2x16xbf16>, vector<32x16xf32> -> vector<32x16xf32>
    %98 = arith.addf %61, %97 : vector<32x16xf32>
    %99 = vector.extract_strided_slice %15 {offsets = [0, 0, 4], sizes = [2, 16, 2], strides = [1, 1, 1]} : vector<2x16x16xf32> to vector<2x16x2xf32>
    %100 = vector.extract_strided_slice %21 {offsets = [0, 0, 4], sizes = [2, 16, 2], strides = [1, 1, 1]} : vector<2x16x16xf32> to vector<2x16x2xf32>
    %101 = vector.extract_strided_slice %7 {offsets = [0, 0], sizes = [1, 2], strides = [1, 1]} : vector<2x2xf32> to vector<1x2xf32>
    %102 = vector.shape_cast %101 : vector<1x2xf32> to vector<1x1x2xf32>
    %103 = vector.broadcast %102 : vector<1x1x2xf32> to vector<2x16x2xf32>
    %104 = arith.mulf %99, %103 : vector<2x16x2xf32>
    %cst_36 = arith.constant dense<0.000000e+00> : vector<2x16xf32>
    %105 = vector.multi_reduction <add>, %104, %cst_36 [2] : vector<2x16x2xf32> to vector<2x16xf32>
    %106 = vector.extract_strided_slice %7 {offsets = [1, 0], sizes = [1, 2], strides = [1, 1]} : vector<2x2xf32> to vector<1x2xf32>
    %107 = vector.shape_cast %106 : vector<1x2xf32> to vector<1x1x2xf32>
    %108 = vector.broadcast %107 : vector<1x1x2xf32> to vector<2x16x2xf32>
    %109 = arith.mulf %100, %108 : vector<2x16x2xf32>
    %cst_37 = arith.constant dense<0.000000e+00> : vector<2x16xf32>
    %110 = vector.multi_reduction <add>, %109, %cst_37 [2] : vector<2x16x2xf32> to vector<2x16xf32>
    %111 = vector.shape_cast %110 : vector<2x16xf32> to vector<2x16x1xf32>
    %112 = vector.shape_cast %105 : vector<2x16xf32> to vector<2x1x16xf32>
    %113 = vector.broadcast %111 : vector<2x16x1xf32> to vector<2x16x16xf32>
    %114 = vector.broadcast %112 : vector<2x1x16xf32> to vector<2x16x16xf32>
    %115 = arith.addf %113, %114 : vector<2x16x16xf32>
    %116 = math.tanh %115 : vector<2x16x16xf32>
    %117 = vector.broadcast %2 : vector<2x1x16xf32> to vector<2x16x16xf32>
    %118 = arith.addf %116, %117 : vector<2x16x16xf32>
    %cst_38 = arith.constant dense<0xFF800000> : vector<2x16xf32>
    %119 = vector.multi_reduction <maximumf>, %118, %cst_38 [2] : vector<2x16x16xf32> to vector<2x16xf32>
    %120 = vector.shape_cast %119 : vector<2x16xf32> to vector<2x16x1xf32>
    %121 = vector.broadcast %120 : vector<2x16x1xf32> to vector<2x16x16xf32>
    %122 = arith.subf %118, %121 : vector<2x16x16xf32>
    %123 = math.exp %122 : vector<2x16x16xf32>
    %cst_39 = arith.constant dense<0.000000e+00> : vector<2x16xf32>
    %124 = vector.multi_reduction <add>, %123, %cst_39 [2] : vector<2x16x16xf32> to vector<2x16xf32>
    %125 = vector.shape_cast %124 : vector<2x16xf32> to vector<2x16x1xf32>
    %126 = vector.broadcast %125 : vector<2x16x1xf32> to vector<2x16x16xf32>
    %127 = arith.divf %123, %126 : vector<2x16x16xf32>
    %128 = arith.truncf %127 : vector<2x16x16xf32> to vector<2x16x16xbf16>
    %129 = arith.truncf %99 : vector<2x16x2xf32> to vector<2x16x2xbf16>
    "tpu.trace_start"() <{level = 10 : i32, message = "bqk,bkd->bqd"}> : () -> ()
    %cst_40 = arith.constant dense<0.000000e+00> : vector<2x16x2xf32>
    %130 = tpu.matmul %128, %129, %cst_40 {dimension_numbers = #tpu.dot_dimension_numbers<[2], [1], [1], [2], [0, 0, 0, 1, 1, 2], [0], [0]>} : vector<2x16x16xbf16>, vector<2x16x2xbf16>, vector<2x16x2xf32> -> vector<2x16x2xf32>
    "tpu.trace_stop"() : () -> ()
    %131 = vector.shape_cast %130 : vector<2x16x2xf32> to vector<32x2xf32>
    %132 = arith.truncf %131 : vector<32x2xf32> to vector<32x2xbf16>
    %133 = vector.extract_strided_slice %8 {offsets = [4, 0], sizes = [2, 16], strides = [1, 1]} : vector<16x16xbf16> to vector<2x16xbf16>
    %cst_41 = arith.constant dense<0.000000e+00> : vector<32x16xf32>
    %134 = tpu.matmul %132, %133, %cst_41 {dimension_numbers = #tpu.dot_dimension_numbers<[1], [0], [0], [1], [0, 0, 1, 1], [], []>} : vector<32x2xbf16>, vector<2x16xbf16>, vector<32x16xf32> -> vector<32x16xf32>
    %135 = arith.addf %98, %134 : vector<32x16xf32>
    %136 = vector.extract_strided_slice %15 {offsets = [0, 0, 6], sizes = [2, 16, 2], strides = [1, 1, 1]} : vector<2x16x16xf32> to vector<2x16x2xf32>
    %137 = vector.extract_strided_slice %21 {offsets = [0, 0, 6], sizes = [2, 16, 2], strides = [1, 1, 1]} : vector<2x16x16xf32> to vector<2x16x2xf32>
    %138 = vector.extract_strided_slice %7 {offsets = [0, 0], sizes = [1, 2], strides = [1, 1]} : vector<2x2xf32> to vector<1x2xf32>
    %139 = vector.shape_cast %138 : vector<1x2xf32> to vector<1x1x2xf32>
    %140 = vector.broadcast %139 : vector<1x1x2xf32> to vector<2x16x2xf32>
    %141 = arith.mulf %136, %140 : vector<2x16x2xf32>
    %cst_42 = arith.constant dense<0.000000e+00> : vector<2x16xf32>
    %142 = vector.multi_reduction <add>, %141, %cst_42 [2] : vector<2x16x2xf32> to vector<2x16xf32>
    %143 = vector.extract_strided_slice %7 {offsets = [1, 0], sizes = [1, 2], strides = [1, 1]} : vector<2x2xf32> to vector<1x2xf32>
    %144 = vector.shape_cast %143 : vector<1x2xf32> to vector<1x1x2xf32>
    %145 = vector.broadcast %144 : vector<1x1x2xf32> to vector<2x16x2xf32>
    %146 = arith.mulf %137, %145 : vector<2x16x2xf32>
    %cst_43 = arith.constant dense<0.000000e+00> : vector<2x16xf32>
    %147 = vector.multi_reduction <add>, %146, %cst_43 [2] : vector<2x16x2xf32> to vector<2x16xf32>
    %148 = vector.shape_cast %147 : vector<2x16xf32> to vector<2x16x1xf32>
    %149 = vector.shape_cast %142 : vector<2x16xf32> to vector<2x1x16xf32>
    %150 = vector.broadcast %148 : vector<2x16x1xf32> to vector<2x16x16xf32>
    %151 = vector.broadcast %149 : vector<2x1x16xf32> to vector<2x16x16xf32>
    %152 = arith.addf %150, %151 : vector<2x16x16xf32>
    %153 = math.tanh %152 : vector<2x16x16xf32>
    %154 = vector.broadcast %2 : vector<2x1x16xf32> to vector<2x16x16xf32>
    %155 = arith.addf %153, %154 : vector<2x16x16xf32>
    %cst_44 = arith.constant dense<0xFF800000> : vector<2x16xf32>
    %156 = vector.multi_reduction <maximumf>, %155, %cst_44 [2] : vector<2x16x16xf32> to vector<2x16xf32>
    %157 = vector.shape_cast %156 : vector<2x16xf32> to vector<2x16x1xf32>
    %158 = vector.broadcast %157 : vector<2x16x1xf32> to vector<2x16x16xf32>
    %159 = arith.subf %155, %158 : vector<2x16x16xf32>
    %160 = math.exp %159 : vector<2x16x16xf32>
    %cst_45 = arith.constant dense<0.000000e+00> : vector<2x16xf32>
    %161 = vector.multi_reduction <add>, %160, %cst_45 [2] : vector<2x16x16xf32> to vector<2x16xf32>
    %162 = vector.shape_cast %161 : vector<2x16xf32> to vector<2x16x1xf32>
    %163 = vector.broadcast %162 : vector<2x16x1xf32> to vector<2x16x16xf32>
    %164 = arith.divf %160, %163 : vector<2x16x16xf32>
    %165 = arith.truncf %164 : vector<2x16x16xf32> to vector<2x16x16xbf16>
    %166 = arith.truncf %136 : vector<2x16x2xf32> to vector<2x16x2xbf16>
    "tpu.trace_start"() <{level = 10 : i32, message = "bqk,bkd->bqd"}> : () -> ()
    %cst_46 = arith.constant dense<0.000000e+00> : vector<2x16x2xf32>
    %167 = tpu.matmul %165, %166, %cst_46 {dimension_numbers = #tpu.dot_dimension_numbers<[2], [1], [1], [2], [0, 0, 0, 1, 1, 2], [0], [0]>} : vector<2x16x16xbf16>, vector<2x16x2xbf16>, vector<2x16x2xf32> -> vector<2x16x2xf32>
    "tpu.trace_stop"() : () -> ()
    %168 = vector.shape_cast %167 : vector<2x16x2xf32> to vector<32x2xf32>
    %169 = arith.truncf %168 : vector<32x2xf32> to vector<32x2xbf16>
    %170 = vector.extract_strided_slice %8 {offsets = [6, 0], sizes = [2, 16], strides = [1, 1]} : vector<16x16xbf16> to vector<2x16xbf16>
    %cst_47 = arith.constant dense<0.000000e+00> : vector<32x16xf32>
    %171 = tpu.matmul %169, %170, %cst_47 {dimension_numbers = #tpu.dot_dimension_numbers<[1], [0], [0], [1], [0, 0, 1, 1], [], []>} : vector<32x2xbf16>, vector<2x16xbf16>, vector<32x16xf32> -> vector<32x16xf32>
    %172 = arith.addf %135, %171 : vector<32x16xf32>
    %173 = vector.extract_strided_slice %15 {offsets = [0, 0, 8], sizes = [2, 16, 2], strides = [1, 1, 1]} : vector<2x16x16xf32> to vector<2x16x2xf32>
    %174 = vector.extract_strided_slice %21 {offsets = [0, 0, 8], sizes = [2, 16, 2], strides = [1, 1, 1]} : vector<2x16x16xf32> to vector<2x16x2xf32>
    %175 = vector.extract_strided_slice %7 {offsets = [0, 0], sizes = [1, 2], strides = [1, 1]} : vector<2x2xf32> to vector<1x2xf32>
    %176 = vector.shape_cast %175 : vector<1x2xf32> to vector<1x1x2xf32>
    %177 = vector.broadcast %176 : vector<1x1x2xf32> to vector<2x16x2xf32>
    %178 = arith.mulf %173, %177 : vector<2x16x2xf32>
    %cst_48 = arith.constant dense<0.000000e+00> : vector<2x16xf32>
    %179 = vector.multi_reduction <add>, %178, %cst_48 [2] : vector<2x16x2xf32> to vector<2x16xf32>
    %180 = vector.extract_strided_slice %7 {offsets = [1, 0], sizes = [1, 2], strides = [1, 1]} : vector<2x2xf32> to vector<1x2xf32>
    %181 = vector.shape_cast %180 : vector<1x2xf32> to vector<1x1x2xf32>
    %182 = vector.broadcast %181 : vector<1x1x2xf32> to vector<2x16x2xf32>
    %183 = arith.mulf %174, %182 : vector<2x16x2xf32>
    %cst_49 = arith.constant dense<0.000000e+00> : vector<2x16xf32>
    %184 = vector.multi_reduction <add>, %183, %cst_49 [2] : vector<2x16x2xf32> to vector<2x16xf32>
    %185 = vector.shape_cast %184 : vector<2x16xf32> to vector<2x16x1xf32>
    %186 = vector.shape_cast %179 : vector<2x16xf32> to vector<2x1x16xf32>
    %187 = vector.broadcast %185 : vector<2x16x1xf32> to vector<2x16x16xf32>
    %188 = vector.broadcast %186 : vector<2x1x16xf32> to vector<2x16x16xf32>
    %189 = arith.addf %187, %188 : vector<2x16x16xf32>
    %190 = math.tanh %189 : vector<2x16x16xf32>
    %191 = vector.broadcast %2 : vector<2x1x16xf32> to vector<2x16x16xf32>
    %192 = arith.addf %190, %191 : vector<2x16x16xf32>
    %cst_50 = arith.constant dense<0xFF800000> : vector<2x16xf32>
    %193 = vector.multi_reduction <maximumf>, %192, %cst_50 [2] : vector<2x16x16xf32> to vector<2x16xf32>
    %194 = vector.shape_cast %193 : vector<2x16xf32> to vector<2x16x1xf32>
    %195 = vector.broadcast %194 : vector<2x16x1xf32> to vector<2x16x16xf32>
    %196 = arith.subf %192, %195 : vector<2x16x16xf32>
    %197 = math.exp %196 : vector<2x16x16xf32>
    %cst_51 = arith.constant dense<0.000000e+00> : vector<2x16xf32>
    %198 = vector.multi_reduction <add>, %197, %cst_51 [2] : vector<2x16x16xf32> to vector<2x16xf32>
    %199 = vector.shape_cast %198 : vector<2x16xf32> to vector<2x16x1xf32>
    %200 = vector.broadcast %199 : vector<2x16x1xf32> to vector<2x16x16xf32>
    %201 = arith.divf %197, %200 : vector<2x16x16xf32>
    %202 = arith.truncf %201 : vector<2x16x16xf32> to vector<2x16x16xbf16>
    %203 = arith.truncf %173 : vector<2x16x2xf32> to vector<2x16x2xbf16>
    "tpu.trace_start"() <{level = 10 : i32, message = "bqk,bkd->bqd"}> : () -> ()
    %cst_52 = arith.constant dense<0.000000e+00> : vector<2x16x2xf32>
    %204 = tpu.matmul %202, %203, %cst_52 {dimension_numbers = #tpu.dot_dimension_numbers<[2], [1], [1], [2], [0, 0, 0, 1, 1, 2], [0], [0]>} : vector<2x16x16xbf16>, vector<2x16x2xbf16>, vector<2x16x2xf32> -> vector<2x16x2xf32>
    "tpu.trace_stop"() : () -> ()
    %205 = vector.shape_cast %204 : vector<2x16x2xf32> to vector<32x2xf32>
    %206 = arith.truncf %205 : vector<32x2xf32> to vector<32x2xbf16>
    %207 = vector.extract_strided_slice %8 {offsets = [8, 0], sizes = [2, 16], strides = [1, 1]} : vector<16x16xbf16> to vector<2x16xbf16>
    %cst_53 = arith.constant dense<0.000000e+00> : vector<32x16xf32>
    %208 = tpu.matmul %206, %207, %cst_53 {dimension_numbers = #tpu.dot_dimension_numbers<[1], [0], [0], [1], [0, 0, 1, 1], [], []>} : vector<32x2xbf16>, vector<2x16xbf16>, vector<32x16xf32> -> vector<32x16xf32>
    %209 = arith.addf %172, %208 : vector<32x16xf32>
    %210 = vector.extract_strided_slice %15 {offsets = [0, 0, 10], sizes = [2, 16, 2], strides = [1, 1, 1]} : vector<2x16x16xf32> to vector<2x16x2xf32>
    %211 = vector.extract_strided_slice %21 {offsets = [0, 0, 10], sizes = [2, 16, 2], strides = [1, 1, 1]} : vector<2x16x16xf32> to vector<2x16x2xf32>
    %212 = vector.extract_strided_slice %7 {offsets = [0, 0], sizes = [1, 2], strides = [1, 1]} : vector<2x2xf32> to vector<1x2xf32>
    %213 = vector.shape_cast %212 : vector<1x2xf32> to vector<1x1x2xf32>
    %214 = vector.broadcast %213 : vector<1x1x2xf32> to vector<2x16x2xf32>
    %215 = arith.mulf %210, %214 : vector<2x16x2xf32>
    %cst_54 = arith.constant dense<0.000000e+00> : vector<2x16xf32>
    %216 = vector.multi_reduction <add>, %215, %cst_54 [2] : vector<2x16x2xf32> to vector<2x16xf32>
    %217 = vector.extract_strided_slice %7 {offsets = [1, 0], sizes = [1, 2], strides = [1, 1]} : vector<2x2xf32> to vector<1x2xf32>
    %218 = vector.shape_cast %217 : vector<1x2xf32> to vector<1x1x2xf32>
    %219 = vector.broadcast %218 : vector<1x1x2xf32> to vector<2x16x2xf32>
    %220 = arith.mulf %211, %219 : vector<2x16x2xf32>
    %cst_55 = arith.constant dense<0.000000e+00> : vector<2x16xf32>
    %221 = vector.multi_reduction <add>, %220, %cst_55 [2] : vector<2x16x2xf32> to vector<2x16xf32>
    %222 = vector.shape_cast %221 : vector<2x16xf32> to vector<2x16x1xf32>
    %223 = vector.shape_cast %216 : vector<2x16xf32> to vector<2x1x16xf32>
    %224 = vector.broadcast %222 : vector<2x16x1xf32> to vector<2x16x16xf32>
    %225 = vector.broadcast %223 : vector<2x1x16xf32> to vector<2x16x16xf32>
    %226 = arith.addf %224, %225 : vector<2x16x16xf32>
    %227 = math.tanh %226 : vector<2x16x16xf32>
    %228 = vector.broadcast %2 : vector<2x1x16xf32> to vector<2x16x16xf32>
    %229 = arith.addf %227, %228 : vector<2x16x16xf32>
    %cst_56 = arith.constant dense<0xFF800000> : vector<2x16xf32>
    %230 = vector.multi_reduction <maximumf>, %229, %cst_56 [2] : vector<2x16x16xf32> to vector<2x16xf32>
    %231 = vector.shape_cast %230 : vector<2x16xf32> to vector<2x16x1xf32>
    %232 = vector.broadcast %231 : vector<2x16x1xf32> to vector<2x16x16xf32>
    %233 = arith.subf %229, %232 : vector<2x16x16xf32>
    %234 = math.exp %233 : vector<2x16x16xf32>
    %cst_57 = arith.constant dense<0.000000e+00> : vector<2x16xf32>
    %235 = vector.multi_reduction <add>, %234, %cst_57 [2] : vector<2x16x16xf32> to vector<2x16xf32>
    %236 = vector.shape_cast %235 : vector<2x16xf32> to vector<2x16x1xf32>
    %237 = vector.broadcast %236 : vector<2x16x1xf32> to vector<2x16x16xf32>
    %238 = arith.divf %234, %237 : vector<2x16x16xf32>
    %239 = arith.truncf %238 : vector<2x16x16xf32> to vector<2x16x16xbf16>
    %240 = arith.truncf %210 : vector<2x16x2xf32> to vector<2x16x2xbf16>
    "tpu.trace_start"() <{level = 10 : i32, message = "bqk,bkd->bqd"}> : () -> ()
    %cst_58 = arith.constant dense<0.000000e+00> : vector<2x16x2xf32>
    %241 = tpu.matmul %239, %240, %cst_58 {dimension_numbers = #tpu.dot_dimension_numbers<[2], [1], [1], [2], [0, 0, 0, 1, 1, 2], [0], [0]>} : vector<2x16x16xbf16>, vector<2x16x2xbf16>, vector<2x16x2xf32> -> vector<2x16x2xf32>
    "tpu.trace_stop"() : () -> ()
    %242 = vector.shape_cast %241 : vector<2x16x2xf32> to vector<32x2xf32>
    %243 = arith.truncf %242 : vector<32x2xf32> to vector<32x2xbf16>
    %244 = vector.extract_strided_slice %8 {offsets = [10, 0], sizes = [2, 16], strides = [1, 1]} : vector<16x16xbf16> to vector<2x16xbf16>
    %cst_59 = arith.constant dense<0.000000e+00> : vector<32x16xf32>
    %245 = tpu.matmul %243, %244, %cst_59 {dimension_numbers = #tpu.dot_dimension_numbers<[1], [0], [0], [1], [0, 0, 1, 1], [], []>} : vector<32x2xbf16>, vector<2x16xbf16>, vector<32x16xf32> -> vector<32x16xf32>
    %246 = arith.addf %209, %245 : vector<32x16xf32>
    %247 = vector.extract_strided_slice %15 {offsets = [0, 0, 12], sizes = [2, 16, 2], strides = [1, 1, 1]} : vector<2x16x16xf32> to vector<2x16x2xf32>
    %248 = vector.extract_strided_slice %21 {offsets = [0, 0, 12], sizes = [2, 16, 2], strides = [1, 1, 1]} : vector<2x16x16xf32> to vector<2x16x2xf32>
    %249 = vector.extract_strided_slice %7 {offsets = [0, 0], sizes = [1, 2], strides = [1, 1]} : vector<2x2xf32> to vector<1x2xf32>
    %250 = vector.shape_cast %249 : vector<1x2xf32> to vector<1x1x2xf32>
    %251 = vector.broadcast %250 : vector<1x1x2xf32> to vector<2x16x2xf32>
    %252 = arith.mulf %247, %251 : vector<2x16x2xf32>
    %cst_60 = arith.constant dense<0.000000e+00> : vector<2x16xf32>
    %253 = vector.multi_reduction <add>, %252, %cst_60 [2] : vector<2x16x2xf32> to vector<2x16xf32>
    %254 = vector.extract_strided_slice %7 {offsets = [1, 0], sizes = [1, 2], strides = [1, 1]} : vector<2x2xf32> to vector<1x2xf32>
    %255 = vector.shape_cast %254 : vector<1x2xf32> to vector<1x1x2xf32>
    %256 = vector.broadcast %255 : vector<1x1x2xf32> to vector<2x16x2xf32>
    %257 = arith.mulf %248, %256 : vector<2x16x2xf32>
    %cst_61 = arith.constant dense<0.000000e+00> : vector<2x16xf32>
    %258 = vector.multi_reduction <add>, %257, %cst_61 [2] : vector<2x16x2xf32> to vector<2x16xf32>
    %259 = vector.shape_cast %258 : vector<2x16xf32> to vector<2x16x1xf32>
    %260 = vector.shape_cast %253 : vector<2x16xf32> to vector<2x1x16xf32>
    %261 = vector.broadcast %259 : vector<2x16x1xf32> to vector<2x16x16xf32>
    %262 = vector.broadcast %260 : vector<2x1x16xf32> to vector<2x16x16xf32>
    %263 = arith.addf %261, %262 : vector<2x16x16xf32>
    %264 = math.tanh %263 : vector<2x16x16xf32>
    %265 = vector.broadcast %2 : vector<2x1x16xf32> to vector<2x16x16xf32>
    %266 = arith.addf %264, %265 : vector<2x16x16xf32>
    %cst_62 = arith.constant dense<0xFF800000> : vector<2x16xf32>
    %267 = vector.multi_reduction <maximumf>, %266, %cst_62 [2] : vector<2x16x16xf32> to vector<2x16xf32>
    %268 = vector.shape_cast %267 : vector<2x16xf32> to vector<2x16x1xf32>
    %269 = vector.broadcast %268 : vector<2x16x1xf32> to vector<2x16x16xf32>
    %270 = arith.subf %266, %269 : vector<2x16x16xf32>
    %271 = math.exp %270 : vector<2x16x16xf32>
    %cst_63 = arith.constant dense<0.000000e+00> : vector<2x16xf32>
    %272 = vector.multi_reduction <add>, %271, %cst_63 [2] : vector<2x16x16xf32> to vector<2x16xf32>
    %273 = vector.shape_cast %272 : vector<2x16xf32> to vector<2x16x1xf32>
    %274 = vector.broadcast %273 : vector<2x16x1xf32> to vector<2x16x16xf32>
    %275 = arith.divf %271, %274 : vector<2x16x16xf32>
    %276 = arith.truncf %275 : vector<2x16x16xf32> to vector<2x16x16xbf16>
    %277 = arith.truncf %247 : vector<2x16x2xf32> to vector<2x16x2xbf16>
    "tpu.trace_start"() <{level = 10 : i32, message = "bqk,bkd->bqd"}> : () -> ()
    %cst_64 = arith.constant dense<0.000000e+00> : vector<2x16x2xf32>
    %278 = tpu.matmul %276, %277, %cst_64 {dimension_numbers = #tpu.dot_dimension_numbers<[2], [1], [1], [2], [0, 0, 0, 1, 1, 2], [0], [0]>} : vector<2x16x16xbf16>, vector<2x16x2xbf16>, vector<2x16x2xf32> -> vector<2x16x2xf32>
    "tpu.trace_stop"() : () -> ()
    %279 = vector.shape_cast %278 : vector<2x16x2xf32> to vector<32x2xf32>
    %280 = arith.truncf %279 : vector<32x2xf32> to vector<32x2xbf16>
    %281 = vector.extract_strided_slice %8 {offsets = [12, 0], sizes = [2, 16], strides = [1, 1]} : vector<16x16xbf16> to vector<2x16xbf16>
    %cst_65 = arith.constant dense<0.000000e+00> : vector<32x16xf32>
    %282 = tpu.matmul %280, %281, %cst_65 {dimension_numbers = #tpu.dot_dimension_numbers<[1], [0], [0], [1], [0, 0, 1, 1], [], []>} : vector<32x2xbf16>, vector<2x16xbf16>, vector<32x16xf32> -> vector<32x16xf32>
    %283 = arith.addf %246, %282 : vector<32x16xf32>
    %284 = vector.extract_strided_slice %15 {offsets = [0, 0, 14], sizes = [2, 16, 2], strides = [1, 1, 1]} : vector<2x16x16xf32> to vector<2x16x2xf32>
    %285 = vector.extract_strided_slice %21 {offsets = [0, 0, 14], sizes = [2, 16, 2], strides = [1, 1, 1]} : vector<2x16x16xf32> to vector<2x16x2xf32>
    %286 = vector.extract_strided_slice %7 {offsets = [0, 0], sizes = [1, 2], strides = [1, 1]} : vector<2x2xf32> to vector<1x2xf32>
    %287 = vector.shape_cast %286 : vector<1x2xf32> to vector<1x1x2xf32>
    %288 = vector.broadcast %287 : vector<1x1x2xf32> to vector<2x16x2xf32>
    %289 = arith.mulf %284, %288 : vector<2x16x2xf32>
    %cst_66 = arith.constant dense<0.000000e+00> : vector<2x16xf32>
    %290 = vector.multi_reduction <add>, %289, %cst_66 [2] : vector<2x16x2xf32> to vector<2x16xf32>
    %291 = vector.extract_strided_slice %7 {offsets = [1, 0], sizes = [1, 2], strides = [1, 1]} : vector<2x2xf32> to vector<1x2xf32>
    %292 = vector.shape_cast %291 : vector<1x2xf32> to vector<1x1x2xf32>
    %293 = vector.broadcast %292 : vector<1x1x2xf32> to vector<2x16x2xf32>
    %294 = arith.mulf %285, %293 : vector<2x16x2xf32>
    %cst_67 = arith.constant dense<0.000000e+00> : vector<2x16xf32>
    %295 = vector.multi_reduction <add>, %294, %cst_67 [2] : vector<2x16x2xf32> to vector<2x16xf32>
    %296 = vector.shape_cast %295 : vector<2x16xf32> to vector<2x16x1xf32>
    %297 = vector.shape_cast %290 : vector<2x16xf32> to vector<2x1x16xf32>
    %298 = vector.broadcast %296 : vector<2x16x1xf32> to vector<2x16x16xf32>
    %299 = vector.broadcast %297 : vector<2x1x16xf32> to vector<2x16x16xf32>
    %300 = arith.addf %298, %299 : vector<2x16x16xf32>
    %301 = math.tanh %300 : vector<2x16x16xf32>
    %302 = vector.broadcast %2 : vector<2x1x16xf32> to vector<2x16x16xf32>
    %303 = arith.addf %301, %302 : vector<2x16x16xf32>
    %cst_68 = arith.constant dense<0xFF800000> : vector<2x16xf32>
    %304 = vector.multi_reduction <maximumf>, %303, %cst_68 [2] : vector<2x16x16xf32> to vector<2x16xf32>
    %305 = vector.shape_cast %304 : vector<2x16xf32> to vector<2x16x1xf32>
    %306 = vector.broadcast %305 : vector<2x16x1xf32> to vector<2x16x16xf32>
    %307 = arith.subf %303, %306 : vector<2x16x16xf32>
    %308 = math.exp %307 : vector<2x16x16xf32>
    %cst_69 = arith.constant dense<0.000000e+00> : vector<2x16xf32>
    %309 = vector.multi_reduction <add>, %308, %cst_69 [2] : vector<2x16x16xf32> to vector<2x16xf32>
    %310 = vector.shape_cast %309 : vector<2x16xf32> to vector<2x16x1xf32>
    %311 = vector.broadcast %310 : vector<2x16x1xf32> to vector<2x16x16xf32>
    %312 = arith.divf %308, %311 : vector<2x16x16xf32>
    %313 = arith.truncf %312 : vector<2x16x16xf32> to vector<2x16x16xbf16>
    %314 = arith.truncf %284 : vector<2x16x2xf32> to vector<2x16x2xbf16>
    "tpu.trace_start"() <{level = 10 : i32, message = "bqk,bkd->bqd"}> : () -> ()
    %cst_70 = arith.constant dense<0.000000e+00> : vector<2x16x2xf32>
    %315 = tpu.matmul %313, %314, %cst_70 {dimension_numbers = #tpu.dot_dimension_numbers<[2], [1], [1], [2], [0, 0, 0, 1, 1, 2], [0], [0]>} : vector<2x16x16xbf16>, vector<2x16x2xbf16>, vector<2x16x2xf32> -> vector<2x16x2xf32>
    "tpu.trace_stop"() : () -> ()
    %316 = vector.shape_cast %315 : vector<2x16x2xf32> to vector<32x2xf32>
    %317 = arith.truncf %316 : vector<32x2xf32> to vector<32x2xbf16>
    %318 = vector.extract_strided_slice %8 {offsets = [14, 0], sizes = [2, 16], strides = [1, 1]} : vector<16x16xbf16> to vector<2x16xbf16>
    %cst_71 = arith.constant dense<0.000000e+00> : vector<32x16xf32>
    %319 = tpu.matmul %317, %318, %cst_71 {dimension_numbers = #tpu.dot_dimension_numbers<[1], [0], [0], [1], [0, 0, 1, 1], [], []>} : vector<32x2xbf16>, vector<2x16xbf16>, vector<32x16xf32> -> vector<32x16xf32>
    %320 = arith.addf %283, %319 : vector<32x16xf32>
    %321 = vector.shape_cast %320 : vector<32x16xf32> to vector<2x16x16xf32>
    %c0_72 = arith.constant 0 : index
    %c0_73 = arith.constant 0 : index
    %c0_74 = arith.constant 0 : index
    %322 = vector.load %arg4[%c0_72, %c0_73, %c0_74] : memref<2x16x1xf32, #tpu.memory_space<vmem>>, vector<2x16x1xf32>
    %323 = vector.broadcast %322 : vector<2x16x1xf32> to vector<2x16x16xf32>
    %324 = arith.mulf %321, %323 : vector<2x16x16xf32>
    %cst_75 = arith.constant dense<0.000000e+00> : vector<2x16xf32>
    %325 = vector.multi_reduction <add>, %324, %cst_75 [1] : vector<2x16x16xf32> to vector<2x16xf32>
    %c0_76 = arith.constant 0 : index
    %c0_77 = arith.constant 0 : index
    %326 = vector.load %arg5[%c0_76, %c0_77] : memref<2x1xf32, #tpu.memory_space<vmem>>, vector<2x1xf32>
    %327 = vector.broadcast %326 : vector<2x1xf32> to vector<2x16xf32>
    %328 = arith.divf %325, %327 : vector<2x16xf32>
    %c0_78 = arith.constant 0 : index
    %c0_79 = arith.constant 0 : index
    %329 = vector.load %arg15[%c0_78, %c0_79] : memref<48x3xbf16, #tpu.memory_space<vmem>>, vector<48x3xbf16>
    %c0_80 = arith.constant 0 : index
    %c0_81 = arith.constant 0 : index
    %330 = vector.load %arg6[%c0_80, %c0_81] : memref<2x16xf32, #tpu.memory_space<vmem>>, vector<2x16xf32>
    %331 = arith.truncf %330 : vector<2x16xf32> to vector<2x16xbf16>
    %332 = vector.extract_strided_slice %329 {offsets = [0, 0], sizes = [16, 3], strides = [1, 1]} : vector<48x3xbf16> to vector<16x3xbf16>
    %cst_82 = arith.constant dense<0.000000e+00> : vector<2x3xf32>
    %333 = tpu.matmul %331, %332, %cst_82 {dimension_numbers = #tpu.dot_dimension_numbers<[1], [0], [0], [1], [0, 0, 1, 1], [], []>} : vector<2x16xbf16>, vector<16x3xbf16>, vector<2x3xf32> -> vector<2x3xf32>
    %334 = arith.truncf %328 : vector<2x16xf32> to vector<2x16xbf16>
    %335 = vector.extract_strided_slice %329 {offsets = [16, 0], sizes = [16, 3], strides = [1, 1]} : vector<48x3xbf16> to vector<16x3xbf16>
    %cst_83 = arith.constant dense<0.000000e+00> : vector<2x3xf32>
    %336 = tpu.matmul %334, %335, %cst_83 {dimension_numbers = #tpu.dot_dimension_numbers<[1], [0], [0], [1], [0, 0, 1, 1], [], []>} : vector<2x16xbf16>, vector<16x3xbf16>, vector<2x3xf32> -> vector<2x3xf32>
    %337 = arith.addf %333, %336 : vector<2x3xf32>
    %c0_84 = arith.constant 0 : index
    %c0_85 = arith.constant 0 : index
    %338 = vector.load %arg7[%c0_84, %c0_85] : memref<2x16xf32, #tpu.memory_space<vmem>>, vector<2x16xf32>
    %339 = arith.truncf %338 : vector<2x16xf32> to vector<2x16xbf16>
    %340 = vector.extract_strided_slice %329 {offsets = [32, 0], sizes = [16, 3], strides = [1, 1]} : vector<48x3xbf16> to vector<16x3xbf16>
    %cst_86 = arith.constant dense<0.000000e+00> : vector<2x3xf32>
    %341 = tpu.matmul %339, %340, %cst_86 {dimension_numbers = #tpu.dot_dimension_numbers<[1], [0], [0], [1], [0, 0, 1, 1], [], []>} : vector<2x16xbf16>, vector<16x3xbf16>, vector<2x3xf32> -> vector<2x3xf32>
    %342 = arith.addf %337, %341 : vector<2x3xf32>
    %c0_87 = arith.constant 0 : index
    %c0_88 = arith.constant 0 : index
    %343 = vector.load %arg16[%c0_87, %c0_88] : memref<1x3xf32, #tpu.memory_space<vmem>>, vector<1x3xf32>
    %344 = vector.broadcast %343 : vector<1x3xf32> to vector<2x3xf32>
    %345 = arith.addf %342, %344 : vector<2x3xf32>
    %c0_89 = arith.constant 0 : index
    %c0_90 = arith.constant 0 : index
    %346 = vector.load %arg17[%c0_89, %c0_90] : memref<2x3xf32, #tpu.memory_space<vmem>>, vector<2x3xf32>
    tpu.vector_store %arg17[%c0_89, %c0_90], %345 {strides = array<i32>} : memref<2x3xf32, #tpu.memory_space<vmem>>, vector<2x3xf32>,
    return
  }
  func.func @transform_0(%arg0: i32) -> (i32, i32, i32) {
    %c0_i32 = arith.constant 0 : i32
    %c0_i32_0 = arith.constant 0 : i32
    %c0_i32_1 = arith.constant 0 : i32
    %c0_i32_2 = arith.constant 0 : i32
    return %c0_i32, %c0_i32_0, %c0_i32_1 : i32, i32, i32
  }
  func.func @transform_1(%arg0: i32) -> (i32, i32, i32) {
    %c0_i32 = arith.constant 0 : i32
    %c0_i32_0 = arith.constant 0 : i32
    %c0_i32_1 = arith.constant 0 : i32
    %c0_i32_2 = arith.constant 0 : i32
    return %c0_i32, %c0_i32_0, %c0_i32_1 : i32, i32, i32
  }
  func.func @transform_2(%arg0: i32) -> (i32, i32, i32) {
    %c0_i32 = arith.constant 0 : i32
    %c0_i32_0 = arith.constant 0 : i32
    %c0_i32_1 = arith.constant 0 : i32
    %c0_i32_2 = arith.constant 0 : i32
    return %c0_i32, %c0_i32_0, %c0_i32_1 : i32, i32, i32
  }
  func.func @transform_3(%arg0: i32) -> (i32, i32, i32) {
    %c0_i32 = arith.constant 0 : i32
    %c0_i32_0 = arith.constant 0 : i32
    %c0_i32_1 = arith.constant 0 : i32
    %c0_i32_2 = arith.constant 0 : i32
    return %c0_i32, %c0_i32_0, %c0_i32_1 : i32, i32, i32
  }
  func.func @transform_4(%arg0: i32) -> (i32, i32) {
    %c0_i32 = arith.constant 0 : i32
    %c0_i32_0 = arith.constant 0 : i32
    %c0_i32_1 = arith.constant 0 : i32
    return %c0_i32, %c0_i32_0 : i32, i32
  }
  func.func @transform_5(%arg0: i32) -> (i32, i32) {
    %c0_i32 = arith.constant 0 : i32
    %c0_i32_0 = arith.constant 0 : i32
    %c0_i32_1 = arith.constant 0 : i32
    return %c0_i32, %c0_i32_0 : i32, i32
  }
  func.func @transform_6(%arg0: i32) -> (i32, i32) {
    %c0_i32 = arith.constant 0 : i32
    %c0_i32_0 = arith.constant 0 : i32
    %c0_i32_1 = arith.constant 0 : i32
    return %c0_i32, %c0_i32_0 : i32, i32
  }
  func.func @transform_7(%arg0: i32) -> (i32, i32) {
    %c0_i32 = arith.constant 0 : i32
    %c0_i32_0 = arith.constant 0 : i32
    %c0_i32_1 = arith.constant 0 : i32
    return %c0_i32, %c0_i32_0 : i32, i32
  }
  func.func @transform_8(%arg0: i32) -> (i32, i32) {
    %c0_i32 = arith.constant 0 : i32
    %c0_i32_0 = arith.constant 0 : i32
    %c0_i32_1 = arith.constant 0 : i32
    return %c0_i32, %c0_i32_0 : i32, i32
  }
  func.func @transform_9(%arg0: i32) -> (i32, i32) {
    %c0_i32 = arith.constant 0 : i32
    %c0_i32_0 = arith.constant 0 : i32
    %c0_i32_1 = arith.constant 0 : i32
    return %c0_i32, %c0_i32_0 : i32, i32
  }
  func.func @transform_10(%arg0: i32) -> (i32, i32) {
    %c0_i32 = arith.constant 0 : i32
    %c0_i32_0 = arith.constant 0 : i32
    %c0_i32_1 = arith.constant 0 : i32
    return %c0_i32, %c0_i32_0 : i32, i32
  }
  func.func @transform_11(%arg0: i32) -> (i32, i32) {
    %c0_i32 = arith.constant 0 : i32
    %c0_i32_0 = arith.constant 0 : i32
    %c0_i32_1 = arith.constant 0 : i32
    return %c0_i32, %c0_i32_0 : i32, i32
  }
  func.func @transform_12(%arg0: i32) -> (i32, i32) {
    %c0_i32 = arith.constant 0 : i32
    %c0_i32_0 = arith.constant 0 : i32
    %c0_i32_1 = arith.constant 0 : i32
    return %c0_i32, %c0_i32_0 : i32, i32
  }
  func.func @transform_13(%arg0: i32) -> (i32, i32) {
    %c0_i32 = arith.constant 0 : i32
    %c0_i32_0 = arith.constant 0 : i32
    %c0_i32_1 = arith.constant 0 : i32
    return %c0_i32, %c0_i32_0 : i32, i32
  }
  func.func @transform_14(%arg0: i32) -> (i32, i32) {
    %c0_i32 = arith.constant 0 : i32
    %c0_i32_0 = arith.constant 0 : i32
    %c0_i32_1 = arith.constant 0 : i32
    return %c0_i32, %c0_i32_0 : i32, i32
  }
  func.func @transform_15(%arg0: i32) -> (i32, i32) {
    %c0_i32 = arith.constant 0 : i32
    %c0_i32_0 = arith.constant 0 : i32
    %c0_i32_1 = arith.constant 0 : i32
    return %c0_i32, %c0_i32_0 : i32, i32
  }
  func.func @transform_16(%arg0: i32) -> (i32, i32) {
    %c0_i32 = arith.constant 0 : i32
    %c0_i32_0 = arith.constant 0 : i32
    %c0_i32_1 = arith.constant 0 : i32
    return %c0_i32, %c0_i32_0 : i32, i32
  }
}

module attributes {stable_mosaic.version = 11 : i64} {
  func.func @_aen_ffn_kernel(%arg0: i32, %arg1: memref<2x16x32xf32, #tpu.memory_space<vmem>>, %arg2: memref<2x16x32xf32, #tpu.memory_space<vmem>>, %arg3: memref<2x1x16xf32, #tpu.memory_space<vmem>>, %arg4: memref<2x16x1xf32, #tpu.memory_space<vmem>>, %arg5: memref<2x1xf32, #tpu.memory_space<vmem>>, %arg6: memref<32x32xbf16, #tpu.memory_space<vmem>>, %arg7: memref<1x32xf32, #tpu.memory_space<vmem>>, %arg8: memref<32x32xbf16, #tpu.memory_space<vmem>>, %arg9: memref<1x32xf32, #tpu.memory_space<vmem>>, %arg10: memref<2x4xf32, #tpu.memory_space<vmem>>, %arg11: memref<32x16xbf16, #tpu.memory_space<vmem>>, %arg12: memref<1x16xf32, #tpu.memory_space<vmem>>, %arg13: memref<16x16xbf16, #tpu.memory_space<vmem>>, %arg14: memref<1x16xf32, #tpu.memory_space<vmem>>, %arg15: memref<16x16xbf16, #tpu.memory_space<vmem>>, %arg16: memref<1x16xf32, #tpu.memory_space<vmem>>, %arg17: memref<2x16x16xf32, #tpu.memory_space<vmem>>, %arg18: memref<2x16xf32, #tpu.memory_space<vmem>>) attributes {dimension_semantics = [#tpu.dimension_semantics<arbitrary>], iteration_bounds = array<i64: 1>, scalar_prefetch = 0 : i64, scratch_operands = 0 : i64, tpu.core_type = #tpu.core_type<tc>, window_params = [{pipeline_mode = #tpu.pipeline_mode<synchronous>, transform_indices = @transform_0, window_bounds = array<i64: 2, 16, 32>}, {pipeline_mode = #tpu.pipeline_mode<synchronous>, transform_indices = @transform_1, window_bounds = array<i64: 2, 16, 32>}, {pipeline_mode = #tpu.pipeline_mode<synchronous>, transform_indices = @transform_2, window_bounds = array<i64: 2, 1, 16>}, {pipeline_mode = #tpu.pipeline_mode<synchronous>, transform_indices = @transform_3, window_bounds = array<i64: 2, 16, 1>}, {pipeline_mode = #tpu.pipeline_mode<synchronous>, transform_indices = @transform_4, window_bounds = array<i64: 2, 1>}, {pipeline_mode = #tpu.pipeline_mode<synchronous>, transform_indices = @transform_5, window_bounds = array<i64: 32, 32>}, {pipeline_mode = #tpu.pipeline_mode<synchronous>, transform_indices = @transform_6, window_bounds = array<i64: 1, 32>}, {pipeline_mode = #tpu.pipeline_mode<synchronous>, transform_indices = @transform_7, window_bounds = array<i64: 32, 32>}, {pipeline_mode = #tpu.pipeline_mode<synchronous>, transform_indices = @transform_8, window_bounds = array<i64: 1, 32>}, {pipeline_mode = #tpu.pipeline_mode<synchronous>, transform_indices = @transform_9, window_bounds = array<i64: 2, 4>}, {pipeline_mode = #tpu.pipeline_mode<synchronous>, transform_indices = @transform_10, window_bounds = array<i64: 32, 16>}, {pipeline_mode = #tpu.pipeline_mode<synchronous>, transform_indices = @transform_11, window_bounds = array<i64: 1, 16>}, {pipeline_mode = #tpu.pipeline_mode<synchronous>, transform_indices = @transform_12, window_bounds = array<i64: 16, 16>}, {pipeline_mode = #tpu.pipeline_mode<synchronous>, transform_indices = @transform_13, window_bounds = array<i64: 1, 16>}, {pipeline_mode = #tpu.pipeline_mode<synchronous>, transform_indices = @transform_14, window_bounds = array<i64: 16, 16>}, {pipeline_mode = #tpu.pipeline_mode<synchronous>, transform_indices = @transform_15, window_bounds = array<i64: 1, 16>}, {pipeline_mode = #tpu.pipeline_mode<synchronous>, transform_indices = @transform_16, window_bounds = array<i64: 2, 16, 16>}, {pipeline_mode = #tpu.pipeline_mode<synchronous>, transform_indices = @transform_17, window_bounds = array<i64: 2, 16>}]} {
    %c0 = arith.constant 0 : index
    %c0_0 = arith.constant 0 : index
    %c0_1 = arith.constant 0 : index
    %0 = vector.load %arg1[%c0, %c0_0, %c0_1] : memref<2x16x32xf32, #tpu.memory_space<vmem>>, vector<2x16x32xf32>
    %c0_2 = arith.constant 0 : index
    %c0_3 = arith.constant 0 : index
    %c0_4 = arith.constant 0 : index
    %1 = vector.load %arg2[%c0_2, %c0_3, %c0_4] : memref<2x16x32xf32, #tpu.memory_space<vmem>>, vector<2x16x32xf32>
    %c0_5 = arith.constant 0 : index
    %c0_6 = arith.constant 0 : index
    %c0_7 = arith.constant 0 : index
    %2 = vector.load %arg3[%c0_5, %c0_6, %c0_7] : memref<2x1x16xf32, #tpu.memory_space<vmem>>, vector<2x1x16xf32>
    %c0_8 = arith.constant 0 : index
    %c0_9 = arith.constant 0 : index
    %3 = vector.load %arg6[%c0_8, %c0_9] : memref<32x32xbf16, #tpu.memory_space<vmem>>, vector<32x32xbf16>
    %c0_10 = arith.constant 0 : index
    %c0_11 = arith.constant 0 : index
    %4 = vector.load %arg7[%c0_10, %c0_11] : memref<1x32xf32, #tpu.memory_space<vmem>>, vector<1x32xf32>
    %c0_12 = arith.constant 0 : index
    %c0_13 = arith.constant 0 : index
    %5 = vector.load %arg8[%c0_12, %c0_13] : memref<32x32xbf16, #tpu.memory_space<vmem>>, vector<32x32xbf16>
    %c0_14 = arith.constant 0 : index
    %c0_15 = arith.constant 0 : index
    %6 = vector.load %arg9[%c0_14, %c0_15] : memref<1x32xf32, #tpu.memory_space<vmem>>, vector<1x32xf32>
    %c0_16 = arith.constant 0 : index
    %c0_17 = arith.constant 0 : index
    %7 = vector.load %arg10[%c0_16, %c0_17] : memref<2x4xf32, #tpu.memory_space<vmem>>, vector<2x4xf32>
    %c0_18 = arith.constant 0 : index
    %c0_19 = arith.constant 0 : index
    %8 = vector.load %arg11[%c0_18, %c0_19] : memref<32x16xbf16, #tpu.memory_space<vmem>>, vector<32x16xbf16>
    %c0_20 = arith.constant 0 : index
    %c0_21 = arith.constant 0 : index
    %9 = vector.load %arg12[%c0_20, %c0_21] : memref<1x16xf32, #tpu.memory_space<vmem>>, vector<1x16xf32>
    %10 = vector.shape_cast %0 : vector<2x16x32xf32> to vector<32x32xf32>
    %11 = arith.truncf %10 : vector<32x32xf32> to vector<32x32xbf16>
    %cst = arith.constant dense<0.000000e+00> : vector<32x32xf32>
    %12 = tpu.matmul %11, %3, %cst {dimension_numbers = #tpu.dot_dimension_numbers<[1], [0], [0], [1], [0, 0, 1, 1], [], []>} : vector<32x32xbf16>, vector<32x32xbf16>, vector<32x32xf32> -> vector<32x32xf32>
    %13 = vector.broadcast %4 : vector<1x32xf32> to vector<32x32xf32>
    %14 = arith.addf %12, %13 : vector<32x32xf32>
    %15 = vector.shape_cast %14 : vector<32x32xf32> to vector<2x16x32xf32>
    %16 = vector.shape_cast %1 : vector<2x16x32xf32> to vector<32x32xf32>
    %17 = arith.truncf %16 : vector<32x32xf32> to vector<32x32xbf16>
    %cst_22 = arith.constant dense<0.000000e+00> : vector<32x32xf32>
    %18 = tpu.matmul %17, %5, %cst_22 {dimension_numbers = #tpu.dot_dimension_numbers<[1], [0], [0], [1], [0, 0, 1, 1], [], []>} : vector<32x32xbf16>, vector<32x32xbf16>, vector<32x32xf32> -> vector<32x32xf32>
    %19 = vector.broadcast %6 : vector<1x32xf32> to vector<32x32xf32>
    %20 = arith.addf %18, %19 : vector<32x32xf32>
    %21 = vector.shape_cast %20 : vector<32x32xf32> to vector<2x16x32xf32>
    %cst_23 = arith.constant 0.000000e+00 : f32
    %22 = vector.broadcast %cst_23 : f32 to vector<32x16xf32>
    %23 = vector.broadcast %9 : vector<1x16xf32> to vector<32x16xf32>
    %24 = arith.addf %22, %23 : vector<32x16xf32>
    %25 = vector.extract_strided_slice %15 {offsets = [0, 0, 0], sizes = [2, 16, 4], strides = [1, 1, 1]} : vector<2x16x32xf32> to vector<2x16x4xf32>
    %26 = vector.extract_strided_slice %21 {offsets = [0, 0, 0], sizes = [2, 16, 4], strides = [1, 1, 1]} : vector<2x16x32xf32> to vector<2x16x4xf32>
    %27 = vector.extract_strided_slice %7 {offsets = [0, 0], sizes = [1, 4], strides = [1, 1]} : vector<2x4xf32> to vector<1x4xf32>
    %28 = vector.shape_cast %27 : vector<1x4xf32> to vector<1x1x4xf32>
    %29 = vector.broadcast %28 : vector<1x1x4xf32> to vector<2x16x4xf32>
    %30 = arith.mulf %25, %29 : vector<2x16x4xf32>
    %cst_24 = arith.constant dense<0.000000e+00> : vector<2x16xf32>
    %31 = vector.multi_reduction <add>, %30, %cst_24 [2] : vector<2x16x4xf32> to vector<2x16xf32>
    %32 = vector.extract_strided_slice %7 {offsets = [1, 0], sizes = [1, 4], strides = [1, 1]} : vector<2x4xf32> to vector<1x4xf32>
    %33 = vector.shape_cast %32 : vector<1x4xf32> to vector<1x1x4xf32>
    %34 = vector.broadcast %33 : vector<1x1x4xf32> to vector<2x16x4xf32>
    %35 = arith.mulf %26, %34 : vector<2x16x4xf32>
    %cst_25 = arith.constant dense<0.000000e+00> : vector<2x16xf32>
    %36 = vector.multi_reduction <add>, %35, %cst_25 [2] : vector<2x16x4xf32> to vector<2x16xf32>
    %37 = vector.shape_cast %36 : vector<2x16xf32> to vector<2x16x1xf32>
    %38 = vector.shape_cast %31 : vector<2x16xf32> to vector<2x1x16xf32>
    %39 = vector.broadcast %37 : vector<2x16x1xf32> to vector<2x16x16xf32>
    %40 = vector.broadcast %38 : vector<2x1x16xf32> to vector<2x16x16xf32>
    %41 = arith.addf %39, %40 : vector<2x16x16xf32>
    %42 = math.tanh %41 : vector<2x16x16xf32>
    %43 = vector.broadcast %2 : vector<2x1x16xf32> to vector<2x16x16xf32>
    %44 = arith.addf %42, %43 : vector<2x16x16xf32>
    %cst_26 = arith.constant dense<0xFF800000> : vector<2x16xf32>
    %45 = vector.multi_reduction <maximumf>, %44, %cst_26 [2] : vector<2x16x16xf32> to vector<2x16xf32>
    %46 = vector.shape_cast %45 : vector<2x16xf32> to vector<2x16x1xf32>
    %47 = vector.broadcast %46 : vector<2x16x1xf32> to vector<2x16x16xf32>
    %48 = arith.subf %44, %47 : vector<2x16x16xf32>
    %49 = math.exp %48 : vector<2x16x16xf32>
    %cst_27 = arith.constant dense<0.000000e+00> : vector<2x16xf32>
    %50 = vector.multi_reduction <add>, %49, %cst_27 [2] : vector<2x16x16xf32> to vector<2x16xf32>
    %51 = vector.shape_cast %50 : vector<2x16xf32> to vector<2x16x1xf32>
    %52 = vector.broadcast %51 : vector<2x16x1xf32> to vector<2x16x16xf32>
    %53 = arith.divf %49, %52 : vector<2x16x16xf32>
    %54 = arith.truncf %53 : vector<2x16x16xf32> to vector<2x16x16xbf16>
    %55 = arith.truncf %25 : vector<2x16x4xf32> to vector<2x16x4xbf16>
    "tpu.trace_start"() <{level = 10 : i32, message = "bqk,bkd->bqd"}> : () -> ()
    %cst_28 = arith.constant dense<0.000000e+00> : vector<2x16x4xf32>
    %56 = tpu.matmul %54, %55, %cst_28 {dimension_numbers = #tpu.dot_dimension_numbers<[2], [1], [1], [2], [0, 0, 0, 1, 1, 2], [0], [0]>} : vector<2x16x16xbf16>, vector<2x16x4xbf16>, vector<2x16x4xf32> -> vector<2x16x4xf32>
    "tpu.trace_stop"() : () -> ()
    %57 = vector.shape_cast %56 : vector<2x16x4xf32> to vector<32x4xf32>
    %58 = arith.truncf %57 : vector<32x4xf32> to vector<32x4xbf16>
    %59 = vector.extract_strided_slice %8 {offsets = [0, 0], sizes = [4, 16], strides = [1, 1]} : vector<32x16xbf16> to vector<4x16xbf16>
    %cst_29 = arith.constant dense<0.000000e+00> : vector<32x16xf32>
    %60 = tpu.matmul %58, %59, %cst_29 {dimension_numbers = #tpu.dot_dimension_numbers<[1], [0], [0], [1], [0, 0, 1, 1], [], []>} : vector<32x4xbf16>, vector<4x16xbf16>, vector<32x16xf32> -> vector<32x16xf32>
    %61 = arith.addf %24, %60 : vector<32x16xf32>
    %62 = vector.extract_strided_slice %15 {offsets = [0, 0, 4], sizes = [2, 16, 4], strides = [1, 1, 1]} : vector<2x16x32xf32> to vector<2x16x4xf32>
    %63 = vector.extract_strided_slice %21 {offsets = [0, 0, 4], sizes = [2, 16, 4], strides = [1, 1, 1]} : vector<2x16x32xf32> to vector<2x16x4xf32>
    %64 = vector.extract_strided_slice %7 {offsets = [0, 0], sizes = [1, 4], strides = [1, 1]} : vector<2x4xf32> to vector<1x4xf32>
    %65 = vector.shape_cast %64 : vector<1x4xf32> to vector<1x1x4xf32>
    %66 = vector.broadcast %65 : vector<1x1x4xf32> to vector<2x16x4xf32>
    %67 = arith.mulf %62, %66 : vector<2x16x4xf32>
    %cst_30 = arith.constant dense<0.000000e+00> : vector<2x16xf32>
    %68 = vector.multi_reduction <add>, %67, %cst_30 [2] : vector<2x16x4xf32> to vector<2x16xf32>
    %69 = vector.extract_strided_slice %7 {offsets = [1, 0], sizes = [1, 4], strides = [1, 1]} : vector<2x4xf32> to vector<1x4xf32>
    %70 = vector.shape_cast %69 : vector<1x4xf32> to vector<1x1x4xf32>
    %71 = vector.broadcast %70 : vector<1x1x4xf32> to vector<2x16x4xf32>
    %72 = arith.mulf %63, %71 : vector<2x16x4xf32>
    %cst_31 = arith.constant dense<0.000000e+00> : vector<2x16xf32>
    %73 = vector.multi_reduction <add>, %72, %cst_31 [2] : vector<2x16x4xf32> to vector<2x16xf32>
    %74 = vector.shape_cast %73 : vector<2x16xf32> to vector<2x16x1xf32>
    %75 = vector.shape_cast %68 : vector<2x16xf32> to vector<2x1x16xf32>
    %76 = vector.broadcast %74 : vector<2x16x1xf32> to vector<2x16x16xf32>
    %77 = vector.broadcast %75 : vector<2x1x16xf32> to vector<2x16x16xf32>
    %78 = arith.addf %76, %77 : vector<2x16x16xf32>
    %79 = math.tanh %78 : vector<2x16x16xf32>
    %80 = vector.broadcast %2 : vector<2x1x16xf32> to vector<2x16x16xf32>
    %81 = arith.addf %79, %80 : vector<2x16x16xf32>
    %cst_32 = arith.constant dense<0xFF800000> : vector<2x16xf32>
    %82 = vector.multi_reduction <maximumf>, %81, %cst_32 [2] : vector<2x16x16xf32> to vector<2x16xf32>
    %83 = vector.shape_cast %82 : vector<2x16xf32> to vector<2x16x1xf32>
    %84 = vector.broadcast %83 : vector<2x16x1xf32> to vector<2x16x16xf32>
    %85 = arith.subf %81, %84 : vector<2x16x16xf32>
    %86 = math.exp %85 : vector<2x16x16xf32>
    %cst_33 = arith.constant dense<0.000000e+00> : vector<2x16xf32>
    %87 = vector.multi_reduction <add>, %86, %cst_33 [2] : vector<2x16x16xf32> to vector<2x16xf32>
    %88 = vector.shape_cast %87 : vector<2x16xf32> to vector<2x16x1xf32>
    %89 = vector.broadcast %88 : vector<2x16x1xf32> to vector<2x16x16xf32>
    %90 = arith.divf %86, %89 : vector<2x16x16xf32>
    %91 = arith.truncf %90 : vector<2x16x16xf32> to vector<2x16x16xbf16>
    %92 = arith.truncf %62 : vector<2x16x4xf32> to vector<2x16x4xbf16>
    "tpu.trace_start"() <{level = 10 : i32, message = "bqk,bkd->bqd"}> : () -> ()
    %cst_34 = arith.constant dense<0.000000e+00> : vector<2x16x4xf32>
    %93 = tpu.matmul %91, %92, %cst_34 {dimension_numbers = #tpu.dot_dimension_numbers<[2], [1], [1], [2], [0, 0, 0, 1, 1, 2], [0], [0]>} : vector<2x16x16xbf16>, vector<2x16x4xbf16>, vector<2x16x4xf32> -> vector<2x16x4xf32>
    "tpu.trace_stop"() : () -> ()
    %94 = vector.shape_cast %93 : vector<2x16x4xf32> to vector<32x4xf32>
    %95 = arith.truncf %94 : vector<32x4xf32> to vector<32x4xbf16>
    %96 = vector.extract_strided_slice %8 {offsets = [4, 0], sizes = [4, 16], strides = [1, 1]} : vector<32x16xbf16> to vector<4x16xbf16>
    %cst_35 = arith.constant dense<0.000000e+00> : vector<32x16xf32>
    %97 = tpu.matmul %95, %96, %cst_35 {dimension_numbers = #tpu.dot_dimension_numbers<[1], [0], [0], [1], [0, 0, 1, 1], [], []>} : vector<32x4xbf16>, vector<4x16xbf16>, vector<32x16xf32> -> vector<32x16xf32>
    %98 = arith.addf %61, %97 : vector<32x16xf32>
    %99 = vector.extract_strided_slice %15 {offsets = [0, 0, 8], sizes = [2, 16, 4], strides = [1, 1, 1]} : vector<2x16x32xf32> to vector<2x16x4xf32>
    %100 = vector.extract_strided_slice %21 {offsets = [0, 0, 8], sizes = [2, 16, 4], strides = [1, 1, 1]} : vector<2x16x32xf32> to vector<2x16x4xf32>
    %101 = vector.extract_strided_slice %7 {offsets = [0, 0], sizes = [1, 4], strides = [1, 1]} : vector<2x4xf32> to vector<1x4xf32>
    %102 = vector.shape_cast %101 : vector<1x4xf32> to vector<1x1x4xf32>
    %103 = vector.broadcast %102 : vector<1x1x4xf32> to vector<2x16x4xf32>
    %104 = arith.mulf %99, %103 : vector<2x16x4xf32>
    %cst_36 = arith.constant dense<0.000000e+00> : vector<2x16xf32>
    %105 = vector.multi_reduction <add>, %104, %cst_36 [2] : vector<2x16x4xf32> to vector<2x16xf32>
    %106 = vector.extract_strided_slice %7 {offsets = [1, 0], sizes = [1, 4], strides = [1, 1]} : vector<2x4xf32> to vector<1x4xf32>
    %107 = vector.shape_cast %106 : vector<1x4xf32> to vector<1x1x4xf32>
    %108 = vector.broadcast %107 : vector<1x1x4xf32> to vector<2x16x4xf32>
    %109 = arith.mulf %100, %108 : vector<2x16x4xf32>
    %cst_37 = arith.constant dense<0.000000e+00> : vector<2x16xf32>
    %110 = vector.multi_reduction <add>, %109, %cst_37 [2] : vector<2x16x4xf32> to vector<2x16xf32>
    %111 = vector.shape_cast %110 : vector<2x16xf32> to vector<2x16x1xf32>
    %112 = vector.shape_cast %105 : vector<2x16xf32> to vector<2x1x16xf32>
    %113 = vector.broadcast %111 : vector<2x16x1xf32> to vector<2x16x16xf32>
    %114 = vector.broadcast %112 : vector<2x1x16xf32> to vector<2x16x16xf32>
    %115 = arith.addf %113, %114 : vector<2x16x16xf32>
    %116 = math.tanh %115 : vector<2x16x16xf32>
    %117 = vector.broadcast %2 : vector<2x1x16xf32> to vector<2x16x16xf32>
    %118 = arith.addf %116, %117 : vector<2x16x16xf32>
    %cst_38 = arith.constant dense<0xFF800000> : vector<2x16xf32>
    %119 = vector.multi_reduction <maximumf>, %118, %cst_38 [2] : vector<2x16x16xf32> to vector<2x16xf32>
    %120 = vector.shape_cast %119 : vector<2x16xf32> to vector<2x16x1xf32>
    %121 = vector.broadcast %120 : vector<2x16x1xf32> to vector<2x16x16xf32>
    %122 = arith.subf %118, %121 : vector<2x16x16xf32>
    %123 = math.exp %122 : vector<2x16x16xf32>
    %cst_39 = arith.constant dense<0.000000e+00> : vector<2x16xf32>
    %124 = vector.multi_reduction <add>, %123, %cst_39 [2] : vector<2x16x16xf32> to vector<2x16xf32>
    %125 = vector.shape_cast %124 : vector<2x16xf32> to vector<2x16x1xf32>
    %126 = vector.broadcast %125 : vector<2x16x1xf32> to vector<2x16x16xf32>
    %127 = arith.divf %123, %126 : vector<2x16x16xf32>
    %128 = arith.truncf %127 : vector<2x16x16xf32> to vector<2x16x16xbf16>
    %129 = arith.truncf %99 : vector<2x16x4xf32> to vector<2x16x4xbf16>
    "tpu.trace_start"() <{level = 10 : i32, message = "bqk,bkd->bqd"}> : () -> ()
    %cst_40 = arith.constant dense<0.000000e+00> : vector<2x16x4xf32>
    %130 = tpu.matmul %128, %129, %cst_40 {dimension_numbers = #tpu.dot_dimension_numbers<[2], [1], [1], [2], [0, 0, 0, 1, 1, 2], [0], [0]>} : vector<2x16x16xbf16>, vector<2x16x4xbf16>, vector<2x16x4xf32> -> vector<2x16x4xf32>
    "tpu.trace_stop"() : () -> ()
    %131 = vector.shape_cast %130 : vector<2x16x4xf32> to vector<32x4xf32>
    %132 = arith.truncf %131 : vector<32x4xf32> to vector<32x4xbf16>
    %133 = vector.extract_strided_slice %8 {offsets = [8, 0], sizes = [4, 16], strides = [1, 1]} : vector<32x16xbf16> to vector<4x16xbf16>
    %cst_41 = arith.constant dense<0.000000e+00> : vector<32x16xf32>
    %134 = tpu.matmul %132, %133, %cst_41 {dimension_numbers = #tpu.dot_dimension_numbers<[1], [0], [0], [1], [0, 0, 1, 1], [], []>} : vector<32x4xbf16>, vector<4x16xbf16>, vector<32x16xf32> -> vector<32x16xf32>
    %135 = arith.addf %98, %134 : vector<32x16xf32>
    %136 = vector.extract_strided_slice %15 {offsets = [0, 0, 12], sizes = [2, 16, 4], strides = [1, 1, 1]} : vector<2x16x32xf32> to vector<2x16x4xf32>
    %137 = vector.extract_strided_slice %21 {offsets = [0, 0, 12], sizes = [2, 16, 4], strides = [1, 1, 1]} : vector<2x16x32xf32> to vector<2x16x4xf32>
    %138 = vector.extract_strided_slice %7 {offsets = [0, 0], sizes = [1, 4], strides = [1, 1]} : vector<2x4xf32> to vector<1x4xf32>
    %139 = vector.shape_cast %138 : vector<1x4xf32> to vector<1x1x4xf32>
    %140 = vector.broadcast %139 : vector<1x1x4xf32> to vector<2x16x4xf32>
    %141 = arith.mulf %136, %140 : vector<2x16x4xf32>
    %cst_42 = arith.constant dense<0.000000e+00> : vector<2x16xf32>
    %142 = vector.multi_reduction <add>, %141, %cst_42 [2] : vector<2x16x4xf32> to vector<2x16xf32>
    %143 = vector.extract_strided_slice %7 {offsets = [1, 0], sizes = [1, 4], strides = [1, 1]} : vector<2x4xf32> to vector<1x4xf32>
    %144 = vector.shape_cast %143 : vector<1x4xf32> to vector<1x1x4xf32>
    %145 = vector.broadcast %144 : vector<1x1x4xf32> to vector<2x16x4xf32>
    %146 = arith.mulf %137, %145 : vector<2x16x4xf32>
    %cst_43 = arith.constant dense<0.000000e+00> : vector<2x16xf32>
    %147 = vector.multi_reduction <add>, %146, %cst_43 [2] : vector<2x16x4xf32> to vector<2x16xf32>
    %148 = vector.shape_cast %147 : vector<2x16xf32> to vector<2x16x1xf32>
    %149 = vector.shape_cast %142 : vector<2x16xf32> to vector<2x1x16xf32>
    %150 = vector.broadcast %148 : vector<2x16x1xf32> to vector<2x16x16xf32>
    %151 = vector.broadcast %149 : vector<2x1x16xf32> to vector<2x16x16xf32>
    %152 = arith.addf %150, %151 : vector<2x16x16xf32>
    %153 = math.tanh %152 : vector<2x16x16xf32>
    %154 = vector.broadcast %2 : vector<2x1x16xf32> to vector<2x16x16xf32>
    %155 = arith.addf %153, %154 : vector<2x16x16xf32>
    %cst_44 = arith.constant dense<0xFF800000> : vector<2x16xf32>
    %156 = vector.multi_reduction <maximumf>, %155, %cst_44 [2] : vector<2x16x16xf32> to vector<2x16xf32>
    %157 = vector.shape_cast %156 : vector<2x16xf32> to vector<2x16x1xf32>
    %158 = vector.broadcast %157 : vector<2x16x1xf32> to vector<2x16x16xf32>
    %159 = arith.subf %155, %158 : vector<2x16x16xf32>
    %160 = math.exp %159 : vector<2x16x16xf32>
    %cst_45 = arith.constant dense<0.000000e+00> : vector<2x16xf32>
    %161 = vector.multi_reduction <add>, %160, %cst_45 [2] : vector<2x16x16xf32> to vector<2x16xf32>
    %162 = vector.shape_cast %161 : vector<2x16xf32> to vector<2x16x1xf32>
    %163 = vector.broadcast %162 : vector<2x16x1xf32> to vector<2x16x16xf32>
    %164 = arith.divf %160, %163 : vector<2x16x16xf32>
    %165 = arith.truncf %164 : vector<2x16x16xf32> to vector<2x16x16xbf16>
    %166 = arith.truncf %136 : vector<2x16x4xf32> to vector<2x16x4xbf16>
    "tpu.trace_start"() <{level = 10 : i32, message = "bqk,bkd->bqd"}> : () -> ()
    %cst_46 = arith.constant dense<0.000000e+00> : vector<2x16x4xf32>
    %167 = tpu.matmul %165, %166, %cst_46 {dimension_numbers = #tpu.dot_dimension_numbers<[2], [1], [1], [2], [0, 0, 0, 1, 1, 2], [0], [0]>} : vector<2x16x16xbf16>, vector<2x16x4xbf16>, vector<2x16x4xf32> -> vector<2x16x4xf32>
    "tpu.trace_stop"() : () -> ()
    %168 = vector.shape_cast %167 : vector<2x16x4xf32> to vector<32x4xf32>
    %169 = arith.truncf %168 : vector<32x4xf32> to vector<32x4xbf16>
    %170 = vector.extract_strided_slice %8 {offsets = [12, 0], sizes = [4, 16], strides = [1, 1]} : vector<32x16xbf16> to vector<4x16xbf16>
    %cst_47 = arith.constant dense<0.000000e+00> : vector<32x16xf32>
    %171 = tpu.matmul %169, %170, %cst_47 {dimension_numbers = #tpu.dot_dimension_numbers<[1], [0], [0], [1], [0, 0, 1, 1], [], []>} : vector<32x4xbf16>, vector<4x16xbf16>, vector<32x16xf32> -> vector<32x16xf32>
    %172 = arith.addf %135, %171 : vector<32x16xf32>
    %173 = vector.extract_strided_slice %15 {offsets = [0, 0, 16], sizes = [2, 16, 4], strides = [1, 1, 1]} : vector<2x16x32xf32> to vector<2x16x4xf32>
    %174 = vector.extract_strided_slice %21 {offsets = [0, 0, 16], sizes = [2, 16, 4], strides = [1, 1, 1]} : vector<2x16x32xf32> to vector<2x16x4xf32>
    %175 = vector.extract_strided_slice %7 {offsets = [0, 0], sizes = [1, 4], strides = [1, 1]} : vector<2x4xf32> to vector<1x4xf32>
    %176 = vector.shape_cast %175 : vector<1x4xf32> to vector<1x1x4xf32>
    %177 = vector.broadcast %176 : vector<1x1x4xf32> to vector<2x16x4xf32>
    %178 = arith.mulf %173, %177 : vector<2x16x4xf32>
    %cst_48 = arith.constant dense<0.000000e+00> : vector<2x16xf32>
    %179 = vector.multi_reduction <add>, %178, %cst_48 [2] : vector<2x16x4xf32> to vector<2x16xf32>
    %180 = vector.extract_strided_slice %7 {offsets = [1, 0], sizes = [1, 4], strides = [1, 1]} : vector<2x4xf32> to vector<1x4xf32>
    %181 = vector.shape_cast %180 : vector<1x4xf32> to vector<1x1x4xf32>
    %182 = vector.broadcast %181 : vector<1x1x4xf32> to vector<2x16x4xf32>
    %183 = arith.mulf %174, %182 : vector<2x16x4xf32>
    %cst_49 = arith.constant dense<0.000000e+00> : vector<2x16xf32>
    %184 = vector.multi_reduction <add>, %183, %cst_49 [2] : vector<2x16x4xf32> to vector<2x16xf32>
    %185 = vector.shape_cast %184 : vector<2x16xf32> to vector<2x16x1xf32>
    %186 = vector.shape_cast %179 : vector<2x16xf32> to vector<2x1x16xf32>
    %187 = vector.broadcast %185 : vector<2x16x1xf32> to vector<2x16x16xf32>
    %188 = vector.broadcast %186 : vector<2x1x16xf32> to vector<2x16x16xf32>
    %189 = arith.addf %187, %188 : vector<2x16x16xf32>
    %190 = math.tanh %189 : vector<2x16x16xf32>
    %191 = vector.broadcast %2 : vector<2x1x16xf32> to vector<2x16x16xf32>
    %192 = arith.addf %190, %191 : vector<2x16x16xf32>
    %cst_50 = arith.constant dense<0xFF800000> : vector<2x16xf32>
    %193 = vector.multi_reduction <maximumf>, %192, %cst_50 [2] : vector<2x16x16xf32> to vector<2x16xf32>
    %194 = vector.shape_cast %193 : vector<2x16xf32> to vector<2x16x1xf32>
    %195 = vector.broadcast %194 : vector<2x16x1xf32> to vector<2x16x16xf32>
    %196 = arith.subf %192, %195 : vector<2x16x16xf32>
    %197 = math.exp %196 : vector<2x16x16xf32>
    %cst_51 = arith.constant dense<0.000000e+00> : vector<2x16xf32>
    %198 = vector.multi_reduction <add>, %197, %cst_51 [2] : vector<2x16x16xf32> to vector<2x16xf32>
    %199 = vector.shape_cast %198 : vector<2x16xf32> to vector<2x16x1xf32>
    %200 = vector.broadcast %199 : vector<2x16x1xf32> to vector<2x16x16xf32>
    %201 = arith.divf %197, %200 : vector<2x16x16xf32>
    %202 = arith.truncf %201 : vector<2x16x16xf32> to vector<2x16x16xbf16>
    %203 = arith.truncf %173 : vector<2x16x4xf32> to vector<2x16x4xbf16>
    "tpu.trace_start"() <{level = 10 : i32, message = "bqk,bkd->bqd"}> : () -> ()
    %cst_52 = arith.constant dense<0.000000e+00> : vector<2x16x4xf32>
    %204 = tpu.matmul %202, %203, %cst_52 {dimension_numbers = #tpu.dot_dimension_numbers<[2], [1], [1], [2], [0, 0, 0, 1, 1, 2], [0], [0]>} : vector<2x16x16xbf16>, vector<2x16x4xbf16>, vector<2x16x4xf32> -> vector<2x16x4xf32>
    "tpu.trace_stop"() : () -> ()
    %205 = vector.shape_cast %204 : vector<2x16x4xf32> to vector<32x4xf32>
    %206 = arith.truncf %205 : vector<32x4xf32> to vector<32x4xbf16>
    %207 = vector.extract_strided_slice %8 {offsets = [16, 0], sizes = [4, 16], strides = [1, 1]} : vector<32x16xbf16> to vector<4x16xbf16>
    %cst_53 = arith.constant dense<0.000000e+00> : vector<32x16xf32>
    %208 = tpu.matmul %206, %207, %cst_53 {dimension_numbers = #tpu.dot_dimension_numbers<[1], [0], [0], [1], [0, 0, 1, 1], [], []>} : vector<32x4xbf16>, vector<4x16xbf16>, vector<32x16xf32> -> vector<32x16xf32>
    %209 = arith.addf %172, %208 : vector<32x16xf32>
    %210 = vector.extract_strided_slice %15 {offsets = [0, 0, 20], sizes = [2, 16, 4], strides = [1, 1, 1]} : vector<2x16x32xf32> to vector<2x16x4xf32>
    %211 = vector.extract_strided_slice %21 {offsets = [0, 0, 20], sizes = [2, 16, 4], strides = [1, 1, 1]} : vector<2x16x32xf32> to vector<2x16x4xf32>
    %212 = vector.extract_strided_slice %7 {offsets = [0, 0], sizes = [1, 4], strides = [1, 1]} : vector<2x4xf32> to vector<1x4xf32>
    %213 = vector.shape_cast %212 : vector<1x4xf32> to vector<1x1x4xf32>
    %214 = vector.broadcast %213 : vector<1x1x4xf32> to vector<2x16x4xf32>
    %215 = arith.mulf %210, %214 : vector<2x16x4xf32>
    %cst_54 = arith.constant dense<0.000000e+00> : vector<2x16xf32>
    %216 = vector.multi_reduction <add>, %215, %cst_54 [2] : vector<2x16x4xf32> to vector<2x16xf32>
    %217 = vector.extract_strided_slice %7 {offsets = [1, 0], sizes = [1, 4], strides = [1, 1]} : vector<2x4xf32> to vector<1x4xf32>
    %218 = vector.shape_cast %217 : vector<1x4xf32> to vector<1x1x4xf32>
    %219 = vector.broadcast %218 : vector<1x1x4xf32> to vector<2x16x4xf32>
    %220 = arith.mulf %211, %219 : vector<2x16x4xf32>
    %cst_55 = arith.constant dense<0.000000e+00> : vector<2x16xf32>
    %221 = vector.multi_reduction <add>, %220, %cst_55 [2] : vector<2x16x4xf32> to vector<2x16xf32>
    %222 = vector.shape_cast %221 : vector<2x16xf32> to vector<2x16x1xf32>
    %223 = vector.shape_cast %216 : vector<2x16xf32> to vector<2x1x16xf32>
    %224 = vector.broadcast %222 : vector<2x16x1xf32> to vector<2x16x16xf32>
    %225 = vector.broadcast %223 : vector<2x1x16xf32> to vector<2x16x16xf32>
    %226 = arith.addf %224, %225 : vector<2x16x16xf32>
    %227 = math.tanh %226 : vector<2x16x16xf32>
    %228 = vector.broadcast %2 : vector<2x1x16xf32> to vector<2x16x16xf32>
    %229 = arith.addf %227, %228 : vector<2x16x16xf32>
    %cst_56 = arith.constant dense<0xFF800000> : vector<2x16xf32>
    %230 = vector.multi_reduction <maximumf>, %229, %cst_56 [2] : vector<2x16x16xf32> to vector<2x16xf32>
    %231 = vector.shape_cast %230 : vector<2x16xf32> to vector<2x16x1xf32>
    %232 = vector.broadcast %231 : vector<2x16x1xf32> to vector<2x16x16xf32>
    %233 = arith.subf %229, %232 : vector<2x16x16xf32>
    %234 = math.exp %233 : vector<2x16x16xf32>
    %cst_57 = arith.constant dense<0.000000e+00> : vector<2x16xf32>
    %235 = vector.multi_reduction <add>, %234, %cst_57 [2] : vector<2x16x16xf32> to vector<2x16xf32>
    %236 = vector.shape_cast %235 : vector<2x16xf32> to vector<2x16x1xf32>
    %237 = vector.broadcast %236 : vector<2x16x1xf32> to vector<2x16x16xf32>
    %238 = arith.divf %234, %237 : vector<2x16x16xf32>
    %239 = arith.truncf %238 : vector<2x16x16xf32> to vector<2x16x16xbf16>
    %240 = arith.truncf %210 : vector<2x16x4xf32> to vector<2x16x4xbf16>
    "tpu.trace_start"() <{level = 10 : i32, message = "bqk,bkd->bqd"}> : () -> ()
    %cst_58 = arith.constant dense<0.000000e+00> : vector<2x16x4xf32>
    %241 = tpu.matmul %239, %240, %cst_58 {dimension_numbers = #tpu.dot_dimension_numbers<[2], [1], [1], [2], [0, 0, 0, 1, 1, 2], [0], [0]>} : vector<2x16x16xbf16>, vector<2x16x4xbf16>, vector<2x16x4xf32> -> vector<2x16x4xf32>
    "tpu.trace_stop"() : () -> ()
    %242 = vector.shape_cast %241 : vector<2x16x4xf32> to vector<32x4xf32>
    %243 = arith.truncf %242 : vector<32x4xf32> to vector<32x4xbf16>
    %244 = vector.extract_strided_slice %8 {offsets = [20, 0], sizes = [4, 16], strides = [1, 1]} : vector<32x16xbf16> to vector<4x16xbf16>
    %cst_59 = arith.constant dense<0.000000e+00> : vector<32x16xf32>
    %245 = tpu.matmul %243, %244, %cst_59 {dimension_numbers = #tpu.dot_dimension_numbers<[1], [0], [0], [1], [0, 0, 1, 1], [], []>} : vector<32x4xbf16>, vector<4x16xbf16>, vector<32x16xf32> -> vector<32x16xf32>
    %246 = arith.addf %209, %245 : vector<32x16xf32>
    %247 = vector.extract_strided_slice %15 {offsets = [0, 0, 24], sizes = [2, 16, 4], strides = [1, 1, 1]} : vector<2x16x32xf32> to vector<2x16x4xf32>
    %248 = vector.extract_strided_slice %21 {offsets = [0, 0, 24], sizes = [2, 16, 4], strides = [1, 1, 1]} : vector<2x16x32xf32> to vector<2x16x4xf32>
    %249 = vector.extract_strided_slice %7 {offsets = [0, 0], sizes = [1, 4], strides = [1, 1]} : vector<2x4xf32> to vector<1x4xf32>
    %250 = vector.shape_cast %249 : vector<1x4xf32> to vector<1x1x4xf32>
    %251 = vector.broadcast %250 : vector<1x1x4xf32> to vector<2x16x4xf32>
    %252 = arith.mulf %247, %251 : vector<2x16x4xf32>
    %cst_60 = arith.constant dense<0.000000e+00> : vector<2x16xf32>
    %253 = vector.multi_reduction <add>, %252, %cst_60 [2] : vector<2x16x4xf32> to vector<2x16xf32>
    %254 = vector.extract_strided_slice %7 {offsets = [1, 0], sizes = [1, 4], strides = [1, 1]} : vector<2x4xf32> to vector<1x4xf32>
    %255 = vector.shape_cast %254 : vector<1x4xf32> to vector<1x1x4xf32>
    %256 = vector.broadcast %255 : vector<1x1x4xf32> to vector<2x16x4xf32>
    %257 = arith.mulf %248, %256 : vector<2x16x4xf32>
    %cst_61 = arith.constant dense<0.000000e+00> : vector<2x16xf32>
    %258 = vector.multi_reduction <add>, %257, %cst_61 [2] : vector<2x16x4xf32> to vector<2x16xf32>
    %259 = vector.shape_cast %258 : vector<2x16xf32> to vector<2x16x1xf32>
    %260 = vector.shape_cast %253 : vector<2x16xf32> to vector<2x1x16xf32>
    %261 = vector.broadcast %259 : vector<2x16x1xf32> to vector<2x16x16xf32>
    %262 = vector.broadcast %260 : vector<2x1x16xf32> to vector<2x16x16xf32>
    %263 = arith.addf %261, %262 : vector<2x16x16xf32>
    %264 = math.tanh %263 : vector<2x16x16xf32>
    %265 = vector.broadcast %2 : vector<2x1x16xf32> to vector<2x16x16xf32>
    %266 = arith.addf %264, %265 : vector<2x16x16xf32>
    %cst_62 = arith.constant dense<0xFF800000> : vector<2x16xf32>
    %267 = vector.multi_reduction <maximumf>, %266, %cst_62 [2] : vector<2x16x16xf32> to vector<2x16xf32>
    %268 = vector.shape_cast %267 : vector<2x16xf32> to vector<2x16x1xf32>
    %269 = vector.broadcast %268 : vector<2x16x1xf32> to vector<2x16x16xf32>
    %270 = arith.subf %266, %269 : vector<2x16x16xf32>
    %271 = math.exp %270 : vector<2x16x16xf32>
    %cst_63 = arith.constant dense<0.000000e+00> : vector<2x16xf32>
    %272 = vector.multi_reduction <add>, %271, %cst_63 [2] : vector<2x16x16xf32> to vector<2x16xf32>
    %273 = vector.shape_cast %272 : vector<2x16xf32> to vector<2x16x1xf32>
    %274 = vector.broadcast %273 : vector<2x16x1xf32> to vector<2x16x16xf32>
    %275 = arith.divf %271, %274 : vector<2x16x16xf32>
    %276 = arith.truncf %275 : vector<2x16x16xf32> to vector<2x16x16xbf16>
    %277 = arith.truncf %247 : vector<2x16x4xf32> to vector<2x16x4xbf16>
    "tpu.trace_start"() <{level = 10 : i32, message = "bqk,bkd->bqd"}> : () -> ()
    %cst_64 = arith.constant dense<0.000000e+00> : vector<2x16x4xf32>
    %278 = tpu.matmul %276, %277, %cst_64 {dimension_numbers = #tpu.dot_dimension_numbers<[2], [1], [1], [2], [0, 0, 0, 1, 1, 2], [0], [0]>} : vector<2x16x16xbf16>, vector<2x16x4xbf16>, vector<2x16x4xf32> -> vector<2x16x4xf32>
    "tpu.trace_stop"() : () -> ()
    %279 = vector.shape_cast %278 : vector<2x16x4xf32> to vector<32x4xf32>
    %280 = arith.truncf %279 : vector<32x4xf32> to vector<32x4xbf16>
    %281 = vector.extract_strided_slice %8 {offsets = [24, 0], sizes = [4, 16], strides = [1, 1]} : vector<32x16xbf16> to vector<4x16xbf16>
    %cst_65 = arith.constant dense<0.000000e+00> : vector<32x16xf32>
    %282 = tpu.matmul %280, %281, %cst_65 {dimension_numbers = #tpu.dot_dimension_numbers<[1], [0], [0], [1], [0, 0, 1, 1], [], []>} : vector<32x4xbf16>, vector<4x16xbf16>, vector<32x16xf32> -> vector<32x16xf32>
    %283 = arith.addf %246, %282 : vector<32x16xf32>
    %284 = vector.extract_strided_slice %15 {offsets = [0, 0, 28], sizes = [2, 16, 4], strides = [1, 1, 1]} : vector<2x16x32xf32> to vector<2x16x4xf32>
    %285 = vector.extract_strided_slice %21 {offsets = [0, 0, 28], sizes = [2, 16, 4], strides = [1, 1, 1]} : vector<2x16x32xf32> to vector<2x16x4xf32>
    %286 = vector.extract_strided_slice %7 {offsets = [0, 0], sizes = [1, 4], strides = [1, 1]} : vector<2x4xf32> to vector<1x4xf32>
    %287 = vector.shape_cast %286 : vector<1x4xf32> to vector<1x1x4xf32>
    %288 = vector.broadcast %287 : vector<1x1x4xf32> to vector<2x16x4xf32>
    %289 = arith.mulf %284, %288 : vector<2x16x4xf32>
    %cst_66 = arith.constant dense<0.000000e+00> : vector<2x16xf32>
    %290 = vector.multi_reduction <add>, %289, %cst_66 [2] : vector<2x16x4xf32> to vector<2x16xf32>
    %291 = vector.extract_strided_slice %7 {offsets = [1, 0], sizes = [1, 4], strides = [1, 1]} : vector<2x4xf32> to vector<1x4xf32>
    %292 = vector.shape_cast %291 : vector<1x4xf32> to vector<1x1x4xf32>
    %293 = vector.broadcast %292 : vector<1x1x4xf32> to vector<2x16x4xf32>
    %294 = arith.mulf %285, %293 : vector<2x16x4xf32>
    %cst_67 = arith.constant dense<0.000000e+00> : vector<2x16xf32>
    %295 = vector.multi_reduction <add>, %294, %cst_67 [2] : vector<2x16x4xf32> to vector<2x16xf32>
    %296 = vector.shape_cast %295 : vector<2x16xf32> to vector<2x16x1xf32>
    %297 = vector.shape_cast %290 : vector<2x16xf32> to vector<2x1x16xf32>
    %298 = vector.broadcast %296 : vector<2x16x1xf32> to vector<2x16x16xf32>
    %299 = vector.broadcast %297 : vector<2x1x16xf32> to vector<2x16x16xf32>
    %300 = arith.addf %298, %299 : vector<2x16x16xf32>
    %301 = math.tanh %300 : vector<2x16x16xf32>
    %302 = vector.broadcast %2 : vector<2x1x16xf32> to vector<2x16x16xf32>
    %303 = arith.addf %301, %302 : vector<2x16x16xf32>
    %cst_68 = arith.constant dense<0xFF800000> : vector<2x16xf32>
    %304 = vector.multi_reduction <maximumf>, %303, %cst_68 [2] : vector<2x16x16xf32> to vector<2x16xf32>
    %305 = vector.shape_cast %304 : vector<2x16xf32> to vector<2x16x1xf32>
    %306 = vector.broadcast %305 : vector<2x16x1xf32> to vector<2x16x16xf32>
    %307 = arith.subf %303, %306 : vector<2x16x16xf32>
    %308 = math.exp %307 : vector<2x16x16xf32>
    %cst_69 = arith.constant dense<0.000000e+00> : vector<2x16xf32>
    %309 = vector.multi_reduction <add>, %308, %cst_69 [2] : vector<2x16x16xf32> to vector<2x16xf32>
    %310 = vector.shape_cast %309 : vector<2x16xf32> to vector<2x16x1xf32>
    %311 = vector.broadcast %310 : vector<2x16x1xf32> to vector<2x16x16xf32>
    %312 = arith.divf %308, %311 : vector<2x16x16xf32>
    %313 = arith.truncf %312 : vector<2x16x16xf32> to vector<2x16x16xbf16>
    %314 = arith.truncf %284 : vector<2x16x4xf32> to vector<2x16x4xbf16>
    "tpu.trace_start"() <{level = 10 : i32, message = "bqk,bkd->bqd"}> : () -> ()
    %cst_70 = arith.constant dense<0.000000e+00> : vector<2x16x4xf32>
    %315 = tpu.matmul %313, %314, %cst_70 {dimension_numbers = #tpu.dot_dimension_numbers<[2], [1], [1], [2], [0, 0, 0, 1, 1, 2], [0], [0]>} : vector<2x16x16xbf16>, vector<2x16x4xbf16>, vector<2x16x4xf32> -> vector<2x16x4xf32>
    "tpu.trace_stop"() : () -> ()
    %316 = vector.shape_cast %315 : vector<2x16x4xf32> to vector<32x4xf32>
    %317 = arith.truncf %316 : vector<32x4xf32> to vector<32x4xbf16>
    %318 = vector.extract_strided_slice %8 {offsets = [28, 0], sizes = [4, 16], strides = [1, 1]} : vector<32x16xbf16> to vector<4x16xbf16>
    %cst_71 = arith.constant dense<0.000000e+00> : vector<32x16xf32>
    %319 = tpu.matmul %317, %318, %cst_71 {dimension_numbers = #tpu.dot_dimension_numbers<[1], [0], [0], [1], [0, 0, 1, 1], [], []>} : vector<32x4xbf16>, vector<4x16xbf16>, vector<32x16xf32> -> vector<32x16xf32>
    %320 = arith.addf %283, %319 : vector<32x16xf32>
    %321 = vector.shape_cast %320 : vector<32x16xf32> to vector<2x16x16xf32>
    %322 = vector.shape_cast %321 : vector<2x16x16xf32> to vector<32x16xf32>
    %323 = arith.truncf %322 : vector<32x16xf32> to vector<32x16xbf16>
    %c0_72 = arith.constant 0 : index
    %c0_73 = arith.constant 0 : index
    %324 = vector.load %arg13[%c0_72, %c0_73] : memref<16x16xbf16, #tpu.memory_space<vmem>>, vector<16x16xbf16>
    %cst_74 = arith.constant dense<0.000000e+00> : vector<32x16xf32>
    %325 = tpu.matmul %323, %324, %cst_74 {dimension_numbers = #tpu.dot_dimension_numbers<[1], [0], [0], [1], [0, 0, 1, 1], [], []>} : vector<32x16xbf16>, vector<16x16xbf16>, vector<32x16xf32> -> vector<32x16xf32>
    %c0_75 = arith.constant 0 : index
    %c0_76 = arith.constant 0 : index
    %326 = vector.load %arg14[%c0_75, %c0_76] : memref<1x16xf32, #tpu.memory_space<vmem>>, vector<1x16xf32>
    %327 = vector.broadcast %326 : vector<1x16xf32> to vector<32x16xf32>
    %328 = arith.addf %325, %327 : vector<32x16xf32>
    %cst_77 = arith.constant 0.000000e+00 : f32
    %329 = vector.broadcast %cst_77 : f32 to vector<32x16xf32>
    %330 = arith.maximumf %328, %329 : vector<32x16xf32>
    %331 = arith.truncf %330 : vector<32x16xf32> to vector<32x16xbf16>
    %c0_78 = arith.constant 0 : index
    %c0_79 = arith.constant 0 : index
    %332 = vector.load %arg15[%c0_78, %c0_79] : memref<16x16xbf16, #tpu.memory_space<vmem>>, vector<16x16xbf16>
    %cst_80 = arith.constant dense<0.000000e+00> : vector<32x16xf32>
    %333 = tpu.matmul %331, %332, %cst_80 {dimension_numbers = #tpu.dot_dimension_numbers<[1], [0], [0], [1], [0, 0, 1, 1], [], []>} : vector<32x16xbf16>, vector<16x16xbf16>, vector<32x16xf32> -> vector<32x16xf32>
    %c0_81 = arith.constant 0 : index
    %c0_82 = arith.constant 0 : index
    %334 = vector.load %arg16[%c0_81, %c0_82] : memref<1x16xf32, #tpu.memory_space<vmem>>, vector<1x16xf32>
    %335 = vector.broadcast %334 : vector<1x16xf32> to vector<32x16xf32>
    %336 = arith.addf %333, %335 : vector<32x16xf32>
    %337 = vector.shape_cast %336 : vector<32x16xf32> to vector<2x16x16xf32>
    %c0_83 = arith.constant 0 : index
    %c0_84 = arith.constant 0 : index
    %c0_85 = arith.constant 0 : index
    %338 = vector.load %arg17[%c0_83, %c0_84, %c0_85] : memref<2x16x16xf32, #tpu.memory_space<vmem>>, vector<2x16x16xf32>
    tpu.vector_store %arg17[%c0_83, %c0_84, %c0_85], %337 {strides = array<i32>} : memref<2x16x16xf32, #tpu.memory_space<vmem>>, vector<2x16x16xf32>,
    %c0_86 = arith.constant 0 : index
    %c0_87 = arith.constant 0 : index
    %c0_88 = arith.constant 0 : index
    %339 = vector.load %arg4[%c0_86, %c0_87, %c0_88] : memref<2x16x1xf32, #tpu.memory_space<vmem>>, vector<2x16x1xf32>
    %340 = vector.broadcast %339 : vector<2x16x1xf32> to vector<2x16x16xf32>
    %341 = arith.mulf %337, %340 : vector<2x16x16xf32>
    %cst_89 = arith.constant dense<0.000000e+00> : vector<2x16xf32>
    %342 = vector.multi_reduction <add>, %341, %cst_89 [1] : vector<2x16x16xf32> to vector<2x16xf32>
    %c0_90 = arith.constant 0 : index
    %c0_91 = arith.constant 0 : index
    %343 = vector.load %arg5[%c0_90, %c0_91] : memref<2x1xf32, #tpu.memory_space<vmem>>, vector<2x1xf32>
    %344 = vector.broadcast %343 : vector<2x1xf32> to vector<2x16xf32>
    %345 = arith.divf %342, %344 : vector<2x16xf32>
    %c0_92 = arith.constant 0 : index
    %c0_93 = arith.constant 0 : index
    %346 = vector.load %arg18[%c0_92, %c0_93] : memref<2x16xf32, #tpu.memory_space<vmem>>, vector<2x16xf32>
    tpu.vector_store %arg18[%c0_92, %c0_93], %345 {strides = array<i32>} : memref<2x16xf32, #tpu.memory_space<vmem>>, vector<2x16xf32>,
    return
  }
  func.func @transform_0(%arg0: i32) -> (i32, i32, i32) {
    %c0_i32 = arith.constant 0 : i32
    %c0_i32_0 = arith.constant 0 : i32
    %c0_i32_1 = arith.constant 0 : i32
    %c0_i32_2 = arith.constant 0 : i32
    return %c0_i32, %c0_i32_0, %c0_i32_1 : i32, i32, i32
  }
  func.func @transform_1(%arg0: i32) -> (i32, i32, i32) {
    %c0_i32 = arith.constant 0 : i32
    %c0_i32_0 = arith.constant 0 : i32
    %c0_i32_1 = arith.constant 0 : i32
    %c0_i32_2 = arith.constant 0 : i32
    return %c0_i32, %c0_i32_0, %c0_i32_1 : i32, i32, i32
  }
  func.func @transform_2(%arg0: i32) -> (i32, i32, i32) {
    %c0_i32 = arith.constant 0 : i32
    %c0_i32_0 = arith.constant 0 : i32
    %c0_i32_1 = arith.constant 0 : i32
    %c0_i32_2 = arith.constant 0 : i32
    return %c0_i32, %c0_i32_0, %c0_i32_1 : i32, i32, i32
  }
  func.func @transform_3(%arg0: i32) -> (i32, i32, i32) {
    %c0_i32 = arith.constant 0 : i32
    %c0_i32_0 = arith.constant 0 : i32
    %c0_i32_1 = arith.constant 0 : i32
    %c0_i32_2 = arith.constant 0 : i32
    return %c0_i32, %c0_i32_0, %c0_i32_1 : i32, i32, i32
  }
  func.func @transform_4(%arg0: i32) -> (i32, i32) {
    %c0_i32 = arith.constant 0 : i32
    %c0_i32_0 = arith.constant 0 : i32
    %c0_i32_1 = arith.constant 0 : i32
    return %c0_i32, %c0_i32_0 : i32, i32
  }
  func.func @transform_5(%arg0: i32) -> (i32, i32) {
    %c0_i32 = arith.constant 0 : i32
    %c0_i32_0 = arith.constant 0 : i32
    %c0_i32_1 = arith.constant 0 : i32
    return %c0_i32, %c0_i32_0 : i32, i32
  }
  func.func @transform_6(%arg0: i32) -> (i32, i32) {
    %c0_i32 = arith.constant 0 : i32
    %c0_i32_0 = arith.constant 0 : i32
    %c0_i32_1 = arith.constant 0 : i32
    return %c0_i32, %c0_i32_0 : i32, i32
  }
  func.func @transform_7(%arg0: i32) -> (i32, i32) {
    %c0_i32 = arith.constant 0 : i32
    %c0_i32_0 = arith.constant 0 : i32
    %c0_i32_1 = arith.constant 0 : i32
    return %c0_i32, %c0_i32_0 : i32, i32
  }
  func.func @transform_8(%arg0: i32) -> (i32, i32) {
    %c0_i32 = arith.constant 0 : i32
    %c0_i32_0 = arith.constant 0 : i32
    %c0_i32_1 = arith.constant 0 : i32
    return %c0_i32, %c0_i32_0 : i32, i32
  }
  func.func @transform_9(%arg0: i32) -> (i32, i32) {
    %c0_i32 = arith.constant 0 : i32
    %c0_i32_0 = arith.constant 0 : i32
    %c0_i32_1 = arith.constant 0 : i32
    return %c0_i32, %c0_i32_0 : i32, i32
  }
  func.func @transform_10(%arg0: i32) -> (i32, i32) {
    %c0_i32 = arith.constant 0 : i32
    %c0_i32_0 = arith.constant 0 : i32
    %c0_i32_1 = arith.constant 0 : i32
    return %c0_i32, %c0_i32_0 : i32, i32
  }
  func.func @transform_11(%arg0: i32) -> (i32, i32) {
    %c0_i32 = arith.constant 0 : i32
    %c0_i32_0 = arith.constant 0 : i32
    %c0_i32_1 = arith.constant 0 : i32
    return %c0_i32, %c0_i32_0 : i32, i32
  }
  func.func @transform_12(%arg0: i32) -> (i32, i32) {
    %c0_i32 = arith.constant 0 : i32
    %c0_i32_0 = arith.constant 0 : i32
    %c0_i32_1 = arith.constant 0 : i32
    return %c0_i32, %c0_i32_0 : i32, i32
  }
  func.func @transform_13(%arg0: i32) -> (i32, i32) {
    %c0_i32 = arith.constant 0 : i32
    %c0_i32_0 = arith.constant 0 : i32
    %c0_i32_1 = arith.constant 0 : i32
    return %c0_i32, %c0_i32_0 : i32, i32
  }
  func.func @transform_14(%arg0: i32) -> (i32, i32) {
    %c0_i32 = arith.constant 0 : i32
    %c0_i32_0 = arith.constant 0 : i32
    %c0_i32_1 = arith.constant 0 : i32
    return %c0_i32, %c0_i32_0 : i32, i32
  }
  func.func @transform_15(%arg0: i32) -> (i32, i32) {
    %c0_i32 = arith.constant 0 : i32
    %c0_i32_0 = arith.constant 0 : i32
    %c0_i32_1 = arith.constant 0 : i32
    return %c0_i32, %c0_i32_0 : i32, i32
  }
  func.func @transform_16(%arg0: i32) -> (i32, i32, i32) {
    %c0_i32 = arith.constant 0 : i32
    %c0_i32_0 = arith.constant 0 : i32
    %c0_i32_1 = arith.constant 0 : i32
    %c0_i32_2 = arith.constant 0 : i32
    return %c0_i32, %c0_i32_0, %c0_i32_1 : i32, i32, i32
  }
  func.func @transform_17(%arg0: i32) -> (i32, i32) {
    %c0_i32 = arith.constant 0 : i32
    %c0_i32_0 = arith.constant 0 : i32
    %c0_i32_1 = arith.constant 0 : i32
    return %c0_i32, %c0_i32_0 : i32, i32
  }
}

module attributes {stable_mosaic.version = 11 : i64} {
  func.func @_bert_kernel(%arg0: i32, %arg1: memref<2x16x32xf32, #tpu.memory_space<vmem>>, %arg2: memref<2x1x16xf32, #tpu.memory_space<vmem>>, %arg3: memref<1x32xf32, #tpu.memory_space<vmem>>, %arg4: memref<1x32xf32, #tpu.memory_space<vmem>>, %arg5: memref<32x96xbf16, #tpu.memory_space<vmem>>, %arg6: memref<1x96xf32, #tpu.memory_space<vmem>>, %arg7: memref<32x32xbf16, #tpu.memory_space<vmem>>, %arg8: memref<1x32xf32, #tpu.memory_space<vmem>>, %arg9: memref<1x32xf32, #tpu.memory_space<vmem>>, %arg10: memref<1x32xf32, #tpu.memory_space<vmem>>, %arg11: memref<32x64xbf16, #tpu.memory_space<vmem>>, %arg12: memref<1x64xf32, #tpu.memory_space<vmem>>, %arg13: memref<64x32xbf16, #tpu.memory_space<vmem>>, %arg14: memref<1x32xf32, #tpu.memory_space<vmem>>, %arg15: memref<1x32xf32, #tpu.memory_space<vmem>>, %arg16: memref<1x32xf32, #tpu.memory_space<vmem>>, %arg17: memref<2x16x32xf32, #tpu.memory_space<vmem>>) attributes {dimension_semantics = [#tpu.dimension_semantics<parallel>], iteration_bounds = array<i64: 2>, scalar_prefetch = 0 : i64, scratch_operands = 0 : i64, tpu.core_type = #tpu.core_type<tc>, window_params = [{transform_indices = @transform_0, window_bounds = array<i64: 2, 16, 32>}, {transform_indices = @transform_1, window_bounds = array<i64: 2, 1, 16>}, {pipeline_mode = #tpu.pipeline_mode<synchronous>, transform_indices = @transform_2, window_bounds = array<i64: 1, 32>}, {pipeline_mode = #tpu.pipeline_mode<synchronous>, transform_indices = @transform_3, window_bounds = array<i64: 1, 32>}, {pipeline_mode = #tpu.pipeline_mode<synchronous>, transform_indices = @transform_4, window_bounds = array<i64: 32, 96>}, {pipeline_mode = #tpu.pipeline_mode<synchronous>, transform_indices = @transform_5, window_bounds = array<i64: 1, 96>}, {pipeline_mode = #tpu.pipeline_mode<synchronous>, transform_indices = @transform_6, window_bounds = array<i64: 32, 32>}, {pipeline_mode = #tpu.pipeline_mode<synchronous>, transform_indices = @transform_7, window_bounds = array<i64: 1, 32>}, {pipeline_mode = #tpu.pipeline_mode<synchronous>, transform_indices = @transform_8, window_bounds = array<i64: 1, 32>}, {pipeline_mode = #tpu.pipeline_mode<synchronous>, transform_indices = @transform_9, window_bounds = array<i64: 1, 32>}, {pipeline_mode = #tpu.pipeline_mode<synchronous>, transform_indices = @transform_10, window_bounds = array<i64: 32, 64>}, {pipeline_mode = #tpu.pipeline_mode<synchronous>, transform_indices = @transform_11, window_bounds = array<i64: 1, 64>}, {pipeline_mode = #tpu.pipeline_mode<synchronous>, transform_indices = @transform_12, window_bounds = array<i64: 64, 32>}, {pipeline_mode = #tpu.pipeline_mode<synchronous>, transform_indices = @transform_13, window_bounds = array<i64: 1, 32>}, {pipeline_mode = #tpu.pipeline_mode<synchronous>, transform_indices = @transform_14, window_bounds = array<i64: 1, 32>}, {pipeline_mode = #tpu.pipeline_mode<synchronous>, transform_indices = @transform_15, window_bounds = array<i64: 1, 32>}, {transform_indices = @transform_16, window_bounds = array<i64: 2, 16, 32>}]} {
    %c0 = arith.constant 0 : index
    %c0_0 = arith.constant 0 : index
    %c0_1 = arith.constant 0 : index
    %0 = vector.load %arg1[%c0, %c0_0, %c0_1] : memref<2x16x32xf32, #tpu.memory_space<vmem>>, vector<2x16x32xf32>
    %c0_2 = arith.constant 0 : index
    %c0_3 = arith.constant 0 : index
    %c0_4 = arith.constant 0 : index
    %1 = vector.load %arg2[%c0_2, %c0_3, %c0_4] : memref<2x1x16xf32, #tpu.memory_space<vmem>>, vector<2x1x16xf32>
    %2 = vector.shape_cast %0 : vector<2x16x32xf32> to vector<32x32xf32>
    %c0_5 = arith.constant 0 : index
    %c0_6 = arith.constant 0 : index
    %3 = vector.load %arg3[%c0_5, %c0_6] : memref<1x32xf32, #tpu.memory_space<vmem>>, vector<1x32xf32>
    %c0_7 = arith.constant 0 : index
    %c0_8 = arith.constant 0 : index
    %4 = vector.load %arg4[%c0_7, %c0_8] : memref<1x32xf32, #tpu.memory_space<vmem>>, vector<1x32xf32>
    %cst = arith.constant dense<0.000000e+00> : vector<32xf32>
    %5 = vector.multi_reduction <add>, %2, %cst [1] : vector<32x32xf32> to vector<32xf32>
    %6 = vector.shape_cast %5 : vector<32xf32> to vector<32x1xf32>
    %cst_9 = arith.constant 3.200000e+01 : f32
    %7 = vector.broadcast %cst_9 : f32 to vector<32x1xf32>
    %8 = arith.divf %6, %7 : vector<32x1xf32>
    %9 = vector.broadcast %8 : vector<32x1xf32> to vector<32x32xf32>
    %10 = arith.subf %2, %9 : vector<32x32xf32>
    %11 = arith.mulf %10, %10 : vector<32x32xf32>
    %cst_10 = arith.constant dense<0.000000e+00> : vector<32xf32>
    %12 = vector.multi_reduction <add>, %11, %cst_10 [1] : vector<32x32xf32> to vector<32xf32>
    %13 = vector.shape_cast %12 : vector<32xf32> to vector<32x1xf32>
    %cst_11 = arith.constant 3.200000e+01 : f32
    %14 = vector.broadcast %cst_11 : f32 to vector<32x1xf32>
    %15 = arith.divf %13, %14 : vector<32x1xf32>
    %16 = vector.broadcast %8 : vector<32x1xf32> to vector<32x32xf32>
    %17 = arith.subf %2, %16 : vector<32x32xf32>
    %cst_12 = arith.constant 9.99999996E-13 : f32
    %18 = vector.broadcast %cst_12 : f32 to vector<32x1xf32>
    %19 = arith.addf %15, %18 : vector<32x1xf32>
    %20 = math.rsqrt %19 : vector<32x1xf32>
    %21 = vector.broadcast %20 : vector<32x1xf32> to vector<32x32xf32>
    %22 = arith.mulf %17, %21 : vector<32x32xf32>
    %23 = vector.broadcast %3 : vector<1x32xf32> to vector<32x32xf32>
    %24 = arith.mulf %22, %23 : vector<32x32xf32>
    %25 = vector.broadcast %4 : vector<1x32xf32> to vector<32x32xf32>
    %26 = arith.addf %24, %25 : vector<32x32xf32>
    %27 = arith.truncf %26 : vector<32x32xf32> to vector<32x32xbf16>
    %c0_13 = arith.constant 0 : index
    %c0_14 = arith.constant 0 : index
    %28 = vector.load %arg5[%c0_13, %c0_14] : memref<32x96xbf16, #tpu.memory_space<vmem>>, vector<32x96xbf16>
    %cst_15 = arith.constant dense<0.000000e+00> : vector<32x96xf32>
    %29 = tpu.matmul %27, %28, %cst_15 {dimension_numbers = #tpu.dot_dimension_numbers<[1], [0], [0], [1], [0, 0, 1, 1], [], []>} : vector<32x32xbf16>, vector<32x96xbf16>, vector<32x96xf32> -> vector<32x96xf32>
    %c0_16 = arith.constant 0 : index
    %c0_17 = arith.constant 0 : index
    %30 = vector.load %arg6[%c0_16, %c0_17] : memref<1x96xf32, #tpu.memory_space<vmem>>, vector<1x96xf32>
    %31 = vector.broadcast %30 : vector<1x96xf32> to vector<32x96xf32>
    %32 = arith.addf %29, %31 : vector<32x96xf32>
    %33 = vector.shape_cast %32 : vector<32x96xf32> to vector<2x16x96xf32>
    %c0_18 = arith.constant 0 : index
    %c0_19 = arith.constant 0 : index
    %34 = vector.load %arg7[%c0_18, %c0_19] : memref<32x32xbf16, #tpu.memory_space<vmem>>, vector<32x32xbf16>
    %cst_20 = arith.constant 0.000000e+00 : f32
    %35 = vector.broadcast %cst_20 : f32 to vector<32x32xf32>
    %c0_21 = arith.constant 0 : index
    %c0_22 = arith.constant 0 : index
    %36 = vector.load %arg8[%c0_21, %c0_22] : memref<1x32xf32, #tpu.memory_space<vmem>>, vector<1x32xf32>
    %37 = vector.broadcast %36 : vector<1x32xf32> to vector<32x32xf32>
    %38 = arith.addf %35, %37 : vector<32x32xf32>
    %39 = vector.extract_strided_slice %33 {offsets = [0, 0, 0], sizes = [2, 16, 8], strides = [1, 1, 1]} : vector<2x16x96xf32> to vector<2x16x8xf32>
    %40 = vector.extract_strided_slice %33 {offsets = [0, 0, 32], sizes = [2, 16, 8], strides = [1, 1, 1]} : vector<2x16x96xf32> to vector<2x16x8xf32>
    %41 = vector.extract_strided_slice %33 {offsets = [0, 0, 64], sizes = [2, 16, 8], strides = [1, 1, 1]} : vector<2x16x96xf32> to vector<2x16x8xf32>
    %42 = arith.truncf %39 : vector<2x16x8xf32> to vector<2x16x8xbf16>
    %43 = arith.truncf %40 : vector<2x16x8xf32> to vector<2x16x8xbf16>
    "tpu.trace_start"() <{level = 10 : i32, message = "bqd,bkd->bqk"}> : () -> ()
    %cst_23 = arith.constant dense<0.000000e+00> : vector<2x16x16xf32>
    %44 = tpu.matmul %42, %43, %cst_23 {dimension_numbers = #tpu.dot_dimension_numbers<[2], [2], [1], [1], [0, 0, 0, 1, 1, 1], [0], [0]>} : vector<2x16x8xbf16>, vector<2x16x8xbf16>, vector<2x16x16xf32> -> vector<2x16x16xf32>
    "tpu.trace_stop"() : () -> ()
    %cst_24 = arith.constant 0.353553385 : f32
    %45 = vector.broadcast %cst_24 : f32 to vector<2x16x16xf32>
    %46 = arith.mulf %44, %45 : vector<2x16x16xf32>
    %47 = vector.broadcast %1 : vector<2x1x16xf32> to vector<2x16x16xf32>
    %48 = arith.addf %46, %47 : vector<2x16x16xf32>
    %cst_25 = arith.constant dense<0xFF800000> : vector<2x16xf32>
    %49 = vector.multi_reduction <maximumf>, %48, %cst_25 [2] : vector<2x16x16xf32> to vector<2x16xf32>
    %50 = vector.shape_cast %49 : vector<2x16xf32> to vector<2x16x1xf32>
    %51 = vector.broadcast %50 : vector<2x16x1xf32> to vector<2x16x16xf32>
    %52 = arith.subf %48, %51 : vector<2x16x16xf32>
    %53 = math.exp %52 : vector<2x16x16xf32>
    %cst_26 = arith.constant dense<0.000000e+00> : vector<2x16xf32>
    %54 = vector.multi_reduction <add>, %53, %cst_26 [2] : vector<2x16x16xf32> to vector<2x16xf32>
    %55 = vector.shape_cast %54 : vector<2x16xf32> to vector<2x16x1xf32>
    %56 = vector.broadcast %55 : vector<2x16x1xf32> to vector<2x16x16xf32>
    %57 = arith.divf %53, %56 : vector<2x16x16xf32>
    %58 = arith.truncf %57 : vector<2x16x16xf32> to vector<2x16x16xbf16>
    %59 = arith.truncf %41 : vector<2x16x8xf32> to vector<2x16x8xbf16>
    "tpu.trace_start"() <{level = 10 : i32, message = "bqk,bkd->bqd"}> : () -> ()
    %cst_27 = arith.constant dense<0.000000e+00> : vector<2x16x8xf32>
    %60 = tpu.matmul %58, %59, %cst_27 {dimension_numbers = #tpu.dot_dimension_numbers<[2], [1], [1], [2], [0, 0, 0, 1, 1, 2], [0], [0]>} : vector<2x16x16xbf16>, vector<2x16x8xbf16>, vector<2x16x8xf32> -> vector<2x16x8xf32>
    "tpu.trace_stop"() : () -> ()
    %61 = vector.shape_cast %60 : vector<2x16x8xf32> to vector<32x8xf32>
    %62 = arith.truncf %61 : vector<32x8xf32> to vector<32x8xbf16>
    %63 = vector.extract_strided_slice %34 {offsets = [0, 0], sizes = [8, 32], strides = [1, 1]} : vector<32x32xbf16> to vector<8x32xbf16>
    %cst_28 = arith.constant dense<0.000000e+00> : vector<32x32xf32>
    %64 = tpu.matmul %62, %63, %cst_28 {dimension_numbers = #tpu.dot_dimension_numbers<[1], [0], [0], [1], [0, 0, 1, 1], [], []>} : vector<32x8xbf16>, vector<8x32xbf16>, vector<32x32xf32> -> vector<32x32xf32>
    %65 = arith.addf %38, %64 : vector<32x32xf32>
    %66 = vector.extract_strided_slice %33 {offsets = [0, 0, 8], sizes = [2, 16, 8], strides = [1, 1, 1]} : vector<2x16x96xf32> to vector<2x16x8xf32>
    %67 = vector.extract_strided_slice %33 {offsets = [0, 0, 40], sizes = [2, 16, 8], strides = [1, 1, 1]} : vector<2x16x96xf32> to vector<2x16x8xf32>
    %68 = vector.extract_strided_slice %33 {offsets = [0, 0, 72], sizes = [2, 16, 8], strides = [1, 1, 1]} : vector<2x16x96xf32> to vector<2x16x8xf32>
    %69 = arith.truncf %66 : vector<2x16x8xf32> to vector<2x16x8xbf16>
    %70 = arith.truncf %67 : vector<2x16x8xf32> to vector<2x16x8xbf16>
    "tpu.trace_start"() <{level = 10 : i32, message = "bqd,bkd->bqk"}> : () -> ()
    %cst_29 = arith.constant dense<0.000000e+00> : vector<2x16x16xf32>
    %71 = tpu.matmul %69, %70, %cst_29 {dimension_numbers = #tpu.dot_dimension_numbers<[2], [2], [1], [1], [0, 0, 0, 1, 1, 1], [0], [0]>} : vector<2x16x8xbf16>, vector<2x16x8xbf16>, vector<2x16x16xf32> -> vector<2x16x16xf32>
    "tpu.trace_stop"() : () -> ()
    %cst_30 = arith.constant 0.353553385 : f32
    %72 = vector.broadcast %cst_30 : f32 to vector<2x16x16xf32>
    %73 = arith.mulf %71, %72 : vector<2x16x16xf32>
    %74 = vector.broadcast %1 : vector<2x1x16xf32> to vector<2x16x16xf32>
    %75 = arith.addf %73, %74 : vector<2x16x16xf32>
    %cst_31 = arith.constant dense<0xFF800000> : vector<2x16xf32>
    %76 = vector.multi_reduction <maximumf>, %75, %cst_31 [2] : vector<2x16x16xf32> to vector<2x16xf32>
    %77 = vector.shape_cast %76 : vector<2x16xf32> to vector<2x16x1xf32>
    %78 = vector.broadcast %77 : vector<2x16x1xf32> to vector<2x16x16xf32>
    %79 = arith.subf %75, %78 : vector<2x16x16xf32>
    %80 = math.exp %79 : vector<2x16x16xf32>
    %cst_32 = arith.constant dense<0.000000e+00> : vector<2x16xf32>
    %81 = vector.multi_reduction <add>, %80, %cst_32 [2] : vector<2x16x16xf32> to vector<2x16xf32>
    %82 = vector.shape_cast %81 : vector<2x16xf32> to vector<2x16x1xf32>
    %83 = vector.broadcast %82 : vector<2x16x1xf32> to vector<2x16x16xf32>
    %84 = arith.divf %80, %83 : vector<2x16x16xf32>
    %85 = arith.truncf %84 : vector<2x16x16xf32> to vector<2x16x16xbf16>
    %86 = arith.truncf %68 : vector<2x16x8xf32> to vector<2x16x8xbf16>
    "tpu.trace_start"() <{level = 10 : i32, message = "bqk,bkd->bqd"}> : () -> ()
    %cst_33 = arith.constant dense<0.000000e+00> : vector<2x16x8xf32>
    %87 = tpu.matmul %85, %86, %cst_33 {dimension_numbers = #tpu.dot_dimension_numbers<[2], [1], [1], [2], [0, 0, 0, 1, 1, 2], [0], [0]>} : vector<2x16x16xbf16>, vector<2x16x8xbf16>, vector<2x16x8xf32> -> vector<2x16x8xf32>
    "tpu.trace_stop"() : () -> ()
    %88 = vector.shape_cast %87 : vector<2x16x8xf32> to vector<32x8xf32>
    %89 = arith.truncf %88 : vector<32x8xf32> to vector<32x8xbf16>
    %90 = vector.extract_strided_slice %34 {offsets = [8, 0], sizes = [8, 32], strides = [1, 1]} : vector<32x32xbf16> to vector<8x32xbf16>
    %cst_34 = arith.constant dense<0.000000e+00> : vector<32x32xf32>
    %91 = tpu.matmul %89, %90, %cst_34 {dimension_numbers = #tpu.dot_dimension_numbers<[1], [0], [0], [1], [0, 0, 1, 1], [], []>} : vector<32x8xbf16>, vector<8x32xbf16>, vector<32x32xf32> -> vector<32x32xf32>
    %92 = arith.addf %65, %91 : vector<32x32xf32>
    %93 = vector.extract_strided_slice %33 {offsets = [0, 0, 16], sizes = [2, 16, 8], strides = [1, 1, 1]} : vector<2x16x96xf32> to vector<2x16x8xf32>
    %94 = vector.extract_strided_slice %33 {offsets = [0, 0, 48], sizes = [2, 16, 8], strides = [1, 1, 1]} : vector<2x16x96xf32> to vector<2x16x8xf32>
    %95 = vector.extract_strided_slice %33 {offsets = [0, 0, 80], sizes = [2, 16, 8], strides = [1, 1, 1]} : vector<2x16x96xf32> to vector<2x16x8xf32>
    %96 = arith.truncf %93 : vector<2x16x8xf32> to vector<2x16x8xbf16>
    %97 = arith.truncf %94 : vector<2x16x8xf32> to vector<2x16x8xbf16>
    "tpu.trace_start"() <{level = 10 : i32, message = "bqd,bkd->bqk"}> : () -> ()
    %cst_35 = arith.constant dense<0.000000e+00> : vector<2x16x16xf32>
    %98 = tpu.matmul %96, %97, %cst_35 {dimension_numbers = #tpu.dot_dimension_numbers<[2], [2], [1], [1], [0, 0, 0, 1, 1, 1], [0], [0]>} : vector<2x16x8xbf16>, vector<2x16x8xbf16>, vector<2x16x16xf32> -> vector<2x16x16xf32>
    "tpu.trace_stop"() : () -> ()
    %cst_36 = arith.constant 0.353553385 : f32
    %99 = vector.broadcast %cst_36 : f32 to vector<2x16x16xf32>
    %100 = arith.mulf %98, %99 : vector<2x16x16xf32>
    %101 = vector.broadcast %1 : vector<2x1x16xf32> to vector<2x16x16xf32>
    %102 = arith.addf %100, %101 : vector<2x16x16xf32>
    %cst_37 = arith.constant dense<0xFF800000> : vector<2x16xf32>
    %103 = vector.multi_reduction <maximumf>, %102, %cst_37 [2] : vector<2x16x16xf32> to vector<2x16xf32>
    %104 = vector.shape_cast %103 : vector<2x16xf32> to vector<2x16x1xf32>
    %105 = vector.broadcast %104 : vector<2x16x1xf32> to vector<2x16x16xf32>
    %106 = arith.subf %102, %105 : vector<2x16x16xf32>
    %107 = math.exp %106 : vector<2x16x16xf32>
    %cst_38 = arith.constant dense<0.000000e+00> : vector<2x16xf32>
    %108 = vector.multi_reduction <add>, %107, %cst_38 [2] : vector<2x16x16xf32> to vector<2x16xf32>
    %109 = vector.shape_cast %108 : vector<2x16xf32> to vector<2x16x1xf32>
    %110 = vector.broadcast %109 : vector<2x16x1xf32> to vector<2x16x16xf32>
    %111 = arith.divf %107, %110 : vector<2x16x16xf32>
    %112 = arith.truncf %111 : vector<2x16x16xf32> to vector<2x16x16xbf16>
    %113 = arith.truncf %95 : vector<2x16x8xf32> to vector<2x16x8xbf16>
    "tpu.trace_start"() <{level = 10 : i32, message = "bqk,bkd->bqd"}> : () -> ()
    %cst_39 = arith.constant dense<0.000000e+00> : vector<2x16x8xf32>
    %114 = tpu.matmul %112, %113, %cst_39 {dimension_numbers = #tpu.dot_dimension_numbers<[2], [1], [1], [2], [0, 0, 0, 1, 1, 2], [0], [0]>} : vector<2x16x16xbf16>, vector<2x16x8xbf16>, vector<2x16x8xf32> -> vector<2x16x8xf32>
    "tpu.trace_stop"() : () -> ()
    %115 = vector.shape_cast %114 : vector<2x16x8xf32> to vector<32x8xf32>
    %116 = arith.truncf %115 : vector<32x8xf32> to vector<32x8xbf16>
    %117 = vector.extract_strided_slice %34 {offsets = [16, 0], sizes = [8, 32], strides = [1, 1]} : vector<32x32xbf16> to vector<8x32xbf16>
    %cst_40 = arith.constant dense<0.000000e+00> : vector<32x32xf32>
    %118 = tpu.matmul %116, %117, %cst_40 {dimension_numbers = #tpu.dot_dimension_numbers<[1], [0], [0], [1], [0, 0, 1, 1], [], []>} : vector<32x8xbf16>, vector<8x32xbf16>, vector<32x32xf32> -> vector<32x32xf32>
    %119 = arith.addf %92, %118 : vector<32x32xf32>
    %120 = vector.extract_strided_slice %33 {offsets = [0, 0, 24], sizes = [2, 16, 8], strides = [1, 1, 1]} : vector<2x16x96xf32> to vector<2x16x8xf32>
    %121 = vector.extract_strided_slice %33 {offsets = [0, 0, 56], sizes = [2, 16, 8], strides = [1, 1, 1]} : vector<2x16x96xf32> to vector<2x16x8xf32>
    %122 = vector.extract_strided_slice %33 {offsets = [0, 0, 88], sizes = [2, 16, 8], strides = [1, 1, 1]} : vector<2x16x96xf32> to vector<2x16x8xf32>
    %123 = arith.truncf %120 : vector<2x16x8xf32> to vector<2x16x8xbf16>
    %124 = arith.truncf %121 : vector<2x16x8xf32> to vector<2x16x8xbf16>
    "tpu.trace_start"() <{level = 10 : i32, message = "bqd,bkd->bqk"}> : () -> ()
    %cst_41 = arith.constant dense<0.000000e+00> : vector<2x16x16xf32>
    %125 = tpu.matmul %123, %124, %cst_41 {dimension_numbers = #tpu.dot_dimension_numbers<[2], [2], [1], [1], [0, 0, 0, 1, 1, 1], [0], [0]>} : vector<2x16x8xbf16>, vector<2x16x8xbf16>, vector<2x16x16xf32> -> vector<2x16x16xf32>
    "tpu.trace_stop"() : () -> ()
    %cst_42 = arith.constant 0.353553385 : f32
    %126 = vector.broadcast %cst_42 : f32 to vector<2x16x16xf32>
    %127 = arith.mulf %125, %126 : vector<2x16x16xf32>
    %128 = vector.broadcast %1 : vector<2x1x16xf32> to vector<2x16x16xf32>
    %129 = arith.addf %127, %128 : vector<2x16x16xf32>
    %cst_43 = arith.constant dense<0xFF800000> : vector<2x16xf32>
    %130 = vector.multi_reduction <maximumf>, %129, %cst_43 [2] : vector<2x16x16xf32> to vector<2x16xf32>
    %131 = vector.shape_cast %130 : vector<2x16xf32> to vector<2x16x1xf32>
    %132 = vector.broadcast %131 : vector<2x16x1xf32> to vector<2x16x16xf32>
    %133 = arith.subf %129, %132 : vector<2x16x16xf32>
    %134 = math.exp %133 : vector<2x16x16xf32>
    %cst_44 = arith.constant dense<0.000000e+00> : vector<2x16xf32>
    %135 = vector.multi_reduction <add>, %134, %cst_44 [2] : vector<2x16x16xf32> to vector<2x16xf32>
    %136 = vector.shape_cast %135 : vector<2x16xf32> to vector<2x16x1xf32>
    %137 = vector.broadcast %136 : vector<2x16x1xf32> to vector<2x16x16xf32>
    %138 = arith.divf %134, %137 : vector<2x16x16xf32>
    %139 = arith.truncf %138 : vector<2x16x16xf32> to vector<2x16x16xbf16>
    %140 = arith.truncf %122 : vector<2x16x8xf32> to vector<2x16x8xbf16>
    "tpu.trace_start"() <{level = 10 : i32, message = "bqk,bkd->bqd"}> : () -> ()
    %cst_45 = arith.constant dense<0.000000e+00> : vector<2x16x8xf32>
    %141 = tpu.matmul %139, %140, %cst_45 {dimension_numbers = #tpu.dot_dimension_numbers<[2], [1], [1], [2], [0, 0, 0, 1, 1, 2], [0], [0]>} : vector<2x16x16xbf16>, vector<2x16x8xbf16>, vector<2x16x8xf32> -> vector<2x16x8xf32>
    "tpu.trace_stop"() : () -> ()
    %142 = vector.shape_cast %141 : vector<2x16x8xf32> to vector<32x8xf32>
    %143 = arith.truncf %142 : vector<32x8xf32> to vector<32x8xbf16>
    %144 = vector.extract_strided_slice %34 {offsets = [24, 0], sizes = [8, 32], strides = [1, 1]} : vector<32x32xbf16> to vector<8x32xbf16>
    %cst_46 = arith.constant dense<0.000000e+00> : vector<32x32xf32>
    %145 = tpu.matmul %143, %144, %cst_46 {dimension_numbers = #tpu.dot_dimension_numbers<[1], [0], [0], [1], [0, 0, 1, 1], [], []>} : vector<32x8xbf16>, vector<8x32xbf16>, vector<32x32xf32> -> vector<32x32xf32>
    %146 = arith.addf %119, %145 : vector<32x32xf32>
    %147 = arith.addf %26, %146 : vector<32x32xf32>
    %c0_47 = arith.constant 0 : index
    %c0_48 = arith.constant 0 : index
    %148 = vector.load %arg9[%c0_47, %c0_48] : memref<1x32xf32, #tpu.memory_space<vmem>>, vector<1x32xf32>
    %c0_49 = arith.constant 0 : index
    %c0_50 = arith.constant 0 : index
    %149 = vector.load %arg10[%c0_49, %c0_50] : memref<1x32xf32, #tpu.memory_space<vmem>>, vector<1x32xf32>
    %cst_51 = arith.constant dense<0.000000e+00> : vector<32xf32>
    %150 = vector.multi_reduction <add>, %147, %cst_51 [1] : vector<32x32xf32> to vector<32xf32>
    %151 = vector.shape_cast %150 : vector<32xf32> to vector<32x1xf32>
    %cst_52 = arith.constant 3.200000e+01 : f32
    %152 = vector.broadcast %cst_52 : f32 to vector<32x1xf32>
    %153 = arith.divf %151, %152 : vector<32x1xf32>
    %154 = vector.broadcast %153 : vector<32x1xf32> to vector<32x32xf32>
    %155 = arith.subf %147, %154 : vector<32x32xf32>
    %156 = arith.mulf %155, %155 : vector<32x32xf32>
    %cst_53 = arith.constant dense<0.000000e+00> : vector<32xf32>
    %157 = vector.multi_reduction <add>, %156, %cst_53 [1] : vector<32x32xf32> to vector<32xf32>
    %158 = vector.shape_cast %157 : vector<32xf32> to vector<32x1xf32>
    %cst_54 = arith.constant 3.200000e+01 : f32
    %159 = vector.broadcast %cst_54 : f32 to vector<32x1xf32>
    %160 = arith.divf %158, %159 : vector<32x1xf32>
    %161 = vector.broadcast %153 : vector<32x1xf32> to vector<32x32xf32>
    %162 = arith.subf %147, %161 : vector<32x32xf32>
    %cst_55 = arith.constant 9.99999996E-13 : f32
    %163 = vector.broadcast %cst_55 : f32 to vector<32x1xf32>
    %164 = arith.addf %160, %163 : vector<32x1xf32>
    %165 = math.rsqrt %164 : vector<32x1xf32>
    %166 = vector.broadcast %165 : vector<32x1xf32> to vector<32x32xf32>
    %167 = arith.mulf %162, %166 : vector<32x32xf32>
    %168 = vector.broadcast %148 : vector<1x32xf32> to vector<32x32xf32>
    %169 = arith.mulf %167, %168 : vector<32x32xf32>
    %170 = vector.broadcast %149 : vector<1x32xf32> to vector<32x32xf32>
    %171 = arith.addf %169, %170 : vector<32x32xf32>
    %172 = arith.truncf %171 : vector<32x32xf32> to vector<32x32xbf16>
    %c0_56 = arith.constant 0 : index
    %c0_57 = arith.constant 0 : index
    %173 = vector.load %arg11[%c0_56, %c0_57] : memref<32x64xbf16, #tpu.memory_space<vmem>>, vector<32x64xbf16>
    %cst_58 = arith.constant dense<0.000000e+00> : vector<32x64xf32>
    %174 = tpu.matmul %172, %173, %cst_58 {dimension_numbers = #tpu.dot_dimension_numbers<[1], [0], [0], [1], [0, 0, 1, 1], [], []>} : vector<32x32xbf16>, vector<32x64xbf16>, vector<32x64xf32> -> vector<32x64xf32>
    %c0_59 = arith.constant 0 : index
    %c0_60 = arith.constant 0 : index
    %175 = vector.load %arg12[%c0_59, %c0_60] : memref<1x64xf32, #tpu.memory_space<vmem>>, vector<1x64xf32>
    %176 = vector.broadcast %175 : vector<1x64xf32> to vector<32x64xf32>
    %177 = arith.addf %174, %176 : vector<32x64xf32>
    %cst_61 = arith.constant 5.000000e-01 : f32
    %178 = vector.broadcast %cst_61 : f32 to vector<32x64xf32>
    %179 = arith.mulf %178, %177 : vector<32x64xf32>
    %cst_62 = arith.constant 4.471500e-02 : f32
    %180 = vector.broadcast %cst_62 : f32 to vector<32x64xf32>
    %181 = arith.mulf %180, %177 : vector<32x64xf32>
    %182 = arith.mulf %181, %177 : vector<32x64xf32>
    %183 = arith.mulf %182, %177 : vector<32x64xf32>
    %184 = arith.addf %177, %183 : vector<32x64xf32>
    %cst_63 = arith.constant 0.797884583 : f32
    %185 = vector.broadcast %cst_63 : f32 to vector<32x64xf32>
    %186 = arith.mulf %185, %184 : vector<32x64xf32>
    %187 = math.tanh %186 : vector<32x64xf32>
    %cst_64 = arith.constant 1.000000e+00 : f32
    %188 = vector.broadcast %cst_64 : f32 to vector<32x64xf32>
    %189 = arith.addf %188, %187 : vector<32x64xf32>
    %190 = arith.mulf %179, %189 : vector<32x64xf32>
    %191 = arith.truncf %190 : vector<32x64xf32> to vector<32x64xbf16>
    %c0_65 = arith.constant 0 : index
    %c0_66 = arith.constant 0 : index
    %192 = vector.load %arg13[%c0_65, %c0_66] : memref<64x32xbf16, #tpu.memory_space<vmem>>, vector<64x32xbf16>
    %cst_67 = arith.constant dense<0.000000e+00> : vector<32x32xf32>
    %193 = tpu.matmul %191, %192, %cst_67 {dimension_numbers = #tpu.dot_dimension_numbers<[1], [0], [0], [1], [0, 0, 1, 1], [], []>} : vector<32x64xbf16>, vector<64x32xbf16>, vector<32x32xf32> -> vector<32x32xf32>
    %c0_68 = arith.constant 0 : index
    %c0_69 = arith.constant 0 : index
    %194 = vector.load %arg14[%c0_68, %c0_69] : memref<1x32xf32, #tpu.memory_space<vmem>>, vector<1x32xf32>
    %195 = vector.broadcast %194 : vector<1x32xf32> to vector<32x32xf32>
    %196 = arith.addf %193, %195 : vector<32x32xf32>
    %197 = arith.addf %171, %196 : vector<32x32xf32>
    %c0_70 = arith.constant 0 : index
    %c0_71 = arith.constant 0 : index
    %198 = vector.load %arg15[%c0_70, %c0_71] : memref<1x32xf32, #tpu.memory_space<vmem>>, vector<1x32xf32>
    %c0_72 = arith.constant 0 : index
    %c0_73 = arith.constant 0 : index
    %199 = vector.load %arg16[%c0_72, %c0_73] : memref<1x32xf32, #tpu.memory_space<vmem>>, vector<1x32xf32>
    %cst_74 = arith.constant dense<0.000000e+00> : vector<32xf32>
    %200 = vector.multi_reduction <add>, %197, %cst_74 [1] : vector<32x32xf32> to vector<32xf32>
    %201 = vector.shape_cast %200 : vector<32xf32> to vector<32x1xf32>
    %cst_75 = arith.constant 3.200000e+01 : f32
    %202 = vector.broadcast %cst_75 : f32 to vector<32x1xf32>
    %203 = arith.divf %201, %202 : vector<32x1xf32>
    %204 = vector.broadcast %203 : vector<32x1xf32> to vector<32x32xf32>
    %205 = arith.subf %197, %204 : vector<32x32xf32>
    %206 = arith.mulf %205, %205 : vector<32x32xf32>
    %cst_76 = arith.constant dense<0.000000e+00> : vector<32xf32>
    %207 = vector.multi_reduction <add>, %206, %cst_76 [1] : vector<32x32xf32> to vector<32xf32>
    %208 = vector.shape_cast %207 : vector<32xf32> to vector<32x1xf32>
    %cst_77 = arith.constant 3.200000e+01 : f32
    %209 = vector.broadcast %cst_77 : f32 to vector<32x1xf32>
    %210 = arith.divf %208, %209 : vector<32x1xf32>
    %211 = vector.broadcast %203 : vector<32x1xf32> to vector<32x32xf32>
    %212 = arith.subf %197, %211 : vector<32x32xf32>
    %cst_78 = arith.constant 9.99999996E-13 : f32
    %213 = vector.broadcast %cst_78 : f32 to vector<32x1xf32>
    %214 = arith.addf %210, %213 : vector<32x1xf32>
    %215 = math.rsqrt %214 : vector<32x1xf32>
    %216 = vector.broadcast %215 : vector<32x1xf32> to vector<32x32xf32>
    %217 = arith.mulf %212, %216 : vector<32x32xf32>
    %218 = vector.broadcast %198 : vector<1x32xf32> to vector<32x32xf32>
    %219 = arith.mulf %217, %218 : vector<32x32xf32>
    %220 = vector.broadcast %199 : vector<1x32xf32> to vector<32x32xf32>
    %221 = arith.addf %219, %220 : vector<32x32xf32>
    %222 = vector.shape_cast %221 : vector<32x32xf32> to vector<2x16x32xf32>
    %c0_79 = arith.constant 0 : index
    %c0_80 = arith.constant 0 : index
    %c0_81 = arith.constant 0 : index
    %223 = vector.load %arg17[%c0_79, %c0_80, %c0_81] : memref<2x16x32xf32, #tpu.memory_space<vmem>>, vector<2x16x32xf32>
    tpu.vector_store %arg17[%c0_79, %c0_80, %c0_81], %222 {strides = array<i32>} : memref<2x16x32xf32, #tpu.memory_space<vmem>>, vector<2x16x32xf32>,
    return
  }
  func.func @transform_0(%arg0: i32) -> (i32, i32, i32) {
    %c0_i32 = arith.constant 0 : i32
    %c0_i32_0 = arith.constant 0 : i32
    %c0_i32_1 = arith.constant 0 : i32
    return %arg0, %c0_i32, %c0_i32_0 : i32, i32, i32
  }
  func.func @transform_1(%arg0: i32) -> (i32, i32, i32) {
    %c0_i32 = arith.constant 0 : i32
    %c0_i32_0 = arith.constant 0 : i32
    %c0_i32_1 = arith.constant 0 : i32
    return %arg0, %c0_i32, %c0_i32_0 : i32, i32, i32
  }
  func.func @transform_2(%arg0: i32) -> (i32, i32) {
    %c0_i32 = arith.constant 0 : i32
    %c0_i32_0 = arith.constant 0 : i32
    %c0_i32_1 = arith.constant 0 : i32
    return %c0_i32, %c0_i32_0 : i32, i32
  }
  func.func @transform_3(%arg0: i32) -> (i32, i32) {
    %c0_i32 = arith.constant 0 : i32
    %c0_i32_0 = arith.constant 0 : i32
    %c0_i32_1 = arith.constant 0 : i32
    return %c0_i32, %c0_i32_0 : i32, i32
  }
  func.func @transform_4(%arg0: i32) -> (i32, i32) {
    %c0_i32 = arith.constant 0 : i32
    %c0_i32_0 = arith.constant 0 : i32
    %c0_i32_1 = arith.constant 0 : i32
    return %c0_i32, %c0_i32_0 : i32, i32
  }
  func.func @transform_5(%arg0: i32) -> (i32, i32) {
    %c0_i32 = arith.constant 0 : i32
    %c0_i32_0 = arith.constant 0 : i32
    %c0_i32_1 = arith.constant 0 : i32
    return %c0_i32, %c0_i32_0 : i32, i32
  }
  func.func @transform_6(%arg0: i32) -> (i32, i32) {
    %c0_i32 = arith.constant 0 : i32
    %c0_i32_0 = arith.constant 0 : i32
    %c0_i32_1 = arith.constant 0 : i32
    return %c0_i32, %c0_i32_0 : i32, i32
  }
  func.func @transform_7(%arg0: i32) -> (i32, i32) {
    %c0_i32 = arith.constant 0 : i32
    %c0_i32_0 = arith.constant 0 : i32
    %c0_i32_1 = arith.constant 0 : i32
    return %c0_i32, %c0_i32_0 : i32, i32
  }
  func.func @transform_8(%arg0: i32) -> (i32, i32) {
    %c0_i32 = arith.constant 0 : i32
    %c0_i32_0 = arith.constant 0 : i32
    %c0_i32_1 = arith.constant 0 : i32
    return %c0_i32, %c0_i32_0 : i32, i32
  }
  func.func @transform_9(%arg0: i32) -> (i32, i32) {
    %c0_i32 = arith.constant 0 : i32
    %c0_i32_0 = arith.constant 0 : i32
    %c0_i32_1 = arith.constant 0 : i32
    return %c0_i32, %c0_i32_0 : i32, i32
  }
  func.func @transform_10(%arg0: i32) -> (i32, i32) {
    %c0_i32 = arith.constant 0 : i32
    %c0_i32_0 = arith.constant 0 : i32
    %c0_i32_1 = arith.constant 0 : i32
    return %c0_i32, %c0_i32_0 : i32, i32
  }
  func.func @transform_11(%arg0: i32) -> (i32, i32) {
    %c0_i32 = arith.constant 0 : i32
    %c0_i32_0 = arith.constant 0 : i32
    %c0_i32_1 = arith.constant 0 : i32
    return %c0_i32, %c0_i32_0 : i32, i32
  }
  func.func @transform_12(%arg0: i32) -> (i32, i32) {
    %c0_i32 = arith.constant 0 : i32
    %c0_i32_0 = arith.constant 0 : i32
    %c0_i32_1 = arith.constant 0 : i32
    return %c0_i32, %c0_i32_0 : i32, i32
  }
  func.func @transform_13(%arg0: i32) -> (i32, i32) {
    %c0_i32 = arith.constant 0 : i32
    %c0_i32_0 = arith.constant 0 : i32
    %c0_i32_1 = arith.constant 0 : i32
    return %c0_i32, %c0_i32_0 : i32, i32
  }
  func.func @transform_14(%arg0: i32) -> (i32, i32) {
    %c0_i32 = arith.constant 0 : i32
    %c0_i32_0 = arith.constant 0 : i32
    %c0_i32_1 = arith.constant 0 : i32
    return %c0_i32, %c0_i32_0 : i32, i32
  }
  func.func @transform_15(%arg0: i32) -> (i32, i32) {
    %c0_i32 = arith.constant 0 : i32
    %c0_i32_0 = arith.constant 0 : i32
    %c0_i32_1 = arith.constant 0 : i32
    return %c0_i32, %c0_i32_0 : i32, i32
  }
  func.func @transform_16(%arg0: i32) -> (i32, i32, i32) {
    %c0_i32 = arith.constant 0 : i32
    %c0_i32_0 = arith.constant 0 : i32
    %c0_i32_1 = arith.constant 0 : i32
    return %arg0, %c0_i32, %c0_i32_0 : i32, i32, i32
  }
}

</mosaic_0001>

<llo_original>
// kernel: aen_bert_forward.4
$region0: #{aen_bert_forward.4}
  #allocation0 [shape = 'u32[]', space=smem, size = 0x4, offset = 0x4, fixed_abs, tag = 'smem constant byte address 0x4 - core index']
  #allocation1 [shape = 'u32[144,128]{1,0:T(1,128)}', space=vmem, size = 0x12000, scoped, tag = 'internal scratch']
  %s0 = inlined_call_operand.vmem [shape: f32[4,16,32], index: 0, kind: input, shape index: {}]
  %s1 = inlined_call_operand.vmem [shape: f32[4,1,16], index: 1, kind: input, shape index: {}]
  %s2 = inlined_call_operand.vmem [shape: f32[1,32], index: 2, kind: input, shape index: {}]
  %s3 = inlined_call_operand.vmem [shape: f32[1,32], index: 3, kind: input, shape index: {}]
  %s4 = inlined_call_operand.vmem [shape: bf16[32,96], index: 4, kind: input, shape index: {}]
  %s5 = inlined_call_operand.vmem [shape: f32[1,96], index: 5, kind: input, shape index: {}]
  %s6 = inlined_call_operand.vmem [shape: bf16[32,32], index: 6, kind: input, shape index: {}]
  %s7 = inlined_call_operand.vmem [shape: f32[1,32], index: 7, kind: input, shape index: {}]
  %s8 = inlined_call_operand.vmem [shape: f32[1,32], index: 8, kind: input, shape index: {}]
  %s9 = inlined_call_operand.vmem [shape: f32[1,32], index: 9, kind: input, shape index: {}]
  %s10 = inlined_call_operand.vmem [shape: bf16[32,64], index: 10, kind: input, shape index: {}]
  %s11 = inlined_call_operand.vmem [shape: f32[1,64], index: 11, kind: input, shape index: {}]
  %s12 = inlined_call_operand.vmem [shape: bf16[64,32], index: 12, kind: input, shape index: {}]
  %s13 = inlined_call_operand.vmem [shape: f32[1,32], index: 13, kind: input, shape index: {}]
  %s14 = inlined_call_operand.vmem [shape: f32[1,32], index: 14, kind: input, shape index: {}]
  %s15 = inlined_call_operand.vmem [shape: f32[1,32], index: 15, kind: input, shape index: {}]
  %s16 = inlined_call_operand.vmem [shape: f32[4,16,32], index: 16, kind: output, shape index: {}]
  %s17 = sld [smem:[#allocation0]]
  $region97: #{aen_bert_forward.4} parent=0
    _
  %s19 = ssub.s32 1, %s17
  %s20 = scalar_select 0, %s19, %s17
  loop: start=0, step=1, limit=4
  $region2: #{aen_bert_forward.4} parent=0 // loop_pre_header
    _
  $region3: #{aen_bert_forward.4} parent=0 // loop_header
    %s22 = sphi 0, %s26
    %p23 = scmp.ge.s32.totalorder %s22, 4
    %s32 = sphi 0, %s34
    %s35 = sphi 0, %s32
    %s36 = sphi 0, %s35
    %s52 = sphi 0, %s36
    %s58 = sphi 0, %s60
    %s61 = sphi 0, %s58
    %s62 = sphi 0, %s61
    %s78 = sphi 0, %s62
    %s82 = sphi 0, %s82
    %s84 = sphi 0, %s82
    %s85 = sphi 0, %s84
    %s99 = sphi 0, %s85
    %s103 = sphi 0, %s103
    %s105 = sphi 0, %s103
    %s106 = sphi 0, %s105
    %s120 = sphi 0, %s106
    %s124 = sphi 0, %s124
    %s126 = sphi 0, %s124
    %s127 = sphi 0, %s126
    %s141 = sphi 0, %s127
    %s145 = sphi 0, %s145
    %s147 = sphi 0, %s145
    %s148 = sphi 0, %s147
    %s162 = sphi 0, %s148
    %s166 = sphi 0, %s166
    %s168 = sphi 0, %s166
    %s169 = sphi 0, %s168
    %s183 = sphi 0, %s169
    %s187 = sphi 0, %s187
    %s189 = sphi 0, %s187
    %s190 = sphi 0, %s189
    %s204 = sphi 0, %s190
    %s208 = sphi 0, %s208
    %s210 = sphi 0, %s208
    %s211 = sphi 0, %s210
    %s225 = sphi 0, %s211
    %s229 = sphi 0, %s229
    %s231 = sphi 0, %s229
    %s232 = sphi 0, %s231
    %s246 = sphi 0, %s232
    %s250 = sphi 0, %s250
    %s252 = sphi 0, %s250
    %s253 = sphi 0, %s252
    %s267 = sphi 0, %s253
    %s271 = sphi 0, %s271
    %s273 = sphi 0, %s271
    %s274 = sphi 0, %s273
    %s288 = sphi 0, %s274
    %s292 = sphi 0, %s292
    %s294 = sphi 0, %s292
    %s295 = sphi 0, %s294
    %s309 = sphi 0, %s295
    %s313 = sphi 0, %s313
    %s315 = sphi 0, %s313
    %s316 = sphi 0, %s315
    %s330 = sphi 0, %s316
    %s334 = sphi 0, %s334
    %s336 = sphi 0, %s334
    %s337 = sphi 0, %s336
    %s351 = sphi 0, %s337
    %s355 = sphi 0, %s355
    %s357 = sphi 0, %s355
    %s358 = sphi 0, %s357
    %s372 = sphi 0, %s358
    %s378 = sphi 0, %s380
    %s381 = sphi 0, %s378
    %s382 = sphi 0, %s381
    %s398 = sphi 0, %s382
  $region4: #{aen_bert_forward.4} parent=0 // loop_header_branch
    %25 = sbr.rel (%p23) target = $region8
  $region5: #{aen_bert_forward.4} parent=0 // loop_body
    %s27 = ssub.s32 %s22, 1
    %s28 = ssub.s32 %s22, 2
    %s29 = sadd.s32 %s22, 1
    %s30 = ssub.s32 %s22, %s29
    %p31 = scmp.eq.s32.totalorder %s30, 0
    %s33 = sadd.s32 %s32, 1
    %s34 = scalar_select %p31, %s32, %s33
    %p37 = pneg %p31
    %p38 = scmp.eq.s32.totalorder %s22, 1
    %p39 = por %p37, %p38
    %p40 = scmp.ne.s32.totalorder %s32, %s35
    %p41 = scmp.eq.s32.totalorder %s22, 0
    %p42 = por %p40, %p41
    %p43 = scmp.ne.s32.totalorder %s32, %s35
    %p44 = scmp.eq.s32.totalorder %s27, 1
    %p45 = por %p43, %p44
    %p46 = scmp.ne.s32.totalorder %s35, %s36
    %p47 = scmp.eq.s32.totalorder %s27, 0
    %p48 = por %p46, %p47
    %p49 = scmp.ne.s32.totalorder %s35, %s36
    %p50 = scmp.eq.s32.totalorder %s28, 1
    %p51 = por %p49, %p50
    %p53 = scmp.ne.s32.totalorder %s36, %s52
    %p54 = scmp.eq.s32.totalorder %s28, 0
    %p55 = por %p53, %p54
    %s56 = ssub.s32 %s22, %s29
    %p57 = scmp.eq.s32.totalorder %s56, 0
    %s59 = sadd.s32 %s58, 1
    %s60 = scalar_select %p57, %s58, %s59
    %p63 = pneg %p57
    %p64 = scmp.eq.s32.totalorder %s22, 1
    %p65 = por %p63, %p64
    %p66 = scmp.ne.s32.totalorder %s58, %s61
    %p67 = scmp.eq.s32.totalorder %s22, 0
    %p68 = por %p66, %p67
    %p69 = scmp.ne.s32.totalorder %s58, %s61
    %p70 = scmp.eq.s32.totalorder %s27, 1
    %p71 = por %p69, %p70
    %p72 = scmp.ne.s32.totalorder %s61, %s62
    %p73 = scmp.eq.s32.totalorder %s27, 0
    %p74 = por %p72, %p73
    %p75 = scmp.ne.s32.totalorder %s61, %s62
    %p76 = scmp.eq.s32.totalorder %s28, 1
    %p77 = por %p75, %p76
    %p79 = scmp.ne.s32.totalorder %s62, %s78
    %p80 = scmp.eq.s32.totalorder %s28, 0
    %p81 = por %p79, %p80
    %s83 = sadd.s32 %s82, 1
    %p86 = scmp.eq.s32.totalorder %s22, 1
    %p87 = scmp.ne.s32.totalorder %s82, %s84
    %p88 = scmp.eq.s32.totalorder %s22, 0
    %p89 = por %p87, %p88
    %p90 = scmp.ne.s32.totalorder %s82, %s84
    %p91 = scmp.eq.s32.totalorder %s27, 1
    %p92 = por %p90, %p91
    %p93 = scmp.ne.s32.totalorder %s84, %s85
    %p94 = scmp.eq.s32.totalorder %s27, 0
    %p95 = por %p93, %p94
    %p96 = scmp.ne.s32.totalorder %s84, %s85
    %p97 = scmp.eq.s32.totalorder %s28, 1
    %p98 = por %p96, %p97
    %p100 = scmp.ne.s32.totalorder %s85, %s99
    %p101 = scmp.eq.s32.totalorder %s28, 0
    %p102 = por %p100, %p101
    %s104 = sadd.s32 %s103, 1
    %p107 = scmp.eq.s32.totalorder %s22, 1
    %p108 = scmp.ne.s32.totalorder %s103, %s105
    %p109 = scmp.eq.s32.totalorder %s22, 0
    %p110 = por %p108, %p109
    %p111 = scmp.ne.s32.totalorder %s103, %s105
    %p112 = scmp.eq.s32.totalorder %s27, 1
    %p113 = por %p111, %p112
    %p114 = scmp.ne.s32.totalorder %s105, %s106
    %p115 = scmp.eq.s32.totalorder %s27, 0
    %p116 = por %p114, %p115
    %p117 = scmp.ne.s32.totalorder %s105, %s106
    %p118 = scmp.eq.s32.totalorder %s28, 1
    %p119 = por %p117, %p118
    %p121 = scmp.ne.s32.totalorder %s106, %s120
    %p122 = scmp.eq.s32.totalorder %s28, 0
    %p123 = por %p121, %p122
    %s125 = sadd.s32 %s124, 1
    %p128 = scmp.eq.s32.totalorder %s22, 1
    %p129 = scmp.ne.s32.totalorder %s124, %s126
    %p130 = scmp.eq.s32.totalorder %s22, 0
    %p131 = por %p129, %p130
    %p132 = scmp.ne.s32.totalorder %s124, %s126
    %p133 = scmp.eq.s32.totalorder %s27, 1
    %p134 = por %p132, %p133
    %p135 = scmp.ne.s32.totalorder %s126, %s127
    %p136 = scmp.eq.s32.totalorder %s27, 0
    %p137 = por %p135, %p136
    %p138 = scmp.ne.s32.totalorder %s126, %s127
    %p139 = scmp.eq.s32.totalorder %s28, 1
    %p140 = por %p138, %p139
    %p142 = scmp.ne.s32.totalorder %s127, %s141
    %p143 = scmp.eq.s32.totalorder %s28, 0
    %p144 = por %p142, %p143
    %s146 = sadd.s32 %s145, 1
    %p149 = scmp.eq.s32.totalorder %s22, 1
    %p150 = scmp.ne.s32.totalorder %s145, %s147
    %p151 = scmp.eq.s32.totalorder %s22, 0
    %p152 = por %p150, %p151
    %p153 = scmp.ne.s32.totalorder %s145, %s147
    %p154 = scmp.eq.s32.totalorder %s27, 1
    %p155 = por %p153, %p154
    %p156 = scmp.ne.s32.totalorder %s147, %s148
    %p157 = scmp.eq.s32.totalorder %s27, 0
    %p158 = por %p156, %p157
    %p159 = scmp.ne.s32.totalorder %s147, %s148
    %p160 = scmp.eq.s32.totalorder %s28, 1
    %p161 = por %p159, %p160
    %p163 = scmp.ne.s32.totalorder %s148, %s162
    %p164 = scmp.eq.s32.totalorder %s28, 0
    %p165 = por %p163, %p164
    %s167 = sadd.s32 %s166, 1
    %p170 = scmp.eq.s32.totalorder %s22, 1
    %p171 = scmp.ne.s32.totalorder %s166, %s168
    %p172 = scmp.eq.s32.totalorder %s22, 0
    %p173 = por %p171, %p172
    %p174 = scmp.ne.s32.totalorder %s166, %s168
    %p175 = scmp.eq.s32.totalorder %s27, 1
    %p176 = por %p174, %p175
    %p177 = scmp.ne.s32.totalorder %s168, %s169
    %p178 = scmp.eq.s32.totalorder %s27, 0
    %p179 = por %p177, %p178
    %p180 = scmp.ne.s32.totalorder %s168, %s169
    %p181 = scmp.eq.s32.totalorder %s28, 1
    %p182 = por %p180, %p181
    %p184 = scmp.ne.s32.totalorder %s169, %s183
    %p185 = scmp.eq.s32.totalorder %s28, 0
    %p186 = por %p184, %p185
    %s188 = sadd.s32 %s187, 1
    %p191 = scmp.eq.s32.totalorder %s22, 1
    %p192 = scmp.ne.s32.totalorder %s187, %s189
    %p193 = scmp.eq.s32.totalorder %s22, 0
    %p194 = por %p192, %p193
    %p195 = scmp.ne.s32.totalorder %s187, %s189
    %p196 = scmp.eq.s32.totalorder %s27, 1
    %p197 = por %p195, %p196
    %p198 = scmp.ne.s32.totalorder %s189, %s190
    %p199 = scmp.eq.s32.totalorder %s27, 0
    %p200 = por %p198, %p199
    %p201 = scmp.ne.s32.totalorder %s189, %s190
    %p202 = scmp.eq.s32.totalorder %s28, 1
    %p203 = por %p201, %p202
    %p205 = scmp.ne.s32.totalorder %s190, %s204
    %p206 = scmp.eq.s32.totalorder %s28, 0
    %p207 = por %p205, %p206
    %s209 = sadd.s32 %s208, 1
    %p212 = scmp.eq.s32.totalorder %s22, 1
    %p213 = scmp.ne.s32.totalorder %s208, %s210
    %p214 = scmp.eq.s32.totalorder %s22, 0
    %p215 = por %p213, %p214
    %p216 = scmp.ne.s32.totalorder %s208, %s210
    %p217 = scmp.eq.s32.totalorder %s27, 1
    %p218 = por %p216, %p217
    %p219 = scmp.ne.s32.totalorder %s210, %s211
    %p220 = scmp.eq.s32.totalorder %s27, 0
    %p221 = por %p219, %p220
    %p222 = scmp.ne.s32.totalorder %s210, %s211
    %p223 = scmp.eq.s32.totalorder %s28, 1
    %p224 = por %p222, %p223
    %p226 = scmp.ne.s32.totalorder %s211, %s225
    %p227 = scmp.eq.s32.totalorder %s28, 0
    %p228 = por %p226, %p227
    %s230 = sadd.s32 %s229, 1
    %p233 = scmp.eq.s32.totalorder %s22, 1
    %p234 = scmp.ne.s32.totalorder %s229, %s231
    %p235 = scmp.eq.s32.totalorder %s22, 0
    %p236 = por %p234, %p235
    %p237 = scmp.ne.s32.totalorder %s229, %s231
    %p238 = scmp.eq.s32.totalorder %s27, 1
    %p239 = por %p237, %p238
    %p240 = scmp.ne.s32.totalorder %s231, %s232
    %p241 = scmp.eq.s32.totalorder %s27, 0
    %p242 = por %p240, %p241
    %p243 = scmp.ne.s32.totalorder %s231, %s232
    %p244 = scmp.eq.s32.totalorder %s28, 1
    %p245 = por %p243, %p244
    %p247 = scmp.ne.s32.totalorder %s232, %s246
    %p248 = scmp.eq.s32.totalorder %s28, 0
    %p249 = por %p247, %p248
    %s251 = sadd.s32 %s250, 1
    %p254 = scmp.eq.s32.totalorder %s22, 1
    %p255 = scmp.ne.s32.totalorder %s250, %s252
    %p256 = scmp.eq.s32.totalorder %s22, 0
    %p257 = por %p255, %p256
    %p258 = scmp.ne.s32.totalorder %s250, %s252
    %p259 = scmp.eq.s32.totalorder %s27, 1
    %p260 = por %p258, %p259
    %p261 = scmp.ne.s32.totalorder %s252, %s253
    %p262 = scmp.eq.s32.totalorder %s27, 0
    %p263 = por %p261, %p262
    %p264 = scmp.ne.s32.totalorder %s252, %s253
    %p265 = scmp.eq.s32.totalorder %s28, 1
    %p266 = por %p264, %p265
    %p268 = scmp.ne.s32.totalorder %s253, %s267
    %p269 = scmp.eq.s32.totalorder %s28, 0
    %p270 = por %p268, %p269
    %s272 = sadd.s32 %s271, 1
    %p275 = scmp.eq.s32.totalorder %s22, 1
    %p276 = scmp.ne.s32.totalorder %s271, %s273
    %p277 = scmp.eq.s32.totalorder %s22, 0
    %p278 = por %p276, %p277
    %p279 = scmp.ne.s32.totalorder %s271, %s273
    %p280 = scmp.eq.s32.totalorder %s27, 1
    %p281 = por %p279, %p280
    %p282 = scmp.ne.s32.totalorder %s273, %s274
    %p283 = scmp.eq.s32.totalorder %s27, 0
    %p284 = por %p282, %p283
    %p285 = scmp.ne.s32.totalorder %s273, %s274
    %p286 = scmp.eq.s32.totalorder %s28, 1
    %p287 = por %p285, %p286
    %p289 = scmp.ne.s32.totalorder %s274, %s288
    %p290 = scmp.eq.s32.totalorder %s28, 0
    %p291 = por %p289, %p290
    %s293 = sadd.s32 %s292, 1
    %p296 = scmp.eq.s32.totalorder %s22, 1
    %p297 = scmp.ne.s32.totalorder %s292, %s294
    %p298 = scmp.eq.s32.totalorder %s22, 0
    %p299 = por %p297, %p298
    %p300 = scmp.ne.s32.totalorder %s292, %s294
    %p301 = scmp.eq.s32.totalorder %s27, 1
    %p302 = por %p300, %p301
    %p303 = scmp.ne.s32.totalorder %s294, %s295
    %p304 = scmp.eq.s32.totalorder %s27, 0
    %p305 = por %p303, %p304
    %p306 = scmp.ne.s32.totalorder %s294, %s295
    %p307 = scmp.eq.s32.totalorder %s28, 1
    %p308 = por %p306, %p307
    %p310 = scmp.ne.s32.totalorder %s295, %s309
    %p311 = scmp.eq.s32.totalorder %s28, 0
    %p312 = por %p310, %p311
    %s314 = sadd.s32 %s313, 1
    %p317 = scmp.eq.s32.totalorder %s22, 1
    %p318 = scmp.ne.s32.totalorder %s313, %s315
    %p319 = scmp.eq.s32.totalorder %s22, 0
    %p320 = por %p318, %p319
    %p321 = scmp.ne.s32.totalorder %s313, %s315
    %p322 = scmp.eq.s32.totalorder %s27, 1
    %p323 = por %p321, %p322
    %p324 = scmp.ne.s32.totalorder %s315, %s316
    %p325 = scmp.eq.s32.totalorder %s27, 0
    %p326 = por %p324, %p325
    %p327 = scmp.ne.s32.totalorder %s315, %s316
    %p328 = scmp.eq.s32.totalorder %s28, 1
    %p329 = por %p327, %p328
    %p331 = scmp.ne.s32.totalorder %s316, %s330
    %p332 = scmp.eq.s32.totalorder %s28, 0
    %p333 = por %p331, %p332
    %s335 = sadd.s32 %s334, 1
    %p338 = scmp.eq.s32.totalorder %s22, 1
    %p339 = scmp.ne.s32.totalorder %s334, %s336
    %p340 = scmp.eq.s32.totalorder %s22, 0
    %p341 = por %p339, %p340
    %p342 = scmp.ne.s32.totalorder %s334, %s336
    %p343 = scmp.eq.s32.totalorder %s27, 1
    %p344 = por %p342, %p343
    %p345 = scmp.ne.s32.totalorder %s336, %s337
    %p346 = scmp.eq.s32.totalorder %s27, 0
    %p347 = por %p345, %p346
    %p348 = scmp.ne.s32.totalorder %s336, %s337
    %p349 = scmp.eq.s32.totalorder %s28, 1
    %p350 = por %p348, %p349
    %p352 = scmp.ne.s32.totalorder %s337, %s351
    %p353 = scmp.eq.s32.totalorder %s28, 0
    %p354 = por %p352, %p353
    %s356 = sadd.s32 %s355, 1
    %p359 = scmp.eq.s32.totalorder %s22, 1
    %p360 = scmp.ne.s32.totalorder %s355, %s357
    %p361 = scmp.eq.s32.totalorder %s22, 0
    %p362 = por %p360, %p361
    %p363 = scmp.ne.s32.totalorder %s355, %s357
    %p364 = scmp.eq.s32.totalorder %s27, 1
    %p365 = por %p363, %p364
    %p366 = scmp.ne.s32.totalorder %s357, %s358
    %p367 = scmp.eq.s32.totalorder %s27, 0
    %p368 = por %p366, %p367
    %p369 = scmp.ne.s32.totalorder %s357, %s358
    %p370 = scmp.eq.s32.totalorder %s28, 1
    %p371 = por %p369, %p370
    %p373 = scmp.ne.s32.totalorder %s358, %s372
    %p374 = scmp.eq.s32.totalorder %s28, 0
    %p375 = por %p373, %p374
    %s376 = ssub.s32 %s22, %s29
    %p377 = scmp.eq.s32.totalorder %s376, 0
    %s379 = sadd.s32 %s378, 1
    %s380 = scalar_select %p377, %s378, %s379
    %p383 = pneg %p377
    %p384 = scmp.eq.s32.totalorder %s22, 1
    %p385 = por %p383, %p384
    %p386 = scmp.ne.s32.totalorder %s378, %s381
    %p387 = scmp.eq.s32.totalorder %s22, 0
    %p388 = por %p386, %p387
    %p389 = scmp.ne.s32.totalorder %s378, %s381
    %p390 = scmp.eq.s32.totalorder %s27, 1
    %p391 = por %p389, %p390
    %p392 = scmp.ne.s32.totalorder %s381, %s382
    %p393 = scmp.eq.s32.totalorder %s27, 0
    %p394 = por %p392, %p393
    %p395 = scmp.ne.s32.totalorder %s381, %s382
    %p396 = scmp.eq.s32.totalorder %s28, 1
    %p397 = por %p395, %p396
    %p399 = scmp.ne.s32.totalorder %s382, %s398
    %p400 = scmp.eq.s32.totalorder %s28, 0
    %p401 = por %p399, %p400
    %p402 = scmp.le.s32.totalorder 1, %s22
    %p403 = scmp.lt.s32.totalorder %s22, 3
    %p404 = pnand %p402, %p403
    %p405 = pneg %p404
    // Predicated region
    $region9: #{aen_bert_forward.4} parent=5 // pred_check
      _
    $region10: #{aen_bert_forward.4} parent=5 // pred_check_branch
      %407 = sbr.rel (%p404) target = $region12
    $region11: #{aen_bert_forward.4} parent=5 // pred_region
      %s408 = ssub.s32 %s22, 1
      // Predicated region
      $region13: #{aen_bert_forward.4} parent=11 // pred_check
        %p409 = pneg %p95
      $region14: #{aen_bert_forward.4} parent=11 // pred_check_branch
        %411 = sbr.rel (%p409) target = $region16
      $region15: #{aen_bert_forward.4} parent=11 // pred_region
        _
      $region16: #{aen_bert_forward.4} parent=11 // pred_fallthru
        _
      // Predicated region
      $region17: #{aen_bert_forward.4} parent=11 // pred_check
        %p412 = pneg %p116
      $region18: #{aen_bert_forward.4} parent=11 // pred_check_branch
        %414 = sbr.rel (%p412) target = $region20
      $region19: #{aen_bert_forward.4} parent=11 // pred_region
        _
      $region20: #{aen_bert_forward.4} parent=11 // pred_fallthru
        _
      // Predicated region
      $region21: #{aen_bert_forward.4} parent=11 // pred_check
        %p415 = pneg %p137
      $region22: #{aen_bert_forward.4} parent=11 // pred_check_branch
        %417 = sbr.rel (%p415) target = $region24
      $region23: #{aen_bert_forward.4} parent=11 // pred_region
        _
      $region24: #{aen_bert_forward.4} parent=11 // pred_fallthru
        _
      // Predicated region
      $region25: #{aen_bert_forward.4} parent=11 // pred_check
        %p418 = pneg %p158
      $region26: #{aen_bert_forward.4} parent=11 // pred_check_branch
        %420 = sbr.rel (%p418) target = $region28
      $region27: #{aen_bert_forward.4} parent=11 // pred_region
        _
      $region28: #{aen_bert_forward.4} parent=11 // pred_fallthru
        _
      // Predicated region
      $region29: #{aen_bert_forward.4} parent=11 // pred_check
        %p421 = pneg %p179
      $region30: #{aen_bert_forward.4} parent=11 // pred_check_branch
        %423 = sbr.rel (%p421) target = $region32
      $region31: #{aen_bert_forward.4} parent=11 // pred_region
        _
      $region32: #{aen_bert_forward.4} parent=11 // pred_fallthru
        _
      // Predicated region
      $region33: #{aen_bert_forward.4} parent=11 // pred_check
        %p424 = pneg %p200
      $region34: #{aen_bert_forward.4} parent=11 // pred_check_branch
        %426 = sbr.rel (%p424) target = $region36
      $region35: #{aen_bert_forward.4} parent=11 // pred_region
        _
      $region36: #{aen_bert_forward.4} parent=11 // pred_fallthru
        _
      // Predicated region
      $region37: #{aen_bert_forward.4} parent=11 // pred_check
        %p427 = pneg %p221
      $region38: #{aen_bert_forward.4} parent=11 // pred_check_branch
        %429 = sbr.rel (%p427) target = $region40
      $region39: #{aen_bert_forward.4} parent=11 // pred_region
        _
      $region40: #{aen_bert_forward.4} parent=11 // pred_fallthru
        _
      // Predicated region
      $region41: #{aen_bert_forward.4} parent=11 // pred_check
        %p430 = pneg %p242
      $region42: #{aen_bert_forward.4} parent=11 // pred_check_branch
        %432 = sbr.rel (%p430) target = $region44
      $region43: #{aen_bert_forward.4} parent=11 // pred_region
        _
      $region44: #{aen_bert_forward.4} parent=11 // pred_fallthru
        _
      // Predicated region
      $region45: #{aen_bert_forward.4} parent=11 // pred_check
        %p433 = pneg %p263
      $region46: #{aen_bert_forward.4} parent=11 // pred_check_branch
        %435 = sbr.rel (%p433) target = $region48
      $region47: #{aen_bert_forward.4} parent=11 // pred_region
        _
      $region48: #{aen_bert_forward.4} parent=11 // pred_fallthru
        _
      // Predicated region
      $region49: #{aen_bert_forward.4} parent=11 // pred_check
        %p436 = pneg %p284
      $region50: #{aen_bert_forward.4} parent=11 // pred_check_branch
        %438 = sbr.rel (%p436) target = $region52
      $region51: #{aen_bert_forward.4} parent=11 // pred_region
        _
      $region52: #{aen_bert_forward.4} parent=11 // pred_fallthru
        _
      // Predicated region
      $region53: #{aen_bert_forward.4} parent=11 // pred_check
        %p439 = pneg %p305
      $region54: #{aen_bert_forward.4} parent=11 // pred_check_branch
        %441 = sbr.rel (%p439) target = $region56
      $region55: #{aen_bert_forward.4} parent=11 // pred_region
        _
      $region56: #{aen_bert_forward.4} parent=11 // pred_fallthru
        _
      // Predicated region
      $region57: #{aen_bert_forward.4} parent=11 // pred_check
        %p442 = pneg %p326
      $region58: #{aen_bert_forward.4} parent=11 // pred_check_branch
        %444 = sbr.rel (%p442) target = $region60
      $region59: #{aen_bert_forward.4} parent=11 // pred_region
        _
      $region60: #{aen_bert_forward.4} parent=11 // pred_fallthru
        _
      // Predicated region
      $region61: #{aen_bert_forward.4} parent=11 // pred_check
        %p445 = pneg %p347
      $region62: #{aen_bert_forward.4} parent=11 // pred_check_branch
        %447 = sbr.rel (%p445) target = $region64
      $region63: #{aen_bert_forward.4} parent=11 // pred_region
        _
      $region64: #{aen_bert_forward.4} parent=11 // pred_fallthru
        _
      // Predicated region
      $region65: #{aen_bert_forward.4} parent=11 // pred_check
        %p448 = pneg %p368
      $region66: #{aen_bert_forward.4} parent=11 // pred_check_branch
        %450 = sbr.rel (%p448) target = $region68
      $region67: #{aen_bert_forward.4} parent=11 // pred_region
        _
      $region68: #{aen_bert_forward.4} parent=11 // pred_fallthru
        _
    $region12: #{aen_bert_forward.4} parent=5 // pred_fallthru
      _
    %p451 = scmp.lt.s32.totalorder %s22, 2
    // Predicated region
    $region69: #{aen_bert_forward.4} parent=5 // pred_check
      %p452 = pneg %p451
    $region70: #{aen_bert_forward.4} parent=5 // pred_check_branch
      %454 = sbr.rel (%p452) target = $region72
    $region71: #{aen_bert_forward.4} parent=5 // pred_region
      // Predicated region
      $region73: #{aen_bert_forward.4} parent=71 // pred_check
        %p455 = pneg %p42
      $region74: #{aen_bert_forward.4} parent=71 // pred_check_branch
        %457 = sbr.rel (%p455) target = $region76
      $region75: #{aen_bert_forward.4} parent=71 // pred_region
        %s458 = smul.u32 2, %s22
        %p459 = scmp.lt.s32.totalorder %s458, 3
        %s460 = scalar_select %p459, %s458, 3
        %s461 = smul.addr %s460, 2
        %s462 = smul.addr %s461, 8
        %s463 = scalar_lea.vmem %s0, %s462
        %s464 = smul.u32 2, %s22
      $region76: #{aen_bert_forward.4} parent=71 // pred_fallthru
        _
      // Predicated region
      $region77: #{aen_bert_forward.4} parent=71 // pred_check
        %p465 = pneg %p68
      $region78: #{aen_bert_forward.4} parent=71 // pred_check_branch
        %467 = sbr.rel (%p465) target = $region80
      $region79: #{aen_bert_forward.4} parent=71 // pred_region
        %s468 = smul.u32 2, %s22
        %p469 = scmp.lt.s32.totalorder %s468, 3
        %s470 = scalar_select %p469, %s468, 3
        %s471 = scalar_lea.vmem %s1, %s470
        %s472 = smul.u32 2, %s22
      $region80: #{aen_bert_forward.4} parent=71 // pred_fallthru
        _
    $region72: #{aen_bert_forward.4} parent=5 // pred_fallthru
      _
    %p473 = scmp.le.s32.totalorder 1, %s22
    %p474 = scmp.lt.s32.totalorder %s22, 3
    %p475 = pnand %p473, %p474
    %p476 = pneg %p475
    // Predicated region
    $region81: #{aen_bert_forward.4} parent=5 // pred_check
      _
    $region82: #{aen_bert_forward.4} parent=5 // pred_check_branch
      %478 = sbr.rel (%p475) target = $region84
    $region83: #{aen_bert_forward.4} parent=5 // pred_region
      %s479 = ssub.s32 %s22, 1
      %s480 = smul.u32 2, %s27
      %p481 = scmp.lt.s32.totalorder %s480, 3
      %s482 = scalar_select %p481, %s480, 3
      %s483 = smul.addr %s482, 2
      %s484 = smul.addr %s483, 8
      %s485 = scalar_lea.vmem %s0, %s484
      %p486 = pneg %p48
      %p487 = pneg %p45
      %s488 = smul.u32 2, %s27
      %p489 = scmp.lt.s32.totalorder %s488, 3
      %s490 = scalar_select %p489, %s488, 3
      %s491 = scalar_lea.vmem %s1, %s490
      %p492 = pneg %p74
      %p493 = pneg %p71
      %p494 = pneg %p95
      %p495 = pneg %p92
      %p496 = pneg %p116
      %p497 = pneg %p113
      %p498 = pneg %p137
      %p499 = pneg %p134
      %p500 = pneg %p158
      %p501 = pneg %p155
      %p502 = pneg %p179
      %p503 = pneg %p176
      %p504 = pneg %p200
      %p505 = pneg %p197
      %p506 = pneg %p221
      %p507 = pneg %p218
      %p508 = pneg %p242
      %p509 = pneg %p239
      %p510 = pneg %p263
      %p511 = pneg %p260
      %p512 = pneg %p284
      %p513 = pneg %p281
      %p514 = pneg %p305
      %p515 = pneg %p302
      %p516 = pneg %p326
      %p517 = pneg %p323
      %p518 = pneg %p347
      %p519 = pneg %p344
      %p520 = pneg %p368
      %p521 = pneg %p365
      %p522 = pneg %p394
      %p523 = pneg %p391
      %s524 = smul.u32 2, %s27
      %p525 = scmp.lt.s32.totalorder %s524, 3
      %s526 = scalar_select %p525, %s524, 3
      %s527 = smul.addr %s526, 2
      %s528 = smul.addr %s527, 8
      %s529 = scalar_lea.vmem %s16, %s528
      %s530 = smul.u32 2, %s27
      %p531 = scmp.lt.s32.totalorder %s530, 3
      %s532 = scalar_select %p531, %s530, 3
      %s533 = smul.addr %s532, 2
      %s534 = smul.addr %s533, 8
      %s535 = scalar_lea.vmem %s0, %s534
      %s536 = smul.u32 2, %s27
      %s537 = smul.u32 2, %s27
      %p538 = scmp.lt.s32.totalorder %s537, 3
      %s539 = scalar_select %p538, %s537, 3
      %s540 = scalar_lea.vmem %s1, %s539
      %s541 = smul.u32 2, %s27
      %s542 = smul.u32 2, %s27
      %p543 = scmp.lt.s32.totalorder %s542, 3
      %s544 = scalar_select %p543, %s542, 3
      %s545 = smul.addr %s544, 2
      %s546 = smul.addr %s545, 8
      %s547 = scalar_lea.vmem %s16, %s546
      %s548 = smul.u32 2, %s27
      %v550 = vld [vmem:[%s535] sm:$0xff]
      %v551 = vld [vmem:[%s535 + $0x8] sm:$0xff]
      %v552 = vld [vmem:[%s535 + $0x10] sm:$0xff]
      %v553 = vld [vmem:[%s535 + $0x18] sm:$0xff]
      %v554 = vld [vmem:[%s540] sm:$0x1]
      %v555 = vld [vmem:[%s540 + $0x1] sm:$0x1]
      %v556 = vld [vmem:[%s2] sm:$0x1]
      %v557 = vld [vmem:[%s3] sm:$0x1]
      %vm558 = vcmask 261120
      %v559 = vsel %vm558, %v550, 0.0
      %560 = vadd.xlane.f32.xlu0 %v559
      %v561 = vpop.xlane.xlu0 %560
      %v562 = vsel %vm558, %v551, 0.0
      %563 = vadd.xlane.f32.xlu0 %v562
      %v564 = vpop.xlane.xlu0 %563
      %v565 = vsel %vm558, %v552, 0.0
      %566 = vadd.xlane.f32.xlu0 %v565
      %v567 = vpop.xlane.xlu0 %566
      %v568 = vsel %vm558, %v553, 0.0
      %569 = vadd.xlane.f32.xlu0 %v568
      %v570 = vpop.xlane.xlu0 %569
      %v571 = vrcp.pop 32.0
      %v572 = vmul.f32 %v561, %v571
      %v573 = vmul.f32 %v564, %v571
      %v574 = vmul.f32 %v567, %v571
      %v575 = vmul.f32 %v570, %v571
      %v576 = vsub.f32 %v550, %v572
      %v577 = vsub.f32 %v551, %v573
      %v578 = vsub.f32 %v552, %v574
      %v579 = vsub.f32 %v553, %v575
      %v580 = vmul.f32 %v576, %v576
      %v581 = vmul.f32 %v577, %v577
      %v582 = vmul.f32 %v578, %v578
      %v583 = vmul.f32 %v579, %v579
      %v584 = vsel %vm558, %v580, 0.0
      %585 = vadd.xlane.f32.xlu0 %v584
      %v586 = vpop.xlane.xlu0 %585
      %v587 = vsel %vm558, %v581, 0.0
      %588 = vadd.xlane.f32.xlu0 %v587
      %v589 = vpop.xlane.xlu0 %588
      %v590 = vsel %vm558, %v582, 0.0
      %591 = vadd.xlane.f32.xlu0 %v590
      %v592 = vpop.xlane.xlu0 %591
      %v593 = vsel %vm558, %v583, 0.0
      %594 = vadd.xlane.f32.xlu0 %v593
      %v595 = vpop.xlane.xlu0 %594
      %v596 = vmul.f32 %v586, %v571
      %v597 = vmul.f32 %v589, %v571
      %v598 = vmul.f32 %v592, %v571
      %v599 = vmul.f32 %v595, %v571
      %v600 = vadd.f32 %v596, 1e-12
      %v601 = vadd.f32 %v597, 1e-12
      %v602 = vadd.f32 %v598, 1e-12
      %v603 = vadd.f32 %v599, 1e-12
      %v604 = vrsqrt.pop %v600
      %v605 = vrsqrt.pop %v601
      %v606 = vrsqrt.pop %v602
      %v607 = vrsqrt.pop %v603
      %v608 = vmul.f32 %v576, %v604
      %v609 = vmul.f32 %v577, %v605
      %v610 = vmul.f32 %v578, %v606
      %v611 = vmul.f32 %v579, %v607
      %v613 = vlaneseq
      %v614 = vshrl.u32 %v613, 7
      %v615 = vsub.s32 0, %v614
      %v616 = vrot.slane %v556, %v615
      %v618 = vmul.f32 %v608, %v616
      %v619 = vmul.f32 %v609, %v616
      %v620 = vmul.f32 %v610, %v616
      %v621 = vmul.f32 %v611, %v616
      %v623 = vlaneseq
      %v624 = vshrl.u32 %v623, 7
      %v625 = vsub.s32 0, %v624
      %v626 = vrot.slane %v557, %v625
      %v628 = vadd.f32 %v618, %v626
      %v629 = vadd.f32 %v619, %v626
      %v630 = vadd.f32 %v620, %v626
      %v631 = vadd.f32 %v621, %v626
      %v632 = vpack.c.bf16 %v629, %v628
      %v633 = vpack.c.bf16 %v631, %v630
      %v634 = vld [vmem:[%s4] sm:$0xf]
      %v635 = vld [vmem:[%s4 + $0x4] sm:$0xf]
      %v636 = vld [vmem:[%s4 + $0x8] sm:$0xf]
      %v637 = vld [vmem:[%s4 + $0xc] sm:$0xf]
      %v638 = vld [vmem:[%s5] sm:$0x1]
      %v640 = vlaneseq
      %v641 = vshrl.u32 %v640, 7
      %v642 = vsub.s32 0, %v641
      %v643 = vrot.slane %v638, %v642
      %v649 = vunpack.c.l.b16 %v634
      %v650 = vunpack.c.l.b16 %v635
      %v651 = vunpack.c.l.b16 %v636
      %v652 = vunpack.c.l.b16 %v637
      %v653 = vpack.c.b16 %v650, %v649
      %v654 = vpack.c.b16 %v652, %v651
      %v658 = vsel %vm558, %v632, 0
      %v661 = vsel %vm558, %v633, 0
      %663 = vmatprep.subr.bf16.mxu0 0
      %664 = vmatpush1.bf16.msra.mxu0 %v653
      %665 = vmatprep.subr.bf16.mxu0 0
      %666 = vmatpush1.bf16.msra.mxu0 %v654
      %667 = vmatprep.subr.bf16.mxu0 0
      %668 = vmatpush1.bf16.msra.mxu0 0
      %669 = vmatprep.subr.bf16.mxu0 0
      %670 = vmatpush1.bf16.msra.mxu0 0
      %671 = vmatprep.subr.bf16.mxu0 0
      %672 = vmatpush1.bf16.msra.mxu0 0
      %673 = vmatprep.subr.bf16.mxu0 0
      %674 = vmatpush1.bf16.msra.mxu0 0
      %675 = vmatprep.subr.bf16.mxu0 0
      %676 = vmatpush1.bf16.msra.mxu0 0
      %677 = vmatprep.subr.bf16.mxu0 0
      %678 = vmatpush1.bf16.msra.mxu0 0
      %679 = vmatprep.subr.bf16.mxu0 0
      %680 = vmatpush1.bf16.msra.mxu0 0
      %681 = vmatprep.subr.bf16.mxu0 0
      %682 = vmatpush1.bf16.msra.mxu0 0
      %683 = vmatprep.subr.bf16.mxu0 0
      %684 = vmatpush1.bf16.msra.mxu0 0
      %685 = vmatprep.subr.bf16.mxu0 0
      %686 = vmatpush1.bf16.msra.mxu0 0
      %687 = vmatprep.subr.bf16.mxu0 0
      %688 = vmatpush1.bf16.msra.mxu0 0
      %689 = vmatprep.subr.bf16.mxu0 0
      %690 = vmatpush1.bf16.msra.mxu0 0
      %691 = vmatprep.subr.bf16.mxu0 0
      %692 = vmatpush1.bf16.msra.mxu0 0
      %693 = vmatprep.subr.bf16.mxu0 0
      %694 = vmatpush1.bf16.msra.mxu0 0
      %695 = vmatprep.mubr.bf16.mxu0 0
      %696 = vmatmul.mubr.bf16.gmra.mrb[0].mxu0 %v658
      %v697 = vpop.f32.mrb[0].mxu0
      %v698 = vadd.f32 %v643, %v697
      %v699 = vpop.f32.mrb[0].mxu0
      %v700 = vpop.f32.mrb[0].mxu0
      %v701 = vadd.f32 %v643, %v700
      %v702 = vpop.f32.mrb[0].mxu0
      %703 = vmatprep.mubr.bf16.mxu0 0
      %704 = vmatmul.mubr.bf16.gmra.mrb[0].mxu0 %v661
      %v705 = vpop.f32.mrb[0].mxu0
      %v706 = vadd.f32 %v643, %v705
      %v707 = vpop.f32.mrb[0].mxu0
      %v708 = vpop.f32.mrb[0].mxu0
      %v709 = vadd.f32 %v643, %v708
      %v710 = vpop.f32.mrb[0].mxu0
      %711 = vdwg.mxu0
      %v712 = vld [vmem:[%s6] sm:$0xf]
      %v713 = vld [vmem:[%s6 + $0x4] sm:$0xf]
      %v714 = vld [vmem:[%s6 + $0x8] sm:$0xf]
      %v715 = vld [vmem:[%s6 + $0xc] sm:$0xf]
      %v716 = vld [vmem:[%s7] sm:$0x1]
      %v718 = vlaneseq
      %v719 = vshrl.u32 %v718, 7
      %v720 = vsub.s32 0, %v719
      %v721 = vrot.slane %v716, %v720
      %v723 = vadd.f32 %v721, 0.0
      %v724 = vpack.c.bf16 %v701, %v698
      %v725 = vpack.c.bf16 %v709, %v706
      %727 = vrot.lane.b32.xlu0 %v724, 96
      %v728 = vpop.permute.xlu0 %727
      %vm729 = vcmask 64512
      %v731 = vsel %vm729, %v724, 0
      %v734 = vsel %vm729, %v728, 0
      %736 = vmatprep.subr.bf16.mxu0 0
      %737 = vmatpush1.bf16.xpose.msra.mxu0 %v734
      %738 = vmatprep.subr.bf16.mxu0 0
      %739 = vmatpush1.bf16.xpose.msra.mxu0 0
      %740 = vmatprep.subr.bf16.mxu0 0
      %741 = vmatpush1.bf16.xpose.msra.mxu0 0
      %742 = vmatprep.subr.bf16.mxu0 0
      %743 = vmatpush1.bf16.xpose.msra.mxu0 0
      %744 = vmatprep.subr.bf16.mxu0 0
      %745 = vmatpush1.bf16.xpose.msra.mxu0 0
      %746 = vmatprep.subr.bf16.mxu0 0
      %747 = vmatpush1.bf16.xpose.msra.mxu0 0
      %748 = vmatprep.subr.bf16.mxu0 0
      %749 = vmatpush1.bf16.xpose.msra.mxu0 0
      %750 = vmatprep.subr.bf16.mxu0 0
      %751 = vmatpush1.bf16.xpose.msra.mxu0 0
      %752 = vmatprep.subr.bf16.mxu0 0
      %753 = vmatpush1.bf16.xpose.msra.mxu0 0
      %754 = vmatprep.subr.bf16.mxu0 0
      %755 = vmatpush1.bf16.xpose.msra.mxu0 0
      %756 = vmatprep.subr.bf16.mxu0 0
      %757 = vmatpush1.bf16.xpose.msra.mxu0 0
      %758 = vmatprep.subr.bf16.mxu0 0
      %759 = vmatpush1.bf16.xpose.msra.mxu0 0
      %760 = vmatprep.subr.bf16.mxu0 0
      %761 = vmatpush1.bf16.xpose.msra.mxu0 0
      %762 = vmatprep.subr.bf16.mxu0 0
      %763 = vmatpush1.bf16.xpose.msra.mxu0 0
      %764 = vmatprep.subr.bf16.mxu0 0
      %765 = vmatpush1.bf16.xpose.msra.mxu0 0
      %766 = vmatprep.subr.bf16.mxu0 0
      %767 = vmatpush1.bf16.xpose.msra.mxu0 0
      %768 = vmatprep.mubr.bf16.mxu0 0
      %769 = vmatmul.mubr.bf16.gmra.mrb[0].mxu0 %v731
      %v770 = vpop.f32.mrb[0].mxu0
      %v771 = vadd.f32 0.0, %v770
      %v772 = vpop.f32.mrb[0].mxu0
      %v773 = vpop.f32.mrb[0].mxu0
      %v774 = vadd.f32 0.0, %v773
      %v775 = vpop.f32.mrb[0].mxu0
      %776 = vdwg.mxu0
      %778 = vrot.lane.b32.xlu0 %v725, 96
      %v779 = vpop.permute.xlu0 %778
      %v781 = vsel %vm729, %v725, 0
      %v784 = vsel %vm729, %v779, 0
      %786 = vmatprep.subr.bf16.mxu0 0
      %787 = vmatpush1.bf16.xpose.msra.mxu0 %v784
      %788 = vmatprep.subr.bf16.mxu0 0
      %789 = vmatpush1.bf16.xpose.msra.mxu0 0
      %790 = vmatprep.subr.bf16.mxu0 0
      %791 = vmatpush1.bf16.xpose.msra.mxu0 0
      %792 = vmatprep.subr.bf16.mxu0 0
      %793 = vmatpush1.bf16.xpose.msra.mxu0 0
      %794 = vmatprep.subr.bf16.mxu0 0
      %795 = vmatpush1.bf16.xpose.msra.mxu0 0
      %796 = vmatprep.subr.bf16.mxu0 0
      %797 = vmatpush1.bf16.xpose.msra.mxu0 0
      %798 = vmatprep.subr.bf16.mxu0 0
      %799 = vmatpush1.bf16.xpose.msra.mxu0 0
      %800 = vmatprep.subr.bf16.mxu0 0
      %801 = vmatpush1.bf16.xpose.msra.mxu0 0
      %802 = vmatprep.subr.bf16.mxu0 0
      %803 = vmatpush1.bf16.xpose.msra.mxu0 0
      %804 = vmatprep.subr.bf16.mxu0 0
      %805 = vmatpush1.bf16.xpose.msra.mxu0 0
      %806 = vmatprep.subr.bf16.mxu0 0
      %807 = vmatpush1.bf16.xpose.msra.mxu0 0
      %808 = vmatprep.subr.bf16.mxu0 0
      %809 = vmatpush1.bf16.xpose.msra.mxu0 0
      %810 = vmatprep.subr.bf16.mxu0 0
      %811 = vmatpush1.bf16.xpose.msra.mxu0 0
      %812 = vmatprep.subr.bf16.mxu0 0
      %813 = vmatpush1.bf16.xpose.msra.mxu0 0
      %814 = vmatprep.subr.bf16.mxu0 0
      %815 = vmatpush1.bf16.xpose.msra.mxu0 0
      %816 = vmatprep.subr.bf16.mxu0 0
      %817 = vmatpush1.bf16.xpose.msra.mxu0 0
      %818 = vmatprep.mubr.bf16.mxu0 0
      %819 = vmatmul.mubr.bf16.gmra.mrb[0].mxu0 %v781
      %v820 = vpop.f32.mrb[0].mxu0
      %v821 = vadd.f32 0.0, %v820
      %v822 = vpop.f32.mrb[0].mxu0
      %v823 = vpop.f32.mrb[0].mxu0
      %v824 = vadd.f32 0.0, %v823
      %v825 = vpop.f32.mrb[0].mxu0
      %826 = vdwg.mxu0
      %v827 = vmul.f32 %v771, 0.35355338
      %v828 = vmul.f32 %v774, 0.35355338
      %v829 = vmul.f32 %v821, 0.35355338
      %v830 = vmul.f32 %v824, 0.35355338
      %v833 = vlaneseq
      %v834 = vshrl.u32 %v833, 7
      %v835 = vsub.s32 0, %v834
      %v836 = vrot.slane %v554, %v835
      %v837 = vlaneseq
      %v838 = vshrl.u32 %v837, 7
      %v839 = vsub.s32 0, %v838
      %v840 = vrot.slane %v555, %v839
      %v843 = vadd.f32 %v827, %v836
      %v844 = vadd.f32 %v828, %v836
      %v845 = vadd.f32 %v829, %v840
      %v846 = vadd.f32 %v830, %v840
      %vm847 = vcmask 130048
      %v848 = vsel %vm847, %v843, -inf
      %849 = vmax.xlane.f32.xlu0 %v848
      %v850 = vpop.xlane.xlu0 %849
      %v851 = vsel %vm847, %v844, -inf
      %852 = vmax.xlane.f32.xlu0 %v851
      %v853 = vpop.xlane.xlu0 %852
      %v854 = vsel %vm847, %v845, -inf
      %855 = vmax.xlane.f32.xlu0 %v854
      %v856 = vpop.xlane.xlu0 %855
      %v857 = vsel %vm847, %v846, -inf
      %858 = vmax.xlane.f32.xlu0 %v857
      %v859 = vpop.xlane.xlu0 %858
      %v860 = vsub.f32 %v843, %v850
      %v861 = vsub.f32 %v844, %v853
      %v862 = vsub.f32 %v845, %v856
      %v863 = vsub.f32 %v846, %v859
      %v864 = vmul.f32 %v860, 1.442695
      %v865 = vpow.pop %v864
      %v866 = vmul.f32 %v861, 1.442695
      %v867 = vpow.pop %v866
      %v868 = vmul.f32 %v862, 1.442695
      %v869 = vpow.pop %v868
      %v870 = vmul.f32 %v863, 1.442695
      %v871 = vpow.pop %v870
      %v872 = vsel %vm847, %v865, 0.0
      %873 = vadd.xlane.f32.xlu0 %v872
      %v874 = vpop.xlane.xlu0 %873
      %v875 = vsel %vm847, %v867, 0.0
      %876 = vadd.xlane.f32.xlu0 %v875
      %v877 = vpop.xlane.xlu0 %876
      %v878 = vsel %vm847, %v869, 0.0
      %879 = vadd.xlane.f32.xlu0 %v878
      %v880 = vpop.xlane.xlu0 %879
      %v881 = vsel %vm847, %v871, 0.0
      %882 = vadd.xlane.f32.xlu0 %v881
      %v883 = vpop.xlane.xlu0 %882
      %v884 = vrcp.pop %v874
      %v885 = vmul.f32 %v865, %v884
      %v886 = vrcp.pop %v877
      %v887 = vmul.f32 %v867, %v886
      %v888 = vrcp.pop %v880
      %v889 = vmul.f32 %v869, %v888
      %v890 = vrcp.pop %v883
      %v891 = vmul.f32 %v871, %v890
      %v892 = vpack.c.bf16 %v887, %v885
      %v893 = vpack.c.bf16 %v891, %v889
      %894 = vrot.lane.b32.xlu0 %v724, 64
      %v895 = vpop.permute.xlu0 %894
      %v898 = vsel %vm847, %v892, 0
      %900 = vmatprep.subr.bf16.mxu0 0
      %901 = vmatpush1.bf16.msra.mxu0 %v895
      %902 = vmatprep.subr.bf16.mxu0 0
      %903 = vmatpush1.bf16.msra.mxu0 0
      %904 = vmatprep.subr.bf16.mxu0 0
      %905 = vmatpush1.bf16.msra.mxu0 0
      %906 = vmatprep.subr.bf16.mxu0 0
      %907 = vmatpush1.bf16.msra.mxu0 0
      %908 = vmatprep.subr.bf16.mxu0 0
      %909 = vmatpush1.bf16.msra.mxu0 0
      %910 = vmatprep.subr.bf16.mxu0 0
      %911 = vmatpush1.bf16.msra.mxu0 0
      %912 = vmatprep.subr.bf16.mxu0 0
      %913 = vmatpush1.bf16.msra.mxu0 0
      %914 = vmatprep.subr.bf16.mxu0 0
      %915 = vmatpush1.bf16.msra.mxu0 0
      %916 = vmatprep.subr.bf16.mxu0 0
      %917 = vmatpush1.bf16.msra.mxu0 0
      %918 = vmatprep.subr.bf16.mxu0 0
      %919 = vmatpush1.bf16.msra.mxu0 0
      %920 = vmatprep.subr.bf16.mxu0 0
      %921 = vmatpush1.bf16.msra.mxu0 0
      %922 = vmatprep.subr.bf16.mxu0 0
      %923 = vmatpush1.bf16.msra.mxu0 0
      %924 = vmatprep.subr.bf16.mxu0 0
      %925 = vmatpush1.bf16.msra.mxu0 0
      %926 = vmatprep.subr.bf16.mxu0 0
      %927 = vmatpush1.bf16.msra.mxu0 0
      %928 = vmatprep.subr.bf16.mxu0 0
      %929 = vmatpush1.bf16.msra.mxu0 0
      %930 = vmatprep.subr.bf16.mxu0 0
      %931 = vmatpush1.bf16.msra.mxu0 0
      %932 = vmatprep.mubr.bf16.mxu0 0
      %933 = vmatmul.mubr.bf16.gmra.mrb[0].mxu0 %v898
      %v934 = vpop.f32.mrb[0].mxu0
      %v935 = vadd.f32 0.0, %v934
      %v936 = vpop.f32.mrb[0].mxu0
      %v937 = vpop.f32.mrb[0].mxu0
      %v938 = vadd.f32 0.0, %v937
      %v939 = vpop.f32.mrb[0].mxu0
      %940 = vdwg.mxu0
      %941 = vrot.lane.b32.xlu0 %v725, 64
      %v942 = vpop.permute.xlu0 %941
      %v945 = vsel %vm847, %v893, 0
      %947 = vmatprep.subr.bf16.mxu0 0
      %948 = vmatpush1.bf16.msra.mxu0 %v942
      %949 = vmatprep.subr.bf16.mxu0 0
      %950 = vmatpush1.bf16.msra.mxu0 0
      %951 = vmatprep.subr.bf16.mxu0 0
      %952 = vmatpush1.bf16.msra.mxu0 0
      %953 = vmatprep.subr.bf16.mxu0 0
      %954 = vmatpush1.bf16.msra.mxu0 0
      %955 = vmatprep.subr.bf16.mxu0 0
      %956 = vmatpush1.bf16.msra.mxu0 0
      %957 = vmatprep.subr.bf16.mxu0 0
      %958 = vmatpush1.bf16.msra.mxu0 0
      %959 = vmatprep.subr.bf16.mxu0 0
      %960 = vmatpush1.bf16.msra.mxu0 0
      %961 = vmatprep.subr.bf16.mxu0 0
      %962 = vmatpush1.bf16.msra.mxu0 0
      %963 = vmatprep.subr.bf16.mxu0 0
      %964 = vmatpush1.bf16.msra.mxu0 0
      %965 = vmatprep.subr.bf16.mxu0 0
      %966 = vmatpush1.bf16.msra.mxu0 0
      %967 = vmatprep.subr.bf16.mxu0 0
      %968 = vmatpush1.bf16.msra.mxu0 0
      %969 = vmatprep.subr.bf16.mxu0 0
      %970 = vmatpush1.bf16.msra.mxu0 0
      %971 = vmatprep.subr.bf16.mxu0 0
      %972 = vmatpush1.bf16.msra.mxu0 0
      %973 = vmatprep.subr.bf16.mxu0 0
      %974 = vmatpush1.bf16.msra.mxu0 0
      %975 = vmatprep.subr.bf16.mxu0 0
      %976 = vmatpush1.bf16.msra.mxu0 0
      %977 = vmatprep.subr.bf16.mxu0 0
      %978 = vmatpush1.bf16.msra.mxu0 0
      %979 = vmatprep.mubr.bf16.mxu0 0
      %980 = vmatmul.mubr.bf16.gmra.mrb[0].mxu0 %v945
      %v981 = vpop.f32.mrb[0].mxu0
      %v982 = vadd.f32 0.0, %v981
      %v983 = vpop.f32.mrb[0].mxu0
      %v984 = vpop.f32.mrb[0].mxu0
      %v985 = vadd.f32 0.0, %v984
      %v986 = vpop.f32.mrb[0].mxu0
      %987 = vdwg.mxu0
      %v988 = vpack.c.bf16 %v938, %v935
      %v989 = vpack.c.bf16 %v985, %v982
      %v991 = vsel %vm729, %v988, 0
      %v994 = vsel %vm729, %v989, 0
      %vm996 = vcmask 1043456
      %v998 = vsel %vm996, %v712, 0
      %1000 = vmatprep.subr.bf16.mxu0 0
      %1001 = vmatpush1.bf16.msra.mxu0 %v998
      %1002 = vmatprep.subr.bf16.mxu0 0
      %1003 = vmatpush1.bf16.msra.mxu0 0
      %1004 = vmatprep.subr.bf16.mxu0 0
      %1005 = vmatpush1.bf16.msra.mxu0 0
      %1006 = vmatprep.subr.bf16.mxu0 0
      %1007 = vmatpush1.bf16.msra.mxu0 0
      %1008 = vmatprep.subr.bf16.mxu0 0
      %1009 = vmatpush1.bf16.msra.mxu0 0
      %1010 = vmatprep.subr.bf16.mxu0 0
      %1011 = vmatpush1.bf16.msra.mxu0 0
      %1012 = vmatprep.subr.bf16.mxu0 0
      %1013 = vmatpush1.bf16.msra.mxu0 0
      %1014 = vmatprep.subr.bf16.mxu0 0
      %1015 = vmatpush1.bf16.msra.mxu0 0
      %1016 = vmatprep.subr.bf16.mxu0 0
      %1017 = vmatpush1.bf16.msra.mxu0 0
      %1018 = vmatprep.subr.bf16.mxu0 0
      %1019 = vmatpush1.bf16.msra.mxu0 0
      %1020 = vmatprep.subr.bf16.mxu0 0
      %1021 = vmatpush1.bf16.msra.mxu0 0
      %1022 = vmatprep.subr.bf16.mxu0 0
      %1023 = vmatpush1.bf16.msra.mxu0 0
      %1024 = vmatprep.subr.bf16.mxu0 0
      %1025 = vmatpush1.bf16.msra.mxu0 0
      %1026 = vmatprep.subr.bf16.mxu0 0
      %1027 = vmatpush1.bf16.msra.mxu0 0
      %1028 = vmatprep.subr.bf16.mxu0 0
      %1029 = vmatpush1.bf16.msra.mxu0 0
      %1030 = vmatprep.subr.bf16.mxu0 0
      %1031 = vmatpush1.bf16.msra.mxu0 0
      %1032 = vmatprep.mubr.bf16.mxu0 0
      %1033 = vmatmul.mubr.bf16.gmra.mrb[0].mxu0 %v991
      %v1034 = vpop.f32.mrb[0].mxu0
      %v1035 = vadd.f32 0.0, %v1034
      %v1036 = vpop.f32.mrb[0].mxu0
      %v1037 = vpop.f32.mrb[0].mxu0
      %v1038 = vadd.f32 0.0, %v1037
      %v1039 = vpop.f32.mrb[0].mxu0
      %1040 = vmatprep.mubr.bf16.mxu0 0
      %1041 = vmatmul.mubr.bf16.gmra.mrb[0].mxu0 %v994
      %v1042 = vpop.f32.mrb[0].mxu0
      %v1043 = vadd.f32 0.0, %v1042
      %v1044 = vpop.f32.mrb[0].mxu0
      %v1045 = vpop.f32.mrb[0].mxu0
      %v1046 = vadd.f32 0.0, %v1045
      %v1047 = vpop.f32.mrb[0].mxu0
      %1048 = vdwg.mxu0
      %v1049 = vadd.f32 %v723, %v1035
      %v1050 = vadd.f32 %v723, %v1038
      %v1051 = vadd.f32 %v723, %v1043
      %v1052 = vadd.f32 %v723, %v1046
      %1053 = vrot.lane.b32.xlu0 %v724, 120
      %v1054 = vpop.permute.xlu0 %1053
      %1055 = vrot.lane.b32.xlu0 %v724, 88
      %v1056 = vpop.permute.xlu0 %1055
      %v1058 = vsel %vm729, %v1054, 0
      %v1061 = vsel %vm729, %v1056, 0
      %1063 = vmatprep.subr.bf16.mxu0 0
      %1064 = vmatpush1.bf16.xpose.msra.mxu0 %v1061
      %1065 = vmatprep.subr.bf16.mxu0 0
      %1066 = vmatpush1.bf16.xpose.msra.mxu0 0
      %1067 = vmatprep.subr.bf16.mxu0 0
      %1068 = vmatpush1.bf16.xpose.msra.mxu0 0
      %1069 = vmatprep.subr.bf16.mxu0 0
      %1070 = vmatpush1.bf16.xpose.msra.mxu0 0
      %1071 = vmatprep.subr.bf16.mxu0 0
      %1072 = vmatpush1.bf16.xpose.msra.mxu0 0
      %1073 = vmatprep.subr.bf16.mxu0 0
      %1074 = vmatpush1.bf16.xpose.msra.mxu0 0
      %1075 = vmatprep.subr.bf16.mxu0 0
      %1076 = vmatpush1.bf16.xpose.msra.mxu0 0
      %1077 = vmatprep.subr.bf16.mxu0 0
      %1078 = vmatpush1.bf16.xpose.msra.mxu0 0
      %1079 = vmatprep.subr.bf16.mxu0 0
      %1080 = vmatpush1.bf16.xpose.msra.mxu0 0
      %1081 = vmatprep.subr.bf16.mxu0 0
      %1082 = vmatpush1.bf16.xpose.msra.mxu0 0
      %1083 = vmatprep.subr.bf16.mxu0 0
      %1084 = vmatpush1.bf16.xpose.msra.mxu0 0
      %1085 = vmatprep.subr.bf16.mxu0 0
      %1086 = vmatpush1.bf16.xpose.msra.mxu0 0
      %1087 = vmatprep.subr.bf16.mxu0 0
      %1088 = vmatpush1.bf16.xpose.msra.mxu0 0
      %1089 = vmatprep.subr.bf16.mxu0 0
      %1090 = vmatpush1.bf16.xpose.msra.mxu0 0
      %1091 = vmatprep.subr.bf16.mxu0 0
      %1092 = vmatpush1.bf16.xpose.msra.mxu0 0
      %1093 = vmatprep.subr.bf16.mxu0 0
      %1094 = vmatpush1.bf16.xpose.msra.mxu0 0
      %1095 = vmatprep.mubr.bf16.mxu0 0
      %1096 = vmatmul.mubr.bf16.gmra.mrb[0].mxu0 %v1058
      %v1097 = vpop.f32.mrb[0].mxu0
      %v1098 = vadd.f32 0.0, %v1097
      %v1099 = vpop.f32.mrb[0].mxu0
      %v1100 = vpop.f32.mrb[0].mxu0
      %v1101 = vadd.f32 0.0, %v1100
      %v1102 = vpop.f32.mrb[0].mxu0
      %1103 = vdwg.mxu0
      %1104 = vrot.lane.b32.xlu0 %v725, 120
      %v1105 = vpop.permute.xlu0 %1104
      %1106 = vrot.lane.b32.xlu0 %v725, 88
      %v1107 = vpop.permute.xlu0 %1106
      %v1109 = vsel %vm729, %v1105, 0
      %v1112 = vsel %vm729, %v1107, 0
      %1114 = vmatprep.subr.bf16.mxu0 0
      %1115 = vmatpush1.bf16.xpose.msra.mxu0 %v1112
      %1116 = vmatprep.subr.bf16.mxu0 0
      %1117 = vmatpush1.bf16.xpose.msra.mxu0 0
      %1118 = vmatprep.subr.bf16.mxu0 0
      %1119 = vmatpush1.bf16.xpose.msra.mxu0 0
      %1120 = vmatprep.subr.bf16.mxu0 0
      %1121 = vmatpush1.bf16.xpose.msra.mxu0 0
      %1122 = vmatprep.subr.bf16.mxu0 0
      %1123 = vmatpush1.bf16.xpose.msra.mxu0 0
      %1124 = vmatprep.subr.bf16.mxu0 0
      %1125 = vmatpush1.bf16.xpose.msra.mxu0 0
      %1126 = vmatprep.subr.bf16.mxu0 0
      %1127 = vmatpush1.bf16.xpose.msra.mxu0 0
      %1128 = vmatprep.subr.bf16.mxu0 0
      %1129 = vmatpush1.bf16.xpose.msra.mxu0 0
      %1130 = vmatprep.subr.bf16.mxu0 0
      %1131 = vmatpush1.bf16.xpose.msra.mxu0 0
      %1132 = vmatprep.subr.bf16.mxu0 0
      %1133 = vmatpush1.bf16.xpose.msra.mxu0 0
      %1134 = vmatprep.subr.bf16.mxu0 0
      %1135 = vmatpush1.bf16.xpose.msra.mxu0 0
      %1136 = vmatprep.subr.bf16.mxu0 0
      %1137 = vmatpush1.bf16.xpose.msra.mxu0 0
      %1138 = vmatprep.subr.bf16.mxu0 0
      %1139 = vmatpush1.bf16.xpose.msra.mxu0 0
      %1140 = vmatprep.subr.bf16.mxu0 0
      %1141 = vmatpush1.bf16.xpose.msra.mxu0 0
      %1142 = vmatprep.subr.bf16.mxu0 0
      %1143 = vmatpush1.bf16.xpose.msra.mxu0 0
      %1144 = vmatprep.subr.bf16.mxu0 0
      %1145 = vmatpush1.bf16.xpose.msra.mxu0 0
      %1146 = vmatprep.mubr.bf16.mxu0 0
      %1147 = vmatmul.mubr.bf16.gmra.mrb[0].mxu0 %v1109
      %v1148 = vpop.f32.mrb[0].mxu0
      %v1149 = vadd.f32 0.0, %v1148
      %v1150 = vpop.f32.mrb[0].mxu0
      %v1151 = vpop.f32.mrb[0].mxu0
      %v1152 = vadd.f32 0.0, %v1151
      %v1153 = vpop.f32.mrb[0].mxu0
      %1154 = vdwg.mxu0
      %v1155 = vmul.f32 %v1098, 0.35355338
      %v1156 = vmul.f32 %v1101, 0.35355338
      %v1157 = vmul.f32 %v1149, 0.35355338
      %v1158 = vmul.f32 %v1152, 0.35355338
      %v1159 = vadd.f32 %v1155, %v836
      %v1160 = vadd.f32 %v1156, %v836
      %v1161 = vadd.f32 %v1157, %v840
      %v1162 = vadd.f32 %v1158, %v840
      %v1163 = vsel %vm847, %v1159, -inf
      %1164 = vmax.xlane.f32.xlu0 %v1163
      %v1165 = vpop.xlane.xlu0 %1164
      %v1166 = vsel %vm847, %v1160, -inf
      %1167 = vmax.xlane.f32.xlu0 %v1166
      %v1168 = vpop.xlane.xlu0 %1167
      %v1169 = vsel %vm847, %v1161, -inf
      %1170 = vmax.xlane.f32.xlu0 %v1169
      %v1171 = vpop.xlane.xlu0 %1170
      %v1172 = vsel %vm847, %v1162, -inf
      %1173 = vmax.xlane.f32.xlu0 %v1172
      %v1174 = vpop.xlane.xlu0 %1173
      %v1175 = vsub.f32 %v1159, %v1165
      %v1176 = vsub.f32 %v1160, %v1168
      %v1177 = vsub.f32 %v1161, %v1171
      %v1178 = vsub.f32 %v1162, %v1174
      %v1179 = vmul.f32 %v1175, 1.442695
      %v1180 = vpow.pop %v1179
      %v1181 = vmul.f32 %v1176, 1.442695
      %v1182 = vpow.pop %v1181
      %v1183 = vmul.f32 %v1177, 1.442695
      %v1184 = vpow.pop %v1183
      %v1185 = vmul.f32 %v1178, 1.442695
      %v1186 = vpow.pop %v1185
      %v1187 = vsel %vm847, %v1180, 0.0
      %1188 = vadd.xlane.f32.xlu0 %v1187
      %v1189 = vpop.xlane.xlu0 %1188
      %v1190 = vsel %vm847, %v1182, 0.0
      %1191 = vadd.xlane.f32.xlu0 %v1190
      %v1192 = vpop.xlane.xlu0 %1191
      %v1193 = vsel %vm847, %v1184, 0.0
      %1194 = vadd.xlane.f32.xlu0 %v1193
      %v1195 = vpop.xlane.xlu0 %1194
      %v1196 = vsel %vm847, %v1186, 0.0
      %1197 = vadd.xlane.f32.xlu0 %v1196
      %v1198 = vpop.xlane.xlu0 %1197
      %v1199 = vrcp.pop %v1189
      %v1200 = vmul.f32 %v1180, %v1199
      %v1201 = vrcp.pop %v1192
      %v1202 = vmul.f32 %v1182, %v1201
      %v1203 = vrcp.pop %v1195
      %v1204 = vmul.f32 %v1184, %v1203
      %v1205 = vrcp.pop %v1198
      %v1206 = vmul.f32 %v1186, %v1205
      %v1207 = vpack.c.bf16 %v1202, %v1200
      %v1208 = vpack.c.bf16 %v1206, %v1204
      %1209 = vrot.lane.b32.xlu0 %v724, 56
      %v1210 = vpop.permute.xlu0 %1209
      %v1213 = vsel %vm847, %v1207, 0
      %1215 = vmatprep.subr.bf16.mxu0 0
      %1216 = vmatpush1.bf16.msra.mxu0 %v1210
      %1217 = vmatprep.subr.bf16.mxu0 0
      %1218 = vmatpush1.bf16.msra.mxu0 0
      %1219 = vmatprep.subr.bf16.mxu0 0
      %1220 = vmatpush1.bf16.msra.mxu0 0
      %1221 = vmatprep.subr.bf16.mxu0 0
      %1222 = vmatpush1.bf16.msra.mxu0 0
      %1223 = vmatprep.subr.bf16.mxu0 0
      %1224 = vmatpush1.bf16.msra.mxu0 0
      %1225 = vmatprep.subr.bf16.mxu0 0
      %1226 = vmatpush1.bf16.msra.mxu0 0
      %1227 = vmatprep.subr.bf16.mxu0 0
      %1228 = vmatpush1.bf16.msra.mxu0 0
      %1229 = vmatprep.subr.bf16.mxu0 0
      %1230 = vmatpush1.bf16.msra.mxu0 0
      %1231 = vmatprep.subr.bf16.mxu0 0
      %1232 = vmatpush1.bf16.msra.mxu0 0
      %1233 = vmatprep.subr.bf16.mxu0 0
      %1234 = vmatpush1.bf16.msra.mxu0 0
      %1235 = vmatprep.subr.bf16.mxu0 0
      %1236 = vmatpush1.bf16.msra.mxu0 0
      %1237 = vmatprep.subr.bf16.mxu0 0
      %1238 = vmatpush1.bf16.msra.mxu0 0
      %1239 = vmatprep.subr.bf16.mxu0 0
      %1240 = vmatpush1.bf16.msra.mxu0 0
      %1241 = vmatprep.subr.bf16.mxu0 0
      %1242 = vmatpush1.bf16.msra.mxu0 0
      %1243 = vmatprep.subr.bf16.mxu0 0
      %1244 = vmatpush1.bf16.msra.mxu0 0
      %1245 = vmatprep.subr.bf16.mxu0 0
      %1246 = vmatpush1.bf16.msra.mxu0 0
      %1247 = vmatprep.mubr.bf16.mxu0 0
      %1248 = vmatmul.mubr.bf16.gmra.mrb[0].mxu0 %v1213
      %v1249 = vpop.f32.mrb[0].mxu0
      %v1250 = vadd.f32 0.0, %v1249
      %v1251 = vpop.f32.mrb[0].mxu0
      %v1252 = vpop.f32.mrb[0].mxu0
      %v1253 = vadd.f32 0.0, %v1252
      %v1254 = vpop.f32.mrb[0].mxu0
      %1255 = vdwg.mxu0
      %1256 = vrot.lane.b32.xlu0 %v725, 56
      %v1257 = vpop.permute.xlu0 %1256
      %v1260 = vsel %vm847, %v1208, 0
      %1262 = vmatprep.subr.bf16.mxu0 0
      %1263 = vmatpush1.bf16.msra.mxu0 %v1257
      %1264 = vmatprep.subr.bf16.mxu0 0
      %1265 = vmatpush1.bf16.msra.mxu0 0
      %1266 = vmatprep.subr.bf16.mxu0 0
      %1267 = vmatpush1.bf16.msra.mxu0 0
      %1268 = vmatprep.subr.bf16.mxu0 0
      %1269 = vmatpush1.bf16.msra.mxu0 0
      %1270 = vmatprep.subr.bf16.mxu0 0
      %1271 = vmatpush1.bf16.msra.mxu0 0
      %1272 = vmatprep.subr.bf16.mxu0 0
      %1273 = vmatpush1.bf16.msra.mxu0 0
      %1274 = vmatprep.subr.bf16.mxu0 0
      %1275 = vmatpush1.bf16.msra.mxu0 0
      %1276 = vmatprep.subr.bf16.mxu0 0
      %1277 = vmatpush1.bf16.msra.mxu0 0
      %1278 = vmatprep.subr.bf16.mxu0 0
      %1279 = vmatpush1.bf16.msra.mxu0 0
      %1280 = vmatprep.subr.bf16.mxu0 0
      %1281 = vmatpush1.bf16.msra.mxu0 0
      %1282 = vmatprep.subr.bf16.mxu0 0
      %1283 = vmatpush1.bf16.msra.mxu0 0
      %1284 = vmatprep.subr.bf16.mxu0 0
      %1285 = vmatpush1.bf16.msra.mxu0 0
      %1286 = vmatprep.subr.bf16.mxu0 0
      %1287 = vmatpush1.bf16.msra.mxu0 0
      %1288 = vmatprep.subr.bf16.mxu0 0
      %1289 = vmatpush1.bf16.msra.mxu0 0
      %1290 = vmatprep.subr.bf16.mxu0 0
      %1291 = vmatpush1.bf16.msra.mxu0 0
      %1292 = vmatprep.subr.bf16.mxu0 0
      %1293 = vmatpush1.bf16.msra.mxu0 0
      %1294 = vmatprep.mubr.bf16.mxu0 0
      %1295 = vmatmul.mubr.bf16.gmra.mrb[0].mxu0 %v1260
      %v1296 = vpop.f32.mrb[0].mxu0
      %v1297 = vadd.f32 0.0, %v1296
      %v1298 = vpop.f32.mrb[0].mxu0
      %v1299 = vpop.f32.mrb[0].mxu0
      %v1300 = vadd.f32 0.0, %v1299
      %v1301 = vpop.f32.mrb[0].mxu0
      %1302 = vdwg.mxu0
      %v1303 = vpack.c.bf16 %v1253, %v1250
      %v1304 = vpack.c.bf16 %v1300, %v1297
      %v1306 = vsel %vm729, %v1303, 0
      %v1309 = vsel %vm729, %v1304, 0
      %v1312 = vsel %vm996, %v713, 0
      %1314 = vmatprep.subr.bf16.mxu0 0
      %1315 = vmatpush1.bf16.msra.mxu0 %v1312
      %1316 = vmatprep.subr.bf16.mxu0 0
      %1317 = vmatpush1.bf16.msra.mxu0 0
      %1318 = vmatprep.subr.bf16.mxu0 0
      %1319 = vmatpush1.bf16.msra.mxu0 0
      %1320 = vmatprep.subr.bf16.mxu0 0
      %1321 = vmatpush1.bf16.msra.mxu0 0
      %1322 = vmatprep.subr.bf16.mxu0 0
      %1323 = vmatpush1.bf16.msra.mxu0 0
      %1324 = vmatprep.subr.bf16.mxu0 0
      %1325 = vmatpush1.bf16.msra.mxu0 0
      %1326 = vmatprep.subr.bf16.mxu0 0
      %1327 = vmatpush1.bf16.msra.mxu0 0
      %1328 = vmatprep.subr.bf16.mxu0 0
      %1329 = vmatpush1.bf16.msra.mxu0 0
      %1330 = vmatprep.subr.bf16.mxu0 0
      %1331 = vmatpush1.bf16.msra.mxu0 0
      %1332 = vmatprep.subr.bf16.mxu0 0
      %1333 = vmatpush1.bf16.msra.mxu0 0
      %1334 = vmatprep.subr.bf16.mxu0 0
      %1335 = vmatpush1.bf16.msra.mxu0 0
      %1336 = vmatprep.subr.bf16.mxu0 0
      %1337 = vmatpush1.bf16.msra.mxu0 0
      %1338 = vmatprep.subr.bf16.mxu0 0
      %1339 = vmatpush1.bf16.msra.mxu0 0
      %1340 = vmatprep.subr.bf16.mxu0 0
      %1341 = vmatpush1.bf16.msra.mxu0 0
      %1342 = vmatprep.subr.bf16.mxu0 0
      %1343 = vmatpush1.bf16.msra.mxu0 0
      %1344 = vmatprep.subr.bf16.mxu0 0
      %1345 = vmatpush1.bf16.msra.mxu0 0
      %1346 = vmatprep.mubr.bf16.mxu0 0
      %1347 = vmatmul.mubr.bf16.gmra.mrb[0].mxu0 %v1306
      %v1348 = vpop.f32.mrb[0].mxu0
      %v1349 = vadd.f32 0.0, %v1348
      %v1350 = vpop.f32.mrb[0].mxu0
      %v1351 = vpop.f32.mrb[0].mxu0
      %v1352 = vadd.f32 0.0, %v1351
      %v1353 = vpop.f32.mrb[0].mxu0
      %1354 = vmatprep.mubr.bf16.mxu0 0
      %1355 = vmatmul.mubr.bf16.gmra.mrb[0].mxu0 %v1309
      %v1356 = vpop.f32.mrb[0].mxu0
      %v1357 = vadd.f32 0.0, %v1356
      %v1358 = vpop.f32.mrb[0].mxu0
      %v1359 = vpop.f32.mrb[0].mxu0
      %v1360 = vadd.f32 0.0, %v1359
      %v1361 = vpop.f32.mrb[0].mxu0
      %1362 = vdwg.mxu0
      %v1363 = vadd.f32 %v1049, %v1349
      %v1364 = vadd.f32 %v1050, %v1352
      %v1365 = vadd.f32 %v1051, %v1357
      %v1366 = vadd.f32 %v1052, %v1360
      %1367 = vrot.lane.b32.xlu0 %v724, 112
      %v1368 = vpop.permute.xlu0 %1367
      %1369 = vrot.lane.b32.xlu0 %v724, 80
      %v1370 = vpop.permute.xlu0 %1369
      %v1372 = vsel %vm729, %v1368, 0
      %v1375 = vsel %vm729, %v1370, 0
      %1377 = vmatprep.subr.bf16.mxu0 0
      %1378 = vmatpush1.bf16.xpose.msra.mxu0 %v1375
      %1379 = vmatprep.subr.bf16.mxu0 0
      %1380 = vmatpush1.bf16.xpose.msra.mxu0 0
      %1381 = vmatprep.subr.bf16.mxu0 0
      %1382 = vmatpush1.bf16.xpose.msra.mxu0 0
      %1383 = vmatprep.subr.bf16.mxu0 0
      %1384 = vmatpush1.bf16.xpose.msra.mxu0 0
      %1385 = vmatprep.subr.bf16.mxu0 0
      %1386 = vmatpush1.bf16.xpose.msra.mxu0 0
      %1387 = vmatprep.subr.bf16.mxu0 0
      %1388 = vmatpush1.bf16.xpose.msra.mxu0 0
      %1389 = vmatprep.subr.bf16.mxu0 0
      %1390 = vmatpush1.bf16.xpose.msra.mxu0 0
      %1391 = vmatprep.subr.bf16.mxu0 0
      %1392 = vmatpush1.bf16.xpose.msra.mxu0 0
      %1393 = vmatprep.subr.bf16.mxu0 0
      %1394 = vmatpush1.bf16.xpose.msra.mxu0 0
      %1395 = vmatprep.subr.bf16.mxu0 0
      %1396 = vmatpush1.bf16.xpose.msra.mxu0 0
      %1397 = vmatprep.subr.bf16.mxu0 0
      %1398 = vmatpush1.bf16.xpose.msra.mxu0 0
      %1399 = vmatprep.subr.bf16.mxu0 0
      %1400 = vmatpush1.bf16.xpose.msra.mxu0 0
      %1401 = vmatprep.subr.bf16.mxu0 0
      %1402 = vmatpush1.bf16.xpose.msra.mxu0 0
      %1403 = vmatprep.subr.bf16.mxu0 0
      %1404 = vmatpush1.bf16.xpose.msra.mxu0 0
      %1405 = vmatprep.subr.bf16.mxu0 0
      %1406 = vmatpush1.bf16.xpose.msra.mxu0 0
      %1407 = vmatprep.subr.bf16.mxu0 0
      %1408 = vmatpush1.bf16.xpose.msra.mxu0 0
      %1409 = vmatprep.mubr.bf16.mxu0 0
      %1410 = vmatmul.mubr.bf16.gmra.mrb[0].mxu0 %v1372
      %v1411 = vpop.f32.mrb[0].mxu0
      %v1412 = vadd.f32 0.0, %v1411
      %v1413 = vpop.f32.mrb[0].mxu0
      %v1414 = vpop.f32.mrb[0].mxu0
      %v1415 = vadd.f32 0.0, %v1414
      %v1416 = vpop.f32.mrb[0].mxu0
      %1417 = vdwg.mxu0
      %1418 = vrot.lane.b32.xlu0 %v725, 112
      %v1419 = vpop.permute.xlu0 %1418
      %1420 = vrot.lane.b32.xlu0 %v725, 80
      %v1421 = vpop.permute.xlu0 %1420
      %v1423 = vsel %vm729, %v1419, 0
      %v1426 = vsel %vm729, %v1421, 0
      %1428 = vmatprep.subr.bf16.mxu0 0
      %1429 = vmatpush1.bf16.xpose.msra.mxu0 %v1426
      %1430 = vmatprep.subr.bf16.mxu0 0
      %1431 = vmatpush1.bf16.xpose.msra.mxu0 0
      %1432 = vmatprep.subr.bf16.mxu0 0
      %1433 = vmatpush1.bf16.xpose.msra.mxu0 0
      %1434 = vmatprep.subr.bf16.mxu0 0
      %1435 = vmatpush1.bf16.xpose.msra.mxu0 0
      %1436 = vmatprep.subr.bf16.mxu0 0
      %1437 = vmatpush1.bf16.xpose.msra.mxu0 0
      %1438 = vmatprep.subr.bf16.mxu0 0
      %1439 = vmatpush1.bf16.xpose.msra.mxu0 0
      %1440 = vmatprep.subr.bf16.mxu0 0
      %1441 = vmatpush1.bf16.xpose.msra.mxu0 0
      %1442 = vmatprep.subr.bf16.mxu0 0
      %1443 = vmatpush1.bf16.xpose.msra.mxu0 0
      %1444 = vmatprep.subr.bf16.mxu0 0
      %1445 = vmatpush1.bf16.xpose.msra.mxu0 0
      %1446 = vmatprep.subr.bf16.mxu0 0
      %1447 = vmatpush1.bf16.xpose.msra.mxu0 0
      %1448 = vmatprep.subr.bf16.mxu0 0
      %1449 = vmatpush1.bf16.xpose.msra.mxu0 0
      %1450 = vmatprep.subr.bf16.mxu0 0
      %1451 = vmatpush1.bf16.xpose.msra.mxu0 0
      %1452 = vmatprep.subr.bf16.mxu0 0
      %1453 = vmatpush1.bf16.xpose.msra.mxu0 0
      %1454 = vmatprep.subr.bf16.mxu0 0
      %1455 = vmatpush1.bf16.xpose.msra.mxu0 0
      %1456 = vmatprep.subr.bf16.mxu0 0
      %1457 = vmatpush1.bf16.xpose.msra.mxu0 0
      %1458 = vmatprep.subr.bf16.mxu0 0
      %1459 = vmatpush1.bf16.xpose.msra.mxu0 0
      %1460 = vmatprep.mubr.bf16.mxu0 0
      %1461 = vmatmul.mubr.bf16.gmra.mrb[0].mxu0 %v1423
      %v1462 = vpop.f32.mrb[0].mxu0
      %v1463 = vadd.f32 0.0, %v1462
      %v1464 = vpop.f32.mrb[0].mxu0
      %v1465 = vpop.f32.mrb[0].mxu0
      %v1466 = vadd.f32 0.0, %v1465
      %v1467 = vpop.f32.mrb[0].mxu0
      %1468 = vdwg.mxu0
      %v1469 = vmul.f32 %v1412, 0.35355338
      %v1470 = vmul.f32 %v1415, 0.35355338
      %v1471 = vmul.f32 %v1463, 0.35355338
      %v1472 = vmul.f32 %v1466, 0.35355338
      %v1473 = vadd.f32 %v1469, %v836
      %v1474 = vadd.f32 %v1470, %v836
      %v1475 = vadd.f32 %v1471, %v840
      %v1476 = vadd.f32 %v1472, %v840
      %v1477 = vsel %vm847, %v1473, -inf
      %1478 = vmax.xlane.f32.xlu0 %v1477
      %v1479 = vpop.xlane.xlu0 %1478
      %v1480 = vsel %vm847, %v1474, -inf
      %1481 = vmax.xlane.f32.xlu0 %v1480
      %v1482 = vpop.xlane.xlu0 %1481
      %v1483 = vsel %vm847, %v1475, -inf
      %1484 = vmax.xlane.f32.xlu0 %v1483
      %v1485 = vpop.xlane.xlu0 %1484
      %v1486 = vsel %vm847, %v1476, -inf
      %1487 = vmax.xlane.f32.xlu0 %v1486
      %v1488 = vpop.xlane.xlu0 %1487
      %v1489 = vsub.f32 %v1473, %v1479
      %v1490 = vsub.f32 %v1474, %v1482
      %v1491 = vsub.f32 %v1475, %v1485
      %v1492 = vsub.f32 %v1476, %v1488
      %v1493 = vmul.f32 %v1489, 1.442695
      %v1494 = vpow.pop %v1493
      %v1495 = vmul.f32 %v1490, 1.442695
      %v1496 = vpow.pop %v1495
      %v1497 = vmul.f32 %v1491, 1.442695
      %v1498 = vpow.pop %v1497
      %v1499 = vmul.f32 %v1492, 1.442695
      %v1500 = vpow.pop %v1499
      %v1501 = vsel %vm847, %v1494, 0.0
      %1502 = vadd.xlane.f32.xlu0 %v1501
      %v1503 = vpop.xlane.xlu0 %1502
      %v1504 = vsel %vm847, %v1496, 0.0
      %1505 = vadd.xlane.f32.xlu0 %v1504
      %v1506 = vpop.xlane.xlu0 %1505
      %v1507 = vsel %vm847, %v1498, 0.0
      %1508 = vadd.xlane.f32.xlu0 %v1507
      %v1509 = vpop.xlane.xlu0 %1508
      %v1510 = vsel %vm847, %v1500, 0.0
      %1511 = vadd.xlane.f32.xlu0 %v1510
      %v1512 = vpop.xlane.xlu0 %1511
      %v1513 = vrcp.pop %v1503
      %v1514 = vmul.f32 %v1494, %v1513
      %v1515 = vrcp.pop %v1506
      %v1516 = vmul.f32 %v1496, %v1515
      %v1517 = vrcp.pop %v1509
      %v1518 = vmul.f32 %v1498, %v1517
      %v1519 = vrcp.pop %v1512
      %v1520 = vmul.f32 %v1500, %v1519
      %v1521 = vpack.c.bf16 %v1516, %v1514
      %v1522 = vpack.c.bf16 %v1520, %v1518
      %1523 = vrot.lane.b32.xlu0 %v724, 48
      %v1524 = vpop.permute.xlu0 %1523
      %v1527 = vsel %vm847, %v1521, 0
      %1529 = vmatprep.subr.bf16.mxu0 0
      %1530 = vmatpush1.bf16.msra.mxu0 %v1524
      %1531 = vmatprep.subr.bf16.mxu0 0
      %1532 = vmatpush1.bf16.msra.mxu0 0
      %1533 = vmatprep.subr.bf16.mxu0 0
      %1534 = vmatpush1.bf16.msra.mxu0 0
      %1535 = vmatprep.subr.bf16.mxu0 0
      %1536 = vmatpush1.bf16.msra.mxu0 0
      %1537 = vmatprep.subr.bf16.mxu0 0
      %1538 = vmatpush1.bf16.msra.mxu0 0
      %1539 = vmatprep.subr.bf16.mxu0 0
      %1540 = vmatpush1.bf16.msra.mxu0 0
      %1541 = vmatprep.subr.bf16.mxu0 0
      %1542 = vmatpush1.bf16.msra.mxu0 0
      %1543 = vmatprep.subr.bf16.mxu0 0
      %1544 = vmatpush1.bf16.msra.mxu0 0
      %1545 = vmatprep.subr.bf16.mxu0 0
      %1546 = vmatpush1.bf16.msra.mxu0 0
      %1547 = vmatprep.subr.bf16.mxu0 0
      %1548 = vmatpush1.bf16.msra.mxu0 0
      %1549 = vmatprep.subr.bf16.mxu0 0
      %1550 = vmatpush1.bf16.msra.mxu0 0
      %1551 = vmatprep.subr.bf16.mxu0 0
      %1552 = vmatpush1.bf16.msra.mxu0 0
      %1553 = vmatprep.subr.bf16.mxu0 0
      %1554 = vmatpush1.bf16.msra.mxu0 0
      %1555 = vmatprep.subr.bf16.mxu0 0
      %1556 = vmatpush1.bf16.msra.mxu0 0
      %1557 = vmatprep.subr.bf16.mxu0 0
      %1558 = vmatpush1.bf16.msra.mxu0 0
      %1559 = vmatprep.subr.bf16.mxu0 0
      %1560 = vmatpush1.bf16.msra.mxu0 0
      %1561 = vmatprep.mubr.bf16.mxu0 0
      %1562 = vmatmul.mubr.bf16.gmra.mrb[0].mxu0 %v1527
      %v1563 = vpop.f32.mrb[0].mxu0
      %v1564 = vadd.f32 0.0, %v1563
      %v1565 = vpop.f32.mrb[0].mxu0
      %v1566 = vpop.f32.mrb[0].mxu0
      %v1567 = vadd.f32 0.0, %v1566
      %v1568 = vpop.f32.mrb[0].mxu0
      %1569 = vdwg.mxu0
      %1570 = vrot.lane.b32.xlu0 %v725, 48
      %v1571 = vpop.permute.xlu0 %1570
      %v1574 = vsel %vm847, %v1522, 0
      %1576 = vmatprep.subr.bf16.mxu0 0
      %1577 = vmatpush1.bf16.msra.mxu0 %v1571
      %1578 = vmatprep.subr.bf16.mxu0 0
      %1579 = vmatpush1.bf16.msra.mxu0 0
      %1580 = vmatprep.subr.bf16.mxu0 0
      %1581 = vmatpush1.bf16.msra.mxu0 0
      %1582 = vmatprep.subr.bf16.mxu0 0
      %1583 = vmatpush1.bf16.msra.mxu0 0
      %1584 = vmatprep.subr.bf16.mxu0 0
      %1585 = vmatpush1.bf16.msra.mxu0 0
      %1586 = vmatprep.subr.bf16.mxu0 0
      %1587 = vmatpush1.bf16.msra.mxu0 0
      %1588 = vmatprep.subr.bf16.mxu0 0
      %1589 = vmatpush1.bf16.msra.mxu0 0
      %1590 = vmatprep.subr.bf16.mxu0 0
      %1591 = vmatpush1.bf16.msra.mxu0 0
      %1592 = vmatprep.subr.bf16.mxu0 0
      %1593 = vmatpush1.bf16.msra.mxu0 0
      %1594 = vmatprep.subr.bf16.mxu0 0
      %1595 = vmatpush1.bf16.msra.mxu0 0
      %1596 = vmatprep.subr.bf16.mxu0 0
      %1597 = vmatpush1.bf16.msra.mxu0 0
      %1598 = vmatprep.subr.bf16.mxu0 0
      %1599 = vmatpush1.bf16.msra.mxu0 0
      %1600 = vmatprep.subr.bf16.mxu0 0
      %1601 = vmatpush1.bf16.msra.mxu0 0
      %1602 = vmatprep.subr.bf16.mxu0 0
      %1603 = vmatpush1.bf16.msra.mxu0 0
      %1604 = vmatprep.subr.bf16.mxu0 0
      %1605 = vmatpush1.bf16.msra.mxu0 0
      %1606 = vmatprep.subr.bf16.mxu0 0
      %1607 = vmatpush1.bf16.msra.mxu0 0
      %1608 = vmatprep.mubr.bf16.mxu0 0
      %1609 = vmatmul.mubr.bf16.gmra.mrb[0].mxu0 %v1574
      %v1610 = vpop.f32.mrb[0].mxu0
      %v1611 = vadd.f32 0.0, %v1610
      %v1612 = vpop.f32.mrb[0].mxu0
      %v1613 = vpop.f32.mrb[0].mxu0
      %v1614 = vadd.f32 0.0, %v1613
      %v1615 = vpop.f32.mrb[0].mxu0
      %1616 = vdwg.mxu0
      %v1617 = vpack.c.bf16 %v1567, %v1564
      %v1618 = vpack.c.bf16 %v1614, %v1611
      %v1620 = vsel %vm729, %v1617, 0
      %v1623 = vsel %vm729, %v1618, 0
      %v1626 = vsel %vm996, %v714, 0
      %1628 = vmatprep.subr.bf16.mxu0 0
      %1629 = vmatpush1.bf16.msra.mxu0 %v1626
      %1630 = vmatprep.subr.bf16.mxu0 0
      %1631 = vmatpush1.bf16.msra.mxu0 0
      %1632 = vmatprep.subr.bf16.mxu0 0
      %1633 = vmatpush1.bf16.msra.mxu0 0
      %1634 = vmatprep.subr.bf16.mxu0 0
      %1635 = vmatpush1.bf16.msra.mxu0 0
      %1636 = vmatprep.subr.bf16.mxu0 0
      %1637 = vmatpush1.bf16.msra.mxu0 0
      %1638 = vmatprep.subr.bf16.mxu0 0
      %1639 = vmatpush1.bf16.msra.mxu0 0
      %1640 = vmatprep.subr.bf16.mxu0 0
      %1641 = vmatpush1.bf16.msra.mxu0 0
      %1642 = vmatprep.subr.bf16.mxu0 0
      %1643 = vmatpush1.bf16.msra.mxu0 0
      %1644 = vmatprep.subr.bf16.mxu0 0
      %1645 = vmatpush1.bf16.msra.mxu0 0
      %1646 = vmatprep.subr.bf16.mxu0 0
      %1647 = vmatpush1.bf16.msra.mxu0 0
      %1648 = vmatprep.subr.bf16.mxu0 0
      %1649 = vmatpush1.bf16.msra.mxu0 0
      %1650 = vmatprep.subr.bf16.mxu0 0
      %1651 = vmatpush1.bf16.msra.mxu0 0
      %1652 = vmatprep.subr.bf16.mxu0 0
      %1653 = vmatpush1.bf16.msra.mxu0 0
      %1654 = vmatprep.subr.bf16.mxu0 0
      %1655 = vmatpush1.bf16.msra.mxu0 0
      %1656 = vmatprep.subr.bf16.mxu0 0
      %1657 = vmatpush1.bf16.msra.mxu0 0
      %1658 = vmatprep.subr.bf16.mxu0 0
      %1659 = vmatpush1.bf16.msra.mxu0 0
      %1660 = vmatprep.mubr.bf16.mxu0 0
      %1661 = vmatmul.mubr.bf16.gmra.mrb[0].mxu0 %v1620
      %v1662 = vpop.f32.mrb[0].mxu0
      %v1663 = vadd.f32 0.0, %v1662
      %v1664 = vpop.f32.mrb[0].mxu0
      %v1665 = vpop.f32.mrb[0].mxu0
      %v1666 = vadd.f32 0.0, %v1665
      %v1667 = vpop.f32.mrb[0].mxu0
      %1668 = vmatprep.mubr.bf16.mxu0 0
      %1669 = vmatmul.mubr.bf16.gmra.mrb[0].mxu0 %v1623
      %v1670 = vpop.f32.mrb[0].mxu0
      %v1671 = vadd.f32 0.0, %v1670
      %v1672 = vpop.f32.mrb[0].mxu0
      %v1673 = vpop.f32.mrb[0].mxu0
      %v1674 = vadd.f32 0.0, %v1673
      %v1675 = vpop.f32.mrb[0].mxu0
      %1676 = vdwg.mxu0
      %v1677 = vadd.f32 %v1363, %v1663
      %v1678 = vadd.f32 %v1364, %v1666
      %v1679 = vadd.f32 %v1365, %v1671
      %v1680 = vadd.f32 %v1366, %v1674
      %1681 = vrot.lane.b32.xlu0 %v724, 104
      %v1682 = vpop.permute.xlu0 %1681
      %1683 = vrot.lane.b32.xlu0 %v724, 72
      %v1684 = vpop.permute.xlu0 %1683
      %v1686 = vsel %vm729, %v1682, 0
      %v1689 = vsel %vm729, %v1684, 0
      %1691 = vmatprep.subr.bf16.mxu0 0
      %1692 = vmatpush1.bf16.xpose.msra.mxu0 %v1689
      %1693 = vmatprep.subr.bf16.mxu0 0
      %1694 = vmatpush1.bf16.xpose.msra.mxu0 0
      %1695 = vmatprep.subr.bf16.mxu0 0
      %1696 = vmatpush1.bf16.xpose.msra.mxu0 0
      %1697 = vmatprep.subr.bf16.mxu0 0
      %1698 = vmatpush1.bf16.xpose.msra.mxu0 0
      %1699 = vmatprep.subr.bf16.mxu0 0
      %1700 = vmatpush1.bf16.xpose.msra.mxu0 0
      %1701 = vmatprep.subr.bf16.mxu0 0
      %1702 = vmatpush1.bf16.xpose.msra.mxu0 0
      %1703 = vmatprep.subr.bf16.mxu0 0
      %1704 = vmatpush1.bf16.xpose.msra.mxu0 0
      %1705 = vmatprep.subr.bf16.mxu0 0
      %1706 = vmatpush1.bf16.xpose.msra.mxu0 0
      %1707 = vmatprep.subr.bf16.mxu0 0
      %1708 = vmatpush1.bf16.xpose.msra.mxu0 0
      %1709 = vmatprep.subr.bf16.mxu0 0
      %1710 = vmatpush1.bf16.xpose.msra.mxu0 0
      %1711 = vmatprep.subr.bf16.mxu0 0
      %1712 = vmatpush1.bf16.xpose.msra.mxu0 0
      %1713 = vmatprep.subr.bf16.mxu0 0
      %1714 = vmatpush1.bf16.xpose.msra.mxu0 0
      %1715 = vmatprep.subr.bf16.mxu0 0
      %1716 = vmatpush1.bf16.xpose.msra.mxu0 0
      %1717 = vmatprep.subr.bf16.mxu0 0
      %1718 = vmatpush1.bf16.xpose.msra.mxu0 0
      %1719 = vmatprep.subr.bf16.mxu0 0
      %1720 = vmatpush1.bf16.xpose.msra.mxu0 0
      %1721 = vmatprep.subr.bf16.mxu0 0
      %1722 = vmatpush1.bf16.xpose.msra.mxu0 0
      %1723 = vmatprep.mubr.bf16.mxu0 0
      %1724 = vmatmul.mubr.bf16.gmra.mrb[0].mxu0 %v1686
      %v1725 = vpop.f32.mrb[0].mxu0
      %v1726 = vadd.f32 0.0, %v1725
      %v1727 = vpop.f32.mrb[0].mxu0
      %v1728 = vpop.f32.mrb[0].mxu0
      %v1729 = vadd.f32 0.0, %v1728
      %v1730 = vpop.f32.mrb[0].mxu0
      %1731 = vdwg.mxu0
      %1732 = vrot.lane.b32.xlu0 %v725, 104
      %v1733 = vpop.permute.xlu0 %1732
      %1734 = vrot.lane.b32.xlu0 %v725, 72
      %v1735 = vpop.permute.xlu0 %1734
      %v1737 = vsel %vm729, %v1733, 0
      %v1740 = vsel %vm729, %v1735, 0
      %1742 = vmatprep.subr.bf16.mxu0 0
      %1743 = vmatpush1.bf16.xpose.msra.mxu0 %v1740
      %1744 = vmatprep.subr.bf16.mxu0 0
      %1745 = vmatpush1.bf16.xpose.msra.mxu0 0
      %1746 = vmatprep.subr.bf16.mxu0 0
      %1747 = vmatpush1.bf16.xpose.msra.mxu0 0
      %1748 = vmatprep.subr.bf16.mxu0 0
      %1749 = vmatpush1.bf16.xpose.msra.mxu0 0
      %1750 = vmatprep.subr.bf16.mxu0 0
      %1751 = vmatpush1.bf16.xpose.msra.mxu0 0
      %1752 = vmatprep.subr.bf16.mxu0 0
      %1753 = vmatpush1.bf16.xpose.msra.mxu0 0
      %1754 = vmatprep.subr.bf16.mxu0 0
      %1755 = vmatpush1.bf16.xpose.msra.mxu0 0
      %1756 = vmatprep.subr.bf16.mxu0 0
      %1757 = vmatpush1.bf16.xpose.msra.mxu0 0
      %1758 = vmatprep.subr.bf16.mxu0 0
      %1759 = vmatpush1.bf16.xpose.msra.mxu0 0
      %1760 = vmatprep.subr.bf16.mxu0 0
      %1761 = vmatpush1.bf16.xpose.msra.mxu0 0
      %1762 = vmatprep.subr.bf16.mxu0 0
      %1763 = vmatpush1.bf16.xpose.msra.mxu0 0
      %1764 = vmatprep.subr.bf16.mxu0 0
      %1765 = vmatpush1.bf16.xpose.msra.mxu0 0
      %1766 = vmatprep.subr.bf16.mxu0 0
      %1767 = vmatpush1.bf16.xpose.msra.mxu0 0
      %1768 = vmatprep.subr.bf16.mxu0 0
      %1769 = vmatpush1.bf16.xpose.msra.mxu0 0
      %1770 = vmatprep.subr.bf16.mxu0 0
      %1771 = vmatpush1.bf16.xpose.msra.mxu0 0
      %1772 = vmatprep.subr.bf16.mxu0 0
      %1773 = vmatpush1.bf16.xpose.msra.mxu0 0
      %1774 = vmatprep.mubr.bf16.mxu0 0
      %1775 = vmatmul.mubr.bf16.gmra.mrb[0].mxu0 %v1737
      %v1776 = vpop.f32.mrb[0].mxu0
      %v1777 = vadd.f32 0.0, %v1776
      %v1778 = vpop.f32.mrb[0].mxu0
      %v1779 = vpop.f32.mrb[0].mxu0
      %v1780 = vadd.f32 0.0, %v1779
      %v1781 = vpop.f32.mrb[0].mxu0
      %1782 = vdwg.mxu0
      %v1783 = vmul.f32 %v1726, 0.35355338
      %v1784 = vmul.f32 %v1729, 0.35355338
      %v1785 = vmul.f32 %v1777, 0.35355338
      %v1786 = vmul.f32 %v1780, 0.35355338
      %v1787 = vadd.f32 %v1783, %v836
      %v1788 = vadd.f32 %v1784, %v836
      %v1789 = vadd.f32 %v1785, %v840
      %v1790 = vadd.f32 %v1786, %v840
      %v1791 = vsel %vm847, %v1787, -inf
      %1792 = vmax.xlane.f32.xlu0 %v1791
      %v1793 = vpop.xlane.xlu0 %1792
      %v1794 = vsel %vm847, %v1788, -inf
      %1795 = vmax.xlane.f32.xlu0 %v1794
      %v1796 = vpop.xlane.xlu0 %1795
      %v1797 = vsel %vm847, %v1789, -inf
      %1798 = vmax.xlane.f32.xlu0 %v1797
      %v1799 = vpop.xlane.xlu0 %1798
      %v1800 = vsel %vm847, %v1790, -inf
      %1801 = vmax.xlane.f32.xlu0 %v1800
      %v1802 = vpop.xlane.xlu0 %1801
      %v1803 = vsub.f32 %v1787, %v1793
      %v1804 = vsub.f32 %v1788, %v1796
      %v1805 = vsub.f32 %v1789, %v1799
      %v1806 = vsub.f32 %v1790, %v1802
      %v1807 = vmul.f32 %v1803, 1.442695
      %v1808 = vpow.pop %v1807
      %v1809 = vmul.f32 %v1804, 1.442695
      %v1810 = vpow.pop %v1809
      %v1811 = vmul.f32 %v1805, 1.442695
      %v1812 = vpow.pop %v1811
      %v1813 = vmul.f32 %v1806, 1.442695
      %v1814 = vpow.pop %v1813
      %v1815 = vsel %vm847, %v1808, 0.0
      %1816 = vadd.xlane.f32.xlu0 %v1815
      %v1817 = vpop.xlane.xlu0 %1816
      %v1818 = vsel %vm847, %v1810, 0.0
      %1819 = vadd.xlane.f32.xlu0 %v1818
      %v1820 = vpop.xlane.xlu0 %1819
      %v1821 = vsel %vm847, %v1812, 0.0
      %1822 = vadd.xlane.f32.xlu0 %v1821
      %v1823 = vpop.xlane.xlu0 %1822
      %v1824 = vsel %vm847, %v1814, 0.0
      %1825 = vadd.xlane.f32.xlu0 %v1824
      %v1826 = vpop.xlane.xlu0 %1825
      %v1827 = vrcp.pop %v1817
      %v1828 = vmul.f32 %v1808, %v1827
      %v1829 = vrcp.pop %v1820
      %v1830 = vmul.f32 %v1810, %v1829
      %v1831 = vrcp.pop %v1823
      %v1832 = vmul.f32 %v1812, %v1831
      %v1833 = vrcp.pop %v1826
      %v1834 = vmul.f32 %v1814, %v1833
      %v1835 = vpack.c.bf16 %v1830, %v1828
      %v1836 = vpack.c.bf16 %v1834, %v1832
      %1837 = vrot.lane.b32.xlu0 %v724, 40
      %v1838 = vpop.permute.xlu0 %1837
      %v1841 = vsel %vm847, %v1835, 0
      %1843 = vmatprep.subr.bf16.mxu0 0
      %1844 = vmatpush1.bf16.msra.mxu0 %v1838
      %1845 = vmatprep.subr.bf16.mxu0 0
      %1846 = vmatpush1.bf16.msra.mxu0 0
      %1847 = vmatprep.subr.bf16.mxu0 0
      %1848 = vmatpush1.bf16.msra.mxu0 0
      %1849 = vmatprep.subr.bf16.mxu0 0
      %1850 = vmatpush1.bf16.msra.mxu0 0
      %1851 = vmatprep.subr.bf16.mxu0 0
      %1852 = vmatpush1.bf16.msra.mxu0 0
      %1853 = vmatprep.subr.bf16.mxu0 0
      %1854 = vmatpush1.bf16.msra.mxu0 0
      %1855 = vmatprep.subr.bf16.mxu0 0
      %1856 = vmatpush1.bf16.msra.mxu0 0
      %1857 = vmatprep.subr.bf16.mxu0 0
      %1858 = vmatpush1.bf16.msra.mxu0 0
      %1859 = vmatprep.subr.bf16.mxu0 0
      %1860 = vmatpush1.bf16.msra.mxu0 0
      %1861 = vmatprep.subr.bf16.mxu0 0
      %1862 = vmatpush1.bf16.msra.mxu0 0
      %1863 = vmatprep.subr.bf16.mxu0 0
      %1864 = vmatpush1.bf16.msra.mxu0 0
      %1865 = vmatprep.subr.bf16.mxu0 0
      %1866 = vmatpush1.bf16.msra.mxu0 0
      %1867 = vmatprep.subr.bf16.mxu0 0
      %1868 = vmatpush1.bf16.msra.mxu0 0
      %1869 = vmatprep.subr.bf16.mxu0 0
      %1870 = vmatpush1.bf16.msra.mxu0 0
      %1871 = vmatprep.subr.bf16.mxu0 0
      %1872 = vmatpush1.bf16.msra.mxu0 0
      %1873 = vmatprep.subr.bf16.mxu0 0
      %1874 = vmatpush1.bf16.msra.mxu0 0
      %1875 = vmatprep.mubr.bf16.mxu0 0
      %1876 = vmatmul.mubr.bf16.gmra.mrb[0].mxu0 %v1841
      %v1877 = vpop.f32.mrb[0].mxu0
      %v1878 = vadd.f32 0.0, %v1877
      %v1879 = vpop.f32.mrb[0].mxu0
      %v1880 = vpop.f32.mrb[0].mxu0
      %v1881 = vadd.f32 0.0, %v1880
      %v1882 = vpop.f32.mrb[0].mxu0
      %1883 = vdwg.mxu0
      %1884 = vrot.lane.b32.xlu0 %v725, 40
      %v1885 = vpop.permute.xlu0 %1884
      %v1888 = vsel %vm847, %v1836, 0
      %1890 = vmatprep.subr.bf16.mxu0 0
      %1891 = vmatpush1.bf16.msra.mxu0 %v1885
      %1892 = vmatprep.subr.bf16.mxu0 0
      %1893 = vmatpush1.bf16.msra.mxu0 0
      %1894 = vmatprep.subr.bf16.mxu0 0
      %1895 = vmatpush1.bf16.msra.mxu0 0
      %1896 = vmatprep.subr.bf16.mxu0 0
      %1897 = vmatpush1.bf16.msra.mxu0 0
      %1898 = vmatprep.subr.bf16.mxu0 0
      %1899 = vmatpush1.bf16.msra.mxu0 0
      %1900 = vmatprep.subr.bf16.mxu0 0
      %1901 = vmatpush1.bf16.msra.mxu0 0
      %1902 = vmatprep.subr.bf16.mxu0 0
      %1903 = vmatpush1.bf16.msra.mxu0 0
      %1904 = vmatprep.subr.bf16.mxu0 0
      %1905 = vmatpush1.bf16.msra.mxu0 0
      %1906 = vmatprep.subr.bf16.mxu0 0
      %1907 = vmatpush1.bf16.msra.mxu0 0
      %1908 = vmatprep.subr.bf16.mxu0 0
      %1909 = vmatpush1.bf16.msra.mxu0 0
      %1910 = vmatprep.subr.bf16.mxu0 0
      %1911 = vmatpush1.bf16.msra.mxu0 0
      %1912 = vmatprep.subr.bf16.mxu0 0
      %1913 = vmatpush1.bf16.msra.mxu0 0
      %1914 = vmatprep.subr.bf16.mxu0 0
      %1915 = vmatpush1.bf16.msra.mxu0 0
      %1916 = vmatprep.subr.bf16.mxu0 0
      %1917 = vmatpush1.bf16.msra.mxu0 0
      %1918 = vmatprep.subr.bf16.mxu0 0
      %1919 = vmatpush1.bf16.msra.mxu0 0
      %1920 = vmatprep.subr.bf16.mxu0 0
      %1921 = vmatpush1.bf16.msra.mxu0 0
      %1922 = vmatprep.mubr.bf16.mxu0 0
      %1923 = vmatmul.mubr.bf16.gmra.mrb[0].mxu0 %v1888
      %v1924 = vpop.f32.mrb[0].mxu0
      %v1925 = vadd.f32 0.0, %v1924
      %v1926 = vpop.f32.mrb[0].mxu0
      %v1927 = vpop.f32.mrb[0].mxu0
      %v1928 = vadd.f32 0.0, %v1927
      %v1929 = vpop.f32.mrb[0].mxu0
      %1930 = vdwg.mxu0
      %v1931 = vpack.c.bf16 %v1881, %v1878
      %v1932 = vpack.c.bf16 %v1928, %v1925
      %v1934 = vsel %vm729, %v1931, 0
      %v1937 = vsel %vm729, %v1932, 0
      %v1940 = vsel %vm996, %v715, 0
      %1942 = vmatprep.subr.bf16.mxu0 0
      %1943 = vmatpush1.bf16.msra.mxu0 %v1940
      %1944 = vmatprep.subr.bf16.mxu0 0
      %1945 = vmatpush1.bf16.msra.mxu0 0
      %1946 = vmatprep.subr.bf16.mxu0 0
      %1947 = vmatpush1.bf16.msra.mxu0 0
      %1948 = vmatprep.subr.bf16.mxu0 0
      %1949 = vmatpush1.bf16.msra.mxu0 0
      %1950 = vmatprep.subr.bf16.mxu0 0
      %1951 = vmatpush1.bf16.msra.mxu0 0
      %1952 = vmatprep.subr.bf16.mxu0 0
      %1953 = vmatpush1.bf16.msra.mxu0 0
      %1954 = vmatprep.subr.bf16.mxu0 0
      %1955 = vmatpush1.bf16.msra.mxu0 0
      %1956 = vmatprep.subr.bf16.mxu0 0
      %1957 = vmatpush1.bf16.msra.mxu0 0
      %1958 = vmatprep.subr.bf16.mxu0 0
      %1959 = vmatpush1.bf16.msra.mxu0 0
      %1960 = vmatprep.subr.bf16.mxu0 0
      %1961 = vmatpush1.bf16.msra.mxu0 0
      %1962 = vmatprep.subr.bf16.mxu0 0
      %1963 = vmatpush1.bf16.msra.mxu0 0
      %1964 = vmatprep.subr.bf16.mxu0 0
      %1965 = vmatpush1.bf16.msra.mxu0 0
      %1966 = vmatprep.subr.bf16.mxu0 0
      %1967 = vmatpush1.bf16.msra.mxu0 0
      %1968 = vmatprep.subr.bf16.mxu0 0
      %1969 = vmatpush1.bf16.msra.mxu0 0
      %1970 = vmatprep.subr.bf16.mxu0 0
      %1971 = vmatpush1.bf16.msra.mxu0 0
      %1972 = vmatprep.subr.bf16.mxu0 0
      %1973 = vmatpush1.bf16.msra.mxu0 0
      %1974 = vmatprep.mubr.bf16.mxu0 0
      %1975 = vmatmul.mubr.bf16.gmra.mrb[0].mxu0 %v1934
      %v1976 = vpop.f32.mrb[0].mxu0
      %v1977 = vadd.f32 0.0, %v1976
      %v1978 = vpop.f32.mrb[0].mxu0
      %v1979 = vpop.f32.mrb[0].mxu0
      %v1980 = vadd.f32 0.0, %v1979
      %v1981 = vpop.f32.mrb[0].mxu0
      %1982 = vmatprep.mubr.bf16.mxu0 0
      %1983 = vmatmul.mubr.bf16.gmra.mrb[0].mxu0 %v1937
      %v1984 = vpop.f32.mrb[0].mxu0
      %v1985 = vadd.f32 0.0, %v1984
      %v1986 = vpop.f32.mrb[0].mxu0
      %v1987 = vpop.f32.mrb[0].mxu0
      %v1988 = vadd.f32 0.0, %v1987
      %v1989 = vpop.f32.mrb[0].mxu0
      %1990 = vdwg.mxu0
      %v1991 = vadd.f32 %v1677, %v1977
      %v1992 = vadd.f32 %v1678, %v1980
      %v1993 = vadd.f32 %v1679, %v1985
      %v1994 = vadd.f32 %v1680, %v1988
      %v1995 = vadd.f32 %v628, %v1991
      %v1996 = vadd.f32 %v629, %v1992
      %v1997 = vadd.f32 %v630, %v1993
      %v1998 = vadd.f32 %v631, %v1994
      %v1999 = vld [vmem:[%s8] sm:$0x1]
      %v2000 = vld [vmem:[%s9] sm:$0x1]
      %v2001 = vsel %vm558, %v1995, 0.0
      %2002 = vadd.xlane.f32.xlu0 %v2001
      %v2003 = vpop.xlane.xlu0 %2002
      %v2004 = vsel %vm558, %v1996, 0.0
      %2005 = vadd.xlane.f32.xlu0 %v2004
      %v2006 = vpop.xlane.xlu0 %2005
      %v2007 = vsel %vm558, %v1997, 0.0
      %2008 = vadd.xlane.f32.xlu0 %v2007
      %v2009 = vpop.xlane.xlu0 %2008
      %v2010 = vsel %vm558, %v1998, 0.0
      %2011 = vadd.xlane.f32.xlu0 %v2010
      %v2012 = vpop.xlane.xlu0 %2011
      %v2013 = vmul.f32 %v2003, %v571
      %v2014 = vmul.f32 %v2006, %v571
      %v2015 = vmul.f32 %v2009, %v571
      %v2016 = vmul.f32 %v2012, %v571
      %v2017 = vsub.f32 %v1995, %v2013
      %v2018 = vsub.f32 %v1996, %v2014
      %v2019 = vsub.f32 %v1997, %v2015
      %v2020 = vsub.f32 %v1998, %v2016
      %v2021 = vmul.f32 %v2017, %v2017
      %v2022 = vmul.f32 %v2018, %v2018
      %v2023 = vmul.f32 %v2019, %v2019
      %v2024 = vmul.f32 %v2020, %v2020
      %v2025 = vsel %vm558, %v2021, 0.0
      %2026 = vadd.xlane.f32.xlu0 %v2025
      %v2027 = vpop.xlane.xlu0 %2026
      %v2028 = vsel %vm558, %v2022, 0.0
      %2029 = vadd.xlane.f32.xlu0 %v2028
      %v2030 = vpop.xlane.xlu0 %2029
      %v2031 = vsel %vm558, %v2023, 0.0
      %2032 = vadd.xlane.f32.xlu0 %v2031
      %v2033 = vpop.xlane.xlu0 %2032
      %v2034 = vsel %vm558, %v2024, 0.0
      %2035 = vadd.xlane.f32.xlu0 %v2034
      %v2036 = vpop.xlane.xlu0 %2035
      %v2037 = vmul.f32 %v2027, %v571
      %v2038 = vmul.f32 %v2030, %v571
      %v2039 = vmul.f32 %v2033, %v571
      %v2040 = vmul.f32 %v2036, %v571
      %v2041 = vadd.f32 %v2037, 1e-12
      %v2042 = vadd.f32 %v2038, 1e-12
      %v2043 = vadd.f32 %v2039, 1e-12
      %v2044 = vadd.f32 %v2040, 1e-12
      %v2045 = vrsqrt.pop %v2041
      %v2046 = vrsqrt.pop %v2042
      %v2047 = vrsqrt.pop %v2043
      %v2048 = vrsqrt.pop %v2044
      %v2049 = vmul.f32 %v2017, %v2045
      %v2050 = vmul.f32 %v2018, %v2046
      %v2051 = vmul.f32 %v2019, %v2047
      %v2052 = vmul.f32 %v2020, %v2048
      %v2054 = vlaneseq
      %v2055 = vshrl.u32 %v2054, 7
      %v2056 = vsub.s32 0, %v2055
      %v2057 = vrot.slane %v1999, %v2056
      %v2059 = vmul.f32 %v2049, %v2057
      %v2060 = vmul.f32 %v2050, %v2057
      %v2061 = vmul.f32 %v2051, %v2057
      %v2062 = vmul.f32 %v2052, %v2057
      %v2064 = vlaneseq
      %v2065 = vshrl.u32 %v2064, 7
      %v2066 = vsub.s32 0, %v2065
      %v2067 = vrot.slane %v2000, %v2066
      %v2069 = vadd.f32 %v2059, %v2067
      %v2070 = vadd.f32 %v2060, %v2067
      %v2071 = vadd.f32 %v2061, %v2067
      %v2072 = vadd.f32 %v2062, %v2067
      %v2073 = vpack.c.bf16 %v2070, %v2069
      %v2074 = vpack.c.bf16 %v2072, %v2071
      %v2075 = vld [vmem:[%s10] sm:$0xf]
      %v2076 = vld [vmem:[%s10 + $0x4] sm:$0xf]
      %v2077 = vld [vmem:[%s10 + $0x8] sm:$0xf]
      %v2078 = vld [vmem:[%s10 + $0xc] sm:$0xf]
      %v2079 = vld [vmem:[%s11] sm:$0x1]
      %v2081 = vlaneseq
      %v2082 = vshrl.u32 %v2081, 7
      %v2083 = vsub.s32 0, %v2082
      %v2084 = vrot.slane %v2079, %v2083
      %v2090 = vunpack.c.l.b16 %v2075
      %v2091 = vunpack.c.l.b16 %v2076
      %v2092 = vunpack.c.l.b16 %v2077
      %v2093 = vunpack.c.l.b16 %v2078
      %v2094 = vpack.c.b16 %v2091, %v2090
      %v2095 = vpack.c.b16 %v2093, %v2092
      %v2099 = vsel %vm558, %v2073, 0
      %v2102 = vsel %vm558, %v2074, 0
      %2104 = vmatprep.subr.bf16.mxu0 0
      %2105 = vmatpush1.bf16.msra.mxu0 %v2094
      %2106 = vmatprep.subr.bf16.mxu0 0
      %2107 = vmatpush1.bf16.msra.mxu0 %v2095
      %2108 = vmatprep.subr.bf16.mxu0 0
      %2109 = vmatpush1.bf16.msra.mxu0 0
      %2110 = vmatprep.subr.bf16.mxu0 0
      %2111 = vmatpush1.bf16.msra.mxu0 0
      %2112 = vmatprep.subr.bf16.mxu0 0
      %2113 = vmatpush1.bf16.msra.mxu0 0
      %2114 = vmatprep.subr.bf16.mxu0 0
      %2115 = vmatpush1.bf16.msra.mxu0 0
      %2116 = vmatprep.subr.bf16.mxu0 0
      %2117 = vmatpush1.bf16.msra.mxu0 0
      %2118 = vmatprep.subr.bf16.mxu0 0
      %2119 = vmatpush1.bf16.msra.mxu0 0
      %2120 = vmatprep.subr.bf16.mxu0 0
      %2121 = vmatpush1.bf16.msra.mxu0 0
      %2122 = vmatprep.subr.bf16.mxu0 0
      %2123 = vmatpush1.bf16.msra.mxu0 0
      %2124 = vmatprep.subr.bf16.mxu0 0
      %2125 = vmatpush1.bf16.msra.mxu0 0
      %2126 = vmatprep.subr.bf16.mxu0 0
      %2127 = vmatpush1.bf16.msra.mxu0 0
      %2128 = vmatprep.subr.bf16.mxu0 0
      %2129 = vmatpush1.bf16.msra.mxu0 0
      %2130 = vmatprep.subr.bf16.mxu0 0
      %2131 = vmatpush1.bf16.msra.mxu0 0
      %2132 = vmatprep.subr.bf16.mxu0 0
      %2133 = vmatpush1.bf16.msra.mxu0 0
      %2134 = vmatprep.subr.bf16.mxu0 0
      %2135 = vmatpush1.bf16.msra.mxu0 0
      %2136 = vmatprep.mubr.bf16.mxu0 0
      %2137 = vmatmul.mubr.bf16.gmra.mrb[0].mxu0 %v2099
      %v2138 = vpop.f32.mrb[0].mxu0
      %v2139 = vadd.f32 %v2084, %v2138
      %v2140 = vpop.f32.mrb[0].mxu0
      %v2141 = vpop.f32.mrb[0].mxu0
      %v2142 = vadd.f32 %v2084, %v2141
      %v2143 = vpop.f32.mrb[0].mxu0
      %2144 = vmatprep.mubr.bf16.mxu0 0
      %2145 = vmatmul.mubr.bf16.gmra.mrb[0].mxu0 %v2102
      %v2146 = vpop.f32.mrb[0].mxu0
      %v2147 = vadd.f32 %v2084, %v2146
      %v2148 = vpop.f32.mrb[0].mxu0
      %v2149 = vpop.f32.mrb[0].mxu0
      %v2150 = vadd.f32 %v2084, %v2149
      %v2151 = vpop.f32.mrb[0].mxu0
      %2152 = vdwg.mxu0
      %v2153 = vmul.f32 %v2139, 0.5
      %v2154 = vmul.f32 %v2142, 0.5
      %v2155 = vmul.f32 %v2147, 0.5
      %v2156 = vmul.f32 %v2150, 0.5
      %v2157 = vmul.f32 %v2139, 0.044715
      %v2158 = vmul.f32 %v2142, 0.044715
      %v2159 = vmul.f32 %v2147, 0.044715
      %v2160 = vmul.f32 %v2150, 0.044715
      %v2161 = vmul.f32 %v2157, %v2139
      %v2162 = vmul.f32 %v2158, %v2142
      %v2163 = vmul.f32 %v2159, %v2147
      %v2164 = vmul.f32 %v2160, %v2150
      %v2165 = vmul.f32 %v2161, %v2139
      %v2166 = vmul.f32 %v2162, %v2142
      %v2167 = vmul.f32 %v2163, %v2147
      %v2168 = vmul.f32 %v2164, %v2150
      %v2169 = vadd.f32 %v2139, %v2165
      %v2170 = vadd.f32 %v2142, %v2166
      %v2171 = vadd.f32 %v2147, %v2167
      %v2172 = vadd.f32 %v2150, %v2168
      %v2173 = vmul.f32 %v2169, 0.7978846
      %v2174 = vmul.f32 %v2170, 0.7978846
      %v2175 = vmul.f32 %v2171, 0.7978846
      %v2176 = vmul.f32 %v2172, 0.7978846
      %v2177 = vtanh.pop %v2173
      %v2178 = vtanh.pop %v2174
      %v2179 = vtanh.pop %v2175
      %v2180 = vtanh.pop %v2176
      %v2181 = vadd.f32 %v2177, 1.0
      %v2182 = vadd.f32 %v2178, 1.0
      %v2183 = vadd.f32 %v2179, 1.0
      %v2184 = vadd.f32 %v2180, 1.0
      %v2185 = vmul.f32 %v2153, %v2181
      %v2186 = vmul.f32 %v2154, %v2182
      %v2187 = vmul.f32 %v2155, %v2183
      %v2188 = vmul.f32 %v2156, %v2184
      %v2189 = vpack.c.bf16 %v2186, %v2185
      %v2190 = vpack.c.bf16 %v2188, %v2187
      %v2191 = vld [vmem:[%s12] sm:$0xf]
      %v2192 = vld [vmem:[%s12 + $0x4] sm:$0xf]
      %v2193 = vld [vmem:[%s12 + $0x8] sm:$0xf]
      %v2194 = vld [vmem:[%s12 + $0xc] sm:$0xf]
      %v2195 = vld [vmem:[%s12 + $0x10] sm:$0xf]
      %v2196 = vld [vmem:[%s12 + $0x14] sm:$0xf]
      %v2197 = vld [vmem:[%s12 + $0x18] sm:$0xf]
      %v2198 = vld [vmem:[%s12 + $0x1c] sm:$0xf]
      %v2199 = vld [vmem:[%s13] sm:$0x1]
      %v2201 = vlaneseq
      %v2202 = vshrl.u32 %v2201, 7
      %v2203 = vsub.s32 0, %v2202
      %v2204 = vrot.slane %v2199, %v2203
      %v2214 = vunpack.c.l.b16 %v2191
      %v2215 = vunpack.c.l.b16 %v2192
      %v2216 = vunpack.c.l.b16 %v2193
      %v2217 = vunpack.c.l.b16 %v2194
      %v2218 = vunpack.c.l.b16 %v2195
      %v2219 = vunpack.c.l.b16 %v2196
      %v2220 = vunpack.c.l.b16 %v2197
      %v2221 = vunpack.c.l.b16 %v2198
      %v2222 = vpack.c.b16 %v2215, %v2214
      %v2223 = vpack.c.b16 %v2217, %v2216
      %v2224 = vpack.c.b16 %v2219, %v2218
      %v2225 = vpack.c.b16 %v2221, %v2220
      %vm2230 = vcmask 523264
      %v2232 = vsel %vm2230, %v2189, 0
      %v2235 = vsel %vm2230, %v2190, 0
      %2237 = vmatprep.subr.bf16.mxu0 0
      %2238 = vmatpush1.bf16.msra.mxu0 %v2222
      %2239 = vmatprep.subr.bf16.mxu0 0
      %2240 = vmatpush1.bf16.msra.mxu0 %v2223
      %2241 = vmatprep.subr.bf16.mxu0 0
      %2242 = vmatpush1.bf16.msra.mxu0 %v2224
      %2243 = vmatprep.subr.bf16.mxu0 0
      %2244 = vmatpush1.bf16.msra.mxu0 %v2225
      %2245 = vmatprep.subr.bf16.mxu0 0
      %2246 = vmatpush1.bf16.msra.mxu0 0
      %2247 = vmatprep.subr.bf16.mxu0 0
      %2248 = vmatpush1.bf16.msra.mxu0 0
      %2249 = vmatprep.subr.bf16.mxu0 0
      %2250 = vmatpush1.bf16.msra.mxu0 0
      %2251 = vmatprep.subr.bf16.mxu0 0
      %2252 = vmatpush1.bf16.msra.mxu0 0
      %2253 = vmatprep.subr.bf16.mxu0 0
      %2254 = vmatpush1.bf16.msra.mxu0 0
      %2255 = vmatprep.subr.bf16.mxu0 0
      %2256 = vmatpush1.bf16.msra.mxu0 0
      %2257 = vmatprep.subr.bf16.mxu0 0
      %2258 = vmatpush1.bf16.msra.mxu0 0
      %2259 = vmatprep.subr.bf16.mxu0 0
      %2260 = vmatpush1.bf16.msra.mxu0 0
      %2261 = vmatprep.subr.bf16.mxu0 0
      %2262 = vmatpush1.bf16.msra.mxu0 0
      %2263 = vmatprep.subr.bf16.mxu0 0
      %2264 = vmatpush1.bf16.msra.mxu0 0
      %2265 = vmatprep.subr.bf16.mxu0 0
      %2266 = vmatpush1.bf16.msra.mxu0 0
      %2267 = vmatprep.subr.bf16.mxu0 0
      %2268 = vmatpush1.bf16.msra.mxu0 0
      %2269 = vmatprep.mubr.bf16.mxu0 0
      %2270 = vmatmul.mubr.bf16.gmra.mrb[0].mxu0 %v2232
      %v2271 = vpop.f32.mrb[0].mxu0
      %v2272 = vadd.f32 %v2204, %v2271
      %v2273 = vpop.f32.mrb[0].mxu0
      %v2274 = vpop.f32.mrb[0].mxu0
      %v2275 = vadd.f32 %v2204, %v2274
      %v2276 = vpop.f32.mrb[0].mxu0
      %2277 = vmatprep.mubr.bf16.mxu0 0
      %2278 = vmatmul.mubr.bf16.gmra.mrb[0].mxu0 %v2235
      %v2279 = vpop.f32.mrb[0].mxu0
      %v2280 = vadd.f32 %v2204, %v2279
      %v2281 = vpop.f32.mrb[0].mxu0
      %v2282 = vpop.f32.mrb[0].mxu0
      %v2283 = vadd.f32 %v2204, %v2282
      %v2284 = vpop.f32.mrb[0].mxu0
      %2285 = vdwg.mxu0
      %v2286 = vadd.f32 %v2069, %v2272
      %v2287 = vadd.f32 %v2070, %v2275
      %v2288 = vadd.f32 %v2071, %v2280
      %v2289 = vadd.f32 %v2072, %v2283
      %v2290 = vld [vmem:[%s14] sm:$0x1]
      %v2291 = vld [vmem:[%s15] sm:$0x1]
      %v2292 = vsel %vm558, %v2286, 0.0
      %2293 = vadd.xlane.f32.xlu0 %v2292
      %v2294 = vpop.xlane.xlu0 %2293
      %v2295 = vsel %vm558, %v2287, 0.0
      %2296 = vadd.xlane.f32.xlu0 %v2295
      %v2297 = vpop.xlane.xlu0 %2296
      %v2298 = vsel %vm558, %v2288, 0.0
      %2299 = vadd.xlane.f32.xlu0 %v2298
      %v2300 = vpop.xlane.xlu0 %2299
      %v2301 = vsel %vm558, %v2289, 0.0
      %2302 = vadd.xlane.f32.xlu0 %v2301
      %v2303 = vpop.xlane.xlu0 %2302
      %v2304 = vmul.f32 %v2294, %v571
      %v2305 = vmul.f32 %v2297, %v571
      %v2306 = vmul.f32 %v2300, %v571
      %v2307 = vmul.f32 %v2303, %v571
      %v2308 = vsub.f32 %v2286, %v2304
      %v2309 = vsub.f32 %v2287, %v2305
      %v2310 = vsub.f32 %v2288, %v2306
      %v2311 = vsub.f32 %v2289, %v2307
      %v2312 = vmul.f32 %v2308, %v2308
      %v2313 = vmul.f32 %v2309, %v2309
      %v2314 = vmul.f32 %v2310, %v2310
      %v2315 = vmul.f32 %v2311, %v2311
      %v2316 = vsel %vm558, %v2312, 0.0
      %2317 = vadd.xlane.f32.xlu0 %v2316
      %v2318 = vpop.xlane.xlu0 %2317
      %v2319 = vsel %vm558, %v2313, 0.0
      %2320 = vadd.xlane.f32.xlu0 %v2319
      %v2321 = vpop.xlane.xlu0 %2320
      %v2322 = vsel %vm558, %v2314, 0.0
      %2323 = vadd.xlane.f32.xlu0 %v2322
      %v2324 = vpop.xlane.xlu0 %2323
      %v2325 = vsel %vm558, %v2315, 0.0
      %2326 = vadd.xlane.f32.xlu0 %v2325
      %v2327 = vpop.xlane.xlu0 %2326
      %v2328 = vmul.f32 %v2318, %v571
      %v2329 = vmul.f32 %v2321, %v571
      %v2330 = vmul.f32 %v2324, %v571
      %v2331 = vmul.f32 %v2327, %v571
      %v2332 = vadd.f32 %v2328, 1e-12
      %v2333 = vadd.f32 %v2329, 1e-12
      %v2334 = vadd.f32 %v2330, 1e-12
      %v2335 = vadd.f32 %v2331, 1e-12
      %v2336 = vrsqrt.pop %v2332
      %v2337 = vrsqrt.pop %v2333
      %v2338 = vrsqrt.pop %v2334
      %v2339 = vrsqrt.pop %v2335
      %v2340 = vmul.f32 %v2308, %v2336
      %v2341 = vmul.f32 %v2309, %v2337
      %v2342 = vmul.f32 %v2310, %v2338
      %v2343 = vmul.f32 %v2311, %v2339
      %v2345 = vlaneseq
      %v2346 = vshrl.u32 %v2345, 7
      %v2347 = vsub.s32 0, %v2346
      %v2348 = vrot.slane %v2290, %v2347
      %v2350 = vmul.f32 %v2340, %v2348
      %v2351 = vmul.f32 %v2341, %v2348
      %v2352 = vmul.f32 %v2342, %v2348
      %v2353 = vmul.f32 %v2343, %v2348
      %v2355 = vlaneseq
      %v2356 = vshrl.u32 %v2355, 7
      %v2357 = vsub.s32 0, %v2356
      %v2358 = vrot.slane %v2291, %v2357
      %v2360 = vadd.f32 %v2350, %v2358
      %v2361 = vadd.f32 %v2351, %v2358
      %v2362 = vadd.f32 %v2352, %v2358
      %v2363 = vadd.f32 %v2353, %v2358
      %2364 = vst.msk [vmem:[%s547] sm:$0xff] %vm558, %v2360
      %2365 = vst.msk [vmem:[%s547 + $0x8] sm:$0xff] %vm558, %v2361
      %2366 = vst.msk [vmem:[%s547 + $0x10] sm:$0xff] %vm558, %v2362
      %2367 = vst.msk [vmem:[%s547 + $0x18] sm:$0xff] %vm558, %v2363
      %s2368 = smul.u32 2, %s27
      %p2369 = scmp.lt.s32.totalorder %s2368, 3
      %s2370 = scalar_select %p2369, %s2368, 3
      %s2371 = smul.addr %s2370, 2
      %s2372 = smul.addr %s2371, 8
      %s2373 = scalar_lea.vmem %s16, %s2372
      // Predicated region
      $region85: #{aen_bert_forward.4} parent=83 // pred_check
        %p2374 = pneg %p391
      $region86: #{aen_bert_forward.4} parent=83 // pred_check_branch
        %2376 = sbr.rel (%p2374) target = $region88
      $region87: #{aen_bert_forward.4} parent=83 // pred_region
        %s2377 = smul.u32 2, %s27
      $region88: #{aen_bert_forward.4} parent=83 // pred_fallthru
        _
    $region84: #{aen_bert_forward.4} parent=5 // pred_fallthru
      _
    %p2378 = scmp.le.s32.totalorder 2, %s22
    // Predicated region
    $region89: #{aen_bert_forward.4} parent=5 // pred_check
      %p2379 = pneg %p2378
    $region90: #{aen_bert_forward.4} parent=5 // pred_check_branch
      %2381 = sbr.rel (%p2379) target = $region92
    $region91: #{aen_bert_forward.4} parent=5 // pred_region
      %s2382 = ssub.s32 %s22, 2
      // Predicated region
      $region93: #{aen_bert_forward.4} parent=91 // pred_check
        %p2383 = pneg %p397
      $region94: #{aen_bert_forward.4} parent=91 // pred_check_branch
        %2385 = sbr.rel (%p2383) target = $region96
      $region95: #{aen_bert_forward.4} parent=91 // pred_region
        %s2386 = smul.u32 2, %s28
        %p2387 = scmp.lt.s32.totalorder %s2386, 3
        %s2388 = scalar_select %p2387, %s2386, 3
        %s2389 = smul.addr %s2388, 2
        %s2390 = smul.addr %s2389, 8
        %s2391 = scalar_lea.vmem %s16, %s2390
      $region96: #{aen_bert_forward.4} parent=91 // pred_fallthru
        _
    $region92: #{aen_bert_forward.4} parent=5 // pred_fallthru
      _
  $region6: #{aen_bert_forward.4} parent=0 // loop_footer
    %s26 = sadd.s32 1, %s22
  $region7: #{aen_bert_forward.4} parent=0 // loop_footer_branch
    %21 = sbr.rel target = $region3
  $region8: #{aen_bert_forward.4} parent=0 // loop_exit
    _

// kernel: aen_bert_forward.7
$region0: #{aen_bert_forward.7}
  #allocation0 [shape = 'u32[]', space=smem, size = 0x4, offset = 0x4, fixed_abs, tag = 'smem constant byte address 0x4 - core index']
  #allocation1 [shape = 'u32[144,128]{1,0:T(1,128)}', space=vmem, size = 0x12000, scoped, tag = 'internal scratch']
  %s0 = inlined_call_operand.vmem [shape: f32[2,16,16], index: 0, kind: input, shape index: {}]
  %s1 = inlined_call_operand.vmem [shape: f32[2,16,16], index: 1, kind: input, shape index: {}]
  %s2 = inlined_call_operand.vmem [shape: f32[2,1,16], index: 2, kind: input, shape index: {}]
  %s3 = inlined_call_operand.vmem [shape: f32[2,16,1], index: 3, kind: input, shape index: {}]
  %s4 = inlined_call_operand.vmem [shape: f32[2,1], index: 4, kind: input, shape index: {}]
  %s5 = inlined_call_operand.vmem [shape: f32[2,16], index: 5, kind: input, shape index: {}]
  %s6 = inlined_call_operand.vmem [shape: f32[2,16], index: 6, kind: input, shape index: {}]
  %s7 = inlined_call_operand.vmem [shape: bf16[16,16], index: 7, kind: input, shape index: {}]
  %s8 = inlined_call_operand.vmem [shape: f32[1,16], index: 8, kind: input, shape index: {}]
  %s9 = inlined_call_operand.vmem [shape: bf16[16,16], index: 9, kind: input, shape index: {}]
  %s10 = inlined_call_operand.vmem [shape: f32[1,16], index: 10, kind: input, shape index: {}]
  %s11 = inlined_call_operand.vmem [shape: f32[2,2], index: 11, kind: input, shape index: {}]
  %s12 = inlined_call_operand.vmem [shape: bf16[16,16], index: 12, kind: input, shape index: {}]
  %s13 = inlined_call_operand.vmem [shape: f32[1,16], index: 13, kind: input, shape index: {}]
  %s14 = inlined_call_operand.vmem [shape: bf16[48,3], index: 14, kind: input, shape index: {}]
  %s15 = inlined_call_operand.vmem [shape: f32[1,3], index: 15, kind: input, shape index: {}]
  %s16 = inlined_call_operand.hbm [shape: f32[2,3], index: 16, kind: output, shape index: {}]
  %s17 = sld [smem:[#allocation0]]
  $region74: #{aen_bert_forward.7} parent=0
    _
  %s19 = ssub.s32 1, %s17
  %s20 = scalar_select 0, %s19, %s17
  $region1: #{aen_bert_forward.7} parent=0
    #allocation2 [shape = 'u8[1024]{0}', space=vmem, size = 0x400, scoped, tag = 'output window, operand 0, single buffered']
    #allocation3 [shape = 's32[1]{0}', space=sflag, size = 0x4, scoped, tag = 'scoped memory for aen_bert_forward.7']
    %21 = vsyncpa [#allocation3], 0
    // Predicated region
    $region2: #{aen_bert_forward.7} parent=1 // pred_check
      _
    $region3: #{aen_bert_forward.7} parent=1 // pred_check_branch
      %23 = sbr.rel (0) target = $region5
    $region4: #{aen_bert_forward.7} parent=1 // pred_region
      _
    $region5: #{aen_bert_forward.7} parent=1 // pred_fallthru
      _
    // Predicated region
    $region6: #{aen_bert_forward.7} parent=1 // pred_check
      _
    $region7: #{aen_bert_forward.7} parent=1 // pred_check_branch
      %25 = sbr.rel (0) target = $region9
    $region8: #{aen_bert_forward.7} parent=1 // pred_region
      _
    $region9: #{aen_bert_forward.7} parent=1 // pred_fallthru
      _
    // Predicated region
    $region10: #{aen_bert_forward.7} parent=1 // pred_check
      _
    $region11: #{aen_bert_forward.7} parent=1 // pred_check_branch
      %27 = sbr.rel (0) target = $region13
    $region12: #{aen_bert_forward.7} parent=1 // pred_region
      _
    $region13: #{aen_bert_forward.7} parent=1 // pred_fallthru
      _
    // Predicated region
    $region14: #{aen_bert_forward.7} parent=1 // pred_check
      _
    $region15: #{aen_bert_forward.7} parent=1 // pred_check_branch
      %29 = sbr.rel (0) target = $region17
    $region16: #{aen_bert_forward.7} parent=1 // pred_region
      _
    $region17: #{aen_bert_forward.7} parent=1 // pred_fallthru
      _
    // Predicated region
    $region18: #{aen_bert_forward.7} parent=1 // pred_check
      _
    $region19: #{aen_bert_forward.7} parent=1 // pred_check_branch
      %31 = sbr.rel (0) target = $region21
    $region20: #{aen_bert_forward.7} parent=1 // pred_region
      _
    $region21: #{aen_bert_forward.7} parent=1 // pred_fallthru
      _
    // Predicated region
    $region22: #{aen_bert_forward.7} parent=1 // pred_check
      _
    $region23: #{aen_bert_forward.7} parent=1 // pred_check_branch
      %33 = sbr.rel (0) target = $region25
    $region24: #{aen_bert_forward.7} parent=1 // pred_region
      _
    $region25: #{aen_bert_forward.7} parent=1 // pred_fallthru
      _
    // Predicated region
    $region26: #{aen_bert_forward.7} parent=1 // pred_check
      _
    $region27: #{aen_bert_forward.7} parent=1 // pred_check_branch
      %35 = sbr.rel (0) target = $region29
    $region28: #{aen_bert_forward.7} parent=1 // pred_region
      _
    $region29: #{aen_bert_forward.7} parent=1 // pred_fallthru
      _
    // Predicated region
    $region30: #{aen_bert_forward.7} parent=1 // pred_check
      _
    $region31: #{aen_bert_forward.7} parent=1 // pred_check_branch
      %37 = sbr.rel (0) target = $region33
    $region32: #{aen_bert_forward.7} parent=1 // pred_region
      _
    $region33: #{aen_bert_forward.7} parent=1 // pred_fallthru
      _
    // Predicated region
    $region34: #{aen_bert_forward.7} parent=1 // pred_check
      _
    $region35: #{aen_bert_forward.7} parent=1 // pred_check_branch
      %39 = sbr.rel (0) target = $region37
    $region36: #{aen_bert_forward.7} parent=1 // pred_region
      _
    $region37: #{aen_bert_forward.7} parent=1 // pred_fallthru
      _
    // Predicated region
    $region38: #{aen_bert_forward.7} parent=1 // pred_check
      _
    $region39: #{aen_bert_forward.7} parent=1 // pred_check_branch
      %41 = sbr.rel (0) target = $region41
    $region40: #{aen_bert_forward.7} parent=1 // pred_region
      _
    $region41: #{aen_bert_forward.7} parent=1 // pred_fallthru
      _
    // Predicated region
    $region42: #{aen_bert_forward.7} parent=1 // pred_check
      _
    $region43: #{aen_bert_forward.7} parent=1 // pred_check_branch
      %43 = sbr.rel (0) target = $region45
    $region44: #{aen_bert_forward.7} parent=1 // pred_region
      _
    $region45: #{aen_bert_forward.7} parent=1 // pred_fallthru
      _
    // Predicated region
    $region46: #{aen_bert_forward.7} parent=1 // pred_check
      _
    $region47: #{aen_bert_forward.7} parent=1 // pred_check_branch
      %45 = sbr.rel (0) target = $region49
    $region48: #{aen_bert_forward.7} parent=1 // pred_region
      _
    $region49: #{aen_bert_forward.7} parent=1 // pred_fallthru
      _
    // Predicated region
    $region50: #{aen_bert_forward.7} parent=1 // pred_check
      _
    $region51: #{aen_bert_forward.7} parent=1 // pred_check_branch
      %47 = sbr.rel (0) target = $region53
    $region52: #{aen_bert_forward.7} parent=1 // pred_region
      _
    $region53: #{aen_bert_forward.7} parent=1 // pred_fallthru
      _
    // Predicated region
    $region54: #{aen_bert_forward.7} parent=1 // pred_check
      _
    $region55: #{aen_bert_forward.7} parent=1 // pred_check_branch
      %49 = sbr.rel (0) target = $region57
    $region56: #{aen_bert_forward.7} parent=1 // pred_region
      _
    $region57: #{aen_bert_forward.7} parent=1 // pred_fallthru
      _
    // Predicated region
    $region58: #{aen_bert_forward.7} parent=1 // pred_check
      _
    $region59: #{aen_bert_forward.7} parent=1 // pred_check_branch
      %51 = sbr.rel (0) target = $region61
    $region60: #{aen_bert_forward.7} parent=1 // pred_region
      _
    $region61: #{aen_bert_forward.7} parent=1 // pred_fallthru
      _
    // Predicated region
    $region62: #{aen_bert_forward.7} parent=1 // pred_check
      _
    $region63: #{aen_bert_forward.7} parent=1 // pred_check_branch
      %53 = sbr.rel (0) target = $region65
    $region64: #{aen_bert_forward.7} parent=1 // pred_region
      _
    $region65: #{aen_bert_forward.7} parent=1 // pred_fallthru
      _
    %v55 = vld [vmem:[%s0] sm:$0xff]
    %v56 = vld [vmem:[%s0 + $0x8] sm:$0xff]
    %v57 = vld [vmem:[%s0 + $0x10] sm:$0xff]
    %v58 = vld [vmem:[%s0 + $0x18] sm:$0xff]
    %v59 = vld [vmem:[%s1] sm:$0xff]
    %v60 = vld [vmem:[%s1 + $0x8] sm:$0xff]
    %v61 = vld [vmem:[%s1 + $0x10] sm:$0xff]
    %v62 = vld [vmem:[%s1 + $0x18] sm:$0xff]
    %v63 = vld [vmem:[%s2] sm:$0x1]
    %v64 = vld [vmem:[%s2 + $0x1] sm:$0x1]
    %v65 = vld [vmem:[%s7] sm:$0xf]
    %v66 = vld [vmem:[%s7 + $0x4] sm:$0xf]
    %v67 = vld [vmem:[%s8] sm:$0x1]
    %v68 = vld [vmem:[%s9] sm:$0xf]
    %v69 = vld [vmem:[%s9 + $0x4] sm:$0xf]
    %v70 = vld [vmem:[%s10] sm:$0x1]
    %v71 = vld [vmem:[%s11] sm:$0x3]
    %v72 = vld [vmem:[%s12] sm:$0xf]
    %v73 = vld [vmem:[%s12 + $0x4] sm:$0xf]
    %v74 = vld [vmem:[%s13] sm:$0x1]
    %v75 = vpack.c.bf16 %v56, %v55
    %v76 = vpack.c.bf16 %v58, %v57
    %v78 = vlaneseq
    %v79 = vshrl.u32 %v78, 7
    %v80 = vsub.s32 0, %v79
    %v81 = vrot.slane %v67, %v80
    %v85 = vunpack.c.l.b16 %v65
    %v86 = vunpack.c.l.b16 %v66
    %v87 = vpack.c.b16 %v86, %v85
    %vm89 = vcmask 130048
    %v91 = vsel %vm89, %v75, 0
    %v94 = vsel %vm89, %v76, 0
    %96 = vmatprep.subr.bf16.mxu0 0
    %97 = vmatpush1.bf16.msra.mxu0 %v87
    %98 = vmatprep.subr.bf16.mxu0 0
    %99 = vmatpush1.bf16.msra.mxu0 0
    %100 = vmatprep.subr.bf16.mxu0 0
    %101 = vmatpush1.bf16.msra.mxu0 0
    %102 = vmatprep.subr.bf16.mxu0 0
    %103 = vmatpush1.bf16.msra.mxu0 0
    %104 = vmatprep.subr.bf16.mxu0 0
    %105 = vmatpush1.bf16.msra.mxu0 0
    %106 = vmatprep.subr.bf16.mxu0 0
    %107 = vmatpush1.bf16.msra.mxu0 0
    %108 = vmatprep.subr.bf16.mxu0 0
    %109 = vmatpush1.bf16.msra.mxu0 0
    %110 = vmatprep.subr.bf16.mxu0 0
    %111 = vmatpush1.bf16.msra.mxu0 0
    %112 = vmatprep.subr.bf16.mxu0 0
    %113 = vmatpush1.bf16.msra.mxu0 0
    %114 = vmatprep.subr.bf16.mxu0 0
    %115 = vmatpush1.bf16.msra.mxu0 0
    %116 = vmatprep.subr.bf16.mxu0 0
    %117 = vmatpush1.bf16.msra.mxu0 0
    %118 = vmatprep.subr.bf16.mxu0 0
    %119 = vmatpush1.bf16.msra.mxu0 0
    %120 = vmatprep.subr.bf16.mxu0 0
    %121 = vmatpush1.bf16.msra.mxu0 0
    %122 = vmatprep.subr.bf16.mxu0 0
    %123 = vmatpush1.bf16.msra.mxu0 0
    %124 = vmatprep.subr.bf16.mxu0 0
    %125 = vmatpush1.bf16.msra.mxu0 0
    %126 = vmatprep.subr.bf16.mxu0 0
    %127 = vmatpush1.bf16.msra.mxu0 0
    %128 = vmatprep.mubr.bf16.mxu0 0
    %129 = vmatmul.mubr.bf16.gmra.mrb[0].mxu0 %v91
    %v130 = vpop.f32.mrb[0].mxu0
    %v131 = vadd.f32 %v81, %v130
    %v132 = vpop.f32.mrb[0].mxu0
    %v133 = vpop.f32.mrb[0].mxu0
    %v134 = vadd.f32 %v81, %v133
    %v135 = vpop.f32.mrb[0].mxu0
    %136 = vmatprep.mubr.bf16.mxu0 0
    %137 = vmatmul.mubr.bf16.gmra.mrb[0].mxu0 %v94
    %v138 = vpop.f32.mrb[0].mxu0
    %v139 = vadd.f32 %v81, %v138
    %v140 = vpop.f32.mrb[0].mxu0
    %v141 = vpop.f32.mrb[0].mxu0
    %v142 = vadd.f32 %v81, %v141
    %v143 = vpop.f32.mrb[0].mxu0
    %144 = vdwg.mxu0
    %v145 = vpack.c.bf16 %v60, %v59
    %v146 = vpack.c.bf16 %v62, %v61
    %v148 = vlaneseq
    %v149 = vshrl.u32 %v148, 7
    %v150 = vsub.s32 0, %v149
    %v151 = vrot.slane %v70, %v150
    %v155 = vunpack.c.l.b16 %v68
    %v156 = vunpack.c.l.b16 %v69
    %v157 = vpack.c.b16 %v156, %v155
    %v160 = vsel %vm89, %v145, 0
    %v163 = vsel %vm89, %v146, 0
    %165 = vmatprep.subr.bf16.mxu0 0
    %166 = vmatpush1.bf16.msra.mxu0 %v157
    %167 = vmatprep.subr.bf16.mxu0 0
    %168 = vmatpush1.bf16.msra.mxu0 0
    %169 = vmatprep.subr.bf16.mxu0 0
    %170 = vmatpush1.bf16.msra.mxu0 0
    %171 = vmatprep.subr.bf16.mxu0 0
    %172 = vmatpush1.bf16.msra.mxu0 0
    %173 = vmatprep.subr.bf16.mxu0 0
    %174 = vmatpush1.bf16.msra.mxu0 0
    %175 = vmatprep.subr.bf16.mxu0 0
    %176 = vmatpush1.bf16.msra.mxu0 0
    %177 = vmatprep.subr.bf16.mxu0 0
    %178 = vmatpush1.bf16.msra.mxu0 0
    %179 = vmatprep.subr.bf16.mxu0 0
    %180 = vmatpush1.bf16.msra.mxu0 0
    %181 = vmatprep.subr.bf16.mxu0 0
    %182 = vmatpush1.bf16.msra.mxu0 0
    %183 = vmatprep.subr.bf16.mxu0 0
    %184 = vmatpush1.bf16.msra.mxu0 0
    %185 = vmatprep.subr.bf16.mxu0 0
    %186 = vmatpush1.bf16.msra.mxu0 0
    %187 = vmatprep.subr.bf16.mxu0 0
    %188 = vmatpush1.bf16.msra.mxu0 0
    %189 = vmatprep.subr.bf16.mxu0 0
    %190 = vmatpush1.bf16.msra.mxu0 0
    %191 = vmatprep.subr.bf16.mxu0 0
    %192 = vmatpush1.bf16.msra.mxu0 0
    %193 = vmatprep.subr.bf16.mxu0 0
    %194 = vmatpush1.bf16.msra.mxu0 0
    %195 = vmatprep.subr.bf16.mxu0 0
    %196 = vmatpush1.bf16.msra.mxu0 0
    %197 = vmatprep.mubr.bf16.mxu0 0
    %198 = vmatmul.mubr.bf16.gmra.mrb[0].mxu0 %v160
    %v199 = vpop.f32.mrb[0].mxu0
    %v200 = vadd.f32 %v151, %v199
    %v201 = vpop.f32.mrb[0].mxu0
    %v202 = vpop.f32.mrb[0].mxu0
    %v203 = vadd.f32 %v151, %v202
    %v204 = vpop.f32.mrb[0].mxu0
    %205 = vmatprep.mubr.bf16.mxu0 0
    %206 = vmatmul.mubr.bf16.gmra.mrb[0].mxu0 %v163
    %v207 = vpop.f32.mrb[0].mxu0
    %v208 = vadd.f32 %v151, %v207
    %v209 = vpop.f32.mrb[0].mxu0
    %v210 = vpop.f32.mrb[0].mxu0
    %v211 = vadd.f32 %v151, %v210
    %v212 = vpop.f32.mrb[0].mxu0
    %213 = vdwg.mxu0
    %v215 = vlaneseq
    %v216 = vshrl.u32 %v215, 7
    %v217 = vsub.s32 0, %v216
    %v218 = vrot.slane %v74, %v217
    %v220 = vadd.f32 %v218, 0.0
    %v221 = vlaneseq
    %v222 = vshrl.u32 %v221, 7
    %v223 = vsub.s32 0, %v222
    %v224 = vrot.slane %v71, %v223
    %v225 = vmul.f32 %v131, %v224
    %v226 = vmul.f32 %v134, %v224
    %v227 = vmul.f32 %v139, %v224
    %v228 = vmul.f32 %v142, %v224
    %vm229 = vcmask 15360
    %v230 = vsel %vm229, %v225, 0.0
    %231 = vadd.xlane.f32.xlu0 %v230
    %v232 = vpop.xlane.xlu0 %231
    %v233 = vsel %vm229, %v226, 0.0
    %234 = vadd.xlane.f32.xlu0 %v233
    %v235 = vpop.xlane.xlu0 %234
    %v236 = vsel %vm229, %v227, 0.0
    %237 = vadd.xlane.f32.xlu0 %v236
    %v238 = vpop.xlane.xlu0 %237
    %v239 = vsel %vm229, %v228, 0.0
    %240 = vadd.xlane.f32.xlu0 %v239
    %v241 = vpop.xlane.xlu0 %240
    %v242 = vlaneseq
    %v243 = vshrl.u32 %v242, 7
    %v244 = vsub.s32 1, %v243
    %v245 = vrot.slane %v71, %v244
    %v246 = vmul.f32 %v200, %v245
    %v247 = vmul.f32 %v203, %v245
    %v248 = vmul.f32 %v208, %v245
    %v249 = vmul.f32 %v211, %v245
    %v250 = vsel %vm229, %v246, 0.0
    %251 = vadd.xlane.f32.xlu0 %v250
    %v252 = vpop.xlane.xlu0 %251
    %v253 = vsel %vm229, %v247, 0.0
    %254 = vadd.xlane.f32.xlu0 %v253
    %v255 = vpop.xlane.xlu0 %254
    %v256 = vsel %vm229, %v248, 0.0
    %257 = vadd.xlane.f32.xlu0 %v256
    %v258 = vpop.xlane.xlu0 %257
    %v259 = vsel %vm229, %v249, 0.0
    %260 = vadd.xlane.f32.xlu0 %v259
    %v261 = vpop.xlane.xlu0 %260
    %v266 = vlaneseq
    %v267 = vand.u32 %v266, 127
    %v268 = vlaneseq
    %v269 = vshrl.u32 %v268, 7
    %v270 = vsub.s32 %v267, %v269
    %v271 = vrot.slane %v232, %v270
    %v272 = vadd.s32 %v267, 4294967288
    %v273 = vlaneseq
    %v274 = vshrl.u32 %v273, 7
    %v275 = vsub.s32 %v272, %v274
    %v276 = vrot.slane %v235, %v275
    %vm277 = vcmask 130112
    %v278 = vsel %vm277, %v276, %v271
    %v279 = vlaneseq
    %v280 = vshrl.u32 %v279, 7
    %v281 = vsub.s32 %v267, %v280
    %v282 = vrot.slane %v238, %v281
    %v283 = vlaneseq
    %v284 = vshrl.u32 %v283, 7
    %v285 = vsub.s32 %v272, %v284
    %v286 = vrot.slane %v241, %v285
    %v287 = vsel %vm277, %v286, %v282
    %vm288 = vcmask 1041409
    %vm289 = vcmask 1042434
    %v290 = vsel %vm289, %v278, %v278
    %vm291 = vcmask 1043459
    %v292 = vsel %vm291, %v278, %v290
    %vm293 = vcmask 1044484
    %v294 = vsel %vm293, %v278, %v292
    %vm295 = vcmask 1045509
    %v296 = vsel %vm295, %v278, %v294
    %vm297 = vcmask 1046534
    %v298 = vsel %vm297, %v278, %v296
    %vm299 = vcmask 1047559
    %v300 = vsel %vm299, %v278, %v298
    %v301 = vsel %vm289, %v287, %v287
    %v302 = vsel %vm291, %v287, %v301
    %v303 = vsel %vm293, %v287, %v302
    %v304 = vsel %vm295, %v287, %v303
    %v305 = vsel %vm297, %v287, %v304
    %v306 = vsel %vm299, %v287, %v305
    %v309 = vadd.f32 %v252, %v300
    %v310 = vadd.f32 %v255, %v300
    %v311 = vadd.f32 %v258, %v306
    %v312 = vadd.f32 %v261, %v306
    %v313 = vtanh.pop %v309
    %v314 = vtanh.pop %v310
    %v315 = vtanh.pop %v311
    %v316 = vtanh.pop %v312
    %v319 = vlaneseq
    %v320 = vshrl.u32 %v319, 7
    %v321 = vsub.s32 0, %v320
    %v322 = vrot.slane %v63, %v321
    %v323 = vlaneseq
    %v324 = vshrl.u32 %v323, 7
    %v325 = vsub.s32 0, %v324
    %v326 = vrot.slane %v64, %v325
    %v329 = vadd.f32 %v313, %v322
    %v330 = vadd.f32 %v314, %v322
    %v331 = vadd.f32 %v315, %v326
    %v332 = vadd.f32 %v316, %v326
    %v333 = vsel %vm89, %v329, -inf
    %334 = vmax.xlane.f32.xlu0 %v333
    %v335 = vpop.xlane.xlu0 %334
    %v336 = vsel %vm89, %v330, -inf
    %337 = vmax.xlane.f32.xlu0 %v336
    %v338 = vpop.xlane.xlu0 %337
    %v339 = vsel %vm89, %v331, -inf
    %340 = vmax.xlane.f32.xlu0 %v339
    %v341 = vpop.xlane.xlu0 %340
    %v342 = vsel %vm89, %v332, -inf
    %343 = vmax.xlane.f32.xlu0 %v342
    %v344 = vpop.xlane.xlu0 %343
    %v345 = vsub.f32 %v329, %v335
    %v346 = vsub.f32 %v330, %v338
    %v347 = vsub.f32 %v331, %v341
    %v348 = vsub.f32 %v332, %v344
    %v349 = vmul.f32 %v345, 1.442695
    %v350 = vpow.pop %v349
    %v351 = vmul.f32 %v346, 1.442695
    %v352 = vpow.pop %v351
    %v353 = vmul.f32 %v347, 1.442695
    %v354 = vpow.pop %v353
    %v355 = vmul.f32 %v348, 1.442695
    %v356 = vpow.pop %v355
    %v357 = vsel %vm89, %v350, 0.0
    %358 = vadd.xlane.f32.xlu0 %v357
    %v359 = vpop.xlane.xlu0 %358
    %v360 = vsel %vm89, %v352, 0.0
    %361 = vadd.xlane.f32.xlu0 %v360
    %v362 = vpop.xlane.xlu0 %361
    %v363 = vsel %vm89, %v354, 0.0
    %364 = vadd.xlane.f32.xlu0 %v363
    %v365 = vpop.xlane.xlu0 %364
    %v366 = vsel %vm89, %v356, 0.0
    %367 = vadd.xlane.f32.xlu0 %v366
    %v368 = vpop.xlane.xlu0 %367
    %v369 = vrcp.pop %v359
    %v370 = vmul.f32 %v350, %v369
    %v371 = vrcp.pop %v362
    %v372 = vmul.f32 %v352, %v371
    %v373 = vrcp.pop %v365
    %v374 = vmul.f32 %v354, %v373
    %v375 = vrcp.pop %v368
    %v376 = vmul.f32 %v356, %v375
    %v377 = vpack.c.bf16 %v372, %v370
    %v378 = vpack.c.bf16 %v376, %v374
    %v379 = vpack.c.bf16 %v134, %v131
    %v380 = vpack.c.bf16 %v142, %v139
    %v382 = vsel %vm89, %v377, 0
    %384 = vmatprep.subr.bf16.mxu0 0
    %385 = vmatpush1.bf16.msra.mxu0 %v379
    %386 = vmatprep.subr.bf16.mxu0 0
    %387 = vmatpush1.bf16.msra.mxu0 0
    %388 = vmatprep.subr.bf16.mxu0 0
    %389 = vmatpush1.bf16.msra.mxu0 0
    %390 = vmatprep.subr.bf16.mxu0 0
    %391 = vmatpush1.bf16.msra.mxu0 0
    %392 = vmatprep.subr.bf16.mxu0 0
    %393 = vmatpush1.bf16.msra.mxu0 0
    %394 = vmatprep.subr.bf16.mxu0 0
    %395 = vmatpush1.bf16.msra.mxu0 0
    %396 = vmatprep.subr.bf16.mxu0 0
    %397 = vmatpush1.bf16.msra.mxu0 0
    %398 = vmatprep.subr.bf16.mxu0 0
    %399 = vmatpush1.bf16.msra.mxu0 0
    %400 = vmatprep.subr.bf16.mxu0 0
    %401 = vmatpush1.bf16.msra.mxu0 0
    %402 = vmatprep.subr.bf16.mxu0 0
    %403 = vmatpush1.bf16.msra.mxu0 0
    %404 = vmatprep.subr.bf16.mxu0 0
    %405 = vmatpush1.bf16.msra.mxu0 0
    %406 = vmatprep.subr.bf16.mxu0 0
    %407 = vmatpush1.bf16.msra.mxu0 0
    %408 = vmatprep.subr.bf16.mxu0 0
    %409 = vmatpush1.bf16.msra.mxu0 0
    %410 = vmatprep.subr.bf16.mxu0 0
    %411 = vmatpush1.bf16.msra.mxu0 0
    %412 = vmatprep.subr.bf16.mxu0 0
    %413 = vmatpush1.bf16.msra.mxu0 0
    %414 = vmatprep.subr.bf16.mxu0 0
    %415 = vmatpush1.bf16.msra.mxu0 0
    %416 = vmatprep.mubr.bf16.mxu0 0
    %417 = vmatmul.mubr.bf16.gmra.mrb[0].mxu0 %v382
    %v418 = vpop.f32.mrb[0].mxu0
    %v419 = vadd.f32 0.0, %v418
    %v420 = vpop.f32.mrb[0].mxu0
    %v421 = vpop.f32.mrb[0].mxu0
    %v422 = vadd.f32 0.0, %v421
    %v423 = vpop.f32.mrb[0].mxu0
    %424 = vdwg.mxu0
    %v426 = vsel %vm89, %v378, 0
    %428 = vmatprep.subr.bf16.mxu0 0
    %429 = vmatpush1.bf16.msra.mxu0 %v380
    %430 = vmatprep.subr.bf16.mxu0 0
    %431 = vmatpush1.bf16.msra.mxu0 0
    %432 = vmatprep.subr.bf16.mxu0 0
    %433 = vmatpush1.bf16.msra.mxu0 0
    %434 = vmatprep.subr.bf16.mxu0 0
    %435 = vmatpush1.bf16.msra.mxu0 0
    %436 = vmatprep.subr.bf16.mxu0 0
    %437 = vmatpush1.bf16.msra.mxu0 0
    %438 = vmatprep.subr.bf16.mxu0 0
    %439 = vmatpush1.bf16.msra.mxu0 0
    %440 = vmatprep.subr.bf16.mxu0 0
    %441 = vmatpush1.bf16.msra.mxu0 0
    %442 = vmatprep.subr.bf16.mxu0 0
    %443 = vmatpush1.bf16.msra.mxu0 0
    %444 = vmatprep.subr.bf16.mxu0 0
    %445 = vmatpush1.bf16.msra.mxu0 0
    %446 = vmatprep.subr.bf16.mxu0 0
    %447 = vmatpush1.bf16.msra.mxu0 0
    %448 = vmatprep.subr.bf16.mxu0 0
    %449 = vmatpush1.bf16.msra.mxu0 0
    %450 = vmatprep.subr.bf16.mxu0 0
    %451 = vmatpush1.bf16.msra.mxu0 0
    %452 = vmatprep.subr.bf16.mxu0 0
    %453 = vmatpush1.bf16.msra.mxu0 0
    %454 = vmatprep.subr.bf16.mxu0 0
    %455 = vmatpush1.bf16.msra.mxu0 0
    %456 = vmatprep.subr.bf16.mxu0 0
    %457 = vmatpush1.bf16.msra.mxu0 0
    %458 = vmatprep.subr.bf16.mxu0 0
    %459 = vmatpush1.bf16.msra.mxu0 0
    %460 = vmatprep.mubr.bf16.mxu0 0
    %461 = vmatmul.mubr.bf16.gmra.mrb[0].mxu0 %v426
    %v462 = vpop.f32.mrb[0].mxu0
    %v463 = vadd.f32 0.0, %v462
    %v464 = vpop.f32.mrb[0].mxu0
    %v465 = vpop.f32.mrb[0].mxu0
    %v466 = vadd.f32 0.0, %v465
    %v467 = vpop.f32.mrb[0].mxu0
    %468 = vdwg.mxu0
    %v469 = vpack.c.bf16 %v422, %v419
    %v470 = vpack.c.bf16 %v466, %v463
    %v472 = vsel %vm229, %v469, 0
    %v475 = vsel %vm229, %v470, 0
    %vm477 = vcmask 1040384
    %v479 = vsel %vm477, %v72, 0
    %481 = vmatprep.subr.bf16.mxu0 0
    %482 = vmatpush1.bf16.msra.mxu0 %v479
    %483 = vmatprep.subr.bf16.mxu0 0
    %484 = vmatpush1.bf16.msra.mxu0 0
    %485 = vmatprep.subr.bf16.mxu0 0
    %486 = vmatpush1.bf16.msra.mxu0 0
    %487 = vmatprep.subr.bf16.mxu0 0
    %488 = vmatpush1.bf16.msra.mxu0 0
    %489 = vmatprep.subr.bf16.mxu0 0
    %490 = vmatpush1.bf16.msra.mxu0 0
    %491 = vmatprep.subr.bf16.mxu0 0
    %492 = vmatpush1.bf16.msra.mxu0 0
    %493 = vmatprep.subr.bf16.mxu0 0
    %494 = vmatpush1.bf16.msra.mxu0 0
    %495 = vmatprep.subr.bf16.mxu0 0
    %496 = vmatpush1.bf16.msra.mxu0 0
    %497 = vmatprep.subr.bf16.mxu0 0
    %498 = vmatpush1.bf16.msra.mxu0 0
    %499 = vmatprep.subr.bf16.mxu0 0
    %500 = vmatpush1.bf16.msra.mxu0 0
    %501 = vmatprep.subr.bf16.mxu0 0
    %502 = vmatpush1.bf16.msra.mxu0 0
    %503 = vmatprep.subr.bf16.mxu0 0
    %504 = vmatpush1.bf16.msra.mxu0 0
    %505 = vmatprep.subr.bf16.mxu0 0
    %506 = vmatpush1.bf16.msra.mxu0 0
    %507 = vmatprep.subr.bf16.mxu0 0
    %508 = vmatpush1.bf16.msra.mxu0 0
    %509 = vmatprep.subr.bf16.mxu0 0
    %510 = vmatpush1.bf16.msra.mxu0 0
    %511 = vmatprep.subr.bf16.mxu0 0
    %512 = vmatpush1.bf16.msra.mxu0 0
    %513 = vmatprep.mubr.bf16.mxu0 0
    %514 = vmatmul.mubr.bf16.gmra.mrb[0].mxu0 %v472
    %v515 = vpop.f32.mrb[0].mxu0
    %v516 = vadd.f32 0.0, %v515
    %v517 = vpop.f32.mrb[0].mxu0
    %v518 = vpop.f32.mrb[0].mxu0
    %v519 = vadd.f32 0.0, %v518
    %v520 = vpop.f32.mrb[0].mxu0
    %521 = vmatprep.mubr.bf16.mxu0 0
    %522 = vmatmul.mubr.bf16.gmra.mrb[0].mxu0 %v475
    %v523 = vpop.f32.mrb[0].mxu0
    %v524 = vadd.f32 0.0, %v523
    %v525 = vpop.f32.mrb[0].mxu0
    %v526 = vpop.f32.mrb[0].mxu0
    %v527 = vadd.f32 0.0, %v526
    %v528 = vpop.f32.mrb[0].mxu0
    %529 = vdwg.mxu0
    %v530 = vadd.f32 %v220, %v516
    %v531 = vadd.f32 %v220, %v519
    %v532 = vadd.f32 %v220, %v524
    %v533 = vadd.f32 %v220, %v527
    %535 = vrot.lane.b32.xlu0 %v224, 2
    %v536 = vpop.permute.xlu0 %535
    %v538 = vmul.f32 %v131, %v536
    %v539 = vmul.f32 %v134, %v536
    %v540 = vmul.f32 %v139, %v536
    %v541 = vmul.f32 %v142, %v536
    %546 = vrot.lane.b32.xlu0 %v538, 126
    %v547 = vpop.permute.xlu0 %546
    %548 = vrot.lane.b32.xlu0 %v539, 126
    %v549 = vpop.permute.xlu0 %548
    %550 = vrot.lane.b32.xlu0 %v540, 126
    %v551 = vpop.permute.xlu0 %550
    %552 = vrot.lane.b32.xlu0 %v541, 126
    %v553 = vpop.permute.xlu0 %552
    %v558 = vsel %vm229, %v547, 0.0
    %559 = vadd.xlane.f32.xlu0 %v558
    %v560 = vpop.xlane.xlu0 %559
    %v561 = vsel %vm229, %v549, 0.0
    %562 = vadd.xlane.f32.xlu0 %v561
    %v563 = vpop.xlane.xlu0 %562
    %v564 = vsel %vm229, %v551, 0.0
    %565 = vadd.xlane.f32.xlu0 %v564
    %v566 = vpop.xlane.xlu0 %565
    %v567 = vsel %vm229, %v553, 0.0
    %568 = vadd.xlane.f32.xlu0 %v567
    %v569 = vpop.xlane.xlu0 %568
    %571 = vrot.lane.b32.xlu0 %v245, 2
    %v572 = vpop.permute.xlu0 %571
    %v574 = vmul.f32 %v200, %v572
    %v575 = vmul.f32 %v203, %v572
    %v576 = vmul.f32 %v208, %v572
    %v577 = vmul.f32 %v211, %v572
    %582 = vrot.lane.b32.xlu0 %v574, 126
    %v583 = vpop.permute.xlu0 %582
    %584 = vrot.lane.b32.xlu0 %v575, 126
    %v585 = vpop.permute.xlu0 %584
    %586 = vrot.lane.b32.xlu0 %v576, 126
    %v587 = vpop.permute.xlu0 %586
    %588 = vrot.lane.b32.xlu0 %v577, 126
    %v589 = vpop.permute.xlu0 %588
    %v594 = vsel %vm229, %v583, 0.0
    %595 = vadd.xlane.f32.xlu0 %v594
    %v596 = vpop.xlane.xlu0 %595
    %v597 = vsel %vm229, %v585, 0.0
    %598 = vadd.xlane.f32.xlu0 %v597
    %v599 = vpop.xlane.xlu0 %598
    %v600 = vsel %vm229, %v587, 0.0
    %601 = vadd.xlane.f32.xlu0 %v600
    %v602 = vpop.xlane.xlu0 %601
    %v603 = vsel %vm229, %v589, 0.0
    %604 = vadd.xlane.f32.xlu0 %v603
    %v605 = vpop.xlane.xlu0 %604
    %v610 = vlaneseq
    %v611 = vshrl.u32 %v610, 7
    %v612 = vsub.s32 %v267, %v611
    %v613 = vrot.slane %v560, %v612
    %v614 = vlaneseq
    %v615 = vshrl.u32 %v614, 7
    %v616 = vsub.s32 %v272, %v615
    %v617 = vrot.slane %v563, %v616
    %v618 = vsel %vm277, %v617, %v613
    %v619 = vlaneseq
    %v620 = vshrl.u32 %v619, 7
    %v621 = vsub.s32 %v267, %v620
    %v622 = vrot.slane %v566, %v621
    %v623 = vlaneseq
    %v624 = vshrl.u32 %v623, 7
    %v625 = vsub.s32 %v272, %v624
    %v626 = vrot.slane %v569, %v625
    %v627 = vsel %vm277, %v626, %v622
    %v628 = vsel %vm289, %v618, %v618
    %v629 = vsel %vm291, %v618, %v628
    %v630 = vsel %vm293, %v618, %v629
    %v631 = vsel %vm295, %v618, %v630
    %v632 = vsel %vm297, %v618, %v631
    %v633 = vsel %vm299, %v618, %v632
    %v634 = vsel %vm289, %v627, %v627
    %v635 = vsel %vm291, %v627, %v634
    %v636 = vsel %vm293, %v627, %v635
    %v637 = vsel %vm295, %v627, %v636
    %v638 = vsel %vm297, %v627, %v637
    %v639 = vsel %vm299, %v627, %v638
    %v642 = vadd.f32 %v596, %v633
    %v643 = vadd.f32 %v599, %v633
    %v644 = vadd.f32 %v602, %v639
    %v645 = vadd.f32 %v605, %v639
    %v646 = vtanh.pop %v642
    %v647 = vtanh.pop %v643
    %v648 = vtanh.pop %v644
    %v649 = vtanh.pop %v645
    %v650 = vadd.f32 %v646, %v322
    %v651 = vadd.f32 %v647, %v322
    %v652 = vadd.f32 %v648, %v326
    %v653 = vadd.f32 %v649, %v326
    %v654 = vsel %vm89, %v650, -inf
    %655 = vmax.xlane.f32.xlu0 %v654
    %v656 = vpop.xlane.xlu0 %655
    %v657 = vsel %vm89, %v651, -inf
    %658 = vmax.xlane.f32.xlu0 %v657
    %v659 = vpop.xlane.xlu0 %658
    %v660 = vsel %vm89, %v652, -inf
    %661 = vmax.xlane.f32.xlu0 %v660
    %v662 = vpop.xlane.xlu0 %661
    %v663 = vsel %vm89, %v653, -inf
    %664 = vmax.xlane.f32.xlu0 %v663
    %v665 = vpop.xlane.xlu0 %664
    %v666 = vsub.f32 %v650, %v656
    %v667 = vsub.f32 %v651, %v659
    %v668 = vsub.f32 %v652, %v662
    %v669 = vsub.f32 %v653, %v665
    %v670 = vmul.f32 %v666, 1.442695
    %v671 = vpow.pop %v670
    %v672 = vmul.f32 %v667, 1.442695
    %v673 = vpow.pop %v672
    %v674 = vmul.f32 %v668, 1.442695
    %v675 = vpow.pop %v674
    %v676 = vmul.f32 %v669, 1.442695
    %v677 = vpow.pop %v676
    %v678 = vsel %vm89, %v671, 0.0
    %679 = vadd.xlane.f32.xlu0 %v678
    %v680 = vpop.xlane.xlu0 %679
    %v681 = vsel %vm89, %v673, 0.0
    %682 = vadd.xlane.f32.xlu0 %v681
    %v683 = vpop.xlane.xlu0 %682
    %v684 = vsel %vm89, %v675, 0.0
    %685 = vadd.xlane.f32.xlu0 %v684
    %v686 = vpop.xlane.xlu0 %685
    %v687 = vsel %vm89, %v677, 0.0
    %688 = vadd.xlane.f32.xlu0 %v687
    %v689 = vpop.xlane.xlu0 %688
    %v690 = vrcp.pop %v680
    %v691 = vmul.f32 %v671, %v690
    %v692 = vrcp.pop %v683
    %v693 = vmul.f32 %v673, %v692
    %v694 = vrcp.pop %v686
    %v695 = vmul.f32 %v675, %v694
    %v696 = vrcp.pop %v689
    %v697 = vmul.f32 %v677, %v696
    %v698 = vpack.c.bf16 %v693, %v691
    %v699 = vpack.c.bf16 %v697, %v695
    %701 = vrot.lane.b32.xlu0 %v379, 126
    %v702 = vpop.permute.xlu0 %701
    %v705 = vsel %vm89, %v698, 0
    %707 = vmatprep.subr.bf16.mxu0 0
    %708 = vmatpush1.bf16.msra.mxu0 %v702
    %709 = vmatprep.subr.bf16.mxu0 0
    %710 = vmatpush1.bf16.msra.mxu0 0
    %711 = vmatprep.subr.bf16.mxu0 0
    %712 = vmatpush1.bf16.msra.mxu0 0
    %713 = vmatprep.subr.bf16.mxu0 0
    %714 = vmatpush1.bf16.msra.mxu0 0
    %715 = vmatprep.subr.bf16.mxu0 0
    %716 = vmatpush1.bf16.msra.mxu0 0
    %717 = vmatprep.subr.bf16.mxu0 0
    %718 = vmatpush1.bf16.msra.mxu0 0
    %719 = vmatprep.subr.bf16.mxu0 0
    %720 = vmatpush1.bf16.msra.mxu0 0
    %721 = vmatprep.subr.bf16.mxu0 0
    %722 = vmatpush1.bf16.msra.mxu0 0
    %723 = vmatprep.subr.bf16.mxu0 0
    %724 = vmatpush1.bf16.msra.mxu0 0
    %725 = vmatprep.subr.bf16.mxu0 0
    %726 = vmatpush1.bf16.msra.mxu0 0
    %727 = vmatprep.subr.bf16.mxu0 0
    %728 = vmatpush1.bf16.msra.mxu0 0
    %729 = vmatprep.subr.bf16.mxu0 0
    %730 = vmatpush1.bf16.msra.mxu0 0
    %731 = vmatprep.subr.bf16.mxu0 0
    %732 = vmatpush1.bf16.msra.mxu0 0
    %733 = vmatprep.subr.bf16.mxu0 0
    %734 = vmatpush1.bf16.msra.mxu0 0
    %735 = vmatprep.subr.bf16.mxu0 0
    %736 = vmatpush1.bf16.msra.mxu0 0
    %737 = vmatprep.subr.bf16.mxu0 0
    %738 = vmatpush1.bf16.msra.mxu0 0
    %739 = vmatprep.mubr.bf16.mxu0 0
    %740 = vmatmul.mubr.bf16.gmra.mrb[0].mxu0 %v705
    %v741 = vpop.f32.mrb[0].mxu0
    %v742 = vadd.f32 0.0, %v741
    %v743 = vpop.f32.mrb[0].mxu0
    %v744 = vpop.f32.mrb[0].mxu0
    %v745 = vadd.f32 0.0, %v744
    %v746 = vpop.f32.mrb[0].mxu0
    %747 = vdwg.mxu0
    %749 = vrot.lane.b32.xlu0 %v380, 126
    %v750 = vpop.permute.xlu0 %749
    %v753 = vsel %vm89, %v699, 0
    %755 = vmatprep.subr.bf16.mxu0 0
    %756 = vmatpush1.bf16.msra.mxu0 %v750
    %757 = vmatprep.subr.bf16.mxu0 0
    %758 = vmatpush1.bf16.msra.mxu0 0
    %759 = vmatprep.subr.bf16.mxu0 0
    %760 = vmatpush1.bf16.msra.mxu0 0
    %761 = vmatprep.subr.bf16.mxu0 0
    %762 = vmatpush1.bf16.msra.mxu0 0
    %763 = vmatprep.subr.bf16.mxu0 0
    %764 = vmatpush1.bf16.msra.mxu0 0
    %765 = vmatprep.subr.bf16.mxu0 0
    %766 = vmatpush1.bf16.msra.mxu0 0
    %767 = vmatprep.subr.bf16.mxu0 0
    %768 = vmatpush1.bf16.msra.mxu0 0
    %769 = vmatprep.subr.bf16.mxu0 0
    %770 = vmatpush1.bf16.msra.mxu0 0
    %771 = vmatprep.subr.bf16.mxu0 0
    %772 = vmatpush1.bf16.msra.mxu0 0
    %773 = vmatprep.subr.bf16.mxu0 0
    %774 = vmatpush1.bf16.msra.mxu0 0
    %775 = vmatprep.subr.bf16.mxu0 0
    %776 = vmatpush1.bf16.msra.mxu0 0
    %777 = vmatprep.subr.bf16.mxu0 0
    %778 = vmatpush1.bf16.msra.mxu0 0
    %779 = vmatprep.subr.bf16.mxu0 0
    %780 = vmatpush1.bf16.msra.mxu0 0
    %781 = vmatprep.subr.bf16.mxu0 0
    %782 = vmatpush1.bf16.msra.mxu0 0
    %783 = vmatprep.subr.bf16.mxu0 0
    %784 = vmatpush1.bf16.msra.mxu0 0
    %785 = vmatprep.subr.bf16.mxu0 0
    %786 = vmatpush1.bf16.msra.mxu0 0
    %787 = vmatprep.mubr.bf16.mxu0 0
    %788 = vmatmul.mubr.bf16.gmra.mrb[0].mxu0 %v753
    %v789 = vpop.f32.mrb[0].mxu0
    %v790 = vadd.f32 0.0, %v789
    %v791 = vpop.f32.mrb[0].mxu0
    %v792 = vpop.f32.mrb[0].mxu0
    %v793 = vadd.f32 0.0, %v792
    %v794 = vpop.f32.mrb[0].mxu0
    %795 = vdwg.mxu0
    %v796 = vpack.c.bf16 %v745, %v742
    %v797 = vpack.c.bf16 %v793, %v790
    %v799 = vunpack.c.l.b16 %v72
    %v800 = vpack.c.b16 %v799, %v799
    %v801 = vrot.slane %v800, 1
    %v803 = vsel %vm229, %v796, 0
    %v806 = vsel %vm229, %v797, 0
    %v809 = vsel %vm477, %v801, 0
    %811 = vmatprep.subr.bf16.mxu0 0
    %812 = vmatpush1.bf16.msra.mxu0 %v809
    %813 = vmatprep.subr.bf16.mxu0 0
    %814 = vmatpush1.bf16.msra.mxu0 0
    %815 = vmatprep.subr.bf16.mxu0 0
    %816 = vmatpush1.bf16.msra.mxu0 0
    %817 = vmatprep.subr.bf16.mxu0 0
    %818 = vmatpush1.bf16.msra.mxu0 0
    %819 = vmatprep.subr.bf16.mxu0 0
    %820 = vmatpush1.bf16.msra.mxu0 0
    %821 = vmatprep.subr.bf16.mxu0 0
    %822 = vmatpush1.bf16.msra.mxu0 0
    %823 = vmatprep.subr.bf16.mxu0 0
    %824 = vmatpush1.bf16.msra.mxu0 0
    %825 = vmatprep.subr.bf16.mxu0 0
    %826 = vmatpush1.bf16.msra.mxu0 0
    %827 = vmatprep.subr.bf16.mxu0 0
    %828 = vmatpush1.bf16.msra.mxu0 0
    %829 = vmatprep.subr.bf16.mxu0 0
    %830 = vmatpush1.bf16.msra.mxu0 0
    %831 = vmatprep.subr.bf16.mxu0 0
    %832 = vmatpush1.bf16.msra.mxu0 0
    %833 = vmatprep.subr.bf16.mxu0 0
    %834 = vmatpush1.bf16.msra.mxu0 0
    %835 = vmatprep.subr.bf16.mxu0 0
    %836 = vmatpush1.bf16.msra.mxu0 0
    %837 = vmatprep.subr.bf16.mxu0 0
    %838 = vmatpush1.bf16.msra.mxu0 0
    %839 = vmatprep.subr.bf16.mxu0 0
    %840 = vmatpush1.bf16.msra.mxu0 0
    %841 = vmatprep.subr.bf16.mxu0 0
    %842 = vmatpush1.bf16.msra.mxu0 0
    %843 = vmatprep.mubr.bf16.mxu0 0
    %844 = vmatmul.mubr.bf16.gmra.mrb[0].mxu0 %v803
    %v845 = vpop.f32.mrb[0].mxu0
    %v846 = vadd.f32 0.0, %v845
    %v847 = vpop.f32.mrb[0].mxu0
    %v848 = vpop.f32.mrb[0].mxu0
    %v849 = vadd.f32 0.0, %v848
    %v850 = vpop.f32.mrb[0].mxu0
    %851 = vmatprep.mubr.bf16.mxu0 0
    %852 = vmatmul.mubr.bf16.gmra.mrb[0].mxu0 %v806
    %v853 = vpop.f32.mrb[0].mxu0
    %v854 = vadd.f32 0.0, %v853
    %v855 = vpop.f32.mrb[0].mxu0
    %v856 = vpop.f32.mrb[0].mxu0
    %v857 = vadd.f32 0.0, %v856
    %v858 = vpop.f32.mrb[0].mxu0
    %859 = vdwg.mxu0
    %v860 = vadd.f32 %v530, %v846
    %v861 = vadd.f32 %v531, %v849
    %v862 = vadd.f32 %v532, %v854
    %v863 = vadd.f32 %v533, %v857
    %864 = vrot.lane.b32.xlu0 %v224, 4
    %v865 = vpop.permute.xlu0 %864
    %v867 = vmul.f32 %v131, %v865
    %v868 = vmul.f32 %v134, %v865
    %v869 = vmul.f32 %v139, %v865
    %v870 = vmul.f32 %v142, %v865
    %875 = vrot.lane.b32.xlu0 %v867, 124
    %v876 = vpop.permute.xlu0 %875
    %877 = vrot.lane.b32.xlu0 %v868, 124
    %v878 = vpop.permute.xlu0 %877
    %879 = vrot.lane.b32.xlu0 %v869, 124
    %v880 = vpop.permute.xlu0 %879
    %881 = vrot.lane.b32.xlu0 %v870, 124
    %v882 = vpop.permute.xlu0 %881
    %v887 = vsel %vm229, %v876, 0.0
    %888 = vadd.xlane.f32.xlu0 %v887
    %v889 = vpop.xlane.xlu0 %888
    %v890 = vsel %vm229, %v878, 0.0
    %891 = vadd.xlane.f32.xlu0 %v890
    %v892 = vpop.xlane.xlu0 %891
    %v893 = vsel %vm229, %v880, 0.0
    %894 = vadd.xlane.f32.xlu0 %v893
    %v895 = vpop.xlane.xlu0 %894
    %v896 = vsel %vm229, %v882, 0.0
    %897 = vadd.xlane.f32.xlu0 %v896
    %v898 = vpop.xlane.xlu0 %897
    %899 = vrot.lane.b32.xlu0 %v245, 4
    %v900 = vpop.permute.xlu0 %899
    %v902 = vmul.f32 %v200, %v900
    %v903 = vmul.f32 %v203, %v900
    %v904 = vmul.f32 %v208, %v900
    %v905 = vmul.f32 %v211, %v900
    %910 = vrot.lane.b32.xlu0 %v902, 124
    %v911 = vpop.permute.xlu0 %910
    %912 = vrot.lane.b32.xlu0 %v903, 124
    %v913 = vpop.permute.xlu0 %912
    %914 = vrot.lane.b32.xlu0 %v904, 124
    %v915 = vpop.permute.xlu0 %914
    %916 = vrot.lane.b32.xlu0 %v905, 124
    %v917 = vpop.permute.xlu0 %916
    %v922 = vsel %vm229, %v911, 0.0
    %923 = vadd.xlane.f32.xlu0 %v922
    %v924 = vpop.xlane.xlu0 %923
    %v925 = vsel %vm229, %v913, 0.0
    %926 = vadd.xlane.f32.xlu0 %v925
    %v927 = vpop.xlane.xlu0 %926
    %v928 = vsel %vm229, %v915, 0.0
    %929 = vadd.xlane.f32.xlu0 %v928
    %v930 = vpop.xlane.xlu0 %929
    %v931 = vsel %vm229, %v917, 0.0
    %932 = vadd.xlane.f32.xlu0 %v931
    %v933 = vpop.xlane.xlu0 %932
    %v938 = vlaneseq
    %v939 = vshrl.u32 %v938, 7
    %v940 = vsub.s32 %v267, %v939
    %v941 = vrot.slane %v889, %v940
    %v942 = vlaneseq
    %v943 = vshrl.u32 %v942, 7
    %v944 = vsub.s32 %v272, %v943
    %v945 = vrot.slane %v892, %v944
    %v946 = vsel %vm277, %v945, %v941
    %v947 = vlaneseq
    %v948 = vshrl.u32 %v947, 7
    %v949 = vsub.s32 %v267, %v948
    %v950 = vrot.slane %v895, %v949
    %v951 = vlaneseq
    %v952 = vshrl.u32 %v951, 7
    %v953 = vsub.s32 %v272, %v952
    %v954 = vrot.slane %v898, %v953
    %v955 = vsel %vm277, %v954, %v950
    %v956 = vsel %vm289, %v946, %v946
    %v957 = vsel %vm291, %v946, %v956
    %v958 = vsel %vm293, %v946, %v957
    %v959 = vsel %vm295, %v946, %v958
    %v960 = vsel %vm297, %v946, %v959
    %v961 = vsel %vm299, %v946, %v960
    %v962 = vsel %vm289, %v955, %v955
    %v963 = vsel %vm291, %v955, %v962
    %v964 = vsel %vm293, %v955, %v963
    %v965 = vsel %vm295, %v955, %v964
    %v966 = vsel %vm297, %v955, %v965
    %v967 = vsel %vm299, %v955, %v966
    %v970 = vadd.f32 %v924, %v961
    %v971 = vadd.f32 %v927, %v961
    %v972 = vadd.f32 %v930, %v967
    %v973 = vadd.f32 %v933, %v967
    %v974 = vtanh.pop %v970
    %v975 = vtanh.pop %v971
    %v976 = vtanh.pop %v972
    %v977 = vtanh.pop %v973
    %v978 = vadd.f32 %v974, %v322
    %v979 = vadd.f32 %v975, %v322
    %v980 = vadd.f32 %v976, %v326
    %v981 = vadd.f32 %v977, %v326
    %v982 = vsel %vm89, %v978, -inf
    %983 = vmax.xlane.f32.xlu0 %v982
    %v984 = vpop.xlane.xlu0 %983
    %v985 = vsel %vm89, %v979, -inf
    %986 = vmax.xlane.f32.xlu0 %v985
    %v987 = vpop.xlane.xlu0 %986
    %v988 = vsel %vm89, %v980, -inf
    %989 = vmax.xlane.f32.xlu0 %v988
    %v990 = vpop.xlane.xlu0 %989
    %v991 = vsel %vm89, %v981, -inf
    %992 = vmax.xlane.f32.xlu0 %v991
    %v993 = vpop.xlane.xlu0 %992
    %v994 = vsub.f32 %v978, %v984
    %v995 = vsub.f32 %v979, %v987
    %v996 = vsub.f32 %v980, %v990
    %v997 = vsub.f32 %v981, %v993
    %v998 = vmul.f32 %v994, 1.442695
    %v999 = vpow.pop %v998
    %v1000 = vmul.f32 %v995, 1.442695
    %v1001 = vpow.pop %v1000
    %v1002 = vmul.f32 %v996, 1.442695
    %v1003 = vpow.pop %v1002
    %v1004 = vmul.f32 %v997, 1.442695
    %v1005 = vpow.pop %v1004
    %v1006 = vsel %vm89, %v999, 0.0
    %1007 = vadd.xlane.f32.xlu0 %v1006
    %v1008 = vpop.xlane.xlu0 %1007
    %v1009 = vsel %vm89, %v1001, 0.0
    %1010 = vadd.xlane.f32.xlu0 %v1009
    %v1011 = vpop.xlane.xlu0 %1010
    %v1012 = vsel %vm89, %v1003, 0.0
    %1013 = vadd.xlane.f32.xlu0 %v1012
    %v1014 = vpop.xlane.xlu0 %1013
    %v1015 = vsel %vm89, %v1005, 0.0
    %1016 = vadd.xlane.f32.xlu0 %v1015
    %v1017 = vpop.xlane.xlu0 %1016
    %v1018 = vrcp.pop %v1008
    %v1019 = vmul.f32 %v999, %v1018
    %v1020 = vrcp.pop %v1011
    %v1021 = vmul.f32 %v1001, %v1020
    %v1022 = vrcp.pop %v1014
    %v1023 = vmul.f32 %v1003, %v1022
    %v1024 = vrcp.pop %v1017
    %v1025 = vmul.f32 %v1005, %v1024
    %v1026 = vpack.c.bf16 %v1021, %v1019
    %v1027 = vpack.c.bf16 %v1025, %v1023
    %1028 = vrot.lane.b32.xlu0 %v379, 124
    %v1029 = vpop.permute.xlu0 %1028
    %v1032 = vsel %vm89, %v1026, 0
    %1034 = vmatprep.subr.bf16.mxu0 0
    %1035 = vmatpush1.bf16.msra.mxu0 %v1029
    %1036 = vmatprep.subr.bf16.mxu0 0
    %1037 = vmatpush1.bf16.msra.mxu0 0
    %1038 = vmatprep.subr.bf16.mxu0 0
    %1039 = vmatpush1.bf16.msra.mxu0 0
    %1040 = vmatprep.subr.bf16.mxu0 0
    %1041 = vmatpush1.bf16.msra.mxu0 0
    %1042 = vmatprep.subr.bf16.mxu0 0
    %1043 = vmatpush1.bf16.msra.mxu0 0
    %1044 = vmatprep.subr.bf16.mxu0 0
    %1045 = vmatpush1.bf16.msra.mxu0 0
    %1046 = vmatprep.subr.bf16.mxu0 0
    %1047 = vmatpush1.bf16.msra.mxu0 0
    %1048 = vmatprep.subr.bf16.mxu0 0
    %1049 = vmatpush1.bf16.msra.mxu0 0
    %1050 = vmatprep.subr.bf16.mxu0 0
    %1051 = vmatpush1.bf16.msra.mxu0 0
    %1052 = vmatprep.subr.bf16.mxu0 0
    %1053 = vmatpush1.bf16.msra.mxu0 0
    %1054 = vmatprep.subr.bf16.mxu0 0
    %1055 = vmatpush1.bf16.msra.mxu0 0
    %1056 = vmatprep.subr.bf16.mxu0 0
    %1057 = vmatpush1.bf16.msra.mxu0 0
    %1058 = vmatprep.subr.bf16.mxu0 0
    %1059 = vmatpush1.bf16.msra.mxu0 0
    %1060 = vmatprep.subr.bf16.mxu0 0
    %1061 = vmatpush1.bf16.msra.mxu0 0
    %1062 = vmatprep.subr.bf16.mxu0 0
    %1063 = vmatpush1.bf16.msra.mxu0 0
    %1064 = vmatprep.subr.bf16.mxu0 0
    %1065 = vmatpush1.bf16.msra.mxu0 0
    %1066 = vmatprep.mubr.bf16.mxu0 0
    %1067 = vmatmul.mubr.bf16.gmra.mrb[0].mxu0 %v1032
    %v1068 = vpop.f32.mrb[0].mxu0
    %v1069 = vadd.f32 0.0, %v1068
    %v1070 = vpop.f32.mrb[0].mxu0
    %v1071 = vpop.f32.mrb[0].mxu0
    %v1072 = vadd.f32 0.0, %v1071
    %v1073 = vpop.f32.mrb[0].mxu0
    %1074 = vdwg.mxu0
    %1075 = vrot.lane.b32.xlu0 %v380, 124
    %v1076 = vpop.permute.xlu0 %1075
    %v1079 = vsel %vm89, %v1027, 0
    %1081 = vmatprep.subr.bf16.mxu0 0
    %1082 = vmatpush1.bf16.msra.mxu0 %v1076
    %1083 = vmatprep.subr.bf16.mxu0 0
    %1084 = vmatpush1.bf16.msra.mxu0 0
    %1085 = vmatprep.subr.bf16.mxu0 0
    %1086 = vmatpush1.bf16.msra.mxu0 0
    %1087 = vmatprep.subr.bf16.mxu0 0
    %1088 = vmatpush1.bf16.msra.mxu0 0
    %1089 = vmatprep.subr.bf16.mxu0 0
    %1090 = vmatpush1.bf16.msra.mxu0 0
    %1091 = vmatprep.subr.bf16.mxu0 0
    %1092 = vmatpush1.bf16.msra.mxu0 0
    %1093 = vmatprep.subr.bf16.mxu0 0
    %1094 = vmatpush1.bf16.msra.mxu0 0
    %1095 = vmatprep.subr.bf16.mxu0 0
    %1096 = vmatpush1.bf16.msra.mxu0 0
    %1097 = vmatprep.subr.bf16.mxu0 0
    %1098 = vmatpush1.bf16.msra.mxu0 0
    %1099 = vmatprep.subr.bf16.mxu0 0
    %1100 = vmatpush1.bf16.msra.mxu0 0
    %1101 = vmatprep.subr.bf16.mxu0 0
    %1102 = vmatpush1.bf16.msra.mxu0 0
    %1103 = vmatprep.subr.bf16.mxu0 0
    %1104 = vmatpush1.bf16.msra.mxu0 0
    %1105 = vmatprep.subr.bf16.mxu0 0
    %1106 = vmatpush1.bf16.msra.mxu0 0
    %1107 = vmatprep.subr.bf16.mxu0 0
    %1108 = vmatpush1.bf16.msra.mxu0 0
    %1109 = vmatprep.subr.bf16.mxu0 0
    %1110 = vmatpush1.bf16.msra.mxu0 0
    %1111 = vmatprep.subr.bf16.mxu0 0
    %1112 = vmatpush1.bf16.msra.mxu0 0
    %1113 = vmatprep.mubr.bf16.mxu0 0
    %1114 = vmatmul.mubr.bf16.gmra.mrb[0].mxu0 %v1079
    %v1115 = vpop.f32.mrb[0].mxu0
    %v1116 = vadd.f32 0.0, %v1115
    %v1117 = vpop.f32.mrb[0].mxu0
    %v1118 = vpop.f32.mrb[0].mxu0
    %v1119 = vadd.f32 0.0, %v1118
    %v1120 = vpop.f32.mrb[0].mxu0
    %1121 = vdwg.mxu0
    %v1122 = vpack.c.bf16 %v1072, %v1069
    %v1123 = vpack.c.bf16 %v1119, %v1116
    %v1124 = vrot.slane %v800, 2
    %v1126 = vsel %vm229, %v1122, 0
    %v1129 = vsel %vm229, %v1123, 0
    %v1132 = vsel %vm477, %v1124, 0
    %1134 = vmatprep.subr.bf16.mxu0 0
    %1135 = vmatpush1.bf16.msra.mxu0 %v1132
    %1136 = vmatprep.subr.bf16.mxu0 0
    %1137 = vmatpush1.bf16.msra.mxu0 0
    %1138 = vmatprep.subr.bf16.mxu0 0
    %1139 = vmatpush1.bf16.msra.mxu0 0
    %1140 = vmatprep.subr.bf16.mxu0 0
    %1141 = vmatpush1.bf16.msra.mxu0 0
    %1142 = vmatprep.subr.bf16.mxu0 0
    %1143 = vmatpush1.bf16.msra.mxu0 0
    %1144 = vmatprep.subr.bf16.mxu0 0
    %1145 = vmatpush1.bf16.msra.mxu0 0
    %1146 = vmatprep.subr.bf16.mxu0 0
    %1147 = vmatpush1.bf16.msra.mxu0 0
    %1148 = vmatprep.subr.bf16.mxu0 0
    %1149 = vmatpush1.bf16.msra.mxu0 0
    %1150 = vmatprep.subr.bf16.mxu0 0
    %1151 = vmatpush1.bf16.msra.mxu0 0
    %1152 = vmatprep.subr.bf16.mxu0 0
    %1153 = vmatpush1.bf16.msra.mxu0 0
    %1154 = vmatprep.subr.bf16.mxu0 0
    %1155 = vmatpush1.bf16.msra.mxu0 0
    %1156 = vmatprep.subr.bf16.mxu0 0
    %1157 = vmatpush1.bf16.msra.mxu0 0
    %1158 = vmatprep.subr.bf16.mxu0 0
    %1159 = vmatpush1.bf16.msra.mxu0 0
    %1160 = vmatprep.subr.bf16.mxu0 0
    %1161 = vmatpush1.bf16.msra.mxu0 0
    %1162 = vmatprep.subr.bf16.mxu0 0
    %1163 = vmatpush1.bf16.msra.mxu0 0
    %1164 = vmatprep.subr.bf16.mxu0 0
    %1165 = vmatpush1.bf16.msra.mxu0 0
    %1166 = vmatprep.mubr.bf16.mxu0 0
    %1167 = vmatmul.mubr.bf16.gmra.mrb[0].mxu0 %v1126
    %v1168 = vpop.f32.mrb[0].mxu0
    %v1169 = vadd.f32 0.0, %v1168
    %v1170 = vpop.f32.mrb[0].mxu0
    %v1171 = vpop.f32.mrb[0].mxu0
    %v1172 = vadd.f32 0.0, %v1171
    %v1173 = vpop.f32.mrb[0].mxu0
    %1174 = vmatprep.mubr.bf16.mxu0 0
    %1175 = vmatmul.mubr.bf16.gmra.mrb[0].mxu0 %v1129
    %v1176 = vpop.f32.mrb[0].mxu0
    %v1177 = vadd.f32 0.0, %v1176
    %v1178 = vpop.f32.mrb[0].mxu0
    %v1179 = vpop.f32.mrb[0].mxu0
    %v1180 = vadd.f32 0.0, %v1179
    %v1181 = vpop.f32.mrb[0].mxu0
    %1182 = vdwg.mxu0
    %v1183 = vadd.f32 %v860, %v1169
    %v1184 = vadd.f32 %v861, %v1172
    %v1185 = vadd.f32 %v862, %v1177
    %v1186 = vadd.f32 %v863, %v1180
    %1187 = vrot.lane.b32.xlu0 %v224, 6
    %v1188 = vpop.permute.xlu0 %1187
    %v1190 = vmul.f32 %v131, %v1188
    %v1191 = vmul.f32 %v134, %v1188
    %v1192 = vmul.f32 %v139, %v1188
    %v1193 = vmul.f32 %v142, %v1188
    %1198 = vrot.lane.b32.xlu0 %v1190, 122
    %v1199 = vpop.permute.xlu0 %1198
    %1200 = vrot.lane.b32.xlu0 %v1191, 122
    %v1201 = vpop.permute.xlu0 %1200
    %1202 = vrot.lane.b32.xlu0 %v1192, 122
    %v1203 = vpop.permute.xlu0 %1202
    %1204 = vrot.lane.b32.xlu0 %v1193, 122
    %v1205 = vpop.permute.xlu0 %1204
    %v1210 = vsel %vm229, %v1199, 0.0
    %1211 = vadd.xlane.f32.xlu0 %v1210
    %v1212 = vpop.xlane.xlu0 %1211
    %v1213 = vsel %vm229, %v1201, 0.0
    %1214 = vadd.xlane.f32.xlu0 %v1213
    %v1215 = vpop.xlane.xlu0 %1214
    %v1216 = vsel %vm229, %v1203, 0.0
    %1217 = vadd.xlane.f32.xlu0 %v1216
    %v1218 = vpop.xlane.xlu0 %1217
    %v1219 = vsel %vm229, %v1205, 0.0
    %1220 = vadd.xlane.f32.xlu0 %v1219
    %v1221 = vpop.xlane.xlu0 %1220
    %1222 = vrot.lane.b32.xlu0 %v245, 6
    %v1223 = vpop.permute.xlu0 %1222
    %v1225 = vmul.f32 %v200, %v1223
    %v1226 = vmul.f32 %v203, %v1223
    %v1227 = vmul.f32 %v208, %v1223
    %v1228 = vmul.f32 %v211, %v1223
    %1233 = vrot.lane.b32.xlu0 %v1225, 122
    %v1234 = vpop.permute.xlu0 %1233
    %1235 = vrot.lane.b32.xlu0 %v1226, 122
    %v1236 = vpop.permute.xlu0 %1235
    %1237 = vrot.lane.b32.xlu0 %v1227, 122
    %v1238 = vpop.permute.xlu0 %1237
    %1239 = vrot.lane.b32.xlu0 %v1228, 122
    %v1240 = vpop.permute.xlu0 %1239
    %v1245 = vsel %vm229, %v1234, 0.0
    %1246 = vadd.xlane.f32.xlu0 %v1245
    %v1247 = vpop.xlane.xlu0 %1246
    %v1248 = vsel %vm229, %v1236, 0.0
    %1249 = vadd.xlane.f32.xlu0 %v1248
    %v1250 = vpop.xlane.xlu0 %1249
    %v1251 = vsel %vm229, %v1238, 0.0
    %1252 = vadd.xlane.f32.xlu0 %v1251
    %v1253 = vpop.xlane.xlu0 %1252
    %v1254 = vsel %vm229, %v1240, 0.0
    %1255 = vadd.xlane.f32.xlu0 %v1254
    %v1256 = vpop.xlane.xlu0 %1255
    %v1261 = vlaneseq
    %v1262 = vshrl.u32 %v1261, 7
    %v1263 = vsub.s32 %v267, %v1262
    %v1264 = vrot.slane %v1212, %v1263
    %v1265 = vlaneseq
    %v1266 = vshrl.u32 %v1265, 7
    %v1267 = vsub.s32 %v272, %v1266
    %v1268 = vrot.slane %v1215, %v1267
    %v1269 = vsel %vm277, %v1268, %v1264
    %v1270 = vlaneseq
    %v1271 = vshrl.u32 %v1270, 7
    %v1272 = vsub.s32 %v267, %v1271
    %v1273 = vrot.slane %v1218, %v1272
    %v1274 = vlaneseq
    %v1275 = vshrl.u32 %v1274, 7
    %v1276 = vsub.s32 %v272, %v1275
    %v1277 = vrot.slane %v1221, %v1276
    %v1278 = vsel %vm277, %v1277, %v1273
    %v1279 = vsel %vm289, %v1269, %v1269
    %v1280 = vsel %vm291, %v1269, %v1279
    %v1281 = vsel %vm293, %v1269, %v1280
    %v1282 = vsel %vm295, %v1269, %v1281
    %v1283 = vsel %vm297, %v1269, %v1282
    %v1284 = vsel %vm299, %v1269, %v1283
    %v1285 = vsel %vm289, %v1278, %v1278
    %v1286 = vsel %vm291, %v1278, %v1285
    %v1287 = vsel %vm293, %v1278, %v1286
    %v1288 = vsel %vm295, %v1278, %v1287
    %v1289 = vsel %vm297, %v1278, %v1288
    %v1290 = vsel %vm299, %v1278, %v1289
    %v1293 = vadd.f32 %v1247, %v1284
    %v1294 = vadd.f32 %v1250, %v1284
    %v1295 = vadd.f32 %v1253, %v1290
    %v1296 = vadd.f32 %v1256, %v1290
    %v1297 = vtanh.pop %v1293
    %v1298 = vtanh.pop %v1294
    %v1299 = vtanh.pop %v1295
    %v1300 = vtanh.pop %v1296
    %v1301 = vadd.f32 %v1297, %v322
    %v1302 = vadd.f32 %v1298, %v322
    %v1303 = vadd.f32 %v1299, %v326
    %v1304 = vadd.f32 %v1300, %v326
    %v1305 = vsel %vm89, %v1301, -inf
    %1306 = vmax.xlane.f32.xlu0 %v1305
    %v1307 = vpop.xlane.xlu0 %1306
    %v1308 = vsel %vm89, %v1302, -inf
    %1309 = vmax.xlane.f32.xlu0 %v1308
    %v1310 = vpop.xlane.xlu0 %1309
    %v1311 = vsel %vm89, %v1303, -inf
    %1312 = vmax.xlane.f32.xlu0 %v1311
    %v1313 = vpop.xlane.xlu0 %1312
    %v1314 = vsel %vm89, %v1304, -inf
    %1315 = vmax.xlane.f32.xlu0 %v1314
    %v1316 = vpop.xlane.xlu0 %1315
    %v1317 = vsub.f32 %v1301, %v1307
    %v1318 = vsub.f32 %v1302, %v1310
    %v1319 = vsub.f32 %v1303, %v1313
    %v1320 = vsub.f32 %v1304, %v1316
    %v1321 = vmul.f32 %v1317, 1.442695
    %v1322 = vpow.pop %v1321
    %v1323 = vmul.f32 %v1318, 1.442695
    %v1324 = vpow.pop %v1323
    %v1325 = vmul.f32 %v1319, 1.442695
    %v1326 = vpow.pop %v1325
    %v1327 = vmul.f32 %v1320, 1.442695
    %v1328 = vpow.pop %v1327
    %v1329 = vsel %vm89, %v1322, 0.0
    %1330 = vadd.xlane.f32.xlu0 %v1329
    %v1331 = vpop.xlane.xlu0 %1330
    %v1332 = vsel %vm89, %v1324, 0.0
    %1333 = vadd.xlane.f32.xlu0 %v1332
    %v1334 = vpop.xlane.xlu0 %1333
    %v1335 = vsel %vm89, %v1326, 0.0
    %1336 = vadd.xlane.f32.xlu0 %v1335
    %v1337 = vpop.xlane.xlu0 %1336
    %v1338 = vsel %vm89, %v1328, 0.0
    %1339 = vadd.xlane.f32.xlu0 %v1338
    %v1340 = vpop.xlane.xlu0 %1339
    %v1341 = vrcp.pop %v1331
    %v1342 = vmul.f32 %v1322, %v1341
    %v1343 = vrcp.pop %v1334
    %v1344 = vmul.f32 %v1324, %v1343
    %v1345 = vrcp.pop %v1337
    %v1346 = vmul.f32 %v1326, %v1345
    %v1347 = vrcp.pop %v1340
    %v1348 = vmul.f32 %v1328, %v1347
    %v1349 = vpack.c.bf16 %v1344, %v1342
    %v1350 = vpack.c.bf16 %v1348, %v1346
    %1351 = vrot.lane.b32.xlu0 %v379, 122
    %v1352 = vpop.permute.xlu0 %1351
    %v1355 = vsel %vm89, %v1349, 0
    %1357 = vmatprep.subr.bf16.mxu0 0
    %1358 = vmatpush1.bf16.msra.mxu0 %v1352
    %1359 = vmatprep.subr.bf16.mxu0 0
    %1360 = vmatpush1.bf16.msra.mxu0 0
    %1361 = vmatprep.subr.bf16.mxu0 0
    %1362 = vmatpush1.bf16.msra.mxu0 0
    %1363 = vmatprep.subr.bf16.mxu0 0
    %1364 = vmatpush1.bf16.msra.mxu0 0
    %1365 = vmatprep.subr.bf16.mxu0 0
    %1366 = vmatpush1.bf16.msra.mxu0 0
    %1367 = vmatprep.subr.bf16.mxu0 0
    %1368 = vmatpush1.bf16.msra.mxu0 0
    %1369 = vmatprep.subr.bf16.mxu0 0
    %1370 = vmatpush1.bf16.msra.mxu0 0
    %1371 = vmatprep.subr.bf16.mxu0 0
    %1372 = vmatpush1.bf16.msra.mxu0 0
    %1373 = vmatprep.subr.bf16.mxu0 0
    %1374 = vmatpush1.bf16.msra.mxu0 0
    %1375 = vmatprep.subr.bf16.mxu0 0
    %1376 = vmatpush1.bf16.msra.mxu0 0
    %1377 = vmatprep.subr.bf16.mxu0 0
    %1378 = vmatpush1.bf16.msra.mxu0 0
    %1379 = vmatprep.subr.bf16.mxu0 0
    %1380 = vmatpush1.bf16.msra.mxu0 0
    %1381 = vmatprep.subr.bf16.mxu0 0
    %1382 = vmatpush1.bf16.msra.mxu0 0
    %1383 = vmatprep.subr.bf16.mxu0 0
    %1384 = vmatpush1.bf16.msra.mxu0 0
    %1385 = vmatprep.subr.bf16.mxu0 0
    %1386 = vmatpush1.bf16.msra.mxu0 0
    %1387 = vmatprep.subr.bf16.mxu0 0
    %1388 = vmatpush1.bf16.msra.mxu0 0
    %1389 = vmatprep.mubr.bf16.mxu0 0
    %1390 = vmatmul.mubr.bf16.gmra.mrb[0].mxu0 %v1355
    %v1391 = vpop.f32.mrb[0].mxu0
    %v1392 = vadd.f32 0.0, %v1391
    %v1393 = vpop.f32.mrb[0].mxu0
    %v1394 = vpop.f32.mrb[0].mxu0
    %v1395 = vadd.f32 0.0, %v1394
    %v1396 = vpop.f32.mrb[0].mxu0
    %1397 = vdwg.mxu0
    %1398 = vrot.lane.b32.xlu0 %v380, 122
    %v1399 = vpop.permute.xlu0 %1398
    %v1402 = vsel %vm89, %v1350, 0
    %1404 = vmatprep.subr.bf16.mxu0 0
    %1405 = vmatpush1.bf16.msra.mxu0 %v1399
    %1406 = vmatprep.subr.bf16.mxu0 0
    %1407 = vmatpush1.bf16.msra.mxu0 0
    %1408 = vmatprep.subr.bf16.mxu0 0
    %1409 = vmatpush1.bf16.msra.mxu0 0
    %1410 = vmatprep.subr.bf16.mxu0 0
    %1411 = vmatpush1.bf16.msra.mxu0 0
    %1412 = vmatprep.subr.bf16.mxu0 0
    %1413 = vmatpush1.bf16.msra.mxu0 0
    %1414 = vmatprep.subr.bf16.mxu0 0
    %1415 = vmatpush1.bf16.msra.mxu0 0
    %1416 = vmatprep.subr.bf16.mxu0 0
    %1417 = vmatpush1.bf16.msra.mxu0 0
    %1418 = vmatprep.subr.bf16.mxu0 0
    %1419 = vmatpush1.bf16.msra.mxu0 0
    %1420 = vmatprep.subr.bf16.mxu0 0
    %1421 = vmatpush1.bf16.msra.mxu0 0
    %1422 = vmatprep.subr.bf16.mxu0 0
    %1423 = vmatpush1.bf16.msra.mxu0 0
    %1424 = vmatprep.subr.bf16.mxu0 0
    %1425 = vmatpush1.bf16.msra.mxu0 0
    %1426 = vmatprep.subr.bf16.mxu0 0
    %1427 = vmatpush1.bf16.msra.mxu0 0
    %1428 = vmatprep.subr.bf16.mxu0 0
    %1429 = vmatpush1.bf16.msra.mxu0 0
    %1430 = vmatprep.subr.bf16.mxu0 0
    %1431 = vmatpush1.bf16.msra.mxu0 0
    %1432 = vmatprep.subr.bf16.mxu0 0
    %1433 = vmatpush1.bf16.msra.mxu0 0
    %1434 = vmatprep.subr.bf16.mxu0 0
    %1435 = vmatpush1.bf16.msra.mxu0 0
    %1436 = vmatprep.mubr.bf16.mxu0 0
    %1437 = vmatmul.mubr.bf16.gmra.mrb[0].mxu0 %v1402
    %v1438 = vpop.f32.mrb[0].mxu0
    %v1439 = vadd.f32 0.0, %v1438
    %v1440 = vpop.f32.mrb[0].mxu0
    %v1441 = vpop.f32.mrb[0].mxu0
    %v1442 = vadd.f32 0.0, %v1441
    %v1443 = vpop.f32.mrb[0].mxu0
    %1444 = vdwg.mxu0
    %v1445 = vpack.c.bf16 %v1395, %v1392
    %v1446 = vpack.c.bf16 %v1442, %v1439
    %v1447 = vrot.slane %v800, 3
    %v1449 = vsel %vm229, %v1445, 0
    %v1452 = vsel %vm229, %v1446, 0
    %v1455 = vsel %vm477, %v1447, 0
    %1457 = vmatprep.subr.bf16.mxu0 0
    %1458 = vmatpush1.bf16.msra.mxu0 %v1455
    %1459 = vmatprep.subr.bf16.mxu0 0
    %1460 = vmatpush1.bf16.msra.mxu0 0
    %1461 = vmatprep.subr.bf16.mxu0 0
    %1462 = vmatpush1.bf16.msra.mxu0 0
    %1463 = vmatprep.subr.bf16.mxu0 0
    %1464 = vmatpush1.bf16.msra.mxu0 0
    %1465 = vmatprep.subr.bf16.mxu0 0
    %1466 = vmatpush1.bf16.msra.mxu0 0
    %1467 = vmatprep.subr.bf16.mxu0 0
    %1468 = vmatpush1.bf16.msra.mxu0 0
    %1469 = vmatprep.subr.bf16.mxu0 0
    %1470 = vmatpush1.bf16.msra.mxu0 0
    %1471 = vmatprep.subr.bf16.mxu0 0
    %1472 = vmatpush1.bf16.msra.mxu0 0
    %1473 = vmatprep.subr.bf16.mxu0 0
    %1474 = vmatpush1.bf16.msra.mxu0 0
    %1475 = vmatprep.subr.bf16.mxu0 0
    %1476 = vmatpush1.bf16.msra.mxu0 0
    %1477 = vmatprep.subr.bf16.mxu0 0
    %1478 = vmatpush1.bf16.msra.mxu0 0
    %1479 = vmatprep.subr.bf16.mxu0 0
    %1480 = vmatpush1.bf16.msra.mxu0 0
    %1481 = vmatprep.subr.bf16.mxu0 0
    %1482 = vmatpush1.bf16.msra.mxu0 0
    %1483 = vmatprep.subr.bf16.mxu0 0
    %1484 = vmatpush1.bf16.msra.mxu0 0
    %1485 = vmatprep.subr.bf16.mxu0 0
    %1486 = vmatpush1.bf16.msra.mxu0 0
    %1487 = vmatprep.subr.bf16.mxu0 0
    %1488 = vmatpush1.bf16.msra.mxu0 0
    %1489 = vmatprep.mubr.bf16.mxu0 0
    %1490 = vmatmul.mubr.bf16.gmra.mrb[0].mxu0 %v1449
    %v1491 = vpop.f32.mrb[0].mxu0
    %v1492 = vadd.f32 0.0, %v1491
    %v1493 = vpop.f32.mrb[0].mxu0
    %v1494 = vpop.f32.mrb[0].mxu0
    %v1495 = vadd.f32 0.0, %v1494
    %v1496 = vpop.f32.mrb[0].mxu0
    %1497 = vmatprep.mubr.bf16.mxu0 0
    %1498 = vmatmul.mubr.bf16.gmra.mrb[0].mxu0 %v1452
    %v1499 = vpop.f32.mrb[0].mxu0
    %v1500 = vadd.f32 0.0, %v1499
    %v1501 = vpop.f32.mrb[0].mxu0
    %v1502 = vpop.f32.mrb[0].mxu0
    %v1503 = vadd.f32 0.0, %v1502
    %v1504 = vpop.f32.mrb[0].mxu0
    %1505 = vdwg.mxu0
    %v1506 = vadd.f32 %v1183, %v1492
    %v1507 = vadd.f32 %v1184, %v1495
    %v1508 = vadd.f32 %v1185, %v1500
    %v1509 = vadd.f32 %v1186, %v1503
    %1510 = vrot.lane.b32.xlu0 %v224, 8
    %v1511 = vpop.permute.xlu0 %1510
    %v1513 = vmul.f32 %v131, %v1511
    %v1514 = vmul.f32 %v134, %v1511
    %v1515 = vmul.f32 %v139, %v1511
    %v1516 = vmul.f32 %v142, %v1511
    %1521 = vrot.lane.b32.xlu0 %v1513, 120
    %v1522 = vpop.permute.xlu0 %1521
    %1523 = vrot.lane.b32.xlu0 %v1514, 120
    %v1524 = vpop.permute.xlu0 %1523
    %1525 = vrot.lane.b32.xlu0 %v1515, 120
    %v1526 = vpop.permute.xlu0 %1525
    %1527 = vrot.lane.b32.xlu0 %v1516, 120
    %v1528 = vpop.permute.xlu0 %1527
    %v1533 = vsel %vm229, %v1522, 0.0
    %1534 = vadd.xlane.f32.xlu0 %v1533
    %v1535 = vpop.xlane.xlu0 %1534
    %v1536 = vsel %vm229, %v1524, 0.0
    %1537 = vadd.xlane.f32.xlu0 %v1536
    %v1538 = vpop.xlane.xlu0 %1537
    %v1539 = vsel %vm229, %v1526, 0.0
    %1540 = vadd.xlane.f32.xlu0 %v1539
    %v1541 = vpop.xlane.xlu0 %1540
    %v1542 = vsel %vm229, %v1528, 0.0
    %1543 = vadd.xlane.f32.xlu0 %v1542
    %v1544 = vpop.xlane.xlu0 %1543
    %1545 = vrot.lane.b32.xlu0 %v245, 8
    %v1546 = vpop.permute.xlu0 %1545
    %v1548 = vmul.f32 %v200, %v1546
    %v1549 = vmul.f32 %v203, %v1546
    %v1550 = vmul.f32 %v208, %v1546
    %v1551 = vmul.f32 %v211, %v1546
    %1556 = vrot.lane.b32.xlu0 %v1548, 120
    %v1557 = vpop.permute.xlu0 %1556
    %1558 = vrot.lane.b32.xlu0 %v1549, 120
    %v1559 = vpop.permute.xlu0 %1558
    %1560 = vrot.lane.b32.xlu0 %v1550, 120
    %v1561 = vpop.permute.xlu0 %1560
    %1562 = vrot.lane.b32.xlu0 %v1551, 120
    %v1563 = vpop.permute.xlu0 %1562
    %v1568 = vsel %vm229, %v1557, 0.0
    %1569 = vadd.xlane.f32.xlu0 %v1568
    %v1570 = vpop.xlane.xlu0 %1569
    %v1571 = vsel %vm229, %v1559, 0.0
    %1572 = vadd.xlane.f32.xlu0 %v1571
    %v1573 = vpop.xlane.xlu0 %1572
    %v1574 = vsel %vm229, %v1561, 0.0
    %1575 = vadd.xlane.f32.xlu0 %v1574
    %v1576 = vpop.xlane.xlu0 %1575
    %v1577 = vsel %vm229, %v1563, 0.0
    %1578 = vadd.xlane.f32.xlu0 %v1577
    %v1579 = vpop.xlane.xlu0 %1578
    %v1584 = vlaneseq
    %v1585 = vshrl.u32 %v1584, 7
    %v1586 = vsub.s32 %v267, %v1585
    %v1587 = vrot.slane %v1535, %v1586
    %v1588 = vlaneseq
    %v1589 = vshrl.u32 %v1588, 7
    %v1590 = vsub.s32 %v272, %v1589
    %v1591 = vrot.slane %v1538, %v1590
    %v1592 = vsel %vm277, %v1591, %v1587
    %v1593 = vlaneseq
    %v1594 = vshrl.u32 %v1593, 7
    %v1595 = vsub.s32 %v267, %v1594
    %v1596 = vrot.slane %v1541, %v1595
    %v1597 = vlaneseq
    %v1598 = vshrl.u32 %v1597, 7
    %v1599 = vsub.s32 %v272, %v1598
    %v1600 = vrot.slane %v1544, %v1599
    %v1601 = vsel %vm277, %v1600, %v1596
    %v1602 = vsel %vm289, %v1592, %v1592
    %v1603 = vsel %vm291, %v1592, %v1602
    %v1604 = vsel %vm293, %v1592, %v1603
    %v1605 = vsel %vm295, %v1592, %v1604
    %v1606 = vsel %vm297, %v1592, %v1605
    %v1607 = vsel %vm299, %v1592, %v1606
    %v1608 = vsel %vm289, %v1601, %v1601
    %v1609 = vsel %vm291, %v1601, %v1608
    %v1610 = vsel %vm293, %v1601, %v1609
    %v1611 = vsel %vm295, %v1601, %v1610
    %v1612 = vsel %vm297, %v1601, %v1611
    %v1613 = vsel %vm299, %v1601, %v1612
    %v1616 = vadd.f32 %v1570, %v1607
    %v1617 = vadd.f32 %v1573, %v1607
    %v1618 = vadd.f32 %v1576, %v1613
    %v1619 = vadd.f32 %v1579, %v1613
    %v1620 = vtanh.pop %v1616
    %v1621 = vtanh.pop %v1617
    %v1622 = vtanh.pop %v1618
    %v1623 = vtanh.pop %v1619
    %v1624 = vadd.f32 %v1620, %v322
    %v1625 = vadd.f32 %v1621, %v322
    %v1626 = vadd.f32 %v1622, %v326
    %v1627 = vadd.f32 %v1623, %v326
    %v1628 = vsel %vm89, %v1624, -inf
    %1629 = vmax.xlane.f32.xlu0 %v1628
    %v1630 = vpop.xlane.xlu0 %1629
    %v1631 = vsel %vm89, %v1625, -inf
    %1632 = vmax.xlane.f32.xlu0 %v1631
    %v1633 = vpop.xlane.xlu0 %1632
    %v1634 = vsel %vm89, %v1626, -inf
    %1635 = vmax.xlane.f32.xlu0 %v1634
    %v1636 = vpop.xlane.xlu0 %1635
    %v1637 = vsel %vm89, %v1627, -inf
    %1638 = vmax.xlane.f32.xlu0 %v1637
    %v1639 = vpop.xlane.xlu0 %1638
    %v1640 = vsub.f32 %v1624, %v1630
    %v1641 = vsub.f32 %v1625, %v1633
    %v1642 = vsub.f32 %v1626, %v1636
    %v1643 = vsub.f32 %v1627, %v1639
    %v1644 = vmul.f32 %v1640, 1.442695
    %v1645 = vpow.pop %v1644
    %v1646 = vmul.f32 %v1641, 1.442695
    %v1647 = vpow.pop %v1646
    %v1648 = vmul.f32 %v1642, 1.442695
    %v1649 = vpow.pop %v1648
    %v1650 = vmul.f32 %v1643, 1.442695
    %v1651 = vpow.pop %v1650
    %v1652 = vsel %vm89, %v1645, 0.0
    %1653 = vadd.xlane.f32.xlu0 %v1652
    %v1654 = vpop.xlane.xlu0 %1653
    %v1655 = vsel %vm89, %v1647, 0.0
    %1656 = vadd.xlane.f32.xlu0 %v1655
    %v1657 = vpop.xlane.xlu0 %1656
    %v1658 = vsel %vm89, %v1649, 0.0
    %1659 = vadd.xlane.f32.xlu0 %v1658
    %v1660 = vpop.xlane.xlu0 %1659
    %v1661 = vsel %vm89, %v1651, 0.0
    %1662 = vadd.xlane.f32.xlu0 %v1661
    %v1663 = vpop.xlane.xlu0 %1662
    %v1664 = vrcp.pop %v1654
    %v1665 = vmul.f32 %v1645, %v1664
    %v1666 = vrcp.pop %v1657
    %v1667 = vmul.f32 %v1647, %v1666
    %v1668 = vrcp.pop %v1660
    %v1669 = vmul.f32 %v1649, %v1668
    %v1670 = vrcp.pop %v1663
    %v1671 = vmul.f32 %v1651, %v1670
    %v1672 = vpack.c.bf16 %v1667, %v1665
    %v1673 = vpack.c.bf16 %v1671, %v1669
    %1674 = vrot.lane.b32.xlu0 %v379, 120
    %v1675 = vpop.permute.xlu0 %1674
    %v1678 = vsel %vm89, %v1672, 0
    %1680 = vmatprep.subr.bf16.mxu0 0
    %1681 = vmatpush1.bf16.msra.mxu0 %v1675
    %1682 = vmatprep.subr.bf16.mxu0 0
    %1683 = vmatpush1.bf16.msra.mxu0 0
    %1684 = vmatprep.subr.bf16.mxu0 0
    %1685 = vmatpush1.bf16.msra.mxu0 0
    %1686 = vmatprep.subr.bf16.mxu0 0
    %1687 = vmatpush1.bf16.msra.mxu0 0
    %1688 = vmatprep.subr.bf16.mxu0 0
    %1689 = vmatpush1.bf16.msra.mxu0 0
    %1690 = vmatprep.subr.bf16.mxu0 0
    %1691 = vmatpush1.bf16.msra.mxu0 0
    %1692 = vmatprep.subr.bf16.mxu0 0
    %1693 = vmatpush1.bf16.msra.mxu0 0
    %1694 = vmatprep.subr.bf16.mxu0 0
    %1695 = vmatpush1.bf16.msra.mxu0 0
    %1696 = vmatprep.subr.bf16.mxu0 0
    %1697 = vmatpush1.bf16.msra.mxu0 0
    %1698 = vmatprep.subr.bf16.mxu0 0
    %1699 = vmatpush1.bf16.msra.mxu0 0
    %1700 = vmatprep.subr.bf16.mxu0 0
    %1701 = vmatpush1.bf16.msra.mxu0 0
    %1702 = vmatprep.subr.bf16.mxu0 0
    %1703 = vmatpush1.bf16.msra.mxu0 0
    %1704 = vmatprep.subr.bf16.mxu0 0
    %1705 = vmatpush1.bf16.msra.mxu0 0
    %1706 = vmatprep.subr.bf16.mxu0 0
    %1707 = vmatpush1.bf16.msra.mxu0 0
    %1708 = vmatprep.subr.bf16.mxu0 0
    %1709 = vmatpush1.bf16.msra.mxu0 0
    %1710 = vmatprep.subr.bf16.mxu0 0
    %1711 = vmatpush1.bf16.msra.mxu0 0
    %1712 = vmatprep.mubr.bf16.mxu0 0
    %1713 = vmatmul.mubr.bf16.gmra.mrb[0].mxu0 %v1678
    %v1714 = vpop.f32.mrb[0].mxu0
    %v1715 = vadd.f32 0.0, %v1714
    %v1716 = vpop.f32.mrb[0].mxu0
    %v1717 = vpop.f32.mrb[0].mxu0
    %v1718 = vadd.f32 0.0, %v1717
    %v1719 = vpop.f32.mrb[0].mxu0
    %1720 = vdwg.mxu0
    %1721 = vrot.lane.b32.xlu0 %v380, 120
    %v1722 = vpop.permute.xlu0 %1721
    %v1725 = vsel %vm89, %v1673, 0
    %1727 = vmatprep.subr.bf16.mxu0 0
    %1728 = vmatpush1.bf16.msra.mxu0 %v1722
    %1729 = vmatprep.subr.bf16.mxu0 0
    %1730 = vmatpush1.bf16.msra.mxu0 0
    %1731 = vmatprep.subr.bf16.mxu0 0
    %1732 = vmatpush1.bf16.msra.mxu0 0
    %1733 = vmatprep.subr.bf16.mxu0 0
    %1734 = vmatpush1.bf16.msra.mxu0 0
    %1735 = vmatprep.subr.bf16.mxu0 0
    %1736 = vmatpush1.bf16.msra.mxu0 0
    %1737 = vmatprep.subr.bf16.mxu0 0
    %1738 = vmatpush1.bf16.msra.mxu0 0
    %1739 = vmatprep.subr.bf16.mxu0 0
    %1740 = vmatpush1.bf16.msra.mxu0 0
    %1741 = vmatprep.subr.bf16.mxu0 0
    %1742 = vmatpush1.bf16.msra.mxu0 0
    %1743 = vmatprep.subr.bf16.mxu0 0
    %1744 = vmatpush1.bf16.msra.mxu0 0
    %1745 = vmatprep.subr.bf16.mxu0 0
    %1746 = vmatpush1.bf16.msra.mxu0 0
    %1747 = vmatprep.subr.bf16.mxu0 0
    %1748 = vmatpush1.bf16.msra.mxu0 0
    %1749 = vmatprep.subr.bf16.mxu0 0
    %1750 = vmatpush1.bf16.msra.mxu0 0
    %1751 = vmatprep.subr.bf16.mxu0 0
    %1752 = vmatpush1.bf16.msra.mxu0 0
    %1753 = vmatprep.subr.bf16.mxu0 0
    %1754 = vmatpush1.bf16.msra.mxu0 0
    %1755 = vmatprep.subr.bf16.mxu0 0
    %1756 = vmatpush1.bf16.msra.mxu0 0
    %1757 = vmatprep.subr.bf16.mxu0 0
    %1758 = vmatpush1.bf16.msra.mxu0 0
    %1759 = vmatprep.mubr.bf16.mxu0 0
    %1760 = vmatmul.mubr.bf16.gmra.mrb[0].mxu0 %v1725
    %v1761 = vpop.f32.mrb[0].mxu0
    %v1762 = vadd.f32 0.0, %v1761
    %v1763 = vpop.f32.mrb[0].mxu0
    %v1764 = vpop.f32.mrb[0].mxu0
    %v1765 = vadd.f32 0.0, %v1764
    %v1766 = vpop.f32.mrb[0].mxu0
    %1767 = vdwg.mxu0
    %v1768 = vpack.c.bf16 %v1718, %v1715
    %v1769 = vpack.c.bf16 %v1765, %v1762
    %v1771 = vsel %vm229, %v1768, 0
    %v1774 = vsel %vm229, %v1769, 0
    %v1777 = vsel %vm477, %v73, 0
    %1779 = vmatprep.subr.bf16.mxu0 0
    %1780 = vmatpush1.bf16.msra.mxu0 %v1777
    %1781 = vmatprep.subr.bf16.mxu0 0
    %1782 = vmatpush1.bf16.msra.mxu0 0
    %1783 = vmatprep.subr.bf16.mxu0 0
    %1784 = vmatpush1.bf16.msra.mxu0 0
    %1785 = vmatprep.subr.bf16.mxu0 0
    %1786 = vmatpush1.bf16.msra.mxu0 0
    %1787 = vmatprep.subr.bf16.mxu0 0
    %1788 = vmatpush1.bf16.msra.mxu0 0
    %1789 = vmatprep.subr.bf16.mxu0 0
    %1790 = vmatpush1.bf16.msra.mxu0 0
    %1791 = vmatprep.subr.bf16.mxu0 0
    %1792 = vmatpush1.bf16.msra.mxu0 0
    %1793 = vmatprep.subr.bf16.mxu0 0
    %1794 = vmatpush1.bf16.msra.mxu0 0
    %1795 = vmatprep.subr.bf16.mxu0 0
    %1796 = vmatpush1.bf16.msra.mxu0 0
    %1797 = vmatprep.subr.bf16.mxu0 0
    %1798 = vmatpush1.bf16.msra.mxu0 0
    %1799 = vmatprep.subr.bf16.mxu0 0
    %1800 = vmatpush1.bf16.msra.mxu0 0
    %1801 = vmatprep.subr.bf16.mxu0 0
    %1802 = vmatpush1.bf16.msra.mxu0 0
    %1803 = vmatprep.subr.bf16.mxu0 0
    %1804 = vmatpush1.bf16.msra.mxu0 0
    %1805 = vmatprep.subr.bf16.mxu0 0
    %1806 = vmatpush1.bf16.msra.mxu0 0
    %1807 = vmatprep.subr.bf16.mxu0 0
    %1808 = vmatpush1.bf16.msra.mxu0 0
    %1809 = vmatprep.subr.bf16.mxu0 0
    %1810 = vmatpush1.bf16.msra.mxu0 0
    %1811 = vmatprep.mubr.bf16.mxu0 0
    %1812 = vmatmul.mubr.bf16.gmra.mrb[0].mxu0 %v1771
    %v1813 = vpop.f32.mrb[0].mxu0
    %v1814 = vadd.f32 0.0, %v1813
    %v1815 = vpop.f32.mrb[0].mxu0
    %v1816 = vpop.f32.mrb[0].mxu0
    %v1817 = vadd.f32 0.0, %v1816
    %v1818 = vpop.f32.mrb[0].mxu0
    %1819 = vmatprep.mubr.bf16.mxu0 0
    %1820 = vmatmul.mubr.bf16.gmra.mrb[0].mxu0 %v1774
    %v1821 = vpop.f32.mrb[0].mxu0
    %v1822 = vadd.f32 0.0, %v1821
    %v1823 = vpop.f32.mrb[0].mxu0
    %v1824 = vpop.f32.mrb[0].mxu0
    %v1825 = vadd.f32 0.0, %v1824
    %v1826 = vpop.f32.mrb[0].mxu0
    %1827 = vdwg.mxu0
    %v1828 = vadd.f32 %v1506, %v1814
    %v1829 = vadd.f32 %v1507, %v1817
    %v1830 = vadd.f32 %v1508, %v1822
    %v1831 = vadd.f32 %v1509, %v1825
    %1832 = vrot.lane.b32.xlu0 %v224, 10
    %v1833 = vpop.permute.xlu0 %1832
    %v1835 = vmul.f32 %v131, %v1833
    %v1836 = vmul.f32 %v134, %v1833
    %v1837 = vmul.f32 %v139, %v1833
    %v1838 = vmul.f32 %v142, %v1833
    %1843 = vrot.lane.b32.xlu0 %v1835, 118
    %v1844 = vpop.permute.xlu0 %1843
    %1845 = vrot.lane.b32.xlu0 %v1836, 118
    %v1846 = vpop.permute.xlu0 %1845
    %1847 = vrot.lane.b32.xlu0 %v1837, 118
    %v1848 = vpop.permute.xlu0 %1847
    %1849 = vrot.lane.b32.xlu0 %v1838, 118
    %v1850 = vpop.permute.xlu0 %1849
    %v1855 = vsel %vm229, %v1844, 0.0
    %1856 = vadd.xlane.f32.xlu0 %v1855
    %v1857 = vpop.xlane.xlu0 %1856
    %v1858 = vsel %vm229, %v1846, 0.0
    %1859 = vadd.xlane.f32.xlu0 %v1858
    %v1860 = vpop.xlane.xlu0 %1859
    %v1861 = vsel %vm229, %v1848, 0.0
    %1862 = vadd.xlane.f32.xlu0 %v1861
    %v1863 = vpop.xlane.xlu0 %1862
    %v1864 = vsel %vm229, %v1850, 0.0
    %1865 = vadd.xlane.f32.xlu0 %v1864
    %v1866 = vpop.xlane.xlu0 %1865
    %1867 = vrot.lane.b32.xlu0 %v245, 10
    %v1868 = vpop.permute.xlu0 %1867
    %v1870 = vmul.f32 %v200, %v1868
    %v1871 = vmul.f32 %v203, %v1868
    %v1872 = vmul.f32 %v208, %v1868
    %v1873 = vmul.f32 %v211, %v1868
    %1878 = vrot.lane.b32.xlu0 %v1870, 118
    %v1879 = vpop.permute.xlu0 %1878
    %1880 = vrot.lane.b32.xlu0 %v1871, 118
    %v1881 = vpop.permute.xlu0 %1880
    %1882 = vrot.lane.b32.xlu0 %v1872, 118
    %v1883 = vpop.permute.xlu0 %1882
    %1884 = vrot.lane.b32.xlu0 %v1873, 118
    %v1885 = vpop.permute.xlu0 %1884
    %v1890 = vsel %vm229, %v1879, 0.0
    %1891 = vadd.xlane.f32.xlu0 %v1890
    %v1892 = vpop.xlane.xlu0 %1891
    %v1893 = vsel %vm229, %v1881, 0.0
    %1894 = vadd.xlane.f32.xlu0 %v1893
    %v1895 = vpop.xlane.xlu0 %1894
    %v1896 = vsel %vm229, %v1883, 0.0
    %1897 = vadd.xlane.f32.xlu0 %v1896
    %v1898 = vpop.xlane.xlu0 %1897
    %v1899 = vsel %vm229, %v1885, 0.0
    %1900 = vadd.xlane.f32.xlu0 %v1899
    %v1901 = vpop.xlane.xlu0 %1900
    %v1906 = vlaneseq
    %v1907 = vshrl.u32 %v1906, 7
    %v1908 = vsub.s32 %v267, %v1907
    %v1909 = vrot.slane %v1857, %v1908
    %v1910 = vlaneseq
    %v1911 = vshrl.u32 %v1910, 7
    %v1912 = vsub.s32 %v272, %v1911
    %v1913 = vrot.slane %v1860, %v1912
    %v1914 = vsel %vm277, %v1913, %v1909
    %v1915 = vlaneseq
    %v1916 = vshrl.u32 %v1915, 7
    %v1917 = vsub.s32 %v267, %v1916
    %v1918 = vrot.slane %v1863, %v1917
    %v1919 = vlaneseq
    %v1920 = vshrl.u32 %v1919, 7
    %v1921 = vsub.s32 %v272, %v1920
    %v1922 = vrot.slane %v1866, %v1921
    %v1923 = vsel %vm277, %v1922, %v1918
    %v1924 = vsel %vm289, %v1914, %v1914
    %v1925 = vsel %vm291, %v1914, %v1924
    %v1926 = vsel %vm293, %v1914, %v1925
    %v1927 = vsel %vm295, %v1914, %v1926
    %v1928 = vsel %vm297, %v1914, %v1927
    %v1929 = vsel %vm299, %v1914, %v1928
    %v1930 = vsel %vm289, %v1923, %v1923
    %v1931 = vsel %vm291, %v1923, %v1930
    %v1932 = vsel %vm293, %v1923, %v1931
    %v1933 = vsel %vm295, %v1923, %v1932
    %v1934 = vsel %vm297, %v1923, %v1933
    %v1935 = vsel %vm299, %v1923, %v1934
    %v1938 = vadd.f32 %v1892, %v1929
    %v1939 = vadd.f32 %v1895, %v1929
    %v1940 = vadd.f32 %v1898, %v1935
    %v1941 = vadd.f32 %v1901, %v1935
    %v1942 = vtanh.pop %v1938
    %v1943 = vtanh.pop %v1939
    %v1944 = vtanh.pop %v1940
    %v1945 = vtanh.pop %v1941
    %v1946 = vadd.f32 %v1942, %v322
    %v1947 = vadd.f32 %v1943, %v322
    %v1948 = vadd.f32 %v1944, %v326
    %v1949 = vadd.f32 %v1945, %v326
    %v1950 = vsel %vm89, %v1946, -inf
    %1951 = vmax.xlane.f32.xlu0 %v1950
    %v1952 = vpop.xlane.xlu0 %1951
    %v1953 = vsel %vm89, %v1947, -inf
    %1954 = vmax.xlane.f32.xlu0 %v1953
    %v1955 = vpop.xlane.xlu0 %1954
    %v1956 = vsel %vm89, %v1948, -inf
    %1957 = vmax.xlane.f32.xlu0 %v1956
    %v1958 = vpop.xlane.xlu0 %1957
    %v1959 = vsel %vm89, %v1949, -inf
    %1960 = vmax.xlane.f32.xlu0 %v1959
    %v1961 = vpop.xlane.xlu0 %1960
    %v1962 = vsub.f32 %v1946, %v1952
    %v1963 = vsub.f32 %v1947, %v1955
    %v1964 = vsub.f32 %v1948, %v1958
    %v1965 = vsub.f32 %v1949, %v1961
    %v1966 = vmul.f32 %v1962, 1.442695
    %v1967 = vpow.pop %v1966
    %v1968 = vmul.f32 %v1963, 1.442695
    %v1969 = vpow.pop %v1968
    %v1970 = vmul.f32 %v1964, 1.442695
    %v1971 = vpow.pop %v1970
    %v1972 = vmul.f32 %v1965, 1.442695
    %v1973 = vpow.pop %v1972
    %v1974 = vsel %vm89, %v1967, 0.0
    %1975 = vadd.xlane.f32.xlu0 %v1974
    %v1976 = vpop.xlane.xlu0 %1975
    %v1977 = vsel %vm89, %v1969, 0.0
    %1978 = vadd.xlane.f32.xlu0 %v1977
    %v1979 = vpop.xlane.xlu0 %1978
    %v1980 = vsel %vm89, %v1971, 0.0
    %1981 = vadd.xlane.f32.xlu0 %v1980
    %v1982 = vpop.xlane.xlu0 %1981
    %v1983 = vsel %vm89, %v1973, 0.0
    %1984 = vadd.xlane.f32.xlu0 %v1983
    %v1985 = vpop.xlane.xlu0 %1984
    %v1986 = vrcp.pop %v1976
    %v1987 = vmul.f32 %v1967, %v1986
    %v1988 = vrcp.pop %v1979
    %v1989 = vmul.f32 %v1969, %v1988
    %v1990 = vrcp.pop %v1982
    %v1991 = vmul.f32 %v1971, %v1990
    %v1992 = vrcp.pop %v1985
    %v1993 = vmul.f32 %v1973, %v1992
    %v1994 = vpack.c.bf16 %v1989, %v1987
    %v1995 = vpack.c.bf16 %v1993, %v1991
    %1996 = vrot.lane.b32.xlu0 %v379, 118
    %v1997 = vpop.permute.xlu0 %1996
    %v2000 = vsel %vm89, %v1994, 0
    %2002 = vmatprep.subr.bf16.mxu0 0
    %2003 = vmatpush1.bf16.msra.mxu0 %v1997
    %2004 = vmatprep.subr.bf16.mxu0 0
    %2005 = vmatpush1.bf16.msra.mxu0 0
    %2006 = vmatprep.subr.bf16.mxu0 0
    %2007 = vmatpush1.bf16.msra.mxu0 0
    %2008 = vmatprep.subr.bf16.mxu0 0
    %2009 = vmatpush1.bf16.msra.mxu0 0
    %2010 = vmatprep.subr.bf16.mxu0 0
    %2011 = vmatpush1.bf16.msra.mxu0 0
    %2012 = vmatprep.subr.bf16.mxu0 0
    %2013 = vmatpush1.bf16.msra.mxu0 0
    %2014 = vmatprep.subr.bf16.mxu0 0
    %2015 = vmatpush1.bf16.msra.mxu0 0
    %2016 = vmatprep.subr.bf16.mxu0 0
    %2017 = vmatpush1.bf16.msra.mxu0 0
    %2018 = vmatprep.subr.bf16.mxu0 0
    %2019 = vmatpush1.bf16.msra.mxu0 0
    %2020 = vmatprep.subr.bf16.mxu0 0
    %2021 = vmatpush1.bf16.msra.mxu0 0
    %2022 = vmatprep.subr.bf16.mxu0 0
    %2023 = vmatpush1.bf16.msra.mxu0 0
    %2024 = vmatprep.subr.bf16.mxu0 0
    %2025 = vmatpush1.bf16.msra.mxu0 0
    %2026 = vmatprep.subr.bf16.mxu0 0
    %2027 = vmatpush1.bf16.msra.mxu0 0
    %2028 = vmatprep.subr.bf16.mxu0 0
    %2029 = vmatpush1.bf16.msra.mxu0 0
    %2030 = vmatprep.subr.bf16.mxu0 0
    %2031 = vmatpush1.bf16.msra.mxu0 0
    %2032 = vmatprep.subr.bf16.mxu0 0
    %2033 = vmatpush1.bf16.msra.mxu0 0
    %2034 = vmatprep.mubr.bf16.mxu0 0
    %2035 = vmatmul.mubr.bf16.gmra.mrb[0].mxu0 %v2000
    %v2036 = vpop.f32.mrb[0].mxu0
    %v2037 = vadd.f32 0.0, %v2036
    %v2038 = vpop.f32.mrb[0].mxu0
    %v2039 = vpop.f32.mrb[0].mxu0
    %v2040 = vadd.f32 0.0, %v2039
    %v2041 = vpop.f32.mrb[0].mxu0
    %2042 = vdwg.mxu0
    %2043 = vrot.lane.b32.xlu0 %v380, 118
    %v2044 = vpop.permute.xlu0 %2043
    %v2047 = vsel %vm89, %v1995, 0
    %2049 = vmatprep.subr.bf16.mxu0 0
    %2050 = vmatpush1.bf16.msra.mxu0 %v2044
    %2051 = vmatprep.subr.bf16.mxu0 0
    %2052 = vmatpush1.bf16.msra.mxu0 0
    %2053 = vmatprep.subr.bf16.mxu0 0
    %2054 = vmatpush1.bf16.msra.mxu0 0
    %2055 = vmatprep.subr.bf16.mxu0 0
    %2056 = vmatpush1.bf16.msra.mxu0 0
    %2057 = vmatprep.subr.bf16.mxu0 0
    %2058 = vmatpush1.bf16.msra.mxu0 0
    %2059 = vmatprep.subr.bf16.mxu0 0
    %2060 = vmatpush1.bf16.msra.mxu0 0
    %2061 = vmatprep.subr.bf16.mxu0 0
    %2062 = vmatpush1.bf16.msra.mxu0 0
    %2063 = vmatprep.subr.bf16.mxu0 0
    %2064 = vmatpush1.bf16.msra.mxu0 0
    %2065 = vmatprep.subr.bf16.mxu0 0
    %2066 = vmatpush1.bf16.msra.mxu0 0
    %2067 = vmatprep.subr.bf16.mxu0 0
    %2068 = vmatpush1.bf16.msra.mxu0 0
    %2069 = vmatprep.subr.bf16.mxu0 0
    %2070 = vmatpush1.bf16.msra.mxu0 0
    %2071 = vmatprep.subr.bf16.mxu0 0
    %2072 = vmatpush1.bf16.msra.mxu0 0
    %2073 = vmatprep.subr.bf16.mxu0 0
    %2074 = vmatpush1.bf16.msra.mxu0 0
    %2075 = vmatprep.subr.bf16.mxu0 0
    %2076 = vmatpush1.bf16.msra.mxu0 0
    %2077 = vmatprep.subr.bf16.mxu0 0
    %2078 = vmatpush1.bf16.msra.mxu0 0
    %2079 = vmatprep.subr.bf16.mxu0 0
    %2080 = vmatpush1.bf16.msra.mxu0 0
    %2081 = vmatprep.mubr.bf16.mxu0 0
    %2082 = vmatmul.mubr.bf16.gmra.mrb[0].mxu0 %v2047
    %v2083 = vpop.f32.mrb[0].mxu0
    %v2084 = vadd.f32 0.0, %v2083
    %v2085 = vpop.f32.mrb[0].mxu0
    %v2086 = vpop.f32.mrb[0].mxu0
    %v2087 = vadd.f32 0.0, %v2086
    %v2088 = vpop.f32.mrb[0].mxu0
    %2089 = vdwg.mxu0
    %v2090 = vpack.c.bf16 %v2040, %v2037
    %v2091 = vpack.c.bf16 %v2087, %v2084
    %v2093 = vunpack.c.l.b16 %v73
    %v2094 = vpack.c.b16 %v2093, %v2093
    %v2095 = vrot.slane %v2094, 1
    %v2097 = vsel %vm229, %v2090, 0
    %v2100 = vsel %vm229, %v2091, 0
    %v2103 = vsel %vm477, %v2095, 0
    %2105 = vmatprep.subr.bf16.mxu0 0
    %2106 = vmatpush1.bf16.msra.mxu0 %v2103
    %2107 = vmatprep.subr.bf16.mxu0 0
    %2108 = vmatpush1.bf16.msra.mxu0 0
    %2109 = vmatprep.subr.bf16.mxu0 0
    %2110 = vmatpush1.bf16.msra.mxu0 0
    %2111 = vmatprep.subr.bf16.mxu0 0
    %2112 = vmatpush1.bf16.msra.mxu0 0
    %2113 = vmatprep.subr.bf16.mxu0 0
    %2114 = vmatpush1.bf16.msra.mxu0 0
    %2115 = vmatprep.subr.bf16.mxu0 0
    %2116 = vmatpush1.bf16.msra.mxu0 0
    %2117 = vmatprep.subr.bf16.mxu0 0
    %2118 = vmatpush1.bf16.msra.mxu0 0
    %2119 = vmatprep.subr.bf16.mxu0 0
    %2120 = vmatpush1.bf16.msra.mxu0 0
    %2121 = vmatprep.subr.bf16.mxu0 0
    %2122 = vmatpush1.bf16.msra.mxu0 0
    %2123 = vmatprep.subr.bf16.mxu0 0
    %2124 = vmatpush1.bf16.msra.mxu0 0
    %2125 = vmatprep.subr.bf16.mxu0 0
    %2126 = vmatpush1.bf16.msra.mxu0 0
    %2127 = vmatprep.subr.bf16.mxu0 0
    %2128 = vmatpush1.bf16.msra.mxu0 0
    %2129 = vmatprep.subr.bf16.mxu0 0
    %2130 = vmatpush1.bf16.msra.mxu0 0
    %2131 = vmatprep.subr.bf16.mxu0 0
    %2132 = vmatpush1.bf16.msra.mxu0 0
    %2133 = vmatprep.subr.bf16.mxu0 0
    %2134 = vmatpush1.bf16.msra.mxu0 0
    %2135 = vmatprep.subr.bf16.mxu0 0
    %2136 = vmatpush1.bf16.msra.mxu0 0
    %2137 = vmatprep.mubr.bf16.mxu0 0
    %2138 = vmatmul.mubr.bf16.gmra.mrb[0].mxu0 %v2097
    %v2139 = vpop.f32.mrb[0].mxu0
    %v2140 = vadd.f32 0.0, %v2139
    %v2141 = vpop.f32.mrb[0].mxu0
    %v2142 = vpop.f32.mrb[0].mxu0
    %v2143 = vadd.f32 0.0, %v2142
    %v2144 = vpop.f32.mrb[0].mxu0
    %2145 = vmatprep.mubr.bf16.mxu0 0
    %2146 = vmatmul.mubr.bf16.gmra.mrb[0].mxu0 %v2100
    %v2147 = vpop.f32.mrb[0].mxu0
    %v2148 = vadd.f32 0.0, %v2147
    %v2149 = vpop.f32.mrb[0].mxu0
    %v2150 = vpop.f32.mrb[0].mxu0
    %v2151 = vadd.f32 0.0, %v2150
    %v2152 = vpop.f32.mrb[0].mxu0
    %2153 = vdwg.mxu0
    %v2154 = vadd.f32 %v1828, %v2140
    %v2155 = vadd.f32 %v1829, %v2143
    %v2156 = vadd.f32 %v1830, %v2148
    %v2157 = vadd.f32 %v1831, %v2151
    %2158 = vrot.lane.b32.xlu0 %v224, 12
    %v2159 = vpop.permute.xlu0 %2158
    %v2161 = vmul.f32 %v131, %v2159
    %v2162 = vmul.f32 %v134, %v2159
    %v2163 = vmul.f32 %v139, %v2159
    %v2164 = vmul.f32 %v142, %v2159
    %2169 = vrot.lane.b32.xlu0 %v2161, 116
    %v2170 = vpop.permute.xlu0 %2169
    %2171 = vrot.lane.b32.xlu0 %v2162, 116
    %v2172 = vpop.permute.xlu0 %2171
    %2173 = vrot.lane.b32.xlu0 %v2163, 116
    %v2174 = vpop.permute.xlu0 %2173
    %2175 = vrot.lane.b32.xlu0 %v2164, 116
    %v2176 = vpop.permute.xlu0 %2175
    %v2181 = vsel %vm229, %v2170, 0.0
    %2182 = vadd.xlane.f32.xlu0 %v2181
    %v2183 = vpop.xlane.xlu0 %2182
    %v2184 = vsel %vm229, %v2172, 0.0
    %2185 = vadd.xlane.f32.xlu0 %v2184
    %v2186 = vpop.xlane.xlu0 %2185
    %v2187 = vsel %vm229, %v2174, 0.0
    %2188 = vadd.xlane.f32.xlu0 %v2187
    %v2189 = vpop.xlane.xlu0 %2188
    %v2190 = vsel %vm229, %v2176, 0.0
    %2191 = vadd.xlane.f32.xlu0 %v2190
    %v2192 = vpop.xlane.xlu0 %2191
    %2193 = vrot.lane.b32.xlu0 %v245, 12
    %v2194 = vpop.permute.xlu0 %2193
    %v2196 = vmul.f32 %v200, %v2194
    %v2197 = vmul.f32 %v203, %v2194
    %v2198 = vmul.f32 %v208, %v2194
    %v2199 = vmul.f32 %v211, %v2194
    %2204 = vrot.lane.b32.xlu0 %v2196, 116
    %v2205 = vpop.permute.xlu0 %2204
    %2206 = vrot.lane.b32.xlu0 %v2197, 116
    %v2207 = vpop.permute.xlu0 %2206
    %2208 = vrot.lane.b32.xlu0 %v2198, 116
    %v2209 = vpop.permute.xlu0 %2208
    %2210 = vrot.lane.b32.xlu0 %v2199, 116
    %v2211 = vpop.permute.xlu0 %2210
    %v2216 = vsel %vm229, %v2205, 0.0
    %2217 = vadd.xlane.f32.xlu0 %v2216
    %v2218 = vpop.xlane.xlu0 %2217
    %v2219 = vsel %vm229, %v2207, 0.0
    %2220 = vadd.xlane.f32.xlu0 %v2219
    %v2221 = vpop.xlane.xlu0 %2220
    %v2222 = vsel %vm229, %v2209, 0.0
    %2223 = vadd.xlane.f32.xlu0 %v2222
    %v2224 = vpop.xlane.xlu0 %2223
    %v2225 = vsel %vm229, %v2211, 0.0
    %2226 = vadd.xlane.f32.xlu0 %v2225
    %v2227 = vpop.xlane.xlu0 %2226
    %v2232 = vlaneseq
    %v2233 = vshrl.u32 %v2232, 7
    %v2234 = vsub.s32 %v267, %v2233
    %v2235 = vrot.slane %v2183, %v2234
    %v2236 = vlaneseq
    %v2237 = vshrl.u32 %v2236, 7
    %v2238 = vsub.s32 %v272, %v2237
    %v2239 = vrot.slane %v2186, %v2238
    %v2240 = vsel %vm277, %v2239, %v2235
    %v2241 = vlaneseq
    %v2242 = vshrl.u32 %v2241, 7
    %v2243 = vsub.s32 %v267, %v2242
    %v2244 = vrot.slane %v2189, %v2243
    %v2245 = vlaneseq
    %v2246 = vshrl.u32 %v2245, 7
    %v2247 = vsub.s32 %v272, %v2246
    %v2248 = vrot.slane %v2192, %v2247
    %v2249 = vsel %vm277, %v2248, %v2244
    %v2250 = vsel %vm289, %v2240, %v2240
    %v2251 = vsel %vm291, %v2240, %v2250
    %v2252 = vsel %vm293, %v2240, %v2251
    %v2253 = vsel %vm295, %v2240, %v2252
    %v2254 = vsel %vm297, %v2240, %v2253
    %v2255 = vsel %vm299, %v2240, %v2254
    %v2256 = vsel %vm289, %v2249, %v2249
    %v2257 = vsel %vm291, %v2249, %v2256
    %v2258 = vsel %vm293, %v2249, %v2257
    %v2259 = vsel %vm295, %v2249, %v2258
    %v2260 = vsel %vm297, %v2249, %v2259
    %v2261 = vsel %vm299, %v2249, %v2260
    %v2264 = vadd.f32 %v2218, %v2255
    %v2265 = vadd.f32 %v2221, %v2255
    %v2266 = vadd.f32 %v2224, %v2261
    %v2267 = vadd.f32 %v2227, %v2261
    %v2268 = vtanh.pop %v2264
    %v2269 = vtanh.pop %v2265
    %v2270 = vtanh.pop %v2266
    %v2271 = vtanh.pop %v2267
    %v2272 = vadd.f32 %v2268, %v322
    %v2273 = vadd.f32 %v2269, %v322
    %v2274 = vadd.f32 %v2270, %v326
    %v2275 = vadd.f32 %v2271, %v326
    %v2276 = vsel %vm89, %v2272, -inf
    %2277 = vmax.xlane.f32.xlu0 %v2276
    %v2278 = vpop.xlane.xlu0 %2277
    %v2279 = vsel %vm89, %v2273, -inf
    %2280 = vmax.xlane.f32.xlu0 %v2279
    %v2281 = vpop.xlane.xlu0 %2280
    %v2282 = vsel %vm89, %v2274, -inf
    %2283 = vmax.xlane.f32.xlu0 %v2282
    %v2284 = vpop.xlane.xlu0 %2283
    %v2285 = vsel %vm89, %v2275, -inf
    %2286 = vmax.xlane.f32.xlu0 %v2285
    %v2287 = vpop.xlane.xlu0 %2286
    %v2288 = vsub.f32 %v2272, %v2278
    %v2289 = vsub.f32 %v2273, %v2281
    %v2290 = vsub.f32 %v2274, %v2284
    %v2291 = vsub.f32 %v2275, %v2287
    %v2292 = vmul.f32 %v2288, 1.442695
    %v2293 = vpow.pop %v2292
    %v2294 = vmul.f32 %v2289, 1.442695
    %v2295 = vpow.pop %v2294
    %v2296 = vmul.f32 %v2290, 1.442695
    %v2297 = vpow.pop %v2296
    %v2298 = vmul.f32 %v2291, 1.442695
    %v2299 = vpow.pop %v2298
    %v2300 = vsel %vm89, %v2293, 0.0
    %2301 = vadd.xlane.f32.xlu0 %v2300
    %v2302 = vpop.xlane.xlu0 %2301
    %v2303 = vsel %vm89, %v2295, 0.0
    %2304 = vadd.xlane.f32.xlu0 %v2303
    %v2305 = vpop.xlane.xlu0 %2304
    %v2306 = vsel %vm89, %v2297, 0.0
    %2307 = vadd.xlane.f32.xlu0 %v2306
    %v2308 = vpop.xlane.xlu0 %2307
    %v2309 = vsel %vm89, %v2299, 0.0
    %2310 = vadd.xlane.f32.xlu0 %v2309
    %v2311 = vpop.xlane.xlu0 %2310
    %v2312 = vrcp.pop %v2302
    %v2313 = vmul.f32 %v2293, %v2312
    %v2314 = vrcp.pop %v2305
    %v2315 = vmul.f32 %v2295, %v2314
    %v2316 = vrcp.pop %v2308
    %v2317 = vmul.f32 %v2297, %v2316
    %v2318 = vrcp.pop %v2311
    %v2319 = vmul.f32 %v2299, %v2318
    %v2320 = vpack.c.bf16 %v2315, %v2313
    %v2321 = vpack.c.bf16 %v2319, %v2317
    %2322 = vrot.lane.b32.xlu0 %v379, 116
    %v2323 = vpop.permute.xlu0 %2322
    %v2326 = vsel %vm89, %v2320, 0
    %2328 = vmatprep.subr.bf16.mxu0 0
    %2329 = vmatpush1.bf16.msra.mxu0 %v2323
    %2330 = vmatprep.subr.bf16.mxu0 0
    %2331 = vmatpush1.bf16.msra.mxu0 0
    %2332 = vmatprep.subr.bf16.mxu0 0
    %2333 = vmatpush1.bf16.msra.mxu0 0
    %2334 = vmatprep.subr.bf16.mxu0 0
    %2335 = vmatpush1.bf16.msra.mxu0 0
    %2336 = vmatprep.subr.bf16.mxu0 0
    %2337 = vmatpush1.bf16.msra.mxu0 0
    %2338 = vmatprep.subr.bf16.mxu0 0
    %2339 = vmatpush1.bf16.msra.mxu0 0
    %2340 = vmatprep.subr.bf16.mxu0 0
    %2341 = vmatpush1.bf16.msra.mxu0 0
    %2342 = vmatprep.subr.bf16.mxu0 0
    %2343 = vmatpush1.bf16.msra.mxu0 0
    %2344 = vmatprep.subr.bf16.mxu0 0
    %2345 = vmatpush1.bf16.msra.mxu0 0
    %2346 = vmatprep.subr.bf16.mxu0 0
    %2347 = vmatpush1.bf16.msra.mxu0 0
    %2348 = vmatprep.subr.bf16.mxu0 0
    %2349 = vmatpush1.bf16.msra.mxu0 0
    %2350 = vmatprep.subr.bf16.mxu0 0
    %2351 = vmatpush1.bf16.msra.mxu0 0
    %2352 = vmatprep.subr.bf16.mxu0 0
    %2353 = vmatpush1.bf16.msra.mxu0 0
    %2354 = vmatprep.subr.bf16.mxu0 0
    %2355 = vmatpush1.bf16.msra.mxu0 0
    %2356 = vmatprep.subr.bf16.mxu0 0
    %2357 = vmatpush1.bf16.msra.mxu0 0
    %2358 = vmatprep.subr.bf16.mxu0 0
    %2359 = vmatpush1.bf16.msra.mxu0 0
    %2360 = vmatprep.mubr.bf16.mxu0 0
    %2361 = vmatmul.mubr.bf16.gmra.mrb[0].mxu0 %v2326
    %v2362 = vpop.f32.mrb[0].mxu0
    %v2363 = vadd.f32 0.0, %v2362
    %v2364 = vpop.f32.mrb[0].mxu0
    %v2365 = vpop.f32.mrb[0].mxu0
    %v2366 = vadd.f32 0.0, %v2365
    %v2367 = vpop.f32.mrb[0].mxu0
    %2368 = vdwg.mxu0
    %2369 = vrot.lane.b32.xlu0 %v380, 116
    %v2370 = vpop.permute.xlu0 %2369
    %v2373 = vsel %vm89, %v2321, 0
    %2375 = vmatprep.subr.bf16.mxu0 0
    %2376 = vmatpush1.bf16.msra.mxu0 %v2370
    %2377 = vmatprep.subr.bf16.mxu0 0
    %2378 = vmatpush1.bf16.msra.mxu0 0
    %2379 = vmatprep.subr.bf16.mxu0 0
    %2380 = vmatpush1.bf16.msra.mxu0 0
    %2381 = vmatprep.subr.bf16.mxu0 0
    %2382 = vmatpush1.bf16.msra.mxu0 0
    %2383 = vmatprep.subr.bf16.mxu0 0
    %2384 = vmatpush1.bf16.msra.mxu0 0
    %2385 = vmatprep.subr.bf16.mxu0 0
    %2386 = vmatpush1.bf16.msra.mxu0 0
    %2387 = vmatprep.subr.bf16.mxu0 0
    %2388 = vmatpush1.bf16.msra.mxu0 0
    %2389 = vmatprep.subr.bf16.mxu0 0
    %2390 = vmatpush1.bf16.msra.mxu0 0
    %2391 = vmatprep.subr.bf16.mxu0 0
    %2392 = vmatpush1.bf16.msra.mxu0 0
    %2393 = vmatprep.subr.bf16.mxu0 0
    %2394 = vmatpush1.bf16.msra.mxu0 0
    %2395 = vmatprep.subr.bf16.mxu0 0
    %2396 = vmatpush1.bf16.msra.mxu0 0
    %2397 = vmatprep.subr.bf16.mxu0 0
    %2398 = vmatpush1.bf16.msra.mxu0 0
    %2399 = vmatprep.subr.bf16.mxu0 0
    %2400 = vmatpush1.bf16.msra.mxu0 0
    %2401 = vmatprep.subr.bf16.mxu0 0
    %2402 = vmatpush1.bf16.msra.mxu0 0
    %2403 = vmatprep.subr.bf16.mxu0 0
    %2404 = vmatpush1.bf16.msra.mxu0 0
    %2405 = vmatprep.subr.bf16.mxu0 0
    %2406 = vmatpush1.bf16.msra.mxu0 0
    %2407 = vmatprep.mubr.bf16.mxu0 0
    %2408 = vmatmul.mubr.bf16.gmra.mrb[0].mxu0 %v2373
    %v2409 = vpop.f32.mrb[0].mxu0
    %v2410 = vadd.f32 0.0, %v2409
    %v2411 = vpop.f32.mrb[0].mxu0
    %v2412 = vpop.f32.mrb[0].mxu0
    %v2413 = vadd.f32 0.0, %v2412
    %v2414 = vpop.f32.mrb[0].mxu0
    %2415 = vdwg.mxu0
    %v2416 = vpack.c.bf16 %v2366, %v2363
    %v2417 = vpack.c.bf16 %v2413, %v2410
    %v2418 = vrot.slane %v2094, 2
    %v2420 = vsel %vm229, %v2416, 0
    %v2423 = vsel %vm229, %v2417, 0
    %v2426 = vsel %vm477, %v2418, 0
    %2428 = vmatprep.subr.bf16.mxu0 0
    %2429 = vmatpush1.bf16.msra.mxu0 %v2426
    %2430 = vmatprep.subr.bf16.mxu0 0
    %2431 = vmatpush1.bf16.msra.mxu0 0
    %2432 = vmatprep.subr.bf16.mxu0 0
    %2433 = vmatpush1.bf16.msra.mxu0 0
    %2434 = vmatprep.subr.bf16.mxu0 0
    %2435 = vmatpush1.bf16.msra.mxu0 0
    %2436 = vmatprep.subr.bf16.mxu0 0
    %2437 = vmatpush1.bf16.msra.mxu0 0
    %2438 = vmatprep.subr.bf16.mxu0 0
    %2439 = vmatpush1.bf16.msra.mxu0 0
    %2440 = vmatprep.subr.bf16.mxu0 0
    %2441 = vmatpush1.bf16.msra.mxu0 0
    %2442 = vmatprep.subr.bf16.mxu0 0
    %2443 = vmatpush1.bf16.msra.mxu0 0
    %2444 = vmatprep.subr.bf16.mxu0 0
    %2445 = vmatpush1.bf16.msra.mxu0 0
    %2446 = vmatprep.subr.bf16.mxu0 0
    %2447 = vmatpush1.bf16.msra.mxu0 0
    %2448 = vmatprep.subr.bf16.mxu0 0
    %2449 = vmatpush1.bf16.msra.mxu0 0
    %2450 = vmatprep.subr.bf16.mxu0 0
    %2451 = vmatpush1.bf16.msra.mxu0 0
    %2452 = vmatprep.subr.bf16.mxu0 0
    %2453 = vmatpush1.bf16.msra.mxu0 0
    %2454 = vmatprep.subr.bf16.mxu0 0
    %2455 = vmatpush1.bf16.msra.mxu0 0
    %2456 = vmatprep.subr.bf16.mxu0 0
    %2457 = vmatpush1.bf16.msra.mxu0 0
    %2458 = vmatprep.subr.bf16.mxu0 0
    %2459 = vmatpush1.bf16.msra.mxu0 0
    %2460 = vmatprep.mubr.bf16.mxu0 0
    %2461 = vmatmul.mubr.bf16.gmra.mrb[0].mxu0 %v2420
    %v2462 = vpop.f32.mrb[0].mxu0
    %v2463 = vadd.f32 0.0, %v2462
    %v2464 = vpop.f32.mrb[0].mxu0
    %v2465 = vpop.f32.mrb[0].mxu0
    %v2466 = vadd.f32 0.0, %v2465
    %v2467 = vpop.f32.mrb[0].mxu0
    %2468 = vmatprep.mubr.bf16.mxu0 0
    %2469 = vmatmul.mubr.bf16.gmra.mrb[0].mxu0 %v2423
    %v2470 = vpop.f32.mrb[0].mxu0
    %v2471 = vadd.f32 0.0, %v2470
    %v2472 = vpop.f32.mrb[0].mxu0
    %v2473 = vpop.f32.mrb[0].mxu0
    %v2474 = vadd.f32 0.0, %v2473
    %v2475 = vpop.f32.mrb[0].mxu0
    %2476 = vdwg.mxu0
    %v2477 = vadd.f32 %v2154, %v2463
    %v2478 = vadd.f32 %v2155, %v2466
    %v2479 = vadd.f32 %v2156, %v2471
    %v2480 = vadd.f32 %v2157, %v2474
    %2481 = vrot.lane.b32.xlu0 %v224, 14
    %v2482 = vpop.permute.xlu0 %2481
    %v2484 = vmul.f32 %v131, %v2482
    %v2485 = vmul.f32 %v134, %v2482
    %v2486 = vmul.f32 %v139, %v2482
    %v2487 = vmul.f32 %v142, %v2482
    %2492 = vrot.lane.b32.xlu0 %v2484, 114
    %v2493 = vpop.permute.xlu0 %2492
    %2494 = vrot.lane.b32.xlu0 %v2485, 114
    %v2495 = vpop.permute.xlu0 %2494
    %2496 = vrot.lane.b32.xlu0 %v2486, 114
    %v2497 = vpop.permute.xlu0 %2496
    %2498 = vrot.lane.b32.xlu0 %v2487, 114
    %v2499 = vpop.permute.xlu0 %2498
    %v2504 = vsel %vm229, %v2493, 0.0
    %2505 = vadd.xlane.f32.xlu0 %v2504
    %v2506 = vpop.xlane.xlu0 %2505
    %v2507 = vsel %vm229, %v2495, 0.0
    %2508 = vadd.xlane.f32.xlu0 %v2507
    %v2509 = vpop.xlane.xlu0 %2508
    %v2510 = vsel %vm229, %v2497, 0.0
    %2511 = vadd.xlane.f32.xlu0 %v2510
    %v2512 = vpop.xlane.xlu0 %2511
    %v2513 = vsel %vm229, %v2499, 0.0
    %2514 = vadd.xlane.f32.xlu0 %v2513
    %v2515 = vpop.xlane.xlu0 %2514
    %2516 = vrot.lane.b32.xlu0 %v245, 14
    %v2517 = vpop.permute.xlu0 %2516
    %v2519 = vmul.f32 %v200, %v2517
    %v2520 = vmul.f32 %v203, %v2517
    %v2521 = vmul.f32 %v208, %v2517
    %v2522 = vmul.f32 %v211, %v2517
    %2527 = vrot.lane.b32.xlu0 %v2519, 114
    %v2528 = vpop.permute.xlu0 %2527
    %2529 = vrot.lane.b32.xlu0 %v2520, 114
    %v2530 = vpop.permute.xlu0 %2529
    %2531 = vrot.lane.b32.xlu0 %v2521, 114
    %v2532 = vpop.permute.xlu0 %2531
    %2533 = vrot.lane.b32.xlu0 %v2522, 114
    %v2534 = vpop.permute.xlu0 %2533
    %v2539 = vsel %vm229, %v2528, 0.0
    %2540 = vadd.xlane.f32.xlu0 %v2539
    %v2541 = vpop.xlane.xlu0 %2540
    %v2542 = vsel %vm229, %v2530, 0.0
    %2543 = vadd.xlane.f32.xlu0 %v2542
    %v2544 = vpop.xlane.xlu0 %2543
    %v2545 = vsel %vm229, %v2532, 0.0
    %2546 = vadd.xlane.f32.xlu0 %v2545
    %v2547 = vpop.xlane.xlu0 %2546
    %v2548 = vsel %vm229, %v2534, 0.0
    %2549 = vadd.xlane.f32.xlu0 %v2548
    %v2550 = vpop.xlane.xlu0 %2549
    %v2555 = vlaneseq
    %v2556 = vshrl.u32 %v2555, 7
    %v2557 = vsub.s32 %v267, %v2556
    %v2558 = vrot.slane %v2506, %v2557
    %v2559 = vlaneseq
    %v2560 = vshrl.u32 %v2559, 7
    %v2561 = vsub.s32 %v272, %v2560
    %v2562 = vrot.slane %v2509, %v2561
    %v2563 = vsel %vm277, %v2562, %v2558
    %v2564 = vlaneseq
    %v2565 = vshrl.u32 %v2564, 7
    %v2566 = vsub.s32 %v267, %v2565
    %v2567 = vrot.slane %v2512, %v2566
    %v2568 = vlaneseq
    %v2569 = vshrl.u32 %v2568, 7
    %v2570 = vsub.s32 %v272, %v2569
    %v2571 = vrot.slane %v2515, %v2570
    %v2572 = vsel %vm277, %v2571, %v2567
    %v2573 = vsel %vm289, %v2563, %v2563
    %v2574 = vsel %vm291, %v2563, %v2573
    %v2575 = vsel %vm293, %v2563, %v2574
    %v2576 = vsel %vm295, %v2563, %v2575
    %v2577 = vsel %vm297, %v2563, %v2576
    %v2578 = vsel %vm299, %v2563, %v2577
    %v2579 = vsel %vm289, %v2572, %v2572
    %v2580 = vsel %vm291, %v2572, %v2579
    %v2581 = vsel %vm293, %v2572, %v2580
    %v2582 = vsel %vm295, %v2572, %v2581
    %v2583 = vsel %vm297, %v2572, %v2582
    %v2584 = vsel %vm299, %v2572, %v2583
    %v2587 = vadd.f32 %v2541, %v2578
    %v2588 = vadd.f32 %v2544, %v2578
    %v2589 = vadd.f32 %v2547, %v2584
    %v2590 = vadd.f32 %v2550, %v2584
    %v2591 = vtanh.pop %v2587
    %v2592 = vtanh.pop %v2588
    %v2593 = vtanh.pop %v2589
    %v2594 = vtanh.pop %v2590
    %v2595 = vadd.f32 %v2591, %v322
    %v2596 = vadd.f32 %v2592, %v322
    %v2597 = vadd.f32 %v2593, %v326
    %v2598 = vadd.f32 %v2594, %v326
    %v2599 = vsel %vm89, %v2595, -inf
    %2600 = vmax.xlane.f32.xlu0 %v2599
    %v2601 = vpop.xlane.xlu0 %2600
    %v2602 = vsel %vm89, %v2596, -inf
    %2603 = vmax.xlane.f32.xlu0 %v2602
    %v2604 = vpop.xlane.xlu0 %2603
    %v2605 = vsel %vm89, %v2597, -inf
    %2606 = vmax.xlane.f32.xlu0 %v2605
    %v2607 = vpop.xlane.xlu0 %2606
    %v2608 = vsel %vm89, %v2598, -inf
    %2609 = vmax.xlane.f32.xlu0 %v2608
    %v2610 = vpop.xlane.xlu0 %2609
    %v2611 = vsub.f32 %v2595, %v2601
    %v2612 = vsub.f32 %v2596, %v2604
    %v2613 = vsub.f32 %v2597, %v2607
    %v2614 = vsub.f32 %v2598, %v2610
    %v2615 = vmul.f32 %v2611, 1.442695
    %v2616 = vpow.pop %v2615
    %v2617 = vmul.f32 %v2612, 1.442695
    %v2618 = vpow.pop %v2617
    %v2619 = vmul.f32 %v2613, 1.442695
    %v2620 = vpow.pop %v2619
    %v2621 = vmul.f32 %v2614, 1.442695
    %v2622 = vpow.pop %v2621
    %v2623 = vsel %vm89, %v2616, 0.0
    %2624 = vadd.xlane.f32.xlu0 %v2623
    %v2625 = vpop.xlane.xlu0 %2624
    %v2626 = vsel %vm89, %v2618, 0.0
    %2627 = vadd.xlane.f32.xlu0 %v2626
    %v2628 = vpop.xlane.xlu0 %2627
    %v2629 = vsel %vm89, %v2620, 0.0
    %2630 = vadd.xlane.f32.xlu0 %v2629
    %v2631 = vpop.xlane.xlu0 %2630
    %v2632 = vsel %vm89, %v2622, 0.0
    %2633 = vadd.xlane.f32.xlu0 %v2632
    %v2634 = vpop.xlane.xlu0 %2633
    %v2635 = vrcp.pop %v2625
    %v2636 = vmul.f32 %v2616, %v2635
    %v2637 = vrcp.pop %v2628
    %v2638 = vmul.f32 %v2618, %v2637
    %v2639 = vrcp.pop %v2631
    %v2640 = vmul.f32 %v2620, %v2639
    %v2641 = vrcp.pop %v2634
    %v2642 = vmul.f32 %v2622, %v2641
    %v2643 = vpack.c.bf16 %v2638, %v2636
    %v2644 = vpack.c.bf16 %v2642, %v2640
    %2645 = vrot.lane.b32.xlu0 %v379, 114
    %v2646 = vpop.permute.xlu0 %2645
    %v2649 = vsel %vm89, %v2643, 0
    %2651 = vmatprep.subr.bf16.mxu0 0
    %2652 = vmatpush1.bf16.msra.mxu0 %v2646
    %2653 = vmatprep.subr.bf16.mxu0 0
    %2654 = vmatpush1.bf16.msra.mxu0 0
    %2655 = vmatprep.subr.bf16.mxu0 0
    %2656 = vmatpush1.bf16.msra.mxu0 0
    %2657 = vmatprep.subr.bf16.mxu0 0
    %2658 = vmatpush1.bf16.msra.mxu0 0
    %2659 = vmatprep.subr.bf16.mxu0 0
    %2660 = vmatpush1.bf16.msra.mxu0 0
    %2661 = vmatprep.subr.bf16.mxu0 0
    %2662 = vmatpush1.bf16.msra.mxu0 0
    %2663 = vmatprep.subr.bf16.mxu0 0
    %2664 = vmatpush1.bf16.msra.mxu0 0
    %2665 = vmatprep.subr.bf16.mxu0 0
    %2666 = vmatpush1.bf16.msra.mxu0 0
    %2667 = vmatprep.subr.bf16.mxu0 0
    %2668 = vmatpush1.bf16.msra.mxu0 0
    %2669 = vmatprep.subr.bf16.mxu0 0
    %2670 = vmatpush1.bf16.msra.mxu0 0
    %2671 = vmatprep.subr.bf16.mxu0 0
    %2672 = vmatpush1.bf16.msra.mxu0 0
    %2673 = vmatprep.subr.bf16.mxu0 0
    %2674 = vmatpush1.bf16.msra.mxu0 0
    %2675 = vmatprep.subr.bf16.mxu0 0
    %2676 = vmatpush1.bf16.msra.mxu0 0
    %2677 = vmatprep.subr.bf16.mxu0 0
    %2678 = vmatpush1.bf16.msra.mxu0 0
    %2679 = vmatprep.subr.bf16.mxu0 0
    %2680 = vmatpush1.bf16.msra.mxu0 0
    %2681 = vmatprep.subr.bf16.mxu0 0
    %2682 = vmatpush1.bf16.msra.mxu0 0
    %2683 = vmatprep.mubr.bf16.mxu0 0
    %2684 = vmatmul.mubr.bf16.gmra.mrb[0].mxu0 %v2649
    %v2685 = vpop.f32.mrb[0].mxu0
    %v2686 = vadd.f32 0.0, %v2685
    %v2687 = vpop.f32.mrb[0].mxu0
    %v2688 = vpop.f32.mrb[0].mxu0
    %v2689 = vadd.f32 0.0, %v2688
    %v2690 = vpop.f32.mrb[0].mxu0
    %2691 = vdwg.mxu0
    %2692 = vrot.lane.b32.xlu0 %v380, 114
    %v2693 = vpop.permute.xlu0 %2692
    %v2696 = vsel %vm89, %v2644, 0
    %2698 = vmatprep.subr.bf16.mxu0 0
    %2699 = vmatpush1.bf16.msra.mxu0 %v2693
    %2700 = vmatprep.subr.bf16.mxu0 0
    %2701 = vmatpush1.bf16.msra.mxu0 0
    %2702 = vmatprep.subr.bf16.mxu0 0
    %2703 = vmatpush1.bf16.msra.mxu0 0
    %2704 = vmatprep.subr.bf16.mxu0 0
    %2705 = vmatpush1.bf16.msra.mxu0 0
    %2706 = vmatprep.subr.bf16.mxu0 0
    %2707 = vmatpush1.bf16.msra.mxu0 0
    %2708 = vmatprep.subr.bf16.mxu0 0
    %2709 = vmatpush1.bf16.msra.mxu0 0
    %2710 = vmatprep.subr.bf16.mxu0 0
    %2711 = vmatpush1.bf16.msra.mxu0 0
    %2712 = vmatprep.subr.bf16.mxu0 0
    %2713 = vmatpush1.bf16.msra.mxu0 0
    %2714 = vmatprep.subr.bf16.mxu0 0
    %2715 = vmatpush1.bf16.msra.mxu0 0
    %2716 = vmatprep.subr.bf16.mxu0 0
    %2717 = vmatpush1.bf16.msra.mxu0 0
    %2718 = vmatprep.subr.bf16.mxu0 0
    %2719 = vmatpush1.bf16.msra.mxu0 0
    %2720 = vmatprep.subr.bf16.mxu0 0
    %2721 = vmatpush1.bf16.msra.mxu0 0
    %2722 = vmatprep.subr.bf16.mxu0 0
    %2723 = vmatpush1.bf16.msra.mxu0 0
    %2724 = vmatprep.subr.bf16.mxu0 0
    %2725 = vmatpush1.bf16.msra.mxu0 0
    %2726 = vmatprep.subr.bf16.mxu0 0
    %2727 = vmatpush1.bf16.msra.mxu0 0
    %2728 = vmatprep.subr.bf16.mxu0 0
    %2729 = vmatpush1.bf16.msra.mxu0 0
    %2730 = vmatprep.mubr.bf16.mxu0 0
    %2731 = vmatmul.mubr.bf16.gmra.mrb[0].mxu0 %v2696
    %v2732 = vpop.f32.mrb[0].mxu0
    %v2733 = vadd.f32 0.0, %v2732
    %v2734 = vpop.f32.mrb[0].mxu0
    %v2735 = vpop.f32.mrb[0].mxu0
    %v2736 = vadd.f32 0.0, %v2735
    %v2737 = vpop.f32.mrb[0].mxu0
    %2738 = vdwg.mxu0
    %v2739 = vpack.c.bf16 %v2689, %v2686
    %v2740 = vpack.c.bf16 %v2736, %v2733
    %v2741 = vrot.slane %v2094, 3
    %v2743 = vsel %vm229, %v2739, 0
    %v2746 = vsel %vm229, %v2740, 0
    %v2749 = vsel %vm477, %v2741, 0
    %2751 = vmatprep.subr.bf16.mxu0 0
    %2752 = vmatpush1.bf16.msra.mxu0 %v2749
    %2753 = vmatprep.subr.bf16.mxu0 0
    %2754 = vmatpush1.bf16.msra.mxu0 0
    %2755 = vmatprep.subr.bf16.mxu0 0
    %2756 = vmatpush1.bf16.msra.mxu0 0
    %2757 = vmatprep.subr.bf16.mxu0 0
    %2758 = vmatpush1.bf16.msra.mxu0 0
    %2759 = vmatprep.subr.bf16.mxu0 0
    %2760 = vmatpush1.bf16.msra.mxu0 0
    %2761 = vmatprep.subr.bf16.mxu0 0
    %2762 = vmatpush1.bf16.msra.mxu0 0
    %2763 = vmatprep.subr.bf16.mxu0 0
    %2764 = vmatpush1.bf16.msra.mxu0 0
    %2765 = vmatprep.subr.bf16.mxu0 0
    %2766 = vmatpush1.bf16.msra.mxu0 0
    %2767 = vmatprep.subr.bf16.mxu0 0
    %2768 = vmatpush1.bf16.msra.mxu0 0
    %2769 = vmatprep.subr.bf16.mxu0 0
    %2770 = vmatpush1.bf16.msra.mxu0 0
    %2771 = vmatprep.subr.bf16.mxu0 0
    %2772 = vmatpush1.bf16.msra.mxu0 0
    %2773 = vmatprep.subr.bf16.mxu0 0
    %2774 = vmatpush1.bf16.msra.mxu0 0
    %2775 = vmatprep.subr.bf16.mxu0 0
    %2776 = vmatpush1.bf16.msra.mxu0 0
    %2777 = vmatprep.subr.bf16.mxu0 0
    %2778 = vmatpush1.bf16.msra.mxu0 0
    %2779 = vmatprep.subr.bf16.mxu0 0
    %2780 = vmatpush1.bf16.msra.mxu0 0
    %2781 = vmatprep.subr.bf16.mxu0 0
    %2782 = vmatpush1.bf16.msra.mxu0 0
    %2783 = vmatprep.mubr.bf16.mxu0 0
    %2784 = vmatmul.mubr.bf16.gmra.mrb[0].mxu0 %v2743
    %v2785 = vpop.f32.mrb[0].mxu0
    %v2786 = vadd.f32 0.0, %v2785
    %v2787 = vpop.f32.mrb[0].mxu0
    %v2788 = vpop.f32.mrb[0].mxu0
    %v2789 = vadd.f32 0.0, %v2788
    %v2790 = vpop.f32.mrb[0].mxu0
    %2791 = vmatprep.mubr.bf16.mxu0 0
    %2792 = vmatmul.mubr.bf16.gmra.mrb[0].mxu0 %v2746
    %v2793 = vpop.f32.mrb[0].mxu0
    %v2794 = vadd.f32 0.0, %v2793
    %v2795 = vpop.f32.mrb[0].mxu0
    %v2796 = vpop.f32.mrb[0].mxu0
    %v2797 = vadd.f32 0.0, %v2796
    %v2798 = vpop.f32.mrb[0].mxu0
    %2799 = vdwg.mxu0
    %v2800 = vadd.f32 %v2477, %v2786
    %v2801 = vadd.f32 %v2478, %v2789
    %v2802 = vadd.f32 %v2479, %v2794
    %v2803 = vadd.f32 %v2480, %v2797
    %v2804 = vld [vmem:[%s3] sm:$0xff]
    %v2805 = vld [vmem:[%s3 + $0x8] sm:$0xff]
    %v2806 = vld [vmem:[%s3 + $0x10] sm:$0xff]
    %v2807 = vld [vmem:[%s3 + $0x18] sm:$0xff]
    %2809 = vset.pattern.permute.xlu0 0
    %2810 = vperm.xlu0 %2809, %v2804
    %v2811 = vpop.permute.xlu0 %2810
    %2814 = vset.pattern.permute.xlu0 0
    %2815 = vperm.xlu0 %2814, %v2805
    %v2816 = vpop.permute.xlu0 %2815
    %2819 = vset.pattern.permute.xlu0 0
    %2820 = vperm.xlu0 %2819, %v2806
    %v2821 = vpop.permute.xlu0 %2820
    %2824 = vset.pattern.permute.xlu0 0
    %2825 = vperm.xlu0 %2824, %v2807
    %v2826 = vpop.permute.xlu0 %2825
    %v2828 = vmul.f32 %v2800, %v2811
    %v2829 = vmul.f32 %v2801, %v2816
    %v2830 = vmul.f32 %v2802, %v2821
    %v2831 = vmul.f32 %v2803, %v2826
    %v2832 = vsel %vm89, %v2828, 0.0
    %v2833 = vsel %vm89, %v2829, 0.0
    %v2834 = vadd.f32 %v2832, %v2833
    %v2835 = vrot.slane %v2834, 4
    %v2836 = vadd.f32 %v2834, %v2835
    %v2837 = vrot.slane %v2836, 2
    %v2838 = vadd.f32 %v2836, %v2837
    %v2839 = vrot.slane %v2838, 1
    %v2840 = vadd.f32 %v2838, %v2839
    %v2841 = vsel %vm89, %v2830, 0.0
    %v2842 = vsel %vm89, %v2831, 0.0
    %v2843 = vadd.f32 %v2841, %v2842
    %v2844 = vrot.slane %v2843, 4
    %v2845 = vadd.f32 %v2843, %v2844
    %v2846 = vrot.slane %v2845, 2
    %v2847 = vadd.f32 %v2845, %v2846
    %v2848 = vrot.slane %v2847, 1
    %v2849 = vadd.f32 %v2847, %v2848
    %v2850 = vld [vmem:[%s4] sm:$0x3]
    %2852 = vset.pattern.permute.xlu0 0
    %2853 = vperm.xlu0 %2852, %v2850
    %v2854 = vpop.permute.xlu0 %2853
    %v2855 = vrot.slane %v2854, 1
    %v2858 = vrcp.pop %v2854
    %v2859 = vmul.f32 %v2840, %v2858
    %v2860 = vrcp.pop %v2855
    %v2861 = vmul.f32 %v2849, %v2860
    %v2862 = vld [vmem:[%s14] sm:$0xf]
    %v2863 = vld [vmem:[%s14 + $0x4] sm:$0xf]
    %v2864 = vld [vmem:[%s14 + $0x8] sm:$0xf]
    %v2865 = vld [vmem:[%s14 + $0xc] sm:$0xf]
    %v2866 = vld [vmem:[%s14 + $0x10] sm:$0xf]
    %v2867 = vld [vmem:[%s14 + $0x14] sm:$0xf]
    %v2868 = vld [vmem:[%s5] sm:$0x3]
    %v2869 = vpack.c.bf16 %v2868, %v2868
    %v2870 = vpack.c.bf16 %v2859, %v2859
    %v2871 = vpack.c.bf16 %v2861, %v2861
    %v2874 = vunpack.c.l.b16 %v2870
    %v2875 = vunpack.c.l.b16 %v2871
    %v2876 = vrot.slane %v2875, 7
    %v2877 = vsel %vm288, %v2876, %v2874
    %v2878 = vpack.c.b16 %v2877, %v2877
    %v2881 = vunpack.c.l.b16 %v2864
    %v2882 = vunpack.c.l.b16 %v2865
    %v2883 = vpack.c.b16 %v2882, %v2881
    %v2886 = vsel %vm89, %v2878, 0
    %2888 = vmatprep.subr.bf16.mxu0 0
    %2889 = vmatpush1.bf16.msra.mxu0 %v2883
    %2890 = vmatprep.subr.bf16.mxu0 0
    %2891 = vmatpush1.bf16.msra.mxu0 0
    %2892 = vmatprep.subr.bf16.mxu0 0
    %2893 = vmatpush1.bf16.msra.mxu0 0
    %2894 = vmatprep.subr.bf16.mxu0 0
    %2895 = vmatpush1.bf16.msra.mxu0 0
    %2896 = vmatprep.subr.bf16.mxu0 0
    %2897 = vmatpush1.bf16.msra.mxu0 0
    %2898 = vmatprep.subr.bf16.mxu0 0
    %2899 = vmatpush1.bf16.msra.mxu0 0
    %2900 = vmatprep.subr.bf16.mxu0 0
    %2901 = vmatpush1.bf16.msra.mxu0 0
    %2902 = vmatprep.subr.bf16.mxu0 0
    %2903 = vmatpush1.bf16.msra.mxu0 0
    %2904 = vmatprep.subr.bf16.mxu0 0
    %2905 = vmatpush1.bf16.msra.mxu0 0
    %2906 = vmatprep.subr.bf16.mxu0 0
    %2907 = vmatpush1.bf16.msra.mxu0 0
    %2908 = vmatprep.subr.bf16.mxu0 0
    %2909 = vmatpush1.bf16.msra.mxu0 0
    %2910 = vmatprep.subr.bf16.mxu0 0
    %2911 = vmatpush1.bf16.msra.mxu0 0
    %2912 = vmatprep.subr.bf16.mxu0 0
    %2913 = vmatpush1.bf16.msra.mxu0 0
    %2914 = vmatprep.subr.bf16.mxu0 0
    %2915 = vmatpush1.bf16.msra.mxu0 0
    %2916 = vmatprep.subr.bf16.mxu0 0
    %2917 = vmatpush1.bf16.msra.mxu0 0
    %2918 = vmatprep.subr.bf16.mxu0 0
    %2919 = vmatpush1.bf16.msra.mxu0 0
    %2920 = vmatprep.mubr.bf16.mxu0 0
    %2921 = vmatmul.mubr.bf16.gmra.mrb[0].mxu0 %v2886
    %v2922 = vpop.f32.mrb[0].mxu0
    %v2923 = vadd.f32 0.0, %v2922
    %v2924 = vpop.f32.mrb[0].mxu0
    %v2925 = vpop.f32.mrb[0].mxu0
    %v2926 = vpop.f32.mrb[0].mxu0
    %2927 = vdwg.mxu0
    %v2930 = vunpack.c.l.b16 %v2862
    %v2931 = vunpack.c.l.b16 %v2863
    %v2932 = vpack.c.b16 %v2931, %v2930
    %v2935 = vsel %vm89, %v2869, 0
    %2937 = vmatprep.subr.bf16.mxu0 0
    %2938 = vmatpush1.bf16.msra.mxu0 %v2932
    %2939 = vmatprep.subr.bf16.mxu0 0
    %2940 = vmatpush1.bf16.msra.mxu0 0
    %2941 = vmatprep.subr.bf16.mxu0 0
    %2942 = vmatpush1.bf16.msra.mxu0 0
    %2943 = vmatprep.subr.bf16.mxu0 0
    %2944 = vmatpush1.bf16.msra.mxu0 0
    %2945 = vmatprep.subr.bf16.mxu0 0
    %2946 = vmatpush1.bf16.msra.mxu0 0
    %2947 = vmatprep.subr.bf16.mxu0 0
    %2948 = vmatpush1.bf16.msra.mxu0 0
    %2949 = vmatprep.subr.bf16.mxu0 0
    %2950 = vmatpush1.bf16.msra.mxu0 0
    %2951 = vmatprep.subr.bf16.mxu0 0
    %2952 = vmatpush1.bf16.msra.mxu0 0
    %2953 = vmatprep.subr.bf16.mxu0 0
    %2954 = vmatpush1.bf16.msra.mxu0 0
    %2955 = vmatprep.subr.bf16.mxu0 0
    %2956 = vmatpush1.bf16.msra.mxu0 0
    %2957 = vmatprep.subr.bf16.mxu0 0
    %2958 = vmatpush1.bf16.msra.mxu0 0
    %2959 = vmatprep.subr.bf16.mxu0 0
    %2960 = vmatpush1.bf16.msra.mxu0 0
    %2961 = vmatprep.subr.bf16.mxu0 0
    %2962 = vmatpush1.bf16.msra.mxu0 0
    %2963 = vmatprep.subr.bf16.mxu0 0
    %2964 = vmatpush1.bf16.msra.mxu0 0
    %2965 = vmatprep.subr.bf16.mxu0 0
    %2966 = vmatpush1.bf16.msra.mxu0 0
    %2967 = vmatprep.subr.bf16.mxu0 0
    %2968 = vmatpush1.bf16.msra.mxu0 0
    %2969 = vmatprep.mubr.bf16.mxu0 0
    %2970 = vmatmul.mubr.bf16.gmra.mrb[0].mxu0 %v2935
    %v2971 = vpop.f32.mrb[0].mxu0
    %v2972 = vadd.f32 %v2923, %v2971
    %v2973 = vpop.f32.mrb[0].mxu0
    %v2974 = vpop.f32.mrb[0].mxu0
    %v2975 = vpop.f32.mrb[0].mxu0
    %2976 = vdwg.mxu0
    %v2977 = vld [vmem:[%s6] sm:$0x3]
    %v2978 = vpack.c.bf16 %v2977, %v2977
    %v2981 = vunpack.c.l.b16 %v2866
    %v2982 = vunpack.c.l.b16 %v2867
    %v2983 = vpack.c.b16 %v2982, %v2981
    %v2986 = vsel %vm89, %v2978, 0
    %2988 = vmatprep.subr.bf16.mxu0 0
    %2989 = vmatpush1.bf16.msra.mxu0 %v2983
    %2990 = vmatprep.subr.bf16.mxu0 0
    %2991 = vmatpush1.bf16.msra.mxu0 0
    %2992 = vmatprep.subr.bf16.mxu0 0
    %2993 = vmatpush1.bf16.msra.mxu0 0
    %2994 = vmatprep.subr.bf16.mxu0 0
    %2995 = vmatpush1.bf16.msra.mxu0 0
    %2996 = vmatprep.subr.bf16.mxu0 0
    %2997 = vmatpush1.bf16.msra.mxu0 0
    %2998 = vmatprep.subr.bf16.mxu0 0
    %2999 = vmatpush1.bf16.msra.mxu0 0
    %3000 = vmatprep.subr.bf16.mxu0 0
    %3001 = vmatpush1.bf16.msra.mxu0 0
    %3002 = vmatprep.subr.bf16.mxu0 0
    %3003 = vmatpush1.bf16.msra.mxu0 0
    %3004 = vmatprep.subr.bf16.mxu0 0
    %3005 = vmatpush1.bf16.msra.mxu0 0
    %3006 = vmatprep.subr.bf16.mxu0 0
    %3007 = vmatpush1.bf16.msra.mxu0 0
    %3008 = vmatprep.subr.bf16.mxu0 0
    %3009 = vmatpush1.bf16.msra.mxu0 0
    %3010 = vmatprep.subr.bf16.mxu0 0
    %3011 = vmatpush1.bf16.msra.mxu0 0
    %3012 = vmatprep.subr.bf16.mxu0 0
    %3013 = vmatpush1.bf16.msra.mxu0 0
    %3014 = vmatprep.subr.bf16.mxu0 0
    %3015 = vmatpush1.bf16.msra.mxu0 0
    %3016 = vmatprep.subr.bf16.mxu0 0
    %3017 = vmatpush1.bf16.msra.mxu0 0
    %3018 = vmatprep.subr.bf16.mxu0 0
    %3019 = vmatpush1.bf16.msra.mxu0 0
    %3020 = vmatprep.mubr.bf16.mxu0 0
    %3021 = vmatmul.mubr.bf16.gmra.mrb[0].mxu0 %v2986
    %v3022 = vpop.f32.mrb[0].mxu0
    %v3023 = vadd.f32 0.0, %v3022
    %v3024 = vpop.f32.mrb[0].mxu0
    %v3025 = vpop.f32.mrb[0].mxu0
    %v3026 = vpop.f32.mrb[0].mxu0
    %3027 = vdwg.mxu0
    %v3028 = vadd.f32 %v2972, %v3023
    %v3029 = vld [vmem:[%s15] sm:$0x1]
    %v3031 = vlaneseq
    %v3032 = vshrl.u32 %v3031, 7
    %v3033 = vsub.s32 0, %v3032
    %v3034 = vrot.slane %v3029, %v3033
    %v3036 = vadd.f32 %v3028, %v3034
    %vm3037 = vcmask 17408
    %3038 = vst.msk [vmem:[#allocation2] sm:$0x3] %vm3037, %v3036
    // Predicated region
    $region66: #{aen_bert_forward.7} parent=1 // pred_check
      _
    $region67: #{aen_bert_forward.7} parent=1 // pred_check_branch
      %3040 = sbr.rel (0) target = $region69
    $region68: #{aen_bert_forward.7} parent=1 // pred_region
      %s3042 = ssub.s32 32, 32
      %3043 = vsyncadd [#allocation3], %s3042
      %s3045 = sshll.u32 [#allocation2], 4
      %s3046 = int_to_ptr.vmem [resolvable:$true] %s3045
      %3048 = dma.vmem_to_hbm [thread:$0]  %s3046, 32, %s16, [#allocation3]
    $region69: #{aen_bert_forward.7} parent=1 // pred_fallthru
      _
    // Predicated region
    $region70: #{aen_bert_forward.7} parent=1 // pred_check
      _
    $region71: #{aen_bert_forward.7} parent=1 // pred_check_branch
      %3050 = sbr.rel (0) target = $region73
    $region72: #{aen_bert_forward.7} parent=1 // pred_region
      %3051 = dma.done [#allocation3], 32
    $region73: #{aen_bert_forward.7} parent=1 // pred_fallthru
      _
    %3052 = vsyncpa [#allocation3], 1

// kernel: aen_bert_forward.6
$region0: #{aen_bert_forward.6}
  #allocation0 [shape = 'u32[]', space=smem, size = 0x4, offset = 0x4, fixed_abs, tag = 'smem constant byte address 0x4 - core index']
  #allocation1 [shape = 'u32[144,128]{1,0:T(1,128)}', space=vmem, size = 0x12000, scoped, tag = 'internal scratch']
  %s0 = inlined_call_operand.vmem [shape: f32[2,16,32], index: 0, kind: input, shape index: {}, may-alias: {0,1}]
  %s1 = inlined_call_operand.vmem [shape: f32[2,16,32], index: 1, kind: input, shape index: {}, may-alias: {0,1}]
  %s2 = inlined_call_operand.vmem [shape: f32[2,1,16], index: 2, kind: input, shape index: {}]
  %s3 = inlined_call_operand.vmem [shape: f32[2,16,1], index: 3, kind: input, shape index: {}]
  %s4 = inlined_call_operand.vmem [shape: f32[2,1], index: 4, kind: input, shape index: {}]
  %s5 = inlined_call_operand.vmem [shape: bf16[32,32], index: 5, kind: input, shape index: {}]
  %s6 = inlined_call_operand.vmem [shape: f32[1,32], index: 6, kind: input, shape index: {}]
  %s7 = inlined_call_operand.vmem [shape: bf16[32,32], index: 7, kind: input, shape index: {}]
  %s8 = inlined_call_operand.vmem [shape: f32[1,32], index: 8, kind: input, shape index: {}]
  %s9 = inlined_call_operand.vmem [shape: f32[2,4], index: 9, kind: input, shape index: {}]
  %s10 = inlined_call_operand.vmem [shape: bf16[32,16], index: 10, kind: input, shape index: {}]
  %s11 = inlined_call_operand.vmem [shape: f32[1,16], index: 11, kind: input, shape index: {}]
  %s12 = inlined_call_operand.vmem [shape: bf16[16,16], index: 12, kind: input, shape index: {}]
  %s13 = inlined_call_operand.vmem [shape: f32[1,16], index: 13, kind: input, shape index: {}]
  %s14 = inlined_call_operand.vmem [shape: bf16[16,16], index: 14, kind: input, shape index: {}]
  %s15 = inlined_call_operand.vmem [shape: f32[1,16], index: 15, kind: input, shape index: {}]
  %s16 = inlined_call_operand.vmem [shape: f32[2,16,16], index: 16, kind: output, shape index: {0}]
  %s17 = inlined_call_operand.vmem [shape: f32[2,16], index: 17, kind: output, shape index: {1}]
  %18 = xla_tuple %s16, %s17
  %s19 = sld [smem:[#allocation0]]
  $region82: #{aen_bert_forward.6} parent=0
    _
  %s21 = ssub.s32 1, %s19
  %s22 = scalar_select 0, %s21, %s19
  // Predicated region
  $region2: #{aen_bert_forward.6} parent=0 // pred_check
    _
  $region3: #{aen_bert_forward.6} parent=0 // pred_check_branch
    %24 = sbr.rel (0) target = $region5
  $region4: #{aen_bert_forward.6} parent=0 // pred_region
    _
  $region5: #{aen_bert_forward.6} parent=0 // pred_fallthru
    _
  // Predicated region
  $region6: #{aen_bert_forward.6} parent=0 // pred_check
    _
  $region7: #{aen_bert_forward.6} parent=0 // pred_check_branch
    %26 = sbr.rel (0) target = $region9
  $region8: #{aen_bert_forward.6} parent=0 // pred_region
    _
  $region9: #{aen_bert_forward.6} parent=0 // pred_fallthru
    _
  // Predicated region
  $region10: #{aen_bert_forward.6} parent=0 // pred_check
    _
  $region11: #{aen_bert_forward.6} parent=0 // pred_check_branch
    %28 = sbr.rel (0) target = $region13
  $region12: #{aen_bert_forward.6} parent=0 // pred_region
    _
  $region13: #{aen_bert_forward.6} parent=0 // pred_fallthru
    _
  // Predicated region
  $region14: #{aen_bert_forward.6} parent=0 // pred_check
    _
  $region15: #{aen_bert_forward.6} parent=0 // pred_check_branch
    %30 = sbr.rel (0) target = $region17
  $region16: #{aen_bert_forward.6} parent=0 // pred_region
    _
  $region17: #{aen_bert_forward.6} parent=0 // pred_fallthru
    _
  // Predicated region
  $region18: #{aen_bert_forward.6} parent=0 // pred_check
    _
  $region19: #{aen_bert_forward.6} parent=0 // pred_check_branch
    %32 = sbr.rel (0) target = $region21
  $region20: #{aen_bert_forward.6} parent=0 // pred_region
    _
  $region21: #{aen_bert_forward.6} parent=0 // pred_fallthru
    _
  // Predicated region
  $region22: #{aen_bert_forward.6} parent=0 // pred_check
    _
  $region23: #{aen_bert_forward.6} parent=0 // pred_check_branch
    %34 = sbr.rel (0) target = $region25
  $region24: #{aen_bert_forward.6} parent=0 // pred_region
    _
  $region25: #{aen_bert_forward.6} parent=0 // pred_fallthru
    _
  // Predicated region
  $region26: #{aen_bert_forward.6} parent=0 // pred_check
    _
  $region27: #{aen_bert_forward.6} parent=0 // pred_check_branch
    %36 = sbr.rel (0) target = $region29
  $region28: #{aen_bert_forward.6} parent=0 // pred_region
    _
  $region29: #{aen_bert_forward.6} parent=0 // pred_fallthru
    _
  // Predicated region
  $region30: #{aen_bert_forward.6} parent=0 // pred_check
    _
  $region31: #{aen_bert_forward.6} parent=0 // pred_check_branch
    %38 = sbr.rel (0) target = $region33
  $region32: #{aen_bert_forward.6} parent=0 // pred_region
    _
  $region33: #{aen_bert_forward.6} parent=0 // pred_fallthru
    _
  // Predicated region
  $region34: #{aen_bert_forward.6} parent=0 // pred_check
    _
  $region35: #{aen_bert_forward.6} parent=0 // pred_check_branch
    %40 = sbr.rel (0) target = $region37
  $region36: #{aen_bert_forward.6} parent=0 // pred_region
    _
  $region37: #{aen_bert_forward.6} parent=0 // pred_fallthru
    _
  // Predicated region
  $region38: #{aen_bert_forward.6} parent=0 // pred_check
    _
  $region39: #{aen_bert_forward.6} parent=0 // pred_check_branch
    %42 = sbr.rel (0) target = $region41
  $region40: #{aen_bert_forward.6} parent=0 // pred_region
    _
  $region41: #{aen_bert_forward.6} parent=0 // pred_fallthru
    _
  // Predicated region
  $region42: #{aen_bert_forward.6} parent=0 // pred_check
    _
  $region43: #{aen_bert_forward.6} parent=0 // pred_check_branch
    %44 = sbr.rel (0) target = $region45
  $region44: #{aen_bert_forward.6} parent=0 // pred_region
    _
  $region45: #{aen_bert_forward.6} parent=0 // pred_fallthru
    _
  // Predicated region
  $region46: #{aen_bert_forward.6} parent=0 // pred_check
    _
  $region47: #{aen_bert_forward.6} parent=0 // pred_check_branch
    %46 = sbr.rel (0) target = $region49
  $region48: #{aen_bert_forward.6} parent=0 // pred_region
    _
  $region49: #{aen_bert_forward.6} parent=0 // pred_fallthru
    _
  // Predicated region
  $region50: #{aen_bert_forward.6} parent=0 // pred_check
    _
  $region51: #{aen_bert_forward.6} parent=0 // pred_check_branch
    %48 = sbr.rel (0) target = $region53
  $region52: #{aen_bert_forward.6} parent=0 // pred_region
    _
  $region53: #{aen_bert_forward.6} parent=0 // pred_fallthru
    _
  // Predicated region
  $region54: #{aen_bert_forward.6} parent=0 // pred_check
    _
  $region55: #{aen_bert_forward.6} parent=0 // pred_check_branch
    %50 = sbr.rel (0) target = $region57
  $region56: #{aen_bert_forward.6} parent=0 // pred_region
    _
  $region57: #{aen_bert_forward.6} parent=0 // pred_fallthru
    _
  // Predicated region
  $region58: #{aen_bert_forward.6} parent=0 // pred_check
    _
  $region59: #{aen_bert_forward.6} parent=0 // pred_check_branch
    %52 = sbr.rel (0) target = $region61
  $region60: #{aen_bert_forward.6} parent=0 // pred_region
    _
  $region61: #{aen_bert_forward.6} parent=0 // pred_fallthru
    _
  // Predicated region
  $region62: #{aen_bert_forward.6} parent=0 // pred_check
    _
  $region63: #{aen_bert_forward.6} parent=0 // pred_check_branch
    %54 = sbr.rel (0) target = $region65
  $region64: #{aen_bert_forward.6} parent=0 // pred_region
    _
  $region65: #{aen_bert_forward.6} parent=0 // pred_fallthru
    _
  %v56 = vld [vmem:[%s0] sm:$0xff]
  %v57 = vld [vmem:[%s0 + $0x8] sm:$0xff]
  %v58 = vld [vmem:[%s0 + $0x10] sm:$0xff]
  %v59 = vld [vmem:[%s0 + $0x18] sm:$0xff]
  %v60 = vld [vmem:[%s1] sm:$0xff]
  %v61 = vld [vmem:[%s1 + $0x8] sm:$0xff]
  %v62 = vld [vmem:[%s1 + $0x10] sm:$0xff]
  %v63 = vld [vmem:[%s1 + $0x18] sm:$0xff]
  %v64 = vld [vmem:[%s2] sm:$0x1]
  %v65 = vld [vmem:[%s2 + $0x1] sm:$0x1]
  %v66 = vld [vmem:[%s5] sm:$0xf]
  %v67 = vld [vmem:[%s5 + $0x4] sm:$0xf]
  %v68 = vld [vmem:[%s5 + $0x8] sm:$0xf]
  %v69 = vld [vmem:[%s5 + $0xc] sm:$0xf]
  %v70 = vld [vmem:[%s6] sm:$0x1]
  %v71 = vld [vmem:[%s7] sm:$0xf]
  %v72 = vld [vmem:[%s7 + $0x4] sm:$0xf]
  %v73 = vld [vmem:[%s7 + $0x8] sm:$0xf]
  %v74 = vld [vmem:[%s7 + $0xc] sm:$0xf]
  %v75 = vld [vmem:[%s8] sm:$0x1]
  %v76 = vld [vmem:[%s9] sm:$0x3]
  %v77 = vld [vmem:[%s10] sm:$0xf]
  %v78 = vld [vmem:[%s10 + $0x4] sm:$0xf]
  %v79 = vld [vmem:[%s10 + $0x8] sm:$0xf]
  %v80 = vld [vmem:[%s10 + $0xc] sm:$0xf]
  %v81 = vld [vmem:[%s11] sm:$0x1]
  %v82 = vpack.c.bf16 %v57, %v56
  %v83 = vpack.c.bf16 %v59, %v58
  %v85 = vlaneseq
  %v86 = vshrl.u32 %v85, 7
  %v87 = vsub.s32 0, %v86
  %v88 = vrot.slane %v70, %v87
  %v94 = vunpack.c.l.b16 %v66
  %v95 = vunpack.c.l.b16 %v67
  %v96 = vunpack.c.l.b16 %v68
  %v97 = vunpack.c.l.b16 %v69
  %v98 = vpack.c.b16 %v95, %v94
  %v99 = vpack.c.b16 %v97, %v96
  %vm102 = vcmask 261120
  %v104 = vsel %vm102, %v82, 0
  %v107 = vsel %vm102, %v83, 0
  %109 = vmatprep.subr.bf16.mxu0 0
  %110 = vmatpush1.bf16.msra.mxu0 %v98
  %111 = vmatprep.subr.bf16.mxu0 0
  %112 = vmatpush1.bf16.msra.mxu0 %v99
  %113 = vmatprep.subr.bf16.mxu0 0
  %114 = vmatpush1.bf16.msra.mxu0 0
  %115 = vmatprep.subr.bf16.mxu0 0
  %116 = vmatpush1.bf16.msra.mxu0 0
  %117 = vmatprep.subr.bf16.mxu0 0
  %118 = vmatpush1.bf16.msra.mxu0 0
  %119 = vmatprep.subr.bf16.mxu0 0
  %120 = vmatpush1.bf16.msra.mxu0 0
  %121 = vmatprep.subr.bf16.mxu0 0
  %122 = vmatpush1.bf16.msra.mxu0 0
  %123 = vmatprep.subr.bf16.mxu0 0
  %124 = vmatpush1.bf16.msra.mxu0 0
  %125 = vmatprep.subr.bf16.mxu0 0
  %126 = vmatpush1.bf16.msra.mxu0 0
  %127 = vmatprep.subr.bf16.mxu0 0
  %128 = vmatpush1.bf16.msra.mxu0 0
  %129 = vmatprep.subr.bf16.mxu0 0
  %130 = vmatpush1.bf16.msra.mxu0 0
  %131 = vmatprep.subr.bf16.mxu0 0
  %132 = vmatpush1.bf16.msra.mxu0 0
  %133 = vmatprep.subr.bf16.mxu0 0
  %134 = vmatpush1.bf16.msra.mxu0 0
  %135 = vmatprep.subr.bf16.mxu0 0
  %136 = vmatpush1.bf16.msra.mxu0 0
  %137 = vmatprep.subr.bf16.mxu0 0
  %138 = vmatpush1.bf16.msra.mxu0 0
  %139 = vmatprep.subr.bf16.mxu0 0
  %140 = vmatpush1.bf16.msra.mxu0 0
  %141 = vmatprep.mubr.bf16.mxu0 0
  %142 = vmatmul.mubr.bf16.gmra.mrb[0].mxu0 %v104
  %v143 = vpop.f32.mrb[0].mxu0
  %v144 = vadd.f32 %v88, %v143
  %v145 = vpop.f32.mrb[0].mxu0
  %v146 = vpop.f32.mrb[0].mxu0
  %v147 = vadd.f32 %v88, %v146
  %v148 = vpop.f32.mrb[0].mxu0
  %149 = vmatprep.mubr.bf16.mxu0 0
  %150 = vmatmul.mubr.bf16.gmra.mrb[0].mxu0 %v107
  %v151 = vpop.f32.mrb[0].mxu0
  %v152 = vadd.f32 %v88, %v151
  %v153 = vpop.f32.mrb[0].mxu0
  %v154 = vpop.f32.mrb[0].mxu0
  %v155 = vadd.f32 %v88, %v154
  %v156 = vpop.f32.mrb[0].mxu0
  %157 = vdwg.mxu0
  %v158 = vpack.c.bf16 %v61, %v60
  %v159 = vpack.c.bf16 %v63, %v62
  %v161 = vlaneseq
  %v162 = vshrl.u32 %v161, 7
  %v163 = vsub.s32 0, %v162
  %v164 = vrot.slane %v75, %v163
  %v170 = vunpack.c.l.b16 %v71
  %v171 = vunpack.c.l.b16 %v72
  %v172 = vunpack.c.l.b16 %v73
  %v173 = vunpack.c.l.b16 %v74
  %v174 = vpack.c.b16 %v171, %v170
  %v175 = vpack.c.b16 %v173, %v172
  %v179 = vsel %vm102, %v158, 0
  %v182 = vsel %vm102, %v159, 0
  %184 = vmatprep.subr.bf16.mxu0 0
  %185 = vmatpush1.bf16.msra.mxu0 %v174
  %186 = vmatprep.subr.bf16.mxu0 0
  %187 = vmatpush1.bf16.msra.mxu0 %v175
  %188 = vmatprep.subr.bf16.mxu0 0
  %189 = vmatpush1.bf16.msra.mxu0 0
  %190 = vmatprep.subr.bf16.mxu0 0
  %191 = vmatpush1.bf16.msra.mxu0 0
  %192 = vmatprep.subr.bf16.mxu0 0
  %193 = vmatpush1.bf16.msra.mxu0 0
  %194 = vmatprep.subr.bf16.mxu0 0
  %195 = vmatpush1.bf16.msra.mxu0 0
  %196 = vmatprep.subr.bf16.mxu0 0
  %197 = vmatpush1.bf16.msra.mxu0 0
  %198 = vmatprep.subr.bf16.mxu0 0
  %199 = vmatpush1.bf16.msra.mxu0 0
  %200 = vmatprep.subr.bf16.mxu0 0
  %201 = vmatpush1.bf16.msra.mxu0 0
  %202 = vmatprep.subr.bf16.mxu0 0
  %203 = vmatpush1.bf16.msra.mxu0 0
  %204 = vmatprep.subr.bf16.mxu0 0
  %205 = vmatpush1.bf16.msra.mxu0 0
  %206 = vmatprep.subr.bf16.mxu0 0
  %207 = vmatpush1.bf16.msra.mxu0 0
  %208 = vmatprep.subr.bf16.mxu0 0
  %209 = vmatpush1.bf16.msra.mxu0 0
  %210 = vmatprep.subr.bf16.mxu0 0
  %211 = vmatpush1.bf16.msra.mxu0 0
  %212 = vmatprep.subr.bf16.mxu0 0
  %213 = vmatpush1.bf16.msra.mxu0 0
  %214 = vmatprep.subr.bf16.mxu0 0
  %215 = vmatpush1.bf16.msra.mxu0 0
  %216 = vmatprep.mubr.bf16.mxu0 0
  %217 = vmatmul.mubr.bf16.gmra.mrb[0].mxu0 %v179
  %v218 = vpop.f32.mrb[0].mxu0
  %v219 = vadd.f32 %v164, %v218
  %v220 = vpop.f32.mrb[0].mxu0
  %v221 = vpop.f32.mrb[0].mxu0
  %v222 = vadd.f32 %v164, %v221
  %v223 = vpop.f32.mrb[0].mxu0
  %224 = vmatprep.mubr.bf16.mxu0 0
  %225 = vmatmul.mubr.bf16.gmra.mrb[0].mxu0 %v182
  %v226 = vpop.f32.mrb[0].mxu0
  %v227 = vadd.f32 %v164, %v226
  %v228 = vpop.f32.mrb[0].mxu0
  %v229 = vpop.f32.mrb[0].mxu0
  %v230 = vadd.f32 %v164, %v229
  %v231 = vpop.f32.mrb[0].mxu0
  %232 = vdwg.mxu0
  %v234 = vlaneseq
  %v235 = vshrl.u32 %v234, 7
  %v236 = vsub.s32 0, %v235
  %v237 = vrot.slane %v81, %v236
  %v239 = vadd.f32 %v237, 0.0
  %v240 = vlaneseq
  %v241 = vshrl.u32 %v240, 7
  %v242 = vsub.s32 0, %v241
  %v243 = vrot.slane %v76, %v242
  %v244 = vmul.f32 %v144, %v243
  %v245 = vmul.f32 %v147, %v243
  %v246 = vmul.f32 %v152, %v243
  %v247 = vmul.f32 %v155, %v243
  %vm248 = vcmask 31744
  %v249 = vsel %vm248, %v244, 0.0
  %250 = vadd.xlane.f32.xlu0 %v249
  %v251 = vpop.xlane.xlu0 %250
  %v252 = vsel %vm248, %v245, 0.0
  %253 = vadd.xlane.f32.xlu0 %v252
  %v254 = vpop.xlane.xlu0 %253
  %v255 = vsel %vm248, %v246, 0.0
  %256 = vadd.xlane.f32.xlu0 %v255
  %v257 = vpop.xlane.xlu0 %256
  %v258 = vsel %vm248, %v247, 0.0
  %259 = vadd.xlane.f32.xlu0 %v258
  %v260 = vpop.xlane.xlu0 %259
  %v261 = vlaneseq
  %v262 = vshrl.u32 %v261, 7
  %v263 = vsub.s32 1, %v262
  %v264 = vrot.slane %v76, %v263
  %v265 = vmul.f32 %v219, %v264
  %v266 = vmul.f32 %v222, %v264
  %v267 = vmul.f32 %v227, %v264
  %v268 = vmul.f32 %v230, %v264
  %v269 = vsel %vm248, %v265, 0.0
  %270 = vadd.xlane.f32.xlu0 %v269
  %v271 = vpop.xlane.xlu0 %270
  %v272 = vsel %vm248, %v266, 0.0
  %273 = vadd.xlane.f32.xlu0 %v272
  %v274 = vpop.xlane.xlu0 %273
  %v275 = vsel %vm248, %v267, 0.0
  %276 = vadd.xlane.f32.xlu0 %v275
  %v277 = vpop.xlane.xlu0 %276
  %v278 = vsel %vm248, %v268, 0.0
  %279 = vadd.xlane.f32.xlu0 %v278
  %v280 = vpop.xlane.xlu0 %279
  %v285 = vlaneseq
  %v286 = vand.u32 %v285, 127
  %v287 = vlaneseq
  %v288 = vshrl.u32 %v287, 7
  %v289 = vsub.s32 %v286, %v288
  %v290 = vrot.slane %v251, %v289
  %v291 = vadd.s32 %v286, 4294967288
  %v292 = vlaneseq
  %v293 = vshrl.u32 %v292, 7
  %v294 = vsub.s32 %v291, %v293
  %v295 = vrot.slane %v254, %v294
  %vm296 = vcmask 130112
  %v297 = vsel %vm296, %v295, %v290
  %v298 = vlaneseq
  %v299 = vshrl.u32 %v298, 7
  %v300 = vsub.s32 %v286, %v299
  %v301 = vrot.slane %v257, %v300
  %v302 = vlaneseq
  %v303 = vshrl.u32 %v302, 7
  %v304 = vsub.s32 %v291, %v303
  %v305 = vrot.slane %v260, %v304
  %v306 = vsel %vm296, %v305, %v301
  %vm307 = vcmask 1041409
  %vm308 = vcmask 1042434
  %v309 = vsel %vm308, %v297, %v297
  %vm310 = vcmask 1043459
  %v311 = vsel %vm310, %v297, %v309
  %vm312 = vcmask 1044484
  %v313 = vsel %vm312, %v297, %v311
  %vm314 = vcmask 1045509
  %v315 = vsel %vm314, %v297, %v313
  %vm316 = vcmask 1046534
  %v317 = vsel %vm316, %v297, %v315
  %vm318 = vcmask 1047559
  %v319 = vsel %vm318, %v297, %v317
  %v320 = vsel %vm308, %v306, %v306
  %v321 = vsel %vm310, %v306, %v320
  %v322 = vsel %vm312, %v306, %v321
  %v323 = vsel %vm314, %v306, %v322
  %v324 = vsel %vm316, %v306, %v323
  %v325 = vsel %vm318, %v306, %v324
  %v328 = vadd.f32 %v271, %v319
  %v329 = vadd.f32 %v274, %v319
  %v330 = vadd.f32 %v277, %v325
  %v331 = vadd.f32 %v280, %v325
  %v332 = vtanh.pop %v328
  %v333 = vtanh.pop %v329
  %v334 = vtanh.pop %v330
  %v335 = vtanh.pop %v331
  %v338 = vlaneseq
  %v339 = vshrl.u32 %v338, 7
  %v340 = vsub.s32 0, %v339
  %v341 = vrot.slane %v64, %v340
  %v342 = vlaneseq
  %v343 = vshrl.u32 %v342, 7
  %v344 = vsub.s32 0, %v343
  %v345 = vrot.slane %v65, %v344
  %v348 = vadd.f32 %v332, %v341
  %v349 = vadd.f32 %v333, %v341
  %v350 = vadd.f32 %v334, %v345
  %v351 = vadd.f32 %v335, %v345
  %vm352 = vcmask 130048
  %v353 = vsel %vm352, %v348, -inf
  %354 = vmax.xlane.f32.xlu0 %v353
  %v355 = vpop.xlane.xlu0 %354
  %v356 = vsel %vm352, %v349, -inf
  %357 = vmax.xlane.f32.xlu0 %v356
  %v358 = vpop.xlane.xlu0 %357
  %v359 = vsel %vm352, %v350, -inf
  %360 = vmax.xlane.f32.xlu0 %v359
  %v361 = vpop.xlane.xlu0 %360
  %v362 = vsel %vm352, %v351, -inf
  %363 = vmax.xlane.f32.xlu0 %v362
  %v364 = vpop.xlane.xlu0 %363
  %v365 = vsub.f32 %v348, %v355
  %v366 = vsub.f32 %v349, %v358
  %v367 = vsub.f32 %v350, %v361
  %v368 = vsub.f32 %v351, %v364
  %v369 = vmul.f32 %v365, 1.442695
  %v370 = vpow.pop %v369
  %v371 = vmul.f32 %v366, 1.442695
  %v372 = vpow.pop %v371
  %v373 = vmul.f32 %v367, 1.442695
  %v374 = vpow.pop %v373
  %v375 = vmul.f32 %v368, 1.442695
  %v376 = vpow.pop %v375
  %v377 = vsel %vm352, %v370, 0.0
  %378 = vadd.xlane.f32.xlu0 %v377
  %v379 = vpop.xlane.xlu0 %378
  %v380 = vsel %vm352, %v372, 0.0
  %381 = vadd.xlane.f32.xlu0 %v380
  %v382 = vpop.xlane.xlu0 %381
  %v383 = vsel %vm352, %v374, 0.0
  %384 = vadd.xlane.f32.xlu0 %v383
  %v385 = vpop.xlane.xlu0 %384
  %v386 = vsel %vm352, %v376, 0.0
  %387 = vadd.xlane.f32.xlu0 %v386
  %v388 = vpop.xlane.xlu0 %387
  %v389 = vrcp.pop %v379
  %v390 = vmul.f32 %v370, %v389
  %v391 = vrcp.pop %v382
  %v392 = vmul.f32 %v372, %v391
  %v393 = vrcp.pop %v385
  %v394 = vmul.f32 %v374, %v393
  %v395 = vrcp.pop %v388
  %v396 = vmul.f32 %v376, %v395
  %v397 = vpack.c.bf16 %v392, %v390
  %v398 = vpack.c.bf16 %v396, %v394
  %v399 = vpack.c.bf16 %v147, %v144
  %v400 = vpack.c.bf16 %v155, %v152
  %v402 = vsel %vm352, %v397, 0
  %404 = vmatprep.subr.bf16.mxu0 0
  %405 = vmatpush1.bf16.msra.mxu0 %v399
  %406 = vmatprep.subr.bf16.mxu0 0
  %407 = vmatpush1.bf16.msra.mxu0 0
  %408 = vmatprep.subr.bf16.mxu0 0
  %409 = vmatpush1.bf16.msra.mxu0 0
  %410 = vmatprep.subr.bf16.mxu0 0
  %411 = vmatpush1.bf16.msra.mxu0 0
  %412 = vmatprep.subr.bf16.mxu0 0
  %413 = vmatpush1.bf16.msra.mxu0 0
  %414 = vmatprep.subr.bf16.mxu0 0
  %415 = vmatpush1.bf16.msra.mxu0 0
  %416 = vmatprep.subr.bf16.mxu0 0
  %417 = vmatpush1.bf16.msra.mxu0 0
  %418 = vmatprep.subr.bf16.mxu0 0
  %419 = vmatpush1.bf16.msra.mxu0 0
  %420 = vmatprep.subr.bf16.mxu0 0
  %421 = vmatpush1.bf16.msra.mxu0 0
  %422 = vmatprep.subr.bf16.mxu0 0
  %423 = vmatpush1.bf16.msra.mxu0 0
  %424 = vmatprep.subr.bf16.mxu0 0
  %425 = vmatpush1.bf16.msra.mxu0 0
  %426 = vmatprep.subr.bf16.mxu0 0
  %427 = vmatpush1.bf16.msra.mxu0 0
  %428 = vmatprep.subr.bf16.mxu0 0
  %429 = vmatpush1.bf16.msra.mxu0 0
  %430 = vmatprep.subr.bf16.mxu0 0
  %431 = vmatpush1.bf16.msra.mxu0 0
  %432 = vmatprep.subr.bf16.mxu0 0
  %433 = vmatpush1.bf16.msra.mxu0 0
  %434 = vmatprep.subr.bf16.mxu0 0
  %435 = vmatpush1.bf16.msra.mxu0 0
  %436 = vmatprep.mubr.bf16.mxu0 0
  %437 = vmatmul.mubr.bf16.gmra.mrb[0].mxu0 %v402
  %v438 = vpop.f32.mrb[0].mxu0
  %v439 = vadd.f32 0.0, %v438
  %v440 = vpop.f32.mrb[0].mxu0
  %v441 = vpop.f32.mrb[0].mxu0
  %v442 = vadd.f32 0.0, %v441
  %v443 = vpop.f32.mrb[0].mxu0
  %444 = vdwg.mxu0
  %v446 = vsel %vm352, %v398, 0
  %448 = vmatprep.subr.bf16.mxu0 0
  %449 = vmatpush1.bf16.msra.mxu0 %v400
  %450 = vmatprep.subr.bf16.mxu0 0
  %451 = vmatpush1.bf16.msra.mxu0 0
  %452 = vmatprep.subr.bf16.mxu0 0
  %453 = vmatpush1.bf16.msra.mxu0 0
  %454 = vmatprep.subr.bf16.mxu0 0
  %455 = vmatpush1.bf16.msra.mxu0 0
  %456 = vmatprep.subr.bf16.mxu0 0
  %457 = vmatpush1.bf16.msra.mxu0 0
  %458 = vmatprep.subr.bf16.mxu0 0
  %459 = vmatpush1.bf16.msra.mxu0 0
  %460 = vmatprep.subr.bf16.mxu0 0
  %461 = vmatpush1.bf16.msra.mxu0 0
  %462 = vmatprep.subr.bf16.mxu0 0
  %463 = vmatpush1.bf16.msra.mxu0 0
  %464 = vmatprep.subr.bf16.mxu0 0
  %465 = vmatpush1.bf16.msra.mxu0 0
  %466 = vmatprep.subr.bf16.mxu0 0
  %467 = vmatpush1.bf16.msra.mxu0 0
  %468 = vmatprep.subr.bf16.mxu0 0
  %469 = vmatpush1.bf16.msra.mxu0 0
  %470 = vmatprep.subr.bf16.mxu0 0
  %471 = vmatpush1.bf16.msra.mxu0 0
  %472 = vmatprep.subr.bf16.mxu0 0
  %473 = vmatpush1.bf16.msra.mxu0 0
  %474 = vmatprep.subr.bf16.mxu0 0
  %475 = vmatpush1.bf16.msra.mxu0 0
  %476 = vmatprep.subr.bf16.mxu0 0
  %477 = vmatpush1.bf16.msra.mxu0 0
  %478 = vmatprep.subr.bf16.mxu0 0
  %479 = vmatpush1.bf16.msra.mxu0 0
  %480 = vmatprep.mubr.bf16.mxu0 0
  %481 = vmatmul.mubr.bf16.gmra.mrb[0].mxu0 %v446
  %v482 = vpop.f32.mrb[0].mxu0
  %v483 = vadd.f32 0.0, %v482
  %v484 = vpop.f32.mrb[0].mxu0
  %v485 = vpop.f32.mrb[0].mxu0
  %v486 = vadd.f32 0.0, %v485
  %v487 = vpop.f32.mrb[0].mxu0
  %488 = vdwg.mxu0
  %v489 = vpack.c.bf16 %v442, %v439
  %v490 = vpack.c.bf16 %v486, %v483
  %v492 = vsel %vm248, %v489, 0
  %v495 = vsel %vm248, %v490, 0
  %vm497 = vcmask 1041408
  %v499 = vsel %vm497, %v77, 0
  %501 = vmatprep.subr.bf16.mxu0 0
  %502 = vmatpush1.bf16.msra.mxu0 %v499
  %503 = vmatprep.subr.bf16.mxu0 0
  %504 = vmatpush1.bf16.msra.mxu0 0
  %505 = vmatprep.subr.bf16.mxu0 0
  %506 = vmatpush1.bf16.msra.mxu0 0
  %507 = vmatprep.subr.bf16.mxu0 0
  %508 = vmatpush1.bf16.msra.mxu0 0
  %509 = vmatprep.subr.bf16.mxu0 0
  %510 = vmatpush1.bf16.msra.mxu0 0
  %511 = vmatprep.subr.bf16.mxu0 0
  %512 = vmatpush1.bf16.msra.mxu0 0
  %513 = vmatprep.subr.bf16.mxu0 0
  %514 = vmatpush1.bf16.msra.mxu0 0
  %515 = vmatprep.subr.bf16.mxu0 0
  %516 = vmatpush1.bf16.msra.mxu0 0
  %517 = vmatprep.subr.bf16.mxu0 0
  %518 = vmatpush1.bf16.msra.mxu0 0
  %519 = vmatprep.subr.bf16.mxu0 0
  %520 = vmatpush1.bf16.msra.mxu0 0
  %521 = vmatprep.subr.bf16.mxu0 0
  %522 = vmatpush1.bf16.msra.mxu0 0
  %523 = vmatprep.subr.bf16.mxu0 0
  %524 = vmatpush1.bf16.msra.mxu0 0
  %525 = vmatprep.subr.bf16.mxu0 0
  %526 = vmatpush1.bf16.msra.mxu0 0
  %527 = vmatprep.subr.bf16.mxu0 0
  %528 = vmatpush1.bf16.msra.mxu0 0
  %529 = vmatprep.subr.bf16.mxu0 0
  %530 = vmatpush1.bf16.msra.mxu0 0
  %531 = vmatprep.subr.bf16.mxu0 0
  %532 = vmatpush1.bf16.msra.mxu0 0
  %533 = vmatprep.mubr.bf16.mxu0 0
  %534 = vmatmul.mubr.bf16.gmra.mrb[0].mxu0 %v492
  %v535 = vpop.f32.mrb[0].mxu0
  %v536 = vadd.f32 0.0, %v535
  %v537 = vpop.f32.mrb[0].mxu0
  %v538 = vpop.f32.mrb[0].mxu0
  %v539 = vadd.f32 0.0, %v538
  %v540 = vpop.f32.mrb[0].mxu0
  %541 = vmatprep.mubr.bf16.mxu0 0
  %542 = vmatmul.mubr.bf16.gmra.mrb[0].mxu0 %v495
  %v543 = vpop.f32.mrb[0].mxu0
  %v544 = vadd.f32 0.0, %v543
  %v545 = vpop.f32.mrb[0].mxu0
  %v546 = vpop.f32.mrb[0].mxu0
  %v547 = vadd.f32 0.0, %v546
  %v548 = vpop.f32.mrb[0].mxu0
  %549 = vdwg.mxu0
  %v550 = vadd.f32 %v239, %v536
  %v551 = vadd.f32 %v239, %v539
  %v552 = vadd.f32 %v239, %v544
  %v553 = vadd.f32 %v239, %v547
  %555 = vrot.lane.b32.xlu0 %v243, 4
  %v556 = vpop.permute.xlu0 %555
  %v558 = vmul.f32 %v144, %v556
  %v559 = vmul.f32 %v147, %v556
  %v560 = vmul.f32 %v152, %v556
  %v561 = vmul.f32 %v155, %v556
  %566 = vrot.lane.b32.xlu0 %v558, 124
  %v567 = vpop.permute.xlu0 %566
  %568 = vrot.lane.b32.xlu0 %v559, 124
  %v569 = vpop.permute.xlu0 %568
  %570 = vrot.lane.b32.xlu0 %v560, 124
  %v571 = vpop.permute.xlu0 %570
  %572 = vrot.lane.b32.xlu0 %v561, 124
  %v573 = vpop.permute.xlu0 %572
  %v578 = vsel %vm248, %v567, 0.0
  %579 = vadd.xlane.f32.xlu0 %v578
  %v580 = vpop.xlane.xlu0 %579
  %v581 = vsel %vm248, %v569, 0.0
  %582 = vadd.xlane.f32.xlu0 %v581
  %v583 = vpop.xlane.xlu0 %582
  %v584 = vsel %vm248, %v571, 0.0
  %585 = vadd.xlane.f32.xlu0 %v584
  %v586 = vpop.xlane.xlu0 %585
  %v587 = vsel %vm248, %v573, 0.0
  %588 = vadd.xlane.f32.xlu0 %v587
  %v589 = vpop.xlane.xlu0 %588
  %591 = vrot.lane.b32.xlu0 %v264, 4
  %v592 = vpop.permute.xlu0 %591
  %v594 = vmul.f32 %v219, %v592
  %v595 = vmul.f32 %v222, %v592
  %v596 = vmul.f32 %v227, %v592
  %v597 = vmul.f32 %v230, %v592
  %602 = vrot.lane.b32.xlu0 %v594, 124
  %v603 = vpop.permute.xlu0 %602
  %604 = vrot.lane.b32.xlu0 %v595, 124
  %v605 = vpop.permute.xlu0 %604
  %606 = vrot.lane.b32.xlu0 %v596, 124
  %v607 = vpop.permute.xlu0 %606
  %608 = vrot.lane.b32.xlu0 %v597, 124
  %v609 = vpop.permute.xlu0 %608
  %v614 = vsel %vm248, %v603, 0.0
  %615 = vadd.xlane.f32.xlu0 %v614
  %v616 = vpop.xlane.xlu0 %615
  %v617 = vsel %vm248, %v605, 0.0
  %618 = vadd.xlane.f32.xlu0 %v617
  %v619 = vpop.xlane.xlu0 %618
  %v620 = vsel %vm248, %v607, 0.0
  %621 = vadd.xlane.f32.xlu0 %v620
  %v622 = vpop.xlane.xlu0 %621
  %v623 = vsel %vm248, %v609, 0.0
  %624 = vadd.xlane.f32.xlu0 %v623
  %v625 = vpop.xlane.xlu0 %624
  %v630 = vlaneseq
  %v631 = vshrl.u32 %v630, 7
  %v632 = vsub.s32 %v286, %v631
  %v633 = vrot.slane %v580, %v632
  %v634 = vlaneseq
  %v635 = vshrl.u32 %v634, 7
  %v636 = vsub.s32 %v291, %v635
  %v637 = vrot.slane %v583, %v636
  %v638 = vsel %vm296, %v637, %v633
  %v639 = vlaneseq
  %v640 = vshrl.u32 %v639, 7
  %v641 = vsub.s32 %v286, %v640
  %v642 = vrot.slane %v586, %v641
  %v643 = vlaneseq
  %v644 = vshrl.u32 %v643, 7
  %v645 = vsub.s32 %v291, %v644
  %v646 = vrot.slane %v589, %v645
  %v647 = vsel %vm296, %v646, %v642
  %v648 = vsel %vm308, %v638, %v638
  %v649 = vsel %vm310, %v638, %v648
  %v650 = vsel %vm312, %v638, %v649
  %v651 = vsel %vm314, %v638, %v650
  %v652 = vsel %vm316, %v638, %v651
  %v653 = vsel %vm318, %v638, %v652
  %v654 = vsel %vm308, %v647, %v647
  %v655 = vsel %vm310, %v647, %v654
  %v656 = vsel %vm312, %v647, %v655
  %v657 = vsel %vm314, %v647, %v656
  %v658 = vsel %vm316, %v647, %v657
  %v659 = vsel %vm318, %v647, %v658
  %v662 = vadd.f32 %v616, %v653
  %v663 = vadd.f32 %v619, %v653
  %v664 = vadd.f32 %v622, %v659
  %v665 = vadd.f32 %v625, %v659
  %v666 = vtanh.pop %v662
  %v667 = vtanh.pop %v663
  %v668 = vtanh.pop %v664
  %v669 = vtanh.pop %v665
  %v670 = vadd.f32 %v666, %v341
  %v671 = vadd.f32 %v667, %v341
  %v672 = vadd.f32 %v668, %v345
  %v673 = vadd.f32 %v669, %v345
  %v674 = vsel %vm352, %v670, -inf
  %675 = vmax.xlane.f32.xlu0 %v674
  %v676 = vpop.xlane.xlu0 %675
  %v677 = vsel %vm352, %v671, -inf
  %678 = vmax.xlane.f32.xlu0 %v677
  %v679 = vpop.xlane.xlu0 %678
  %v680 = vsel %vm352, %v672, -inf
  %681 = vmax.xlane.f32.xlu0 %v680
  %v682 = vpop.xlane.xlu0 %681
  %v683 = vsel %vm352, %v673, -inf
  %684 = vmax.xlane.f32.xlu0 %v683
  %v685 = vpop.xlane.xlu0 %684
  %v686 = vsub.f32 %v670, %v676
  %v687 = vsub.f32 %v671, %v679
  %v688 = vsub.f32 %v672, %v682
  %v689 = vsub.f32 %v673, %v685
  %v690 = vmul.f32 %v686, 1.442695
  %v691 = vpow.pop %v690
  %v692 = vmul.f32 %v687, 1.442695
  %v693 = vpow.pop %v692
  %v694 = vmul.f32 %v688, 1.442695
  %v695 = vpow.pop %v694
  %v696 = vmul.f32 %v689, 1.442695
  %v697 = vpow.pop %v696
  %v698 = vsel %vm352, %v691, 0.0
  %699 = vadd.xlane.f32.xlu0 %v698
  %v700 = vpop.xlane.xlu0 %699
  %v701 = vsel %vm352, %v693, 0.0
  %702 = vadd.xlane.f32.xlu0 %v701
  %v703 = vpop.xlane.xlu0 %702
  %v704 = vsel %vm352, %v695, 0.0
  %705 = vadd.xlane.f32.xlu0 %v704
  %v706 = vpop.xlane.xlu0 %705
  %v707 = vsel %vm352, %v697, 0.0
  %708 = vadd.xlane.f32.xlu0 %v707
  %v709 = vpop.xlane.xlu0 %708
  %v710 = vrcp.pop %v700
  %v711 = vmul.f32 %v691, %v710
  %v712 = vrcp.pop %v703
  %v713 = vmul.f32 %v693, %v712
  %v714 = vrcp.pop %v706
  %v715 = vmul.f32 %v695, %v714
  %v716 = vrcp.pop %v709
  %v717 = vmul.f32 %v697, %v716
  %v718 = vpack.c.bf16 %v713, %v711
  %v719 = vpack.c.bf16 %v717, %v715
  %721 = vrot.lane.b32.xlu0 %v399, 124
  %v722 = vpop.permute.xlu0 %721
  %v725 = vsel %vm352, %v718, 0
  %727 = vmatprep.subr.bf16.mxu0 0
  %728 = vmatpush1.bf16.msra.mxu0 %v722
  %729 = vmatprep.subr.bf16.mxu0 0
  %730 = vmatpush1.bf16.msra.mxu0 0
  %731 = vmatprep.subr.bf16.mxu0 0
  %732 = vmatpush1.bf16.msra.mxu0 0
  %733 = vmatprep.subr.bf16.mxu0 0
  %734 = vmatpush1.bf16.msra.mxu0 0
  %735 = vmatprep.subr.bf16.mxu0 0
  %736 = vmatpush1.bf16.msra.mxu0 0
  %737 = vmatprep.subr.bf16.mxu0 0
  %738 = vmatpush1.bf16.msra.mxu0 0
  %739 = vmatprep.subr.bf16.mxu0 0
  %740 = vmatpush1.bf16.msra.mxu0 0
  %741 = vmatprep.subr.bf16.mxu0 0
  %742 = vmatpush1.bf16.msra.mxu0 0
  %743 = vmatprep.subr.bf16.mxu0 0
  %744 = vmatpush1.bf16.msra.mxu0 0
  %745 = vmatprep.subr.bf16.mxu0 0
  %746 = vmatpush1.bf16.msra.mxu0 0
  %747 = vmatprep.subr.bf16.mxu0 0
  %748 = vmatpush1.bf16.msra.mxu0 0
  %749 = vmatprep.subr.bf16.mxu0 0
  %750 = vmatpush1.bf16.msra.mxu0 0
  %751 = vmatprep.subr.bf16.mxu0 0
  %752 = vmatpush1.bf16.msra.mxu0 0
  %753 = vmatprep.subr.bf16.mxu0 0
  %754 = vmatpush1.bf16.msra.mxu0 0
  %755 = vmatprep.subr.bf16.mxu0 0
  %756 = vmatpush1.bf16.msra.mxu0 0
  %757 = vmatprep.subr.bf16.mxu0 0
  %758 = vmatpush1.bf16.msra.mxu0 0
  %759 = vmatprep.mubr.bf16.mxu0 0
  %760 = vmatmul.mubr.bf16.gmra.mrb[0].mxu0 %v725
  %v761 = vpop.f32.mrb[0].mxu0
  %v762 = vadd.f32 0.0, %v761
  %v763 = vpop.f32.mrb[0].mxu0
  %v764 = vpop.f32.mrb[0].mxu0
  %v765 = vadd.f32 0.0, %v764
  %v766 = vpop.f32.mrb[0].mxu0
  %767 = vdwg.mxu0
  %769 = vrot.lane.b32.xlu0 %v400, 124
  %v770 = vpop.permute.xlu0 %769
  %v773 = vsel %vm352, %v719, 0
  %775 = vmatprep.subr.bf16.mxu0 0
  %776 = vmatpush1.bf16.msra.mxu0 %v770
  %777 = vmatprep.subr.bf16.mxu0 0
  %778 = vmatpush1.bf16.msra.mxu0 0
  %779 = vmatprep.subr.bf16.mxu0 0
  %780 = vmatpush1.bf16.msra.mxu0 0
  %781 = vmatprep.subr.bf16.mxu0 0
  %782 = vmatpush1.bf16.msra.mxu0 0
  %783 = vmatprep.subr.bf16.mxu0 0
  %784 = vmatpush1.bf16.msra.mxu0 0
  %785 = vmatprep.subr.bf16.mxu0 0
  %786 = vmatpush1.bf16.msra.mxu0 0
  %787 = vmatprep.subr.bf16.mxu0 0
  %788 = vmatpush1.bf16.msra.mxu0 0
  %789 = vmatprep.subr.bf16.mxu0 0
  %790 = vmatpush1.bf16.msra.mxu0 0
  %791 = vmatprep.subr.bf16.mxu0 0
  %792 = vmatpush1.bf16.msra.mxu0 0
  %793 = vmatprep.subr.bf16.mxu0 0
  %794 = vmatpush1.bf16.msra.mxu0 0
  %795 = vmatprep.subr.bf16.mxu0 0
  %796 = vmatpush1.bf16.msra.mxu0 0
  %797 = vmatprep.subr.bf16.mxu0 0
  %798 = vmatpush1.bf16.msra.mxu0 0
  %799 = vmatprep.subr.bf16.mxu0 0
  %800 = vmatpush1.bf16.msra.mxu0 0
  %801 = vmatprep.subr.bf16.mxu0 0
  %802 = vmatpush1.bf16.msra.mxu0 0
  %803 = vmatprep.subr.bf16.mxu0 0
  %804 = vmatpush1.bf16.msra.mxu0 0
  %805 = vmatprep.subr.bf16.mxu0 0
  %806 = vmatpush1.bf16.msra.mxu0 0
  %807 = vmatprep.mubr.bf16.mxu0 0
  %808 = vmatmul.mubr.bf16.gmra.mrb[0].mxu0 %v773
  %v809 = vpop.f32.mrb[0].mxu0
  %v810 = vadd.f32 0.0, %v809
  %v811 = vpop.f32.mrb[0].mxu0
  %v812 = vpop.f32.mrb[0].mxu0
  %v813 = vadd.f32 0.0, %v812
  %v814 = vpop.f32.mrb[0].mxu0
  %815 = vdwg.mxu0
  %v816 = vpack.c.bf16 %v765, %v762
  %v817 = vpack.c.bf16 %v813, %v810
  %v819 = vunpack.c.l.b16 %v77
  %v820 = vpack.c.b16 %v819, %v819
  %v821 = vrot.slane %v820, 2
  %v823 = vsel %vm248, %v816, 0
  %v826 = vsel %vm248, %v817, 0
  %v829 = vsel %vm497, %v821, 0
  %831 = vmatprep.subr.bf16.mxu0 0
  %832 = vmatpush1.bf16.msra.mxu0 %v829
  %833 = vmatprep.subr.bf16.mxu0 0
  %834 = vmatpush1.bf16.msra.mxu0 0
  %835 = vmatprep.subr.bf16.mxu0 0
  %836 = vmatpush1.bf16.msra.mxu0 0
  %837 = vmatprep.subr.bf16.mxu0 0
  %838 = vmatpush1.bf16.msra.mxu0 0
  %839 = vmatprep.subr.bf16.mxu0 0
  %840 = vmatpush1.bf16.msra.mxu0 0
  %841 = vmatprep.subr.bf16.mxu0 0
  %842 = vmatpush1.bf16.msra.mxu0 0
  %843 = vmatprep.subr.bf16.mxu0 0
  %844 = vmatpush1.bf16.msra.mxu0 0
  %845 = vmatprep.subr.bf16.mxu0 0
  %846 = vmatpush1.bf16.msra.mxu0 0
  %847 = vmatprep.subr.bf16.mxu0 0
  %848 = vmatpush1.bf16.msra.mxu0 0
  %849 = vmatprep.subr.bf16.mxu0 0
  %850 = vmatpush1.bf16.msra.mxu0 0
  %851 = vmatprep.subr.bf16.mxu0 0
  %852 = vmatpush1.bf16.msra.mxu0 0
  %853 = vmatprep.subr.bf16.mxu0 0
  %854 = vmatpush1.bf16.msra.mxu0 0
  %855 = vmatprep.subr.bf16.mxu0 0
  %856 = vmatpush1.bf16.msra.mxu0 0
  %857 = vmatprep.subr.bf16.mxu0 0
  %858 = vmatpush1.bf16.msra.mxu0 0
  %859 = vmatprep.subr.bf16.mxu0 0
  %860 = vmatpush1.bf16.msra.mxu0 0
  %861 = vmatprep.subr.bf16.mxu0 0
  %862 = vmatpush1.bf16.msra.mxu0 0
  %863 = vmatprep.mubr.bf16.mxu0 0
  %864 = vmatmul.mubr.bf16.gmra.mrb[0].mxu0 %v823
  %v865 = vpop.f32.mrb[0].mxu0
  %v866 = vadd.f32 0.0, %v865
  %v867 = vpop.f32.mrb[0].mxu0
  %v868 = vpop.f32.mrb[0].mxu0
  %v869 = vadd.f32 0.0, %v868
  %v870 = vpop.f32.mrb[0].mxu0
  %871 = vmatprep.mubr.bf16.mxu0 0
  %872 = vmatmul.mubr.bf16.gmra.mrb[0].mxu0 %v826
  %v873 = vpop.f32.mrb[0].mxu0
  %v874 = vadd.f32 0.0, %v873
  %v875 = vpop.f32.mrb[0].mxu0
  %v876 = vpop.f32.mrb[0].mxu0
  %v877 = vadd.f32 0.0, %v876
  %v878 = vpop.f32.mrb[0].mxu0
  %879 = vdwg.mxu0
  %v880 = vadd.f32 %v550, %v866
  %v881 = vadd.f32 %v551, %v869
  %v882 = vadd.f32 %v552, %v874
  %v883 = vadd.f32 %v553, %v877
  %884 = vrot.lane.b32.xlu0 %v243, 8
  %v885 = vpop.permute.xlu0 %884
  %v887 = vmul.f32 %v144, %v885
  %v888 = vmul.f32 %v147, %v885
  %v889 = vmul.f32 %v152, %v885
  %v890 = vmul.f32 %v155, %v885
  %895 = vrot.lane.b32.xlu0 %v887, 120
  %v896 = vpop.permute.xlu0 %895
  %897 = vrot.lane.b32.xlu0 %v888, 120
  %v898 = vpop.permute.xlu0 %897
  %899 = vrot.lane.b32.xlu0 %v889, 120
  %v900 = vpop.permute.xlu0 %899
  %901 = vrot.lane.b32.xlu0 %v890, 120
  %v902 = vpop.permute.xlu0 %901
  %v907 = vsel %vm248, %v896, 0.0
  %908 = vadd.xlane.f32.xlu0 %v907
  %v909 = vpop.xlane.xlu0 %908
  %v910 = vsel %vm248, %v898, 0.0
  %911 = vadd.xlane.f32.xlu0 %v910
  %v912 = vpop.xlane.xlu0 %911
  %v913 = vsel %vm248, %v900, 0.0
  %914 = vadd.xlane.f32.xlu0 %v913
  %v915 = vpop.xlane.xlu0 %914
  %v916 = vsel %vm248, %v902, 0.0
  %917 = vadd.xlane.f32.xlu0 %v916
  %v918 = vpop.xlane.xlu0 %917
  %919 = vrot.lane.b32.xlu0 %v264, 8
  %v920 = vpop.permute.xlu0 %919
  %v922 = vmul.f32 %v219, %v920
  %v923 = vmul.f32 %v222, %v920
  %v924 = vmul.f32 %v227, %v920
  %v925 = vmul.f32 %v230, %v920
  %930 = vrot.lane.b32.xlu0 %v922, 120
  %v931 = vpop.permute.xlu0 %930
  %932 = vrot.lane.b32.xlu0 %v923, 120
  %v933 = vpop.permute.xlu0 %932
  %934 = vrot.lane.b32.xlu0 %v924, 120
  %v935 = vpop.permute.xlu0 %934
  %936 = vrot.lane.b32.xlu0 %v925, 120
  %v937 = vpop.permute.xlu0 %936
  %v942 = vsel %vm248, %v931, 0.0
  %943 = vadd.xlane.f32.xlu0 %v942
  %v944 = vpop.xlane.xlu0 %943
  %v945 = vsel %vm248, %v933, 0.0
  %946 = vadd.xlane.f32.xlu0 %v945
  %v947 = vpop.xlane.xlu0 %946
  %v948 = vsel %vm248, %v935, 0.0
  %949 = vadd.xlane.f32.xlu0 %v948
  %v950 = vpop.xlane.xlu0 %949
  %v951 = vsel %vm248, %v937, 0.0
  %952 = vadd.xlane.f32.xlu0 %v951
  %v953 = vpop.xlane.xlu0 %952
  %v958 = vlaneseq
  %v959 = vshrl.u32 %v958, 7
  %v960 = vsub.s32 %v286, %v959
  %v961 = vrot.slane %v909, %v960
  %v962 = vlaneseq
  %v963 = vshrl.u32 %v962, 7
  %v964 = vsub.s32 %v291, %v963
  %v965 = vrot.slane %v912, %v964
  %v966 = vsel %vm296, %v965, %v961
  %v967 = vlaneseq
  %v968 = vshrl.u32 %v967, 7
  %v969 = vsub.s32 %v286, %v968
  %v970 = vrot.slane %v915, %v969
  %v971 = vlaneseq
  %v972 = vshrl.u32 %v971, 7
  %v973 = vsub.s32 %v291, %v972
  %v974 = vrot.slane %v918, %v973
  %v975 = vsel %vm296, %v974, %v970
  %v976 = vsel %vm308, %v966, %v966
  %v977 = vsel %vm310, %v966, %v976
  %v978 = vsel %vm312, %v966, %v977
  %v979 = vsel %vm314, %v966, %v978
  %v980 = vsel %vm316, %v966, %v979
  %v981 = vsel %vm318, %v966, %v980
  %v982 = vsel %vm308, %v975, %v975
  %v983 = vsel %vm310, %v975, %v982
  %v984 = vsel %vm312, %v975, %v983
  %v985 = vsel %vm314, %v975, %v984
  %v986 = vsel %vm316, %v975, %v985
  %v987 = vsel %vm318, %v975, %v986
  %v990 = vadd.f32 %v944, %v981
  %v991 = vadd.f32 %v947, %v981
  %v992 = vadd.f32 %v950, %v987
  %v993 = vadd.f32 %v953, %v987
  %v994 = vtanh.pop %v990
  %v995 = vtanh.pop %v991
  %v996 = vtanh.pop %v992
  %v997 = vtanh.pop %v993
  %v998 = vadd.f32 %v994, %v341
  %v999 = vadd.f32 %v995, %v341
  %v1000 = vadd.f32 %v996, %v345
  %v1001 = vadd.f32 %v997, %v345
  %v1002 = vsel %vm352, %v998, -inf
  %1003 = vmax.xlane.f32.xlu0 %v1002
  %v1004 = vpop.xlane.xlu0 %1003
  %v1005 = vsel %vm352, %v999, -inf
  %1006 = vmax.xlane.f32.xlu0 %v1005
  %v1007 = vpop.xlane.xlu0 %1006
  %v1008 = vsel %vm352, %v1000, -inf
  %1009 = vmax.xlane.f32.xlu0 %v1008
  %v1010 = vpop.xlane.xlu0 %1009
  %v1011 = vsel %vm352, %v1001, -inf
  %1012 = vmax.xlane.f32.xlu0 %v1011
  %v1013 = vpop.xlane.xlu0 %1012
  %v1014 = vsub.f32 %v998, %v1004
  %v1015 = vsub.f32 %v999, %v1007
  %v1016 = vsub.f32 %v1000, %v1010
  %v1017 = vsub.f32 %v1001, %v1013
  %v1018 = vmul.f32 %v1014, 1.442695
  %v1019 = vpow.pop %v1018
  %v1020 = vmul.f32 %v1015, 1.442695
  %v1021 = vpow.pop %v1020
  %v1022 = vmul.f32 %v1016, 1.442695
  %v1023 = vpow.pop %v1022
  %v1024 = vmul.f32 %v1017, 1.442695
  %v1025 = vpow.pop %v1024
  %v1026 = vsel %vm352, %v1019, 0.0
  %1027 = vadd.xlane.f32.xlu0 %v1026
  %v1028 = vpop.xlane.xlu0 %1027
  %v1029 = vsel %vm352, %v1021, 0.0
  %1030 = vadd.xlane.f32.xlu0 %v1029
  %v1031 = vpop.xlane.xlu0 %1030
  %v1032 = vsel %vm352, %v1023, 0.0
  %1033 = vadd.xlane.f32.xlu0 %v1032
  %v1034 = vpop.xlane.xlu0 %1033
  %v1035 = vsel %vm352, %v1025, 0.0
  %1036 = vadd.xlane.f32.xlu0 %v1035
  %v1037 = vpop.xlane.xlu0 %1036
  %v1038 = vrcp.pop %v1028
  %v1039 = vmul.f32 %v1019, %v1038
  %v1040 = vrcp.pop %v1031
  %v1041 = vmul.f32 %v1021, %v1040
  %v1042 = vrcp.pop %v1034
  %v1043 = vmul.f32 %v1023, %v1042
  %v1044 = vrcp.pop %v1037
  %v1045 = vmul.f32 %v1025, %v1044
  %v1046 = vpack.c.bf16 %v1041, %v1039
  %v1047 = vpack.c.bf16 %v1045, %v1043
  %1048 = vrot.lane.b32.xlu0 %v399, 120
  %v1049 = vpop.permute.xlu0 %1048
  %v1052 = vsel %vm352, %v1046, 0
  %1054 = vmatprep.subr.bf16.mxu0 0
  %1055 = vmatpush1.bf16.msra.mxu0 %v1049
  %1056 = vmatprep.subr.bf16.mxu0 0
  %1057 = vmatpush1.bf16.msra.mxu0 0
  %1058 = vmatprep.subr.bf16.mxu0 0
  %1059 = vmatpush1.bf16.msra.mxu0 0
  %1060 = vmatprep.subr.bf16.mxu0 0
  %1061 = vmatpush1.bf16.msra.mxu0 0
  %1062 = vmatprep.subr.bf16.mxu0 0
  %1063 = vmatpush1.bf16.msra.mxu0 0
  %1064 = vmatprep.subr.bf16.mxu0 0
  %1065 = vmatpush1.bf16.msra.mxu0 0
  %1066 = vmatprep.subr.bf16.mxu0 0
  %1067 = vmatpush1.bf16.msra.mxu0 0
  %1068 = vmatprep.subr.bf16.mxu0 0
  %1069 = vmatpush1.bf16.msra.mxu0 0
  %1070 = vmatprep.subr.bf16.mxu0 0
  %1071 = vmatpush1.bf16.msra.mxu0 0
  %1072 = vmatprep.subr.bf16.mxu0 0
  %1073 = vmatpush1.bf16.msra.mxu0 0
  %1074 = vmatprep.subr.bf16.mxu0 0
  %1075 = vmatpush1.bf16.msra.mxu0 0
  %1076 = vmatprep.subr.bf16.mxu0 0
  %1077 = vmatpush1.bf16.msra.mxu0 0
  %1078 = vmatprep.subr.bf16.mxu0 0
  %1079 = vmatpush1.bf16.msra.mxu0 0
  %1080 = vmatprep.subr.bf16.mxu0 0
  %1081 = vmatpush1.bf16.msra.mxu0 0
  %1082 = vmatprep.subr.bf16.mxu0 0
  %1083 = vmatpush1.bf16.msra.mxu0 0
  %1084 = vmatprep.subr.bf16.mxu0 0
  %1085 = vmatpush1.bf16.msra.mxu0 0
  %1086 = vmatprep.mubr.bf16.mxu0 0
  %1087 = vmatmul.mubr.bf16.gmra.mrb[0].mxu0 %v1052
  %v1088 = vpop.f32.mrb[0].mxu0
  %v1089 = vadd.f32 0.0, %v1088
  %v1090 = vpop.f32.mrb[0].mxu0
  %v1091 = vpop.f32.mrb[0].mxu0
  %v1092 = vadd.f32 0.0, %v1091
  %v1093 = vpop.f32.mrb[0].mxu0
  %1094 = vdwg.mxu0
  %1095 = vrot.lane.b32.xlu0 %v400, 120
  %v1096 = vpop.permute.xlu0 %1095
  %v1099 = vsel %vm352, %v1047, 0
  %1101 = vmatprep.subr.bf16.mxu0 0
  %1102 = vmatpush1.bf16.msra.mxu0 %v1096
  %1103 = vmatprep.subr.bf16.mxu0 0
  %1104 = vmatpush1.bf16.msra.mxu0 0
  %1105 = vmatprep.subr.bf16.mxu0 0
  %1106 = vmatpush1.bf16.msra.mxu0 0
  %1107 = vmatprep.subr.bf16.mxu0 0
  %1108 = vmatpush1.bf16.msra.mxu0 0
  %1109 = vmatprep.subr.bf16.mxu0 0
  %1110 = vmatpush1.bf16.msra.mxu0 0
  %1111 = vmatprep.subr.bf16.mxu0 0
  %1112 = vmatpush1.bf16.msra.mxu0 0
  %1113 = vmatprep.subr.bf16.mxu0 0
  %1114 = vmatpush1.bf16.msra.mxu0 0
  %1115 = vmatprep.subr.bf16.mxu0 0
  %1116 = vmatpush1.bf16.msra.mxu0 0
  %1117 = vmatprep.subr.bf16.mxu0 0
  %1118 = vmatpush1.bf16.msra.mxu0 0
  %1119 = vmatprep.subr.bf16.mxu0 0
  %1120 = vmatpush1.bf16.msra.mxu0 0
  %1121 = vmatprep.subr.bf16.mxu0 0
  %1122 = vmatpush1.bf16.msra.mxu0 0
  %1123 = vmatprep.subr.bf16.mxu0 0
  %1124 = vmatpush1.bf16.msra.mxu0 0
  %1125 = vmatprep.subr.bf16.mxu0 0
  %1126 = vmatpush1.bf16.msra.mxu0 0
  %1127 = vmatprep.subr.bf16.mxu0 0
  %1128 = vmatpush1.bf16.msra.mxu0 0
  %1129 = vmatprep.subr.bf16.mxu0 0
  %1130 = vmatpush1.bf16.msra.mxu0 0
  %1131 = vmatprep.subr.bf16.mxu0 0
  %1132 = vmatpush1.bf16.msra.mxu0 0
  %1133 = vmatprep.mubr.bf16.mxu0 0
  %1134 = vmatmul.mubr.bf16.gmra.mrb[0].mxu0 %v1099
  %v1135 = vpop.f32.mrb[0].mxu0
  %v1136 = vadd.f32 0.0, %v1135
  %v1137 = vpop.f32.mrb[0].mxu0
  %v1138 = vpop.f32.mrb[0].mxu0
  %v1139 = vadd.f32 0.0, %v1138
  %v1140 = vpop.f32.mrb[0].mxu0
  %1141 = vdwg.mxu0
  %v1142 = vpack.c.bf16 %v1092, %v1089
  %v1143 = vpack.c.bf16 %v1139, %v1136
  %v1145 = vsel %vm248, %v1142, 0
  %v1148 = vsel %vm248, %v1143, 0
  %v1151 = vsel %vm497, %v78, 0
  %1153 = vmatprep.subr.bf16.mxu0 0
  %1154 = vmatpush1.bf16.msra.mxu0 %v1151
  %1155 = vmatprep.subr.bf16.mxu0 0
  %1156 = vmatpush1.bf16.msra.mxu0 0
  %1157 = vmatprep.subr.bf16.mxu0 0
  %1158 = vmatpush1.bf16.msra.mxu0 0
  %1159 = vmatprep.subr.bf16.mxu0 0
  %1160 = vmatpush1.bf16.msra.mxu0 0
  %1161 = vmatprep.subr.bf16.mxu0 0
  %1162 = vmatpush1.bf16.msra.mxu0 0
  %1163 = vmatprep.subr.bf16.mxu0 0
  %1164 = vmatpush1.bf16.msra.mxu0 0
  %1165 = vmatprep.subr.bf16.mxu0 0
  %1166 = vmatpush1.bf16.msra.mxu0 0
  %1167 = vmatprep.subr.bf16.mxu0 0
  %1168 = vmatpush1.bf16.msra.mxu0 0
  %1169 = vmatprep.subr.bf16.mxu0 0
  %1170 = vmatpush1.bf16.msra.mxu0 0
  %1171 = vmatprep.subr.bf16.mxu0 0
  %1172 = vmatpush1.bf16.msra.mxu0 0
  %1173 = vmatprep.subr.bf16.mxu0 0
  %1174 = vmatpush1.bf16.msra.mxu0 0
  %1175 = vmatprep.subr.bf16.mxu0 0
  %1176 = vmatpush1.bf16.msra.mxu0 0
  %1177 = vmatprep.subr.bf16.mxu0 0
  %1178 = vmatpush1.bf16.msra.mxu0 0
  %1179 = vmatprep.subr.bf16.mxu0 0
  %1180 = vmatpush1.bf16.msra.mxu0 0
  %1181 = vmatprep.subr.bf16.mxu0 0
  %1182 = vmatpush1.bf16.msra.mxu0 0
  %1183 = vmatprep.subr.bf16.mxu0 0
  %1184 = vmatpush1.bf16.msra.mxu0 0
  %1185 = vmatprep.mubr.bf16.mxu0 0
  %1186 = vmatmul.mubr.bf16.gmra.mrb[0].mxu0 %v1145
  %v1187 = vpop.f32.mrb[0].mxu0
  %v1188 = vadd.f32 0.0, %v1187
  %v1189 = vpop.f32.mrb[0].mxu0
  %v1190 = vpop.f32.mrb[0].mxu0
  %v1191 = vadd.f32 0.0, %v1190
  %v1192 = vpop.f32.mrb[0].mxu0
  %1193 = vmatprep.mubr.bf16.mxu0 0
  %1194 = vmatmul.mubr.bf16.gmra.mrb[0].mxu0 %v1148
  %v1195 = vpop.f32.mrb[0].mxu0
  %v1196 = vadd.f32 0.0, %v1195
  %v1197 = vpop.f32.mrb[0].mxu0
  %v1198 = vpop.f32.mrb[0].mxu0
  %v1199 = vadd.f32 0.0, %v1198
  %v1200 = vpop.f32.mrb[0].mxu0
  %1201 = vdwg.mxu0
  %v1202 = vadd.f32 %v880, %v1188
  %v1203 = vadd.f32 %v881, %v1191
  %v1204 = vadd.f32 %v882, %v1196
  %v1205 = vadd.f32 %v883, %v1199
  %1206 = vrot.lane.b32.xlu0 %v243, 12
  %v1207 = vpop.permute.xlu0 %1206
  %v1209 = vmul.f32 %v144, %v1207
  %v1210 = vmul.f32 %v147, %v1207
  %v1211 = vmul.f32 %v152, %v1207
  %v1212 = vmul.f32 %v155, %v1207
  %1217 = vrot.lane.b32.xlu0 %v1209, 116
  %v1218 = vpop.permute.xlu0 %1217
  %1219 = vrot.lane.b32.xlu0 %v1210, 116
  %v1220 = vpop.permute.xlu0 %1219
  %1221 = vrot.lane.b32.xlu0 %v1211, 116
  %v1222 = vpop.permute.xlu0 %1221
  %1223 = vrot.lane.b32.xlu0 %v1212, 116
  %v1224 = vpop.permute.xlu0 %1223
  %v1229 = vsel %vm248, %v1218, 0.0
  %1230 = vadd.xlane.f32.xlu0 %v1229
  %v1231 = vpop.xlane.xlu0 %1230
  %v1232 = vsel %vm248, %v1220, 0.0
  %1233 = vadd.xlane.f32.xlu0 %v1232
  %v1234 = vpop.xlane.xlu0 %1233
  %v1235 = vsel %vm248, %v1222, 0.0
  %1236 = vadd.xlane.f32.xlu0 %v1235
  %v1237 = vpop.xlane.xlu0 %1236
  %v1238 = vsel %vm248, %v1224, 0.0
  %1239 = vadd.xlane.f32.xlu0 %v1238
  %v1240 = vpop.xlane.xlu0 %1239
  %1241 = vrot.lane.b32.xlu0 %v264, 12
  %v1242 = vpop.permute.xlu0 %1241
  %v1244 = vmul.f32 %v219, %v1242
  %v1245 = vmul.f32 %v222, %v1242
  %v1246 = vmul.f32 %v227, %v1242
  %v1247 = vmul.f32 %v230, %v1242
  %1252 = vrot.lane.b32.xlu0 %v1244, 116
  %v1253 = vpop.permute.xlu0 %1252
  %1254 = vrot.lane.b32.xlu0 %v1245, 116
  %v1255 = vpop.permute.xlu0 %1254
  %1256 = vrot.lane.b32.xlu0 %v1246, 116
  %v1257 = vpop.permute.xlu0 %1256
  %1258 = vrot.lane.b32.xlu0 %v1247, 116
  %v1259 = vpop.permute.xlu0 %1258
  %v1264 = vsel %vm248, %v1253, 0.0
  %1265 = vadd.xlane.f32.xlu0 %v1264
  %v1266 = vpop.xlane.xlu0 %1265
  %v1267 = vsel %vm248, %v1255, 0.0
  %1268 = vadd.xlane.f32.xlu0 %v1267
  %v1269 = vpop.xlane.xlu0 %1268
  %v1270 = vsel %vm248, %v1257, 0.0
  %1271 = vadd.xlane.f32.xlu0 %v1270
  %v1272 = vpop.xlane.xlu0 %1271
  %v1273 = vsel %vm248, %v1259, 0.0
  %1274 = vadd.xlane.f32.xlu0 %v1273
  %v1275 = vpop.xlane.xlu0 %1274
  %v1280 = vlaneseq
  %v1281 = vshrl.u32 %v1280, 7
  %v1282 = vsub.s32 %v286, %v1281
  %v1283 = vrot.slane %v1231, %v1282
  %v1284 = vlaneseq
  %v1285 = vshrl.u32 %v1284, 7
  %v1286 = vsub.s32 %v291, %v1285
  %v1287 = vrot.slane %v1234, %v1286
  %v1288 = vsel %vm296, %v1287, %v1283
  %v1289 = vlaneseq
  %v1290 = vshrl.u32 %v1289, 7
  %v1291 = vsub.s32 %v286, %v1290
  %v1292 = vrot.slane %v1237, %v1291
  %v1293 = vlaneseq
  %v1294 = vshrl.u32 %v1293, 7
  %v1295 = vsub.s32 %v291, %v1294
  %v1296 = vrot.slane %v1240, %v1295
  %v1297 = vsel %vm296, %v1296, %v1292
  %v1298 = vsel %vm308, %v1288, %v1288
  %v1299 = vsel %vm310, %v1288, %v1298
  %v1300 = vsel %vm312, %v1288, %v1299
  %v1301 = vsel %vm314, %v1288, %v1300
  %v1302 = vsel %vm316, %v1288, %v1301
  %v1303 = vsel %vm318, %v1288, %v1302
  %v1304 = vsel %vm308, %v1297, %v1297
  %v1305 = vsel %vm310, %v1297, %v1304
  %v1306 = vsel %vm312, %v1297, %v1305
  %v1307 = vsel %vm314, %v1297, %v1306
  %v1308 = vsel %vm316, %v1297, %v1307
  %v1309 = vsel %vm318, %v1297, %v1308
  %v1312 = vadd.f32 %v1266, %v1303
  %v1313 = vadd.f32 %v1269, %v1303
  %v1314 = vadd.f32 %v1272, %v1309
  %v1315 = vadd.f32 %v1275, %v1309
  %v1316 = vtanh.pop %v1312
  %v1317 = vtanh.pop %v1313
  %v1318 = vtanh.pop %v1314
  %v1319 = vtanh.pop %v1315
  %v1320 = vadd.f32 %v1316, %v341
  %v1321 = vadd.f32 %v1317, %v341
  %v1322 = vadd.f32 %v1318, %v345
  %v1323 = vadd.f32 %v1319, %v345
  %v1324 = vsel %vm352, %v1320, -inf
  %1325 = vmax.xlane.f32.xlu0 %v1324
  %v1326 = vpop.xlane.xlu0 %1325
  %v1327 = vsel %vm352, %v1321, -inf
  %1328 = vmax.xlane.f32.xlu0 %v1327
  %v1329 = vpop.xlane.xlu0 %1328
  %v1330 = vsel %vm352, %v1322, -inf
  %1331 = vmax.xlane.f32.xlu0 %v1330
  %v1332 = vpop.xlane.xlu0 %1331
  %v1333 = vsel %vm352, %v1323, -inf
  %1334 = vmax.xlane.f32.xlu0 %v1333
  %v1335 = vpop.xlane.xlu0 %1334
  %v1336 = vsub.f32 %v1320, %v1326
  %v1337 = vsub.f32 %v1321, %v1329
  %v1338 = vsub.f32 %v1322, %v1332
  %v1339 = vsub.f32 %v1323, %v1335
  %v1340 = vmul.f32 %v1336, 1.442695
  %v1341 = vpow.pop %v1340
  %v1342 = vmul.f32 %v1337, 1.442695
  %v1343 = vpow.pop %v1342
  %v1344 = vmul.f32 %v1338, 1.442695
  %v1345 = vpow.pop %v1344
  %v1346 = vmul.f32 %v1339, 1.442695
  %v1347 = vpow.pop %v1346
  %v1348 = vsel %vm352, %v1341, 0.0
  %1349 = vadd.xlane.f32.xlu0 %v1348
  %v1350 = vpop.xlane.xlu0 %1349
  %v1351 = vsel %vm352, %v1343, 0.0
  %1352 = vadd.xlane.f32.xlu0 %v1351
  %v1353 = vpop.xlane.xlu0 %1352
  %v1354 = vsel %vm352, %v1345, 0.0
  %1355 = vadd.xlane.f32.xlu0 %v1354
  %v1356 = vpop.xlane.xlu0 %1355
  %v1357 = vsel %vm352, %v1347, 0.0
  %1358 = vadd.xlane.f32.xlu0 %v1357
  %v1359 = vpop.xlane.xlu0 %1358
  %v1360 = vrcp.pop %v1350
  %v1361 = vmul.f32 %v1341, %v1360
  %v1362 = vrcp.pop %v1353
  %v1363 = vmul.f32 %v1343, %v1362
  %v1364 = vrcp.pop %v1356
  %v1365 = vmul.f32 %v1345, %v1364
  %v1366 = vrcp.pop %v1359
  %v1367 = vmul.f32 %v1347, %v1366
  %v1368 = vpack.c.bf16 %v1363, %v1361
  %v1369 = vpack.c.bf16 %v1367, %v1365
  %1370 = vrot.lane.b32.xlu0 %v399, 116
  %v1371 = vpop.permute.xlu0 %1370
  %v1374 = vsel %vm352, %v1368, 0
  %1376 = vmatprep.subr.bf16.mxu0 0
  %1377 = vmatpush1.bf16.msra.mxu0 %v1371
  %1378 = vmatprep.subr.bf16.mxu0 0
  %1379 = vmatpush1.bf16.msra.mxu0 0
  %1380 = vmatprep.subr.bf16.mxu0 0
  %1381 = vmatpush1.bf16.msra.mxu0 0
  %1382 = vmatprep.subr.bf16.mxu0 0
  %1383 = vmatpush1.bf16.msra.mxu0 0
  %1384 = vmatprep.subr.bf16.mxu0 0
  %1385 = vmatpush1.bf16.msra.mxu0 0
  %1386 = vmatprep.subr.bf16.mxu0 0
  %1387 = vmatpush1.bf16.msra.mxu0 0
  %1388 = vmatprep.subr.bf16.mxu0 0
  %1389 = vmatpush1.bf16.msra.mxu0 0
  %1390 = vmatprep.subr.bf16.mxu0 0
  %1391 = vmatpush1.bf16.msra.mxu0 0
  %1392 = vmatprep.subr.bf16.mxu0 0
  %1393 = vmatpush1.bf16.msra.mxu0 0
  %1394 = vmatprep.subr.bf16.mxu0 0
  %1395 = vmatpush1.bf16.msra.mxu0 0
  %1396 = vmatprep.subr.bf16.mxu0 0
  %1397 = vmatpush1.bf16.msra.mxu0 0
  %1398 = vmatprep.subr.bf16.mxu0 0
  %1399 = vmatpush1.bf16.msra.mxu0 0
  %1400 = vmatprep.subr.bf16.mxu0 0
  %1401 = vmatpush1.bf16.msra.mxu0 0
  %1402 = vmatprep.subr.bf16.mxu0 0
  %1403 = vmatpush1.bf16.msra.mxu0 0
  %1404 = vmatprep.subr.bf16.mxu0 0
  %1405 = vmatpush1.bf16.msra.mxu0 0
  %1406 = vmatprep.subr.bf16.mxu0 0
  %1407 = vmatpush1.bf16.msra.mxu0 0
  %1408 = vmatprep.mubr.bf16.mxu0 0
  %1409 = vmatmul.mubr.bf16.gmra.mrb[0].mxu0 %v1374
  %v1410 = vpop.f32.mrb[0].mxu0
  %v1411 = vadd.f32 0.0, %v1410
  %v1412 = vpop.f32.mrb[0].mxu0
  %v1413 = vpop.f32.mrb[0].mxu0
  %v1414 = vadd.f32 0.0, %v1413
  %v1415 = vpop.f32.mrb[0].mxu0
  %1416 = vdwg.mxu0
  %1417 = vrot.lane.b32.xlu0 %v400, 116
  %v1418 = vpop.permute.xlu0 %1417
  %v1421 = vsel %vm352, %v1369, 0
  %1423 = vmatprep.subr.bf16.mxu0 0
  %1424 = vmatpush1.bf16.msra.mxu0 %v1418
  %1425 = vmatprep.subr.bf16.mxu0 0
  %1426 = vmatpush1.bf16.msra.mxu0 0
  %1427 = vmatprep.subr.bf16.mxu0 0
  %1428 = vmatpush1.bf16.msra.mxu0 0
  %1429 = vmatprep.subr.bf16.mxu0 0
  %1430 = vmatpush1.bf16.msra.mxu0 0
  %1431 = vmatprep.subr.bf16.mxu0 0
  %1432 = vmatpush1.bf16.msra.mxu0 0
  %1433 = vmatprep.subr.bf16.mxu0 0
  %1434 = vmatpush1.bf16.msra.mxu0 0
  %1435 = vmatprep.subr.bf16.mxu0 0
  %1436 = vmatpush1.bf16.msra.mxu0 0
  %1437 = vmatprep.subr.bf16.mxu0 0
  %1438 = vmatpush1.bf16.msra.mxu0 0
  %1439 = vmatprep.subr.bf16.mxu0 0
  %1440 = vmatpush1.bf16.msra.mxu0 0
  %1441 = vmatprep.subr.bf16.mxu0 0
  %1442 = vmatpush1.bf16.msra.mxu0 0
  %1443 = vmatprep.subr.bf16.mxu0 0
  %1444 = vmatpush1.bf16.msra.mxu0 0
  %1445 = vmatprep.subr.bf16.mxu0 0
  %1446 = vmatpush1.bf16.msra.mxu0 0
  %1447 = vmatprep.subr.bf16.mxu0 0
  %1448 = vmatpush1.bf16.msra.mxu0 0
  %1449 = vmatprep.subr.bf16.mxu0 0
  %1450 = vmatpush1.bf16.msra.mxu0 0
  %1451 = vmatprep.subr.bf16.mxu0 0
  %1452 = vmatpush1.bf16.msra.mxu0 0
  %1453 = vmatprep.subr.bf16.mxu0 0
  %1454 = vmatpush1.bf16.msra.mxu0 0
  %1455 = vmatprep.mubr.bf16.mxu0 0
  %1456 = vmatmul.mubr.bf16.gmra.mrb[0].mxu0 %v1421
  %v1457 = vpop.f32.mrb[0].mxu0
  %v1458 = vadd.f32 0.0, %v1457
  %v1459 = vpop.f32.mrb[0].mxu0
  %v1460 = vpop.f32.mrb[0].mxu0
  %v1461 = vadd.f32 0.0, %v1460
  %v1462 = vpop.f32.mrb[0].mxu0
  %1463 = vdwg.mxu0
  %v1464 = vpack.c.bf16 %v1414, %v1411
  %v1465 = vpack.c.bf16 %v1461, %v1458
  %v1467 = vunpack.c.l.b16 %v78
  %v1468 = vpack.c.b16 %v1467, %v1467
  %v1469 = vrot.slane %v1468, 2
  %v1471 = vsel %vm248, %v1464, 0
  %v1474 = vsel %vm248, %v1465, 0
  %v1477 = vsel %vm497, %v1469, 0
  %1479 = vmatprep.subr.bf16.mxu0 0
  %1480 = vmatpush1.bf16.msra.mxu0 %v1477
  %1481 = vmatprep.subr.bf16.mxu0 0
  %1482 = vmatpush1.bf16.msra.mxu0 0
  %1483 = vmatprep.subr.bf16.mxu0 0
  %1484 = vmatpush1.bf16.msra.mxu0 0
  %1485 = vmatprep.subr.bf16.mxu0 0
  %1486 = vmatpush1.bf16.msra.mxu0 0
  %1487 = vmatprep.subr.bf16.mxu0 0
  %1488 = vmatpush1.bf16.msra.mxu0 0
  %1489 = vmatprep.subr.bf16.mxu0 0
  %1490 = vmatpush1.bf16.msra.mxu0 0
  %1491 = vmatprep.subr.bf16.mxu0 0
  %1492 = vmatpush1.bf16.msra.mxu0 0
  %1493 = vmatprep.subr.bf16.mxu0 0
  %1494 = vmatpush1.bf16.msra.mxu0 0
  %1495 = vmatprep.subr.bf16.mxu0 0
  %1496 = vmatpush1.bf16.msra.mxu0 0
  %1497 = vmatprep.subr.bf16.mxu0 0
  %1498 = vmatpush1.bf16.msra.mxu0 0
  %1499 = vmatprep.subr.bf16.mxu0 0
  %1500 = vmatpush1.bf16.msra.mxu0 0
  %1501 = vmatprep.subr.bf16.mxu0 0
  %1502 = vmatpush1.bf16.msra.mxu0 0
  %1503 = vmatprep.subr.bf16.mxu0 0
  %1504 = vmatpush1.bf16.msra.mxu0 0
  %1505 = vmatprep.subr.bf16.mxu0 0
  %1506 = vmatpush1.bf16.msra.mxu0 0
  %1507 = vmatprep.subr.bf16.mxu0 0
  %1508 = vmatpush1.bf16.msra.mxu0 0
  %1509 = vmatprep.subr.bf16.mxu0 0
  %1510 = vmatpush1.bf16.msra.mxu0 0
  %1511 = vmatprep.mubr.bf16.mxu0 0
  %1512 = vmatmul.mubr.bf16.gmra.mrb[0].mxu0 %v1471
  %v1513 = vpop.f32.mrb[0].mxu0
  %v1514 = vadd.f32 0.0, %v1513
  %v1515 = vpop.f32.mrb[0].mxu0
  %v1516 = vpop.f32.mrb[0].mxu0
  %v1517 = vadd.f32 0.0, %v1516
  %v1518 = vpop.f32.mrb[0].mxu0
  %1519 = vmatprep.mubr.bf16.mxu0 0
  %1520 = vmatmul.mubr.bf16.gmra.mrb[0].mxu0 %v1474
  %v1521 = vpop.f32.mrb[0].mxu0
  %v1522 = vadd.f32 0.0, %v1521
  %v1523 = vpop.f32.mrb[0].mxu0
  %v1524 = vpop.f32.mrb[0].mxu0
  %v1525 = vadd.f32 0.0, %v1524
  %v1526 = vpop.f32.mrb[0].mxu0
  %1527 = vdwg.mxu0
  %v1528 = vadd.f32 %v1202, %v1514
  %v1529 = vadd.f32 %v1203, %v1517
  %v1530 = vadd.f32 %v1204, %v1522
  %v1531 = vadd.f32 %v1205, %v1525
  %1532 = vrot.lane.b32.xlu0 %v243, 16
  %v1533 = vpop.permute.xlu0 %1532
  %v1535 = vmul.f32 %v144, %v1533
  %v1536 = vmul.f32 %v147, %v1533
  %v1537 = vmul.f32 %v152, %v1533
  %v1538 = vmul.f32 %v155, %v1533
  %1543 = vrot.lane.b32.xlu0 %v1535, 112
  %v1544 = vpop.permute.xlu0 %1543
  %1545 = vrot.lane.b32.xlu0 %v1536, 112
  %v1546 = vpop.permute.xlu0 %1545
  %1547 = vrot.lane.b32.xlu0 %v1537, 112
  %v1548 = vpop.permute.xlu0 %1547
  %1549 = vrot.lane.b32.xlu0 %v1538, 112
  %v1550 = vpop.permute.xlu0 %1549
  %v1555 = vsel %vm248, %v1544, 0.0
  %1556 = vadd.xlane.f32.xlu0 %v1555
  %v1557 = vpop.xlane.xlu0 %1556
  %v1558 = vsel %vm248, %v1546, 0.0
  %1559 = vadd.xlane.f32.xlu0 %v1558
  %v1560 = vpop.xlane.xlu0 %1559
  %v1561 = vsel %vm248, %v1548, 0.0
  %1562 = vadd.xlane.f32.xlu0 %v1561
  %v1563 = vpop.xlane.xlu0 %1562
  %v1564 = vsel %vm248, %v1550, 0.0
  %1565 = vadd.xlane.f32.xlu0 %v1564
  %v1566 = vpop.xlane.xlu0 %1565
  %1567 = vrot.lane.b32.xlu0 %v264, 16
  %v1568 = vpop.permute.xlu0 %1567
  %v1570 = vmul.f32 %v219, %v1568
  %v1571 = vmul.f32 %v222, %v1568
  %v1572 = vmul.f32 %v227, %v1568
  %v1573 = vmul.f32 %v230, %v1568
  %1578 = vrot.lane.b32.xlu0 %v1570, 112
  %v1579 = vpop.permute.xlu0 %1578
  %1580 = vrot.lane.b32.xlu0 %v1571, 112
  %v1581 = vpop.permute.xlu0 %1580
  %1582 = vrot.lane.b32.xlu0 %v1572, 112
  %v1583 = vpop.permute.xlu0 %1582
  %1584 = vrot.lane.b32.xlu0 %v1573, 112
  %v1585 = vpop.permute.xlu0 %1584
  %v1590 = vsel %vm248, %v1579, 0.0
  %1591 = vadd.xlane.f32.xlu0 %v1590
  %v1592 = vpop.xlane.xlu0 %1591
  %v1593 = vsel %vm248, %v1581, 0.0
  %1594 = vadd.xlane.f32.xlu0 %v1593
  %v1595 = vpop.xlane.xlu0 %1594
  %v1596 = vsel %vm248, %v1583, 0.0
  %1597 = vadd.xlane.f32.xlu0 %v1596
  %v1598 = vpop.xlane.xlu0 %1597
  %v1599 = vsel %vm248, %v1585, 0.0
  %1600 = vadd.xlane.f32.xlu0 %v1599
  %v1601 = vpop.xlane.xlu0 %1600
  %v1606 = vlaneseq
  %v1607 = vshrl.u32 %v1606, 7
  %v1608 = vsub.s32 %v286, %v1607
  %v1609 = vrot.slane %v1557, %v1608
  %v1610 = vlaneseq
  %v1611 = vshrl.u32 %v1610, 7
  %v1612 = vsub.s32 %v291, %v1611
  %v1613 = vrot.slane %v1560, %v1612
  %v1614 = vsel %vm296, %v1613, %v1609
  %v1615 = vlaneseq
  %v1616 = vshrl.u32 %v1615, 7
  %v1617 = vsub.s32 %v286, %v1616
  %v1618 = vrot.slane %v1563, %v1617
  %v1619 = vlaneseq
  %v1620 = vshrl.u32 %v1619, 7
  %v1621 = vsub.s32 %v291, %v1620
  %v1622 = vrot.slane %v1566, %v1621
  %v1623 = vsel %vm296, %v1622, %v1618
  %v1624 = vsel %vm308, %v1614, %v1614
  %v1625 = vsel %vm310, %v1614, %v1624
  %v1626 = vsel %vm312, %v1614, %v1625
  %v1627 = vsel %vm314, %v1614, %v1626
  %v1628 = vsel %vm316, %v1614, %v1627
  %v1629 = vsel %vm318, %v1614, %v1628
  %v1630 = vsel %vm308, %v1623, %v1623
  %v1631 = vsel %vm310, %v1623, %v1630
  %v1632 = vsel %vm312, %v1623, %v1631
  %v1633 = vsel %vm314, %v1623, %v1632
  %v1634 = vsel %vm316, %v1623, %v1633
  %v1635 = vsel %vm318, %v1623, %v1634
  %v1638 = vadd.f32 %v1592, %v1629
  %v1639 = vadd.f32 %v1595, %v1629
  %v1640 = vadd.f32 %v1598, %v1635
  %v1641 = vadd.f32 %v1601, %v1635
  %v1642 = vtanh.pop %v1638
  %v1643 = vtanh.pop %v1639
  %v1644 = vtanh.pop %v1640
  %v1645 = vtanh.pop %v1641
  %v1646 = vadd.f32 %v1642, %v341
  %v1647 = vadd.f32 %v1643, %v341
  %v1648 = vadd.f32 %v1644, %v345
  %v1649 = vadd.f32 %v1645, %v345
  %v1650 = vsel %vm352, %v1646, -inf
  %1651 = vmax.xlane.f32.xlu0 %v1650
  %v1652 = vpop.xlane.xlu0 %1651
  %v1653 = vsel %vm352, %v1647, -inf
  %1654 = vmax.xlane.f32.xlu0 %v1653
  %v1655 = vpop.xlane.xlu0 %1654
  %v1656 = vsel %vm352, %v1648, -inf
  %1657 = vmax.xlane.f32.xlu0 %v1656
  %v1658 = vpop.xlane.xlu0 %1657
  %v1659 = vsel %vm352, %v1649, -inf
  %1660 = vmax.xlane.f32.xlu0 %v1659
  %v1661 = vpop.xlane.xlu0 %1660
  %v1662 = vsub.f32 %v1646, %v1652
  %v1663 = vsub.f32 %v1647, %v1655
  %v1664 = vsub.f32 %v1648, %v1658
  %v1665 = vsub.f32 %v1649, %v1661
  %v1666 = vmul.f32 %v1662, 1.442695
  %v1667 = vpow.pop %v1666
  %v1668 = vmul.f32 %v1663, 1.442695
  %v1669 = vpow.pop %v1668
  %v1670 = vmul.f32 %v1664, 1.442695
  %v1671 = vpow.pop %v1670
  %v1672 = vmul.f32 %v1665, 1.442695
  %v1673 = vpow.pop %v1672
  %v1674 = vsel %vm352, %v1667, 0.0
  %1675 = vadd.xlane.f32.xlu0 %v1674
  %v1676 = vpop.xlane.xlu0 %1675
  %v1677 = vsel %vm352, %v1669, 0.0
  %1678 = vadd.xlane.f32.xlu0 %v1677
  %v1679 = vpop.xlane.xlu0 %1678
  %v1680 = vsel %vm352, %v1671, 0.0
  %1681 = vadd.xlane.f32.xlu0 %v1680
  %v1682 = vpop.xlane.xlu0 %1681
  %v1683 = vsel %vm352, %v1673, 0.0
  %1684 = vadd.xlane.f32.xlu0 %v1683
  %v1685 = vpop.xlane.xlu0 %1684
  %v1686 = vrcp.pop %v1676
  %v1687 = vmul.f32 %v1667, %v1686
  %v1688 = vrcp.pop %v1679
  %v1689 = vmul.f32 %v1669, %v1688
  %v1690 = vrcp.pop %v1682
  %v1691 = vmul.f32 %v1671, %v1690
  %v1692 = vrcp.pop %v1685
  %v1693 = vmul.f32 %v1673, %v1692
  %v1694 = vpack.c.bf16 %v1689, %v1687
  %v1695 = vpack.c.bf16 %v1693, %v1691
  %1696 = vrot.lane.b32.xlu0 %v399, 112
  %v1697 = vpop.permute.xlu0 %1696
  %v1700 = vsel %vm352, %v1694, 0
  %1702 = vmatprep.subr.bf16.mxu0 0
  %1703 = vmatpush1.bf16.msra.mxu0 %v1697
  %1704 = vmatprep.subr.bf16.mxu0 0
  %1705 = vmatpush1.bf16.msra.mxu0 0
  %1706 = vmatprep.subr.bf16.mxu0 0
  %1707 = vmatpush1.bf16.msra.mxu0 0
  %1708 = vmatprep.subr.bf16.mxu0 0
  %1709 = vmatpush1.bf16.msra.mxu0 0
  %1710 = vmatprep.subr.bf16.mxu0 0
  %1711 = vmatpush1.bf16.msra.mxu0 0
  %1712 = vmatprep.subr.bf16.mxu0 0
  %1713 = vmatpush1.bf16.msra.mxu0 0
  %1714 = vmatprep.subr.bf16.mxu0 0
  %1715 = vmatpush1.bf16.msra.mxu0 0
  %1716 = vmatprep.subr.bf16.mxu0 0
  %1717 = vmatpush1.bf16.msra.mxu0 0
  %1718 = vmatprep.subr.bf16.mxu0 0
  %1719 = vmatpush1.bf16.msra.mxu0 0
  %1720 = vmatprep.subr.bf16.mxu0 0
  %1721 = vmatpush1.bf16.msra.mxu0 0
  %1722 = vmatprep.subr.bf16.mxu0 0
  %1723 = vmatpush1.bf16.msra.mxu0 0
  %1724 = vmatprep.subr.bf16.mxu0 0
  %1725 = vmatpush1.bf16.msra.mxu0 0
  %1726 = vmatprep.subr.bf16.mxu0 0
  %1727 = vmatpush1.bf16.msra.mxu0 0
  %1728 = vmatprep.subr.bf16.mxu0 0
  %1729 = vmatpush1.bf16.msra.mxu0 0
  %1730 = vmatprep.subr.bf16.mxu0 0
  %1731 = vmatpush1.bf16.msra.mxu0 0
  %1732 = vmatprep.subr.bf16.mxu0 0
  %1733 = vmatpush1.bf16.msra.mxu0 0
  %1734 = vmatprep.mubr.bf16.mxu0 0
  %1735 = vmatmul.mubr.bf16.gmra.mrb[0].mxu0 %v1700
  %v1736 = vpop.f32.mrb[0].mxu0
  %v1737 = vadd.f32 0.0, %v1736
  %v1738 = vpop.f32.mrb[0].mxu0
  %v1739 = vpop.f32.mrb[0].mxu0
  %v1740 = vadd.f32 0.0, %v1739
  %v1741 = vpop.f32.mrb[0].mxu0
  %1742 = vdwg.mxu0
  %1743 = vrot.lane.b32.xlu0 %v400, 112
  %v1744 = vpop.permute.xlu0 %1743
  %v1747 = vsel %vm352, %v1695, 0
  %1749 = vmatprep.subr.bf16.mxu0 0
  %1750 = vmatpush1.bf16.msra.mxu0 %v1744
  %1751 = vmatprep.subr.bf16.mxu0 0
  %1752 = vmatpush1.bf16.msra.mxu0 0
  %1753 = vmatprep.subr.bf16.mxu0 0
  %1754 = vmatpush1.bf16.msra.mxu0 0
  %1755 = vmatprep.subr.bf16.mxu0 0
  %1756 = vmatpush1.bf16.msra.mxu0 0
  %1757 = vmatprep.subr.bf16.mxu0 0
  %1758 = vmatpush1.bf16.msra.mxu0 0
  %1759 = vmatprep.subr.bf16.mxu0 0
  %1760 = vmatpush1.bf16.msra.mxu0 0
  %1761 = vmatprep.subr.bf16.mxu0 0
  %1762 = vmatpush1.bf16.msra.mxu0 0
  %1763 = vmatprep.subr.bf16.mxu0 0
  %1764 = vmatpush1.bf16.msra.mxu0 0
  %1765 = vmatprep.subr.bf16.mxu0 0
  %1766 = vmatpush1.bf16.msra.mxu0 0
  %1767 = vmatprep.subr.bf16.mxu0 0
  %1768 = vmatpush1.bf16.msra.mxu0 0
  %1769 = vmatprep.subr.bf16.mxu0 0
  %1770 = vmatpush1.bf16.msra.mxu0 0
  %1771 = vmatprep.subr.bf16.mxu0 0
  %1772 = vmatpush1.bf16.msra.mxu0 0
  %1773 = vmatprep.subr.bf16.mxu0 0
  %1774 = vmatpush1.bf16.msra.mxu0 0
  %1775 = vmatprep.subr.bf16.mxu0 0
  %1776 = vmatpush1.bf16.msra.mxu0 0
  %1777 = vmatprep.subr.bf16.mxu0 0
  %1778 = vmatpush1.bf16.msra.mxu0 0
  %1779 = vmatprep.subr.bf16.mxu0 0
  %1780 = vmatpush1.bf16.msra.mxu0 0
  %1781 = vmatprep.mubr.bf16.mxu0 0
  %1782 = vmatmul.mubr.bf16.gmra.mrb[0].mxu0 %v1747
  %v1783 = vpop.f32.mrb[0].mxu0
  %v1784 = vadd.f32 0.0, %v1783
  %v1785 = vpop.f32.mrb[0].mxu0
  %v1786 = vpop.f32.mrb[0].mxu0
  %v1787 = vadd.f32 0.0, %v1786
  %v1788 = vpop.f32.mrb[0].mxu0
  %1789 = vdwg.mxu0
  %v1790 = vpack.c.bf16 %v1740, %v1737
  %v1791 = vpack.c.bf16 %v1787, %v1784
  %v1793 = vsel %vm248, %v1790, 0
  %v1796 = vsel %vm248, %v1791, 0
  %v1799 = vsel %vm497, %v79, 0
  %1801 = vmatprep.subr.bf16.mxu0 0
  %1802 = vmatpush1.bf16.msra.mxu0 %v1799
  %1803 = vmatprep.subr.bf16.mxu0 0
  %1804 = vmatpush1.bf16.msra.mxu0 0
  %1805 = vmatprep.subr.bf16.mxu0 0
  %1806 = vmatpush1.bf16.msra.mxu0 0
  %1807 = vmatprep.subr.bf16.mxu0 0
  %1808 = vmatpush1.bf16.msra.mxu0 0
  %1809 = vmatprep.subr.bf16.mxu0 0
  %1810 = vmatpush1.bf16.msra.mxu0 0
  %1811 = vmatprep.subr.bf16.mxu0 0
  %1812 = vmatpush1.bf16.msra.mxu0 0
  %1813 = vmatprep.subr.bf16.mxu0 0
  %1814 = vmatpush1.bf16.msra.mxu0 0
  %1815 = vmatprep.subr.bf16.mxu0 0
  %1816 = vmatpush1.bf16.msra.mxu0 0
  %1817 = vmatprep.subr.bf16.mxu0 0
  %1818 = vmatpush1.bf16.msra.mxu0 0
  %1819 = vmatprep.subr.bf16.mxu0 0
  %1820 = vmatpush1.bf16.msra.mxu0 0
  %1821 = vmatprep.subr.bf16.mxu0 0
  %1822 = vmatpush1.bf16.msra.mxu0 0
  %1823 = vmatprep.subr.bf16.mxu0 0
  %1824 = vmatpush1.bf16.msra.mxu0 0
  %1825 = vmatprep.subr.bf16.mxu0 0
  %1826 = vmatpush1.bf16.msra.mxu0 0
  %1827 = vmatprep.subr.bf16.mxu0 0
  %1828 = vmatpush1.bf16.msra.mxu0 0
  %1829 = vmatprep.subr.bf16.mxu0 0
  %1830 = vmatpush1.bf16.msra.mxu0 0
  %1831 = vmatprep.subr.bf16.mxu0 0
  %1832 = vmatpush1.bf16.msra.mxu0 0
  %1833 = vmatprep.mubr.bf16.mxu0 0
  %1834 = vmatmul.mubr.bf16.gmra.mrb[0].mxu0 %v1793
  %v1835 = vpop.f32.mrb[0].mxu0
  %v1836 = vadd.f32 0.0, %v1835
  %v1837 = vpop.f32.mrb[0].mxu0
  %v1838 = vpop.f32.mrb[0].mxu0
  %v1839 = vadd.f32 0.0, %v1838
  %v1840 = vpop.f32.mrb[0].mxu0
  %1841 = vmatprep.mubr.bf16.mxu0 0
  %1842 = vmatmul.mubr.bf16.gmra.mrb[0].mxu0 %v1796
  %v1843 = vpop.f32.mrb[0].mxu0
  %v1844 = vadd.f32 0.0, %v1843
  %v1845 = vpop.f32.mrb[0].mxu0
  %v1846 = vpop.f32.mrb[0].mxu0
  %v1847 = vadd.f32 0.0, %v1846
  %v1848 = vpop.f32.mrb[0].mxu0
  %1849 = vdwg.mxu0
  %v1850 = vadd.f32 %v1528, %v1836
  %v1851 = vadd.f32 %v1529, %v1839
  %v1852 = vadd.f32 %v1530, %v1844
  %v1853 = vadd.f32 %v1531, %v1847
  %1854 = vrot.lane.b32.xlu0 %v243, 20
  %v1855 = vpop.permute.xlu0 %1854
  %v1857 = vmul.f32 %v144, %v1855
  %v1858 = vmul.f32 %v147, %v1855
  %v1859 = vmul.f32 %v152, %v1855
  %v1860 = vmul.f32 %v155, %v1855
  %1865 = vrot.lane.b32.xlu0 %v1857, 108
  %v1866 = vpop.permute.xlu0 %1865
  %1867 = vrot.lane.b32.xlu0 %v1858, 108
  %v1868 = vpop.permute.xlu0 %1867
  %1869 = vrot.lane.b32.xlu0 %v1859, 108
  %v1870 = vpop.permute.xlu0 %1869
  %1871 = vrot.lane.b32.xlu0 %v1860, 108
  %v1872 = vpop.permute.xlu0 %1871
  %v1877 = vsel %vm248, %v1866, 0.0
  %1878 = vadd.xlane.f32.xlu0 %v1877
  %v1879 = vpop.xlane.xlu0 %1878
  %v1880 = vsel %vm248, %v1868, 0.0
  %1881 = vadd.xlane.f32.xlu0 %v1880
  %v1882 = vpop.xlane.xlu0 %1881
  %v1883 = vsel %vm248, %v1870, 0.0
  %1884 = vadd.xlane.f32.xlu0 %v1883
  %v1885 = vpop.xlane.xlu0 %1884
  %v1886 = vsel %vm248, %v1872, 0.0
  %1887 = vadd.xlane.f32.xlu0 %v1886
  %v1888 = vpop.xlane.xlu0 %1887
  %1889 = vrot.lane.b32.xlu0 %v264, 20
  %v1890 = vpop.permute.xlu0 %1889
  %v1892 = vmul.f32 %v219, %v1890
  %v1893 = vmul.f32 %v222, %v1890
  %v1894 = vmul.f32 %v227, %v1890
  %v1895 = vmul.f32 %v230, %v1890
  %1900 = vrot.lane.b32.xlu0 %v1892, 108
  %v1901 = vpop.permute.xlu0 %1900
  %1902 = vrot.lane.b32.xlu0 %v1893, 108
  %v1903 = vpop.permute.xlu0 %1902
  %1904 = vrot.lane.b32.xlu0 %v1894, 108
  %v1905 = vpop.permute.xlu0 %1904
  %1906 = vrot.lane.b32.xlu0 %v1895, 108
  %v1907 = vpop.permute.xlu0 %1906
  %v1912 = vsel %vm248, %v1901, 0.0
  %1913 = vadd.xlane.f32.xlu0 %v1912
  %v1914 = vpop.xlane.xlu0 %1913
  %v1915 = vsel %vm248, %v1903, 0.0
  %1916 = vadd.xlane.f32.xlu0 %v1915
  %v1917 = vpop.xlane.xlu0 %1916
  %v1918 = vsel %vm248, %v1905, 0.0
  %1919 = vadd.xlane.f32.xlu0 %v1918
  %v1920 = vpop.xlane.xlu0 %1919
  %v1921 = vsel %vm248, %v1907, 0.0
  %1922 = vadd.xlane.f32.xlu0 %v1921
  %v1923 = vpop.xlane.xlu0 %1922
  %v1928 = vlaneseq
  %v1929 = vshrl.u32 %v1928, 7
  %v1930 = vsub.s32 %v286, %v1929
  %v1931 = vrot.slane %v1879, %v1930
  %v1932 = vlaneseq
  %v1933 = vshrl.u32 %v1932, 7
  %v1934 = vsub.s32 %v291, %v1933
  %v1935 = vrot.slane %v1882, %v1934
  %v1936 = vsel %vm296, %v1935, %v1931
  %v1937 = vlaneseq
  %v1938 = vshrl.u32 %v1937, 7
  %v1939 = vsub.s32 %v286, %v1938
  %v1940 = vrot.slane %v1885, %v1939
  %v1941 = vlaneseq
  %v1942 = vshrl.u32 %v1941, 7
  %v1943 = vsub.s32 %v291, %v1942
  %v1944 = vrot.slane %v1888, %v1943
  %v1945 = vsel %vm296, %v1944, %v1940
  %v1946 = vsel %vm308, %v1936, %v1936
  %v1947 = vsel %vm310, %v1936, %v1946
  %v1948 = vsel %vm312, %v1936, %v1947
  %v1949 = vsel %vm314, %v1936, %v1948
  %v1950 = vsel %vm316, %v1936, %v1949
  %v1951 = vsel %vm318, %v1936, %v1950
  %v1952 = vsel %vm308, %v1945, %v1945
  %v1953 = vsel %vm310, %v1945, %v1952
  %v1954 = vsel %vm312, %v1945, %v1953
  %v1955 = vsel %vm314, %v1945, %v1954
  %v1956 = vsel %vm316, %v1945, %v1955
  %v1957 = vsel %vm318, %v1945, %v1956
  %v1960 = vadd.f32 %v1914, %v1951
  %v1961 = vadd.f32 %v1917, %v1951
  %v1962 = vadd.f32 %v1920, %v1957
  %v1963 = vadd.f32 %v1923, %v1957
  %v1964 = vtanh.pop %v1960
  %v1965 = vtanh.pop %v1961
  %v1966 = vtanh.pop %v1962
  %v1967 = vtanh.pop %v1963
  %v1968 = vadd.f32 %v1964, %v341
  %v1969 = vadd.f32 %v1965, %v341
  %v1970 = vadd.f32 %v1966, %v345
  %v1971 = vadd.f32 %v1967, %v345
  %v1972 = vsel %vm352, %v1968, -inf
  %1973 = vmax.xlane.f32.xlu0 %v1972
  %v1974 = vpop.xlane.xlu0 %1973
  %v1975 = vsel %vm352, %v1969, -inf
  %1976 = vmax.xlane.f32.xlu0 %v1975
  %v1977 = vpop.xlane.xlu0 %1976
  %v1978 = vsel %vm352, %v1970, -inf
  %1979 = vmax.xlane.f32.xlu0 %v1978
  %v1980 = vpop.xlane.xlu0 %1979
  %v1981 = vsel %vm352, %v1971, -inf
  %1982 = vmax.xlane.f32.xlu0 %v1981
  %v1983 = vpop.xlane.xlu0 %1982
  %v1984 = vsub.f32 %v1968, %v1974
  %v1985 = vsub.f32 %v1969, %v1977
  %v1986 = vsub.f32 %v1970, %v1980
  %v1987 = vsub.f32 %v1971, %v1983
  %v1988 = vmul.f32 %v1984, 1.442695
  %v1989 = vpow.pop %v1988
  %v1990 = vmul.f32 %v1985, 1.442695
  %v1991 = vpow.pop %v1990
  %v1992 = vmul.f32 %v1986, 1.442695
  %v1993 = vpow.pop %v1992
  %v1994 = vmul.f32 %v1987, 1.442695
  %v1995 = vpow.pop %v1994
  %v1996 = vsel %vm352, %v1989, 0.0
  %1997 = vadd.xlane.f32.xlu0 %v1996
  %v1998 = vpop.xlane.xlu0 %1997
  %v1999 = vsel %vm352, %v1991, 0.0
  %2000 = vadd.xlane.f32.xlu0 %v1999
  %v2001 = vpop.xlane.xlu0 %2000
  %v2002 = vsel %vm352, %v1993, 0.0
  %2003 = vadd.xlane.f32.xlu0 %v2002
  %v2004 = vpop.xlane.xlu0 %2003
  %v2005 = vsel %vm352, %v1995, 0.0
  %2006 = vadd.xlane.f32.xlu0 %v2005
  %v2007 = vpop.xlane.xlu0 %2006
  %v2008 = vrcp.pop %v1998
  %v2009 = vmul.f32 %v1989, %v2008
  %v2010 = vrcp.pop %v2001
  %v2011 = vmul.f32 %v1991, %v2010
  %v2012 = vrcp.pop %v2004
  %v2013 = vmul.f32 %v1993, %v2012
  %v2014 = vrcp.pop %v2007
  %v2015 = vmul.f32 %v1995, %v2014
  %v2016 = vpack.c.bf16 %v2011, %v2009
  %v2017 = vpack.c.bf16 %v2015, %v2013
  %2018 = vrot.lane.b32.xlu0 %v399, 108
  %v2019 = vpop.permute.xlu0 %2018
  %v2022 = vsel %vm352, %v2016, 0
  %2024 = vmatprep.subr.bf16.mxu0 0
  %2025 = vmatpush1.bf16.msra.mxu0 %v2019
  %2026 = vmatprep.subr.bf16.mxu0 0
  %2027 = vmatpush1.bf16.msra.mxu0 0
  %2028 = vmatprep.subr.bf16.mxu0 0
  %2029 = vmatpush1.bf16.msra.mxu0 0
  %2030 = vmatprep.subr.bf16.mxu0 0
  %2031 = vmatpush1.bf16.msra.mxu0 0
  %2032 = vmatprep.subr.bf16.mxu0 0
  %2033 = vmatpush1.bf16.msra.mxu0 0
  %2034 = vmatprep.subr.bf16.mxu0 0
  %2035 = vmatpush1.bf16.msra.mxu0 0
  %2036 = vmatprep.subr.bf16.mxu0 0
  %2037 = vmatpush1.bf16.msra.mxu0 0
  %2038 = vmatprep.subr.bf16.mxu0 0
  %2039 = vmatpush1.bf16.msra.mxu0 0
  %2040 = vmatprep.subr.bf16.mxu0 0
  %2041 = vmatpush1.bf16.msra.mxu0 0
  %2042 = vmatprep.subr.bf16.mxu0 0
  %2043 = vmatpush1.bf16.msra.mxu0 0
  %2044 = vmatprep.subr.bf16.mxu0 0
  %2045 = vmatpush1.bf16.msra.mxu0 0
  %2046 = vmatprep.subr.bf16.mxu0 0
  %2047 = vmatpush1.bf16.msra.mxu0 0
  %2048 = vmatprep.subr.bf16.mxu0 0
  %2049 = vmatpush1.bf16.msra.mxu0 0
  %2050 = vmatprep.subr.bf16.mxu0 0
  %2051 = vmatpush1.bf16.msra.mxu0 0
  %2052 = vmatprep.subr.bf16.mxu0 0
  %2053 = vmatpush1.bf16.msra.mxu0 0
  %2054 = vmatprep.subr.bf16.mxu0 0
  %2055 = vmatpush1.bf16.msra.mxu0 0
  %2056 = vmatprep.mubr.bf16.mxu0 0
  %2057 = vmatmul.mubr.bf16.gmra.mrb[0].mxu0 %v2022
  %v2058 = vpop.f32.mrb[0].mxu0
  %v2059 = vadd.f32 0.0, %v2058
  %v2060 = vpop.f32.mrb[0].mxu0
  %v2061 = vpop.f32.mrb[0].mxu0
  %v2062 = vadd.f32 0.0, %v2061
  %v2063 = vpop.f32.mrb[0].mxu0
  %2064 = vdwg.mxu0
  %2065 = vrot.lane.b32.xlu0 %v400, 108
  %v2066 = vpop.permute.xlu0 %2065
  %v2069 = vsel %vm352, %v2017, 0
  %2071 = vmatprep.subr.bf16.mxu0 0
  %2072 = vmatpush1.bf16.msra.mxu0 %v2066
  %2073 = vmatprep.subr.bf16.mxu0 0
  %2074 = vmatpush1.bf16.msra.mxu0 0
  %2075 = vmatprep.subr.bf16.mxu0 0
  %2076 = vmatpush1.bf16.msra.mxu0 0
  %2077 = vmatprep.subr.bf16.mxu0 0
  %2078 = vmatpush1.bf16.msra.mxu0 0
  %2079 = vmatprep.subr.bf16.mxu0 0
  %2080 = vmatpush1.bf16.msra.mxu0 0
  %2081 = vmatprep.subr.bf16.mxu0 0
  %2082 = vmatpush1.bf16.msra.mxu0 0
  %2083 = vmatprep.subr.bf16.mxu0 0
  %2084 = vmatpush1.bf16.msra.mxu0 0
  %2085 = vmatprep.subr.bf16.mxu0 0
  %2086 = vmatpush1.bf16.msra.mxu0 0
  %2087 = vmatprep.subr.bf16.mxu0 0
  %2088 = vmatpush1.bf16.msra.mxu0 0
  %2089 = vmatprep.subr.bf16.mxu0 0
  %2090 = vmatpush1.bf16.msra.mxu0 0
  %2091 = vmatprep.subr.bf16.mxu0 0
  %2092 = vmatpush1.bf16.msra.mxu0 0
  %2093 = vmatprep.subr.bf16.mxu0 0
  %2094 = vmatpush1.bf16.msra.mxu0 0
  %2095 = vmatprep.subr.bf16.mxu0 0
  %2096 = vmatpush1.bf16.msra.mxu0 0
  %2097 = vmatprep.subr.bf16.mxu0 0
  %2098 = vmatpush1.bf16.msra.mxu0 0
  %2099 = vmatprep.subr.bf16.mxu0 0
  %2100 = vmatpush1.bf16.msra.mxu0 0
  %2101 = vmatprep.subr.bf16.mxu0 0
  %2102 = vmatpush1.bf16.msra.mxu0 0
  %2103 = vmatprep.mubr.bf16.mxu0 0
  %2104 = vmatmul.mubr.bf16.gmra.mrb[0].mxu0 %v2069
  %v2105 = vpop.f32.mrb[0].mxu0
  %v2106 = vadd.f32 0.0, %v2105
  %v2107 = vpop.f32.mrb[0].mxu0
  %v2108 = vpop.f32.mrb[0].mxu0
  %v2109 = vadd.f32 0.0, %v2108
  %v2110 = vpop.f32.mrb[0].mxu0
  %2111 = vdwg.mxu0
  %v2112 = vpack.c.bf16 %v2062, %v2059
  %v2113 = vpack.c.bf16 %v2109, %v2106
  %v2115 = vunpack.c.l.b16 %v79
  %v2116 = vpack.c.b16 %v2115, %v2115
  %v2117 = vrot.slane %v2116, 2
  %v2119 = vsel %vm248, %v2112, 0
  %v2122 = vsel %vm248, %v2113, 0
  %v2125 = vsel %vm497, %v2117, 0
  %2127 = vmatprep.subr.bf16.mxu0 0
  %2128 = vmatpush1.bf16.msra.mxu0 %v2125
  %2129 = vmatprep.subr.bf16.mxu0 0
  %2130 = vmatpush1.bf16.msra.mxu0 0
  %2131 = vmatprep.subr.bf16.mxu0 0
  %2132 = vmatpush1.bf16.msra.mxu0 0
  %2133 = vmatprep.subr.bf16.mxu0 0
  %2134 = vmatpush1.bf16.msra.mxu0 0
  %2135 = vmatprep.subr.bf16.mxu0 0
  %2136 = vmatpush1.bf16.msra.mxu0 0
  %2137 = vmatprep.subr.bf16.mxu0 0
  %2138 = vmatpush1.bf16.msra.mxu0 0
  %2139 = vmatprep.subr.bf16.mxu0 0
  %2140 = vmatpush1.bf16.msra.mxu0 0
  %2141 = vmatprep.subr.bf16.mxu0 0
  %2142 = vmatpush1.bf16.msra.mxu0 0
  %2143 = vmatprep.subr.bf16.mxu0 0
  %2144 = vmatpush1.bf16.msra.mxu0 0
  %2145 = vmatprep.subr.bf16.mxu0 0
  %2146 = vmatpush1.bf16.msra.mxu0 0
  %2147 = vmatprep.subr.bf16.mxu0 0
  %2148 = vmatpush1.bf16.msra.mxu0 0
  %2149 = vmatprep.subr.bf16.mxu0 0
  %2150 = vmatpush1.bf16.msra.mxu0 0
  %2151 = vmatprep.subr.bf16.mxu0 0
  %2152 = vmatpush1.bf16.msra.mxu0 0
  %2153 = vmatprep.subr.bf16.mxu0 0
  %2154 = vmatpush1.bf16.msra.mxu0 0
  %2155 = vmatprep.subr.bf16.mxu0 0
  %2156 = vmatpush1.bf16.msra.mxu0 0
  %2157 = vmatprep.subr.bf16.mxu0 0
  %2158 = vmatpush1.bf16.msra.mxu0 0
  %2159 = vmatprep.mubr.bf16.mxu0 0
  %2160 = vmatmul.mubr.bf16.gmra.mrb[0].mxu0 %v2119
  %v2161 = vpop.f32.mrb[0].mxu0
  %v2162 = vadd.f32 0.0, %v2161
  %v2163 = vpop.f32.mrb[0].mxu0
  %v2164 = vpop.f32.mrb[0].mxu0
  %v2165 = vadd.f32 0.0, %v2164
  %v2166 = vpop.f32.mrb[0].mxu0
  %2167 = vmatprep.mubr.bf16.mxu0 0
  %2168 = vmatmul.mubr.bf16.gmra.mrb[0].mxu0 %v2122
  %v2169 = vpop.f32.mrb[0].mxu0
  %v2170 = vadd.f32 0.0, %v2169
  %v2171 = vpop.f32.mrb[0].mxu0
  %v2172 = vpop.f32.mrb[0].mxu0
  %v2173 = vadd.f32 0.0, %v2172
  %v2174 = vpop.f32.mrb[0].mxu0
  %2175 = vdwg.mxu0
  %v2176 = vadd.f32 %v1850, %v2162
  %v2177 = vadd.f32 %v1851, %v2165
  %v2178 = vadd.f32 %v1852, %v2170
  %v2179 = vadd.f32 %v1853, %v2173
  %2180 = vrot.lane.b32.xlu0 %v243, 24
  %v2181 = vpop.permute.xlu0 %2180
  %v2183 = vmul.f32 %v144, %v2181
  %v2184 = vmul.f32 %v147, %v2181
  %v2185 = vmul.f32 %v152, %v2181
  %v2186 = vmul.f32 %v155, %v2181
  %2191 = vrot.lane.b32.xlu0 %v2183, 104
  %v2192 = vpop.permute.xlu0 %2191
  %2193 = vrot.lane.b32.xlu0 %v2184, 104
  %v2194 = vpop.permute.xlu0 %2193
  %2195 = vrot.lane.b32.xlu0 %v2185, 104
  %v2196 = vpop.permute.xlu0 %2195
  %2197 = vrot.lane.b32.xlu0 %v2186, 104
  %v2198 = vpop.permute.xlu0 %2197
  %v2203 = vsel %vm248, %v2192, 0.0
  %2204 = vadd.xlane.f32.xlu0 %v2203
  %v2205 = vpop.xlane.xlu0 %2204
  %v2206 = vsel %vm248, %v2194, 0.0
  %2207 = vadd.xlane.f32.xlu0 %v2206
  %v2208 = vpop.xlane.xlu0 %2207
  %v2209 = vsel %vm248, %v2196, 0.0
  %2210 = vadd.xlane.f32.xlu0 %v2209
  %v2211 = vpop.xlane.xlu0 %2210
  %v2212 = vsel %vm248, %v2198, 0.0
  %2213 = vadd.xlane.f32.xlu0 %v2212
  %v2214 = vpop.xlane.xlu0 %2213
  %2215 = vrot.lane.b32.xlu0 %v264, 24
  %v2216 = vpop.permute.xlu0 %2215
  %v2218 = vmul.f32 %v219, %v2216
  %v2219 = vmul.f32 %v222, %v2216
  %v2220 = vmul.f32 %v227, %v2216
  %v2221 = vmul.f32 %v230, %v2216
  %2226 = vrot.lane.b32.xlu0 %v2218, 104
  %v2227 = vpop.permute.xlu0 %2226
  %2228 = vrot.lane.b32.xlu0 %v2219, 104
  %v2229 = vpop.permute.xlu0 %2228
  %2230 = vrot.lane.b32.xlu0 %v2220, 104
  %v2231 = vpop.permute.xlu0 %2230
  %2232 = vrot.lane.b32.xlu0 %v2221, 104
  %v2233 = vpop.permute.xlu0 %2232
  %v2238 = vsel %vm248, %v2227, 0.0
  %2239 = vadd.xlane.f32.xlu0 %v2238
  %v2240 = vpop.xlane.xlu0 %2239
  %v2241 = vsel %vm248, %v2229, 0.0
  %2242 = vadd.xlane.f32.xlu0 %v2241
  %v2243 = vpop.xlane.xlu0 %2242
  %v2244 = vsel %vm248, %v2231, 0.0
  %2245 = vadd.xlane.f32.xlu0 %v2244
  %v2246 = vpop.xlane.xlu0 %2245
  %v2247 = vsel %vm248, %v2233, 0.0
  %2248 = vadd.xlane.f32.xlu0 %v2247
  %v2249 = vpop.xlane.xlu0 %2248
  %v2254 = vlaneseq
  %v2255 = vshrl.u32 %v2254, 7
  %v2256 = vsub.s32 %v286, %v2255
  %v2257 = vrot.slane %v2205, %v2256
  %v2258 = vlaneseq
  %v2259 = vshrl.u32 %v2258, 7
  %v2260 = vsub.s32 %v291, %v2259
  %v2261 = vrot.slane %v2208, %v2260
  %v2262 = vsel %vm296, %v2261, %v2257
  %v2263 = vlaneseq
  %v2264 = vshrl.u32 %v2263, 7
  %v2265 = vsub.s32 %v286, %v2264
  %v2266 = vrot.slane %v2211, %v2265
  %v2267 = vlaneseq
  %v2268 = vshrl.u32 %v2267, 7
  %v2269 = vsub.s32 %v291, %v2268
  %v2270 = vrot.slane %v2214, %v2269
  %v2271 = vsel %vm296, %v2270, %v2266
  %v2272 = vsel %vm308, %v2262, %v2262
  %v2273 = vsel %vm310, %v2262, %v2272
  %v2274 = vsel %vm312, %v2262, %v2273
  %v2275 = vsel %vm314, %v2262, %v2274
  %v2276 = vsel %vm316, %v2262, %v2275
  %v2277 = vsel %vm318, %v2262, %v2276
  %v2278 = vsel %vm308, %v2271, %v2271
  %v2279 = vsel %vm310, %v2271, %v2278
  %v2280 = vsel %vm312, %v2271, %v2279
  %v2281 = vsel %vm314, %v2271, %v2280
  %v2282 = vsel %vm316, %v2271, %v2281
  %v2283 = vsel %vm318, %v2271, %v2282
  %v2286 = vadd.f32 %v2240, %v2277
  %v2287 = vadd.f32 %v2243, %v2277
  %v2288 = vadd.f32 %v2246, %v2283
  %v2289 = vadd.f32 %v2249, %v2283
  %v2290 = vtanh.pop %v2286
  %v2291 = vtanh.pop %v2287
  %v2292 = vtanh.pop %v2288
  %v2293 = vtanh.pop %v2289
  %v2294 = vadd.f32 %v2290, %v341
  %v2295 = vadd.f32 %v2291, %v341
  %v2296 = vadd.f32 %v2292, %v345
  %v2297 = vadd.f32 %v2293, %v345
  %v2298 = vsel %vm352, %v2294, -inf
  %2299 = vmax.xlane.f32.xlu0 %v2298
  %v2300 = vpop.xlane.xlu0 %2299
  %v2301 = vsel %vm352, %v2295, -inf
  %2302 = vmax.xlane.f32.xlu0 %v2301
  %v2303 = vpop.xlane.xlu0 %2302
  %v2304 = vsel %vm352, %v2296, -inf
  %2305 = vmax.xlane.f32.xlu0 %v2304
  %v2306 = vpop.xlane.xlu0 %2305
  %v2307 = vsel %vm352, %v2297, -inf
  %2308 = vmax.xlane.f32.xlu0 %v2307
  %v2309 = vpop.xlane.xlu0 %2308
  %v2310 = vsub.f32 %v2294, %v2300
  %v2311 = vsub.f32 %v2295, %v2303
  %v2312 = vsub.f32 %v2296, %v2306
  %v2313 = vsub.f32 %v2297, %v2309
  %v2314 = vmul.f32 %v2310, 1.442695
  %v2315 = vpow.pop %v2314
  %v2316 = vmul.f32 %v2311, 1.442695
  %v2317 = vpow.pop %v2316
  %v2318 = vmul.f32 %v2312, 1.442695
  %v2319 = vpow.pop %v2318
  %v2320 = vmul.f32 %v2313, 1.442695
  %v2321 = vpow.pop %v2320
  %v2322 = vsel %vm352, %v2315, 0.0
  %2323 = vadd.xlane.f32.xlu0 %v2322
  %v2324 = vpop.xlane.xlu0 %2323
  %v2325 = vsel %vm352, %v2317, 0.0
  %2326 = vadd.xlane.f32.xlu0 %v2325
  %v2327 = vpop.xlane.xlu0 %2326
  %v2328 = vsel %vm352, %v2319, 0.0
  %2329 = vadd.xlane.f32.xlu0 %v2328
  %v2330 = vpop.xlane.xlu0 %2329
  %v2331 = vsel %vm352, %v2321, 0.0
  %2332 = vadd.xlane.f32.xlu0 %v2331
  %v2333 = vpop.xlane.xlu0 %2332
  %v2334 = vrcp.pop %v2324
  %v2335 = vmul.f32 %v2315, %v2334
  %v2336 = vrcp.pop %v2327
  %v2337 = vmul.f32 %v2317, %v2336
  %v2338 = vrcp.pop %v2330
  %v2339 = vmul.f32 %v2319, %v2338
  %v2340 = vrcp.pop %v2333
  %v2341 = vmul.f32 %v2321, %v2340
  %v2342 = vpack.c.bf16 %v2337, %v2335
  %v2343 = vpack.c.bf16 %v2341, %v2339
  %2344 = vrot.lane.b32.xlu0 %v399, 104
  %v2345 = vpop.permute.xlu0 %2344
  %v2348 = vsel %vm352, %v2342, 0
  %2350 = vmatprep.subr.bf16.mxu0 0
  %2351 = vmatpush1.bf16.msra.mxu0 %v2345
  %2352 = vmatprep.subr.bf16.mxu0 0
  %2353 = vmatpush1.bf16.msra.mxu0 0
  %2354 = vmatprep.subr.bf16.mxu0 0
  %2355 = vmatpush1.bf16.msra.mxu0 0
  %2356 = vmatprep.subr.bf16.mxu0 0
  %2357 = vmatpush1.bf16.msra.mxu0 0
  %2358 = vmatprep.subr.bf16.mxu0 0
  %2359 = vmatpush1.bf16.msra.mxu0 0
  %2360 = vmatprep.subr.bf16.mxu0 0
  %2361 = vmatpush1.bf16.msra.mxu0 0
  %2362 = vmatprep.subr.bf16.mxu0 0
  %2363 = vmatpush1.bf16.msra.mxu0 0
  %2364 = vmatprep.subr.bf16.mxu0 0
  %2365 = vmatpush1.bf16.msra.mxu0 0
  %2366 = vmatprep.subr.bf16.mxu0 0
  %2367 = vmatpush1.bf16.msra.mxu0 0
  %2368 = vmatprep.subr.bf16.mxu0 0
  %2369 = vmatpush1.bf16.msra.mxu0 0
  %2370 = vmatprep.subr.bf16.mxu0 0
  %2371 = vmatpush1.bf16.msra.mxu0 0
  %2372 = vmatprep.subr.bf16.mxu0 0
  %2373 = vmatpush1.bf16.msra.mxu0 0
  %2374 = vmatprep.subr.bf16.mxu0 0
  %2375 = vmatpush1.bf16.msra.mxu0 0
  %2376 = vmatprep.subr.bf16.mxu0 0
  %2377 = vmatpush1.bf16.msra.mxu0 0
  %2378 = vmatprep.subr.bf16.mxu0 0
  %2379 = vmatpush1.bf16.msra.mxu0 0
  %2380 = vmatprep.subr.bf16.mxu0 0
  %2381 = vmatpush1.bf16.msra.mxu0 0
  %2382 = vmatprep.mubr.bf16.mxu0 0
  %2383 = vmatmul.mubr.bf16.gmra.mrb[0].mxu0 %v2348
  %v2384 = vpop.f32.mrb[0].mxu0
  %v2385 = vadd.f32 0.0, %v2384
  %v2386 = vpop.f32.mrb[0].mxu0
  %v2387 = vpop.f32.mrb[0].mxu0
  %v2388 = vadd.f32 0.0, %v2387
  %v2389 = vpop.f32.mrb[0].mxu0
  %2390 = vdwg.mxu0
  %2391 = vrot.lane.b32.xlu0 %v400, 104
  %v2392 = vpop.permute.xlu0 %2391
  %v2395 = vsel %vm352, %v2343, 0
  %2397 = vmatprep.subr.bf16.mxu0 0
  %2398 = vmatpush1.bf16.msra.mxu0 %v2392
  %2399 = vmatprep.subr.bf16.mxu0 0
  %2400 = vmatpush1.bf16.msra.mxu0 0
  %2401 = vmatprep.subr.bf16.mxu0 0
  %2402 = vmatpush1.bf16.msra.mxu0 0
  %2403 = vmatprep.subr.bf16.mxu0 0
  %2404 = vmatpush1.bf16.msra.mxu0 0
  %2405 = vmatprep.subr.bf16.mxu0 0
  %2406 = vmatpush1.bf16.msra.mxu0 0
  %2407 = vmatprep.subr.bf16.mxu0 0
  %2408 = vmatpush1.bf16.msra.mxu0 0
  %2409 = vmatprep.subr.bf16.mxu0 0
  %2410 = vmatpush1.bf16.msra.mxu0 0
  %2411 = vmatprep.subr.bf16.mxu0 0
  %2412 = vmatpush1.bf16.msra.mxu0 0
  %2413 = vmatprep.subr.bf16.mxu0 0
  %2414 = vmatpush1.bf16.msra.mxu0 0
  %2415 = vmatprep.subr.bf16.mxu0 0
  %2416 = vmatpush1.bf16.msra.mxu0 0
  %2417 = vmatprep.subr.bf16.mxu0 0
  %2418 = vmatpush1.bf16.msra.mxu0 0
  %2419 = vmatprep.subr.bf16.mxu0 0
  %2420 = vmatpush1.bf16.msra.mxu0 0
  %2421 = vmatprep.subr.bf16.mxu0 0
  %2422 = vmatpush1.bf16.msra.mxu0 0
  %2423 = vmatprep.subr.bf16.mxu0 0
  %2424 = vmatpush1.bf16.msra.mxu0 0
  %2425 = vmatprep.subr.bf16.mxu0 0
  %2426 = vmatpush1.bf16.msra.mxu0 0
  %2427 = vmatprep.subr.bf16.mxu0 0
  %2428 = vmatpush1.bf16.msra.mxu0 0
  %2429 = vmatprep.mubr.bf16.mxu0 0
  %2430 = vmatmul.mubr.bf16.gmra.mrb[0].mxu0 %v2395
  %v2431 = vpop.f32.mrb[0].mxu0
  %v2432 = vadd.f32 0.0, %v2431
  %v2433 = vpop.f32.mrb[0].mxu0
  %v2434 = vpop.f32.mrb[0].mxu0
  %v2435 = vadd.f32 0.0, %v2434
  %v2436 = vpop.f32.mrb[0].mxu0
  %2437 = vdwg.mxu0
  %v2438 = vpack.c.bf16 %v2388, %v2385
  %v2439 = vpack.c.bf16 %v2435, %v2432
  %v2441 = vsel %vm248, %v2438, 0
  %v2444 = vsel %vm248, %v2439, 0
  %v2447 = vsel %vm497, %v80, 0
  %2449 = vmatprep.subr.bf16.mxu0 0
  %2450 = vmatpush1.bf16.msra.mxu0 %v2447
  %2451 = vmatprep.subr.bf16.mxu0 0
  %2452 = vmatpush1.bf16.msra.mxu0 0
  %2453 = vmatprep.subr.bf16.mxu0 0
  %2454 = vmatpush1.bf16.msra.mxu0 0
  %2455 = vmatprep.subr.bf16.mxu0 0
  %2456 = vmatpush1.bf16.msra.mxu0 0
  %2457 = vmatprep.subr.bf16.mxu0 0
  %2458 = vmatpush1.bf16.msra.mxu0 0
  %2459 = vmatprep.subr.bf16.mxu0 0
  %2460 = vmatpush1.bf16.msra.mxu0 0
  %2461 = vmatprep.subr.bf16.mxu0 0
  %2462 = vmatpush1.bf16.msra.mxu0 0
  %2463 = vmatprep.subr.bf16.mxu0 0
  %2464 = vmatpush1.bf16.msra.mxu0 0
  %2465 = vmatprep.subr.bf16.mxu0 0
  %2466 = vmatpush1.bf16.msra.mxu0 0
  %2467 = vmatprep.subr.bf16.mxu0 0
  %2468 = vmatpush1.bf16.msra.mxu0 0
  %2469 = vmatprep.subr.bf16.mxu0 0
  %2470 = vmatpush1.bf16.msra.mxu0 0
  %2471 = vmatprep.subr.bf16.mxu0 0
  %2472 = vmatpush1.bf16.msra.mxu0 0
  %2473 = vmatprep.subr.bf16.mxu0 0
  %2474 = vmatpush1.bf16.msra.mxu0 0
  %2475 = vmatprep.subr.bf16.mxu0 0
  %2476 = vmatpush1.bf16.msra.mxu0 0
  %2477 = vmatprep.subr.bf16.mxu0 0
  %2478 = vmatpush1.bf16.msra.mxu0 0
  %2479 = vmatprep.subr.bf16.mxu0 0
  %2480 = vmatpush1.bf16.msra.mxu0 0
  %2481 = vmatprep.mubr.bf16.mxu0 0
  %2482 = vmatmul.mubr.bf16.gmra.mrb[0].mxu0 %v2441
  %v2483 = vpop.f32.mrb[0].mxu0
  %v2484 = vadd.f32 0.0, %v2483
  %v2485 = vpop.f32.mrb[0].mxu0
  %v2486 = vpop.f32.mrb[0].mxu0
  %v2487 = vadd.f32 0.0, %v2486
  %v2488 = vpop.f32.mrb[0].mxu0
  %2489 = vmatprep.mubr.bf16.mxu0 0
  %2490 = vmatmul.mubr.bf16.gmra.mrb[0].mxu0 %v2444
  %v2491 = vpop.f32.mrb[0].mxu0
  %v2492 = vadd.f32 0.0, %v2491
  %v2493 = vpop.f32.mrb[0].mxu0
  %v2494 = vpop.f32.mrb[0].mxu0
  %v2495 = vadd.f32 0.0, %v2494
  %v2496 = vpop.f32.mrb[0].mxu0
  %2497 = vdwg.mxu0
  %v2498 = vadd.f32 %v2176, %v2484
  %v2499 = vadd.f32 %v2177, %v2487
  %v2500 = vadd.f32 %v2178, %v2492
  %v2501 = vadd.f32 %v2179, %v2495
  %2502 = vrot.lane.b32.xlu0 %v243, 28
  %v2503 = vpop.permute.xlu0 %2502
  %v2505 = vmul.f32 %v144, %v2503
  %v2506 = vmul.f32 %v147, %v2503
  %v2507 = vmul.f32 %v152, %v2503
  %v2508 = vmul.f32 %v155, %v2503
  %2513 = vrot.lane.b32.xlu0 %v2505, 100
  %v2514 = vpop.permute.xlu0 %2513
  %2515 = vrot.lane.b32.xlu0 %v2506, 100
  %v2516 = vpop.permute.xlu0 %2515
  %2517 = vrot.lane.b32.xlu0 %v2507, 100
  %v2518 = vpop.permute.xlu0 %2517
  %2519 = vrot.lane.b32.xlu0 %v2508, 100
  %v2520 = vpop.permute.xlu0 %2519
  %v2525 = vsel %vm248, %v2514, 0.0
  %2526 = vadd.xlane.f32.xlu0 %v2525
  %v2527 = vpop.xlane.xlu0 %2526
  %v2528 = vsel %vm248, %v2516, 0.0
  %2529 = vadd.xlane.f32.xlu0 %v2528
  %v2530 = vpop.xlane.xlu0 %2529
  %v2531 = vsel %vm248, %v2518, 0.0
  %2532 = vadd.xlane.f32.xlu0 %v2531
  %v2533 = vpop.xlane.xlu0 %2532
  %v2534 = vsel %vm248, %v2520, 0.0
  %2535 = vadd.xlane.f32.xlu0 %v2534
  %v2536 = vpop.xlane.xlu0 %2535
  %2537 = vrot.lane.b32.xlu0 %v264, 28
  %v2538 = vpop.permute.xlu0 %2537
  %v2540 = vmul.f32 %v219, %v2538
  %v2541 = vmul.f32 %v222, %v2538
  %v2542 = vmul.f32 %v227, %v2538
  %v2543 = vmul.f32 %v230, %v2538
  %2548 = vrot.lane.b32.xlu0 %v2540, 100
  %v2549 = vpop.permute.xlu0 %2548
  %2550 = vrot.lane.b32.xlu0 %v2541, 100
  %v2551 = vpop.permute.xlu0 %2550
  %2552 = vrot.lane.b32.xlu0 %v2542, 100
  %v2553 = vpop.permute.xlu0 %2552
  %2554 = vrot.lane.b32.xlu0 %v2543, 100
  %v2555 = vpop.permute.xlu0 %2554
  %v2560 = vsel %vm248, %v2549, 0.0
  %2561 = vadd.xlane.f32.xlu0 %v2560
  %v2562 = vpop.xlane.xlu0 %2561
  %v2563 = vsel %vm248, %v2551, 0.0
  %2564 = vadd.xlane.f32.xlu0 %v2563
  %v2565 = vpop.xlane.xlu0 %2564
  %v2566 = vsel %vm248, %v2553, 0.0
  %2567 = vadd.xlane.f32.xlu0 %v2566
  %v2568 = vpop.xlane.xlu0 %2567
  %v2569 = vsel %vm248, %v2555, 0.0
  %2570 = vadd.xlane.f32.xlu0 %v2569
  %v2571 = vpop.xlane.xlu0 %2570
  %v2576 = vlaneseq
  %v2577 = vshrl.u32 %v2576, 7
  %v2578 = vsub.s32 %v286, %v2577
  %v2579 = vrot.slane %v2527, %v2578
  %v2580 = vlaneseq
  %v2581 = vshrl.u32 %v2580, 7
  %v2582 = vsub.s32 %v291, %v2581
  %v2583 = vrot.slane %v2530, %v2582
  %v2584 = vsel %vm296, %v2583, %v2579
  %v2585 = vlaneseq
  %v2586 = vshrl.u32 %v2585, 7
  %v2587 = vsub.s32 %v286, %v2586
  %v2588 = vrot.slane %v2533, %v2587
  %v2589 = vlaneseq
  %v2590 = vshrl.u32 %v2589, 7
  %v2591 = vsub.s32 %v291, %v2590
  %v2592 = vrot.slane %v2536, %v2591
  %v2593 = vsel %vm296, %v2592, %v2588
  %v2594 = vsel %vm308, %v2584, %v2584
  %v2595 = vsel %vm310, %v2584, %v2594
  %v2596 = vsel %vm312, %v2584, %v2595
  %v2597 = vsel %vm314, %v2584, %v2596
  %v2598 = vsel %vm316, %v2584, %v2597
  %v2599 = vsel %vm318, %v2584, %v2598
  %v2600 = vsel %vm308, %v2593, %v2593
  %v2601 = vsel %vm310, %v2593, %v2600
  %v2602 = vsel %vm312, %v2593, %v2601
  %v2603 = vsel %vm314, %v2593, %v2602
  %v2604 = vsel %vm316, %v2593, %v2603
  %v2605 = vsel %vm318, %v2593, %v2604
  %v2608 = vadd.f32 %v2562, %v2599
  %v2609 = vadd.f32 %v2565, %v2599
  %v2610 = vadd.f32 %v2568, %v2605
  %v2611 = vadd.f32 %v2571, %v2605
  %v2612 = vtanh.pop %v2608
  %v2613 = vtanh.pop %v2609
  %v2614 = vtanh.pop %v2610
  %v2615 = vtanh.pop %v2611
  %v2616 = vadd.f32 %v2612, %v341
  %v2617 = vadd.f32 %v2613, %v341
  %v2618 = vadd.f32 %v2614, %v345
  %v2619 = vadd.f32 %v2615, %v345
  %v2620 = vsel %vm352, %v2616, -inf
  %2621 = vmax.xlane.f32.xlu0 %v2620
  %v2622 = vpop.xlane.xlu0 %2621
  %v2623 = vsel %vm352, %v2617, -inf
  %2624 = vmax.xlane.f32.xlu0 %v2623
  %v2625 = vpop.xlane.xlu0 %2624
  %v2626 = vsel %vm352, %v2618, -inf
  %2627 = vmax.xlane.f32.xlu0 %v2626
  %v2628 = vpop.xlane.xlu0 %2627
  %v2629 = vsel %vm352, %v2619, -inf
  %2630 = vmax.xlane.f32.xlu0 %v2629
  %v2631 = vpop.xlane.xlu0 %2630
  %v2632 = vsub.f32 %v2616, %v2622
  %v2633 = vsub.f32 %v2617, %v2625
  %v2634 = vsub.f32 %v2618, %v2628
  %v2635 = vsub.f32 %v2619, %v2631
  %v2636 = vmul.f32 %v2632, 1.442695
  %v2637 = vpow.pop %v2636
  %v2638 = vmul.f32 %v2633, 1.442695
  %v2639 = vpow.pop %v2638
  %v2640 = vmul.f32 %v2634, 1.442695
  %v2641 = vpow.pop %v2640
  %v2642 = vmul.f32 %v2635, 1.442695
  %v2643 = vpow.pop %v2642
  %v2644 = vsel %vm352, %v2637, 0.0
  %2645 = vadd.xlane.f32.xlu0 %v2644
  %v2646 = vpop.xlane.xlu0 %2645
  %v2647 = vsel %vm352, %v2639, 0.0
  %2648 = vadd.xlane.f32.xlu0 %v2647
  %v2649 = vpop.xlane.xlu0 %2648
  %v2650 = vsel %vm352, %v2641, 0.0
  %2651 = vadd.xlane.f32.xlu0 %v2650
  %v2652 = vpop.xlane.xlu0 %2651
  %v2653 = vsel %vm352, %v2643, 0.0
  %2654 = vadd.xlane.f32.xlu0 %v2653
  %v2655 = vpop.xlane.xlu0 %2654
  %v2656 = vrcp.pop %v2646
  %v2657 = vmul.f32 %v2637, %v2656
  %v2658 = vrcp.pop %v2649
  %v2659 = vmul.f32 %v2639, %v2658
  %v2660 = vrcp.pop %v2652
  %v2661 = vmul.f32 %v2641, %v2660
  %v2662 = vrcp.pop %v2655
  %v2663 = vmul.f32 %v2643, %v2662
  %v2664 = vpack.c.bf16 %v2659, %v2657
  %v2665 = vpack.c.bf16 %v2663, %v2661
  %2666 = vrot.lane.b32.xlu0 %v399, 100
  %v2667 = vpop.permute.xlu0 %2666
  %v2670 = vsel %vm352, %v2664, 0
  %2672 = vmatprep.subr.bf16.mxu0 0
  %2673 = vmatpush1.bf16.msra.mxu0 %v2667
  %2674 = vmatprep.subr.bf16.mxu0 0
  %2675 = vmatpush1.bf16.msra.mxu0 0
  %2676 = vmatprep.subr.bf16.mxu0 0
  %2677 = vmatpush1.bf16.msra.mxu0 0
  %2678 = vmatprep.subr.bf16.mxu0 0
  %2679 = vmatpush1.bf16.msra.mxu0 0
  %2680 = vmatprep.subr.bf16.mxu0 0
  %2681 = vmatpush1.bf16.msra.mxu0 0
  %2682 = vmatprep.subr.bf16.mxu0 0
  %2683 = vmatpush1.bf16.msra.mxu0 0
  %2684 = vmatprep.subr.bf16.mxu0 0
  %2685 = vmatpush1.bf16.msra.mxu0 0
  %2686 = vmatprep.subr.bf16.mxu0 0
  %2687 = vmatpush1.bf16.msra.mxu0 0
  %2688 = vmatprep.subr.bf16.mxu0 0
  %2689 = vmatpush1.bf16.msra.mxu0 0
  %2690 = vmatprep.subr.bf16.mxu0 0
  %2691 = vmatpush1.bf16.msra.mxu0 0
  %2692 = vmatprep.subr.bf16.mxu0 0
  %2693 = vmatpush1.bf16.msra.mxu0 0
  %2694 = vmatprep.subr.bf16.mxu0 0
  %2695 = vmatpush1.bf16.msra.mxu0 0
  %2696 = vmatprep.subr.bf16.mxu0 0
  %2697 = vmatpush1.bf16.msra.mxu0 0
  %2698 = vmatprep.subr.bf16.mxu0 0
  %2699 = vmatpush1.bf16.msra.mxu0 0
  %2700 = vmatprep.subr.bf16.mxu0 0
  %2701 = vmatpush1.bf16.msra.mxu0 0
  %2702 = vmatprep.subr.bf16.mxu0 0
  %2703 = vmatpush1.bf16.msra.mxu0 0
  %2704 = vmatprep.mubr.bf16.mxu0 0
  %2705 = vmatmul.mubr.bf16.gmra.mrb[0].mxu0 %v2670
  %v2706 = vpop.f32.mrb[0].mxu0
  %v2707 = vadd.f32 0.0, %v2706
  %v2708 = vpop.f32.mrb[0].mxu0
  %v2709 = vpop.f32.mrb[0].mxu0
  %v2710 = vadd.f32 0.0, %v2709
  %v2711 = vpop.f32.mrb[0].mxu0
  %2712 = vdwg.mxu0
  %2713 = vrot.lane.b32.xlu0 %v400, 100
  %v2714 = vpop.permute.xlu0 %2713
  %v2717 = vsel %vm352, %v2665, 0
  %2719 = vmatprep.subr.bf16.mxu0 0
  %2720 = vmatpush1.bf16.msra.mxu0 %v2714
  %2721 = vmatprep.subr.bf16.mxu0 0
  %2722 = vmatpush1.bf16.msra.mxu0 0
  %2723 = vmatprep.subr.bf16.mxu0 0
  %2724 = vmatpush1.bf16.msra.mxu0 0
  %2725 = vmatprep.subr.bf16.mxu0 0
  %2726 = vmatpush1.bf16.msra.mxu0 0
  %2727 = vmatprep.subr.bf16.mxu0 0
  %2728 = vmatpush1.bf16.msra.mxu0 0
  %2729 = vmatprep.subr.bf16.mxu0 0
  %2730 = vmatpush1.bf16.msra.mxu0 0
  %2731 = vmatprep.subr.bf16.mxu0 0
  %2732 = vmatpush1.bf16.msra.mxu0 0
  %2733 = vmatprep.subr.bf16.mxu0 0
  %2734 = vmatpush1.bf16.msra.mxu0 0
  %2735 = vmatprep.subr.bf16.mxu0 0
  %2736 = vmatpush1.bf16.msra.mxu0 0
  %2737 = vmatprep.subr.bf16.mxu0 0
  %2738 = vmatpush1.bf16.msra.mxu0 0
  %2739 = vmatprep.subr.bf16.mxu0 0
  %2740 = vmatpush1.bf16.msra.mxu0 0
  %2741 = vmatprep.subr.bf16.mxu0 0
  %2742 = vmatpush1.bf16.msra.mxu0 0
  %2743 = vmatprep.subr.bf16.mxu0 0
  %2744 = vmatpush1.bf16.msra.mxu0 0
  %2745 = vmatprep.subr.bf16.mxu0 0
  %2746 = vmatpush1.bf16.msra.mxu0 0
  %2747 = vmatprep.subr.bf16.mxu0 0
  %2748 = vmatpush1.bf16.msra.mxu0 0
  %2749 = vmatprep.subr.bf16.mxu0 0
  %2750 = vmatpush1.bf16.msra.mxu0 0
  %2751 = vmatprep.mubr.bf16.mxu0 0
  %2752 = vmatmul.mubr.bf16.gmra.mrb[0].mxu0 %v2717
  %v2753 = vpop.f32.mrb[0].mxu0
  %v2754 = vadd.f32 0.0, %v2753
  %v2755 = vpop.f32.mrb[0].mxu0
  %v2756 = vpop.f32.mrb[0].mxu0
  %v2757 = vadd.f32 0.0, %v2756
  %v2758 = vpop.f32.mrb[0].mxu0
  %2759 = vdwg.mxu0
  %v2760 = vpack.c.bf16 %v2710, %v2707
  %v2761 = vpack.c.bf16 %v2757, %v2754
  %v2763 = vunpack.c.l.b16 %v80
  %v2764 = vpack.c.b16 %v2763, %v2763
  %v2765 = vrot.slane %v2764, 2
  %v2767 = vsel %vm248, %v2760, 0
  %v2770 = vsel %vm248, %v2761, 0
  %v2773 = vsel %vm497, %v2765, 0
  %2775 = vmatprep.subr.bf16.mxu0 0
  %2776 = vmatpush1.bf16.msra.mxu0 %v2773
  %2777 = vmatprep.subr.bf16.mxu0 0
  %2778 = vmatpush1.bf16.msra.mxu0 0
  %2779 = vmatprep.subr.bf16.mxu0 0
  %2780 = vmatpush1.bf16.msra.mxu0 0
  %2781 = vmatprep.subr.bf16.mxu0 0
  %2782 = vmatpush1.bf16.msra.mxu0 0
  %2783 = vmatprep.subr.bf16.mxu0 0
  %2784 = vmatpush1.bf16.msra.mxu0 0
  %2785 = vmatprep.subr.bf16.mxu0 0
  %2786 = vmatpush1.bf16.msra.mxu0 0
  %2787 = vmatprep.subr.bf16.mxu0 0
  %2788 = vmatpush1.bf16.msra.mxu0 0
  %2789 = vmatprep.subr.bf16.mxu0 0
  %2790 = vmatpush1.bf16.msra.mxu0 0
  %2791 = vmatprep.subr.bf16.mxu0 0
  %2792 = vmatpush1.bf16.msra.mxu0 0
  %2793 = vmatprep.subr.bf16.mxu0 0
  %2794 = vmatpush1.bf16.msra.mxu0 0
  %2795 = vmatprep.subr.bf16.mxu0 0
  %2796 = vmatpush1.bf16.msra.mxu0 0
  %2797 = vmatprep.subr.bf16.mxu0 0
  %2798 = vmatpush1.bf16.msra.mxu0 0
  %2799 = vmatprep.subr.bf16.mxu0 0
  %2800 = vmatpush1.bf16.msra.mxu0 0
  %2801 = vmatprep.subr.bf16.mxu0 0
  %2802 = vmatpush1.bf16.msra.mxu0 0
  %2803 = vmatprep.subr.bf16.mxu0 0
  %2804 = vmatpush1.bf16.msra.mxu0 0
  %2805 = vmatprep.subr.bf16.mxu0 0
  %2806 = vmatpush1.bf16.msra.mxu0 0
  %2807 = vmatprep.mubr.bf16.mxu0 0
  %2808 = vmatmul.mubr.bf16.gmra.mrb[0].mxu0 %v2767
  %v2809 = vpop.f32.mrb[0].mxu0
  %v2810 = vadd.f32 0.0, %v2809
  %v2811 = vpop.f32.mrb[0].mxu0
  %v2812 = vpop.f32.mrb[0].mxu0
  %v2813 = vadd.f32 0.0, %v2812
  %v2814 = vpop.f32.mrb[0].mxu0
  %2815 = vmatprep.mubr.bf16.mxu0 0
  %2816 = vmatmul.mubr.bf16.gmra.mrb[0].mxu0 %v2770
  %v2817 = vpop.f32.mrb[0].mxu0
  %v2818 = vadd.f32 0.0, %v2817
  %v2819 = vpop.f32.mrb[0].mxu0
  %v2820 = vpop.f32.mrb[0].mxu0
  %v2821 = vadd.f32 0.0, %v2820
  %v2822 = vpop.f32.mrb[0].mxu0
  %2823 = vdwg.mxu0
  %v2824 = vadd.f32 %v2498, %v2810
  %v2825 = vadd.f32 %v2499, %v2813
  %v2826 = vadd.f32 %v2500, %v2818
  %v2827 = vadd.f32 %v2501, %v2821
  %v2828 = vpack.c.bf16 %v2825, %v2824
  %v2829 = vpack.c.bf16 %v2827, %v2826
  %v2830 = vld [vmem:[%s12] sm:$0xf]
  %v2831 = vld [vmem:[%s12 + $0x4] sm:$0xf]
  %v2832 = vld [vmem:[%s13] sm:$0x1]
  %v2834 = vlaneseq
  %v2835 = vshrl.u32 %v2834, 7
  %v2836 = vsub.s32 0, %v2835
  %v2837 = vrot.slane %v2832, %v2836
  %v2841 = vunpack.c.l.b16 %v2830
  %v2842 = vunpack.c.l.b16 %v2831
  %v2843 = vpack.c.b16 %v2842, %v2841
  %v2846 = vsel %vm352, %v2828, 0
  %v2849 = vsel %vm352, %v2829, 0
  %2851 = vmatprep.subr.bf16.mxu0 0
  %2852 = vmatpush1.bf16.msra.mxu0 %v2843
  %2853 = vmatprep.subr.bf16.mxu0 0
  %2854 = vmatpush1.bf16.msra.mxu0 0
  %2855 = vmatprep.subr.bf16.mxu0 0
  %2856 = vmatpush1.bf16.msra.mxu0 0
  %2857 = vmatprep.subr.bf16.mxu0 0
  %2858 = vmatpush1.bf16.msra.mxu0 0
  %2859 = vmatprep.subr.bf16.mxu0 0
  %2860 = vmatpush1.bf16.msra.mxu0 0
  %2861 = vmatprep.subr.bf16.mxu0 0
  %2862 = vmatpush1.bf16.msra.mxu0 0
  %2863 = vmatprep.subr.bf16.mxu0 0
  %2864 = vmatpush1.bf16.msra.mxu0 0
  %2865 = vmatprep.subr.bf16.mxu0 0
  %2866 = vmatpush1.bf16.msra.mxu0 0
  %2867 = vmatprep.subr.bf16.mxu0 0
  %2868 = vmatpush1.bf16.msra.mxu0 0
  %2869 = vmatprep.subr.bf16.mxu0 0
  %2870 = vmatpush1.bf16.msra.mxu0 0
  %2871 = vmatprep.subr.bf16.mxu0 0
  %2872 = vmatpush1.bf16.msra.mxu0 0
  %2873 = vmatprep.subr.bf16.mxu0 0
  %2874 = vmatpush1.bf16.msra.mxu0 0
  %2875 = vmatprep.subr.bf16.mxu0 0
  %2876 = vmatpush1.bf16.msra.mxu0 0
  %2877 = vmatprep.subr.bf16.mxu0 0
  %2878 = vmatpush1.bf16.msra.mxu0 0
  %2879 = vmatprep.subr.bf16.mxu0 0
  %2880 = vmatpush1.bf16.msra.mxu0 0
  %2881 = vmatprep.subr.bf16.mxu0 0
  %2882 = vmatpush1.bf16.msra.mxu0 0
  %2883 = vmatprep.mubr.bf16.mxu0 0
  %2884 = vmatmul.mubr.bf16.gmra.mrb[0].mxu0 %v2846
  %v2885 = vpop.f32.mrb[0].mxu0
  %v2886 = vadd.f32 %v2837, %v2885
  %v2887 = vpop.f32.mrb[0].mxu0
  %v2888 = vpop.f32.mrb[0].mxu0
  %v2889 = vadd.f32 %v2837, %v2888
  %v2890 = vpop.f32.mrb[0].mxu0
  %2891 = vmatprep.mubr.bf16.mxu0 0
  %2892 = vmatmul.mubr.bf16.gmra.mrb[0].mxu0 %v2849
  %v2893 = vpop.f32.mrb[0].mxu0
  %v2894 = vadd.f32 %v2837, %v2893
  %v2895 = vpop.f32.mrb[0].mxu0
  %v2896 = vpop.f32.mrb[0].mxu0
  %v2897 = vadd.f32 %v2837, %v2896
  %v2898 = vpop.f32.mrb[0].mxu0
  %2899 = vdwg.mxu0
  %v2900 = vmax.f32 %v2886, 0.0
  %v2901 = vmax.f32 %v2889, 0.0
  %v2902 = vmax.f32 %v2894, 0.0
  %v2903 = vmax.f32 %v2897, 0.0
  %v2904 = vpack.c.bf16 %v2901, %v2900
  %v2905 = vpack.c.bf16 %v2903, %v2902
  %v2906 = vld [vmem:[%s14] sm:$0xf]
  %v2907 = vld [vmem:[%s14 + $0x4] sm:$0xf]
  %v2908 = vld [vmem:[%s15] sm:$0x1]
  %v2910 = vlaneseq
  %v2911 = vshrl.u32 %v2910, 7
  %v2912 = vsub.s32 0, %v2911
  %v2913 = vrot.slane %v2908, %v2912
  %v2917 = vunpack.c.l.b16 %v2906
  %v2918 = vunpack.c.l.b16 %v2907
  %v2919 = vpack.c.b16 %v2918, %v2917
  %v2922 = vsel %vm352, %v2904, 0
  %v2925 = vsel %vm352, %v2905, 0
  %2927 = vmatprep.subr.bf16.mxu0 0
  %2928 = vmatpush1.bf16.msra.mxu0 %v2919
  %2929 = vmatprep.subr.bf16.mxu0 0
  %2930 = vmatpush1.bf16.msra.mxu0 0
  %2931 = vmatprep.subr.bf16.mxu0 0
  %2932 = vmatpush1.bf16.msra.mxu0 0
  %2933 = vmatprep.subr.bf16.mxu0 0
  %2934 = vmatpush1.bf16.msra.mxu0 0
  %2935 = vmatprep.subr.bf16.mxu0 0
  %2936 = vmatpush1.bf16.msra.mxu0 0
  %2937 = vmatprep.subr.bf16.mxu0 0
  %2938 = vmatpush1.bf16.msra.mxu0 0
  %2939 = vmatprep.subr.bf16.mxu0 0
  %2940 = vmatpush1.bf16.msra.mxu0 0
  %2941 = vmatprep.subr.bf16.mxu0 0
  %2942 = vmatpush1.bf16.msra.mxu0 0
  %2943 = vmatprep.subr.bf16.mxu0 0
  %2944 = vmatpush1.bf16.msra.mxu0 0
  %2945 = vmatprep.subr.bf16.mxu0 0
  %2946 = vmatpush1.bf16.msra.mxu0 0
  %2947 = vmatprep.subr.bf16.mxu0 0
  %2948 = vmatpush1.bf16.msra.mxu0 0
  %2949 = vmatprep.subr.bf16.mxu0 0
  %2950 = vmatpush1.bf16.msra.mxu0 0
  %2951 = vmatprep.subr.bf16.mxu0 0
  %2952 = vmatpush1.bf16.msra.mxu0 0
  %2953 = vmatprep.subr.bf16.mxu0 0
  %2954 = vmatpush1.bf16.msra.mxu0 0
  %2955 = vmatprep.subr.bf16.mxu0 0
  %2956 = vmatpush1.bf16.msra.mxu0 0
  %2957 = vmatprep.subr.bf16.mxu0 0
  %2958 = vmatpush1.bf16.msra.mxu0 0
  %2959 = vmatprep.mubr.bf16.mxu0 0
  %2960 = vmatmul.mubr.bf16.gmra.mrb[0].mxu0 %v2922
  %v2961 = vpop.f32.mrb[0].mxu0
  %v2962 = vadd.f32 %v2913, %v2961
  %v2963 = vpop.f32.mrb[0].mxu0
  %v2964 = vpop.f32.mrb[0].mxu0
  %v2965 = vadd.f32 %v2913, %v2964
  %v2966 = vpop.f32.mrb[0].mxu0
  %2967 = vmatprep.mubr.bf16.mxu0 0
  %2968 = vmatmul.mubr.bf16.gmra.mrb[0].mxu0 %v2925
  %v2969 = vpop.f32.mrb[0].mxu0
  %v2970 = vadd.f32 %v2913, %v2969
  %v2971 = vpop.f32.mrb[0].mxu0
  %v2972 = vpop.f32.mrb[0].mxu0
  %v2973 = vadd.f32 %v2913, %v2972
  %v2974 = vpop.f32.mrb[0].mxu0
  %2975 = vdwg.mxu0
  %2976 = vst.msk [vmem:[%s16] sm:$0xff] %vm352, %v2962
  %2977 = vst.msk [vmem:[%s16 + $0x8] sm:$0xff] %vm352, %v2965
  %2978 = vst.msk [vmem:[%s16 + $0x10] sm:$0xff] %vm352, %v2970
  %2979 = vst.msk [vmem:[%s16 + $0x18] sm:$0xff] %vm352, %v2973
  %v2980 = vld [vmem:[%s3] sm:$0xff]
  %v2981 = vld [vmem:[%s3 + $0x8] sm:$0xff]
  %v2982 = vld [vmem:[%s3 + $0x10] sm:$0xff]
  %v2983 = vld [vmem:[%s3 + $0x18] sm:$0xff]
  %2985 = vset.pattern.permute.xlu0 0
  %2986 = vperm.xlu0 %2985, %v2980
  %v2987 = vpop.permute.xlu0 %2986
  %2990 = vset.pattern.permute.xlu0 0
  %2991 = vperm.xlu0 %2990, %v2981
  %v2992 = vpop.permute.xlu0 %2991
  %2995 = vset.pattern.permute.xlu0 0
  %2996 = vperm.xlu0 %2995, %v2982
  %v2997 = vpop.permute.xlu0 %2996
  %3000 = vset.pattern.permute.xlu0 0
  %3001 = vperm.xlu0 %3000, %v2983
  %v3002 = vpop.permute.xlu0 %3001
  %v3004 = vmul.f32 %v2962, %v2987
  %v3005 = vmul.f32 %v2965, %v2992
  %v3006 = vmul.f32 %v2970, %v2997
  %v3007 = vmul.f32 %v2973, %v3002
  %v3008 = vsel %vm352, %v3004, 0.0
  %v3009 = vsel %vm352, %v3005, 0.0
  %v3010 = vadd.f32 %v3008, %v3009
  %v3011 = vrot.slane %v3010, 4
  %v3012 = vadd.f32 %v3010, %v3011
  %v3013 = vrot.slane %v3012, 2
  %v3014 = vadd.f32 %v3012, %v3013
  %v3015 = vrot.slane %v3014, 1
  %v3016 = vadd.f32 %v3014, %v3015
  %v3017 = vsel %vm352, %v3006, 0.0
  %v3018 = vsel %vm352, %v3007, 0.0
  %v3019 = vadd.f32 %v3017, %v3018
  %v3020 = vrot.slane %v3019, 4
  %v3021 = vadd.f32 %v3019, %v3020
  %v3022 = vrot.slane %v3021, 2
  %v3023 = vadd.f32 %v3021, %v3022
  %v3024 = vrot.slane %v3023, 1
  %v3025 = vadd.f32 %v3023, %v3024
  %v3026 = vld [vmem:[%s4] sm:$0x3]
  %3028 = vset.pattern.permute.xlu0 0
  %3029 = vperm.xlu0 %3028, %v3026
  %v3030 = vpop.permute.xlu0 %3029
  %v3031 = vrot.slane %v3030, 1
  %v3034 = vrcp.pop %v3030
  %v3035 = vmul.f32 %v3016, %v3034
  %v3036 = vrcp.pop %v3031
  %v3037 = vmul.f32 %v3025, %v3036
  %v3040 = vrot.slane %v3037, 7
  %v3041 = vsel %vm307, %v3040, %v3035
  %vm3043 = vcmask 123904
  %3044 = vst.msk [vmem:[%s17] sm:$0x3] %vm3043, %v3041
  // Predicated region
  $region66: #{aen_bert_forward.6} parent=0 // pred_check
    _
  $region67: #{aen_bert_forward.6} parent=0 // pred_check_branch
    %3046 = sbr.rel (0) target = $region69
  $region68: #{aen_bert_forward.6} parent=0 // pred_region
    _
  $region69: #{aen_bert_forward.6} parent=0 // pred_fallthru
    _
  // Predicated region
  $region70: #{aen_bert_forward.6} parent=0 // pred_check
    _
  $region71: #{aen_bert_forward.6} parent=0 // pred_check_branch
    %3048 = sbr.rel (0) target = $region73
  $region72: #{aen_bert_forward.6} parent=0 // pred_region
    _
  $region73: #{aen_bert_forward.6} parent=0 // pred_fallthru
    _
  // Predicated region
  $region74: #{aen_bert_forward.6} parent=0 // pred_check
    _
  $region75: #{aen_bert_forward.6} parent=0 // pred_check_branch
    %3050 = sbr.rel (0) target = $region77
  $region76: #{aen_bert_forward.6} parent=0 // pred_region
    _
  $region77: #{aen_bert_forward.6} parent=0 // pred_fallthru
    _
  // Predicated region
  $region78: #{aen_bert_forward.6} parent=0 // pred_check
    _
  $region79: #{aen_bert_forward.6} parent=0 // pred_check_branch
    %3052 = sbr.rel (0) target = $region81
  $region80: #{aen_bert_forward.6} parent=0 // pred_region
    _
  $region81: #{aen_bert_forward.6} parent=0 // pred_fallthru
    _

</llo_original>
